<compile_context>
chip_gen: v7x
topology: tpu7x:2x2x1
jax: 0.10.0
libtpu: 0.0.40
codegen_flags: <defaults>
</compile_context>

<pallas_src>
import functools

import jax
import jax.numpy as jnp
from jax.experimental import pallas as pl
from jax.experimental.pallas import tpu as pltpu


D_IN = 34
H1, H2, H3 = 128, 256, 64
H3P = 128          # layer-3 per-gate width padded to one 128-lane vreg
N_CLASSES = 2
BN_EPS = 1e-5


# ----------------------------------------------------------------------------
# Fused kernel: lstm1 -> lstm2 -> lstm3 -> (BN folded into) FC.
# Gate order follows PyTorch: [i, f, g, o].
# ----------------------------------------------------------------------------
def fused_skel_lstm_kernel(
        x_ref,
        w1x_ref, w1h_ref, b1_ref,
        w2x_ref, w2h_ref, b2_ref,
        w3x_ref, w3h_ref, b3_ref,
        wfc_ref, bfc_ref,
        out_ref,
        h1_all, h2_all,
        *, T, B):
    f32 = jnp.float32

    def recurrence(gx_all, w_h, H, all_h_ref):
        """Per-timestep recurrence. gx_all: (T*B, 4H) = X@W_ih^T + bias,
        precomputed outside the loop. Only h @ W_hh^T stays on the serial path."""
        h = jnp.zeros((B, H), f32)
        c = jnp.zeros((B, H), f32)
        for t in range(T):                      # T is small & static: full unroll
            gates = gx_all[t * B:(t + 1) * B, :] + jnp.dot(
                h, w_h, preferred_element_type=f32)          # (B, 4H)
            i = jax.nn.sigmoid(gates[:, 0 * H:1 * H])
            f = jax.nn.sigmoid(gates[:, 1 * H:2 * H])
            g = jnp.tanh(gates[:, 2 * H:3 * H])
            o = jax.nn.sigmoid(gates[:, 3 * H:4 * H])
            c = f * c + i * g
            h = o * jnp.tanh(c)
            if all_h_ref is not None:
                all_h_ref[t * B:(t + 1) * B, :] = h           # stays in VMEM
        return h

    x = x_ref[...]                                            # (T*B, 34)

    # ---- layer 1 (34 -> 128): hoisted input projection, one matmul M=T*B ----
    gx1 = jnp.dot(x, w1x_ref[...], preferred_element_type=f32) + b1_ref[...]
    recurrence(gx1, w1h_ref[...], H1, h1_all)

    # ---- layer 2 (128 -> 256) ----
    gx2 = jnp.dot(h1_all[...], w2x_ref[...],
                  preferred_element_type=f32) + b2_ref[...]
    recurrence(gx2, w2h_ref[...], H2, h2_all)

    # ---- layer 3 (256 -> 64), gates padded to 128-lane blocks.
    #      Padded lanes: gates==0 -> i=f=o=0.5, g=0 -> c,h stay exactly 0. ----
    gx3 = jnp.dot(h2_all[...], w3x_ref[...],
                  preferred_element_type=f32) + b3_ref[...]
    h3_last = recurrence(gx3, w3h_ref[...], H3P, None)        # (B, 128) padded

    # ---- head: dropout is identity (eval); eval-mode BN folded into FC ----
    # TODO(synk): training-mode dropout and batch-statistics BatchNorm not implemented.
    out_ref[...] = jnp.dot(h3_last, wfc_ref[...],
                           preferred_element_type=f32) + bfc_ref[...]


# ----------------------------------------------------------------------------
# One-time parameter preparation: transposes, fused biases, layer-3 lane
# padding, and folding eval-mode BatchNorm into the FC layer.
# ----------------------------------------------------------------------------
def prepare_params(params):
    prep = {}
    for li in (1, 2):
        p = params[f"lstm{li}"]
        prep[f"w{li}x"] = jnp.transpose(p["w_ih"])                  # (D_in, 4H)
        prep[f"w{li}h"] = jnp.transpose(p["w_hh"])                  # (H,   4H)
        prep[f"b{li}"] = (p["b_ih"] + p["b_hh"]).reshape(1, -1)     # (1,   4H)

    # Layer 3: pad each H=64 gate block to 128 lanes (zeros in the padding).
    p = params["lstm3"]
    w_ih_t = jnp.transpose(p["w_ih"])                               # (256, 256)
    w_hh_t = jnp.transpose(p["w_hh"])                               # (64,  256)
    b3 = p["b_ih"] + p["b_hh"]                                      # (256,)

    def pad_gate_cols(w):                                           # (.., 4*64) -> (.., 4*128)
        rows = w.shape[0]
        return jnp.pad(w.reshape(rows, 4, H3),
                       ((0, 0), (0, 0), (0, H3P - H3))).reshape(rows, 4 * H3P)

    prep["w3x"] = pad_gate_cols(w_ih_t)                             # (256, 512)
    prep["w3h"] = jnp.pad(pad_gate_cols(w_hh_t),
                          ((0, H3P - H3), (0, 0)))                  # (128, 512)
    prep["b3"] = jnp.pad(b3.reshape(4, H3),
                         ((0, 0), (0, H3P - H3))).reshape(1, 4 * H3P)

    # Fold eval-mode BN into FC:  y = (h*scale + shift) @ W^T + b
    bn, fc = params["bn"], params["fc"]
    inv_std = jax.lax.rsqrt(bn["running_var"] + BN_EPS)             # (64,)
    scale = bn["gamma"] * inv_std                                   # (64,)
    shift = bn["beta"] - bn["running_mean"] * scale                 # (64,)
    wfc_t = jnp.transpose(fc["w"])                                  # (64, 2)
    w_fold = wfc_t * scale[:, None]                                 # (64, 2)
    b_fold = fc["b"] + shift @ wfc_t                                # (2,)
    prep["wfc"] = jnp.pad(w_fold, ((0, H3P - H3), (0, 0)))          # (128, 2)
    prep["bfc"] = b_fold.reshape(1, N_CLASSES)
    return prep


@jax.jit
def skel_lstm_forward(prep, x):
    """x: (B, T, 34) batch_first, like the PyTorch module. Returns (B, 2)."""
    B, T, D = x.shape
    x_tm = jnp.transpose(x, (1, 0, 2)).reshape(T * B, D).astype(jnp.float32)

    operands = (x_tm,
                prep["w1x"], prep["w1h"], prep["b1"],
                prep["w2x"], prep["w2h"], prep["b2"],
                prep["w3x"], prep["w3h"], prep["b3"],
                prep["wfc"], prep["bfc"])

    def full(a):
        nd = a.ndim
        return pl.BlockSpec(a.shape, lambda: (0,) * nd)

    return pl.pallas_call(
        functools.partial(fused_skel_lstm_kernel, T=T, B=B),
        out_shape=jax.ShapeDtypeStruct((B, N_CLASSES), jnp.float32),
        in_specs=[full(a) for a in operands],
        out_specs=pl.BlockSpec((B, N_CLASSES), lambda: (0, 0)),
        scratch_shapes=[
            pltpu.VMEM((T * B, H1), jnp.float32),   # all h1 timesteps (VMEM only)
            pltpu.VMEM((T * B, H2), jnp.float32),   # all h2 timesteps (VMEM only)
        ],
    )(*operands)


# ----------------------------------------------------------------------------
# Parameter init (PyTorch-shaped) and a pure-JAX reference for validation.
# ----------------------------------------------------------------------------
def init_params(key):
    sizes = [(D_IN, H1), (H1, H2), (H2, H3)]
    params = {}
    keys = jax.random.split(key, 16)
    k = 0
    for li, (d_in, h) in enumerate(sizes, start=1):
        s = 1.0 / jnp.sqrt(h)
        params[f"lstm{li}"] = dict(
            w_ih=jax.random.uniform(keys[k + 0], (4 * h, d_in), jnp.float32, -s, s),
            w_hh=jax.random.uniform(keys[k + 1], (4 * h, h), jnp.float32, -s, s),
            b_ih=jax.random.uniform(keys[k + 2], (4 * h,), jnp.float32, -s, s),
            b_hh=jax.random.uniform(keys[k + 3], (4 * h,), jnp.float32, -s, s),
        )
        k += 4
    params["bn"] = dict(
        gamma=jnp.ones((H3,), jnp.float32),
        beta=jnp.zeros((H3,), jnp.float32),
        running_mean=jnp.zeros((H3,), jnp.float32),
        running_var=jnp.ones((H3,), jnp.float32),
    )
    s = 1.0 / jnp.sqrt(float(H3))
    params["fc"] = dict(
        w=jax.random.uniform(keys[k], (N_CLASSES, H3), jnp.float32, -s, s),
        b=jax.random.uniform(keys[k + 1], (N_CLASSES,), jnp.float32, -s, s),
    )
    return params


def reference_forward(params, x):
    """Pure-JAX reference of the PyTorch forward (eval mode)."""
    def lstm(x_tm, p):
        H = p["w_hh"].shape[1]
        T_, B_ = x_tm.shape[0], x_tm.shape[1]
        h = jnp.zeros((B_, H), jnp.float32)
        c = jnp.zeros((B_, H), jnp.float32)
        outs = []
        for t in range(T_):
            gates = (x_tm[t] @ p["w_ih"].T + h @ p["w_hh"].T
                     + p["b_ih"] + p["b_hh"])
            i = jax.nn.sigmoid(gates[:, 0 * H:1 * H])
            f = jax.nn.sigmoid(gates[:, 1 * H:2 * H])
            g = jnp.tanh(gates[:, 2 * H:3 * H])
            o = jax.nn.sigmoid(gates[:, 3 * H:4 * H])
            c = f * c + i * g
            h = o * jnp.tanh(c)
            outs.append(h)
        return jnp.stack(outs, 0)

    x_tm = jnp.transpose(x, (1, 0, 2)).astype(jnp.float32)
    h1 = lstm(x_tm, params["lstm1"])
    h2 = lstm(h1, params["lstm2"])
    h3 = lstm(h2, params["lstm3"])
    h_last = h3[-1]
    bn = params["bn"]
    normed = ((h_last - bn["running_mean"])
              * jax.lax.rsqrt(bn["running_var"] + BN_EPS)
              * bn["gamma"] + bn["beta"])
    return normed @ params["fc"]["w"].T + params["fc"]["b"]


if __name__ == "__main__":
    key = jax.random.PRNGKey(0)
    pkey, xkey = jax.random.split(key)
    params = init_params(pkey)
    prep = prepare_params(params)

    B, T, D = 2, 8, D_IN
    x = jax.random.normal(xkey, (B, T, D), dtype=jnp.float32)

    out = skel_lstm_forward(prep, x)
    out = jax.block_until_ready(out)
    assert out.shape == (B, N_CLASSES), out.shape

    ref = jax.block_until_ready(reference_forward(params, x))
    max_err = float(jnp.max(jnp.abs(out - ref)))
    assert max_err < 1e-2, f"mismatch vs reference: {max_err}"

    print("KERNEL_OK")
</pallas_src>

<mosaic_0001>
module attributes {stable_mosaic.version = 11 : i64} {
  func.func @fused_skel_lstm_kernel(%arg0: memref<16x34xf32, #tpu.memory_space<vmem>>, %arg1: memref<34x512xf32, #tpu.memory_space<vmem>>, %arg2: memref<128x512xf32, #tpu.memory_space<vmem>>, %arg3: memref<1x512xf32, #tpu.memory_space<vmem>>, %arg4: memref<128x1024xf32, #tpu.memory_space<vmem>>, %arg5: memref<256x1024xf32, #tpu.memory_space<vmem>>, %arg6: memref<1x1024xf32, #tpu.memory_space<vmem>>, %arg7: memref<256x512xf32, #tpu.memory_space<vmem>>, %arg8: memref<128x512xf32, #tpu.memory_space<vmem>>, %arg9: memref<1x512xf32, #tpu.memory_space<vmem>>, %arg10: memref<128x2xf32, #tpu.memory_space<vmem>>, %arg11: memref<1x2xf32, #tpu.memory_space<vmem>>, %arg12: memref<2x2xf32, #tpu.memory_space<vmem>>, %arg13: memref<16x128xf32, #tpu.memory_space<vmem>>, %arg14: memref<16x256xf32, #tpu.memory_space<vmem>>) attributes {dimension_semantics = [], scalar_prefetch = 0 : i64, scratch_operands = 2 : i64, tpu.core_type = #tpu.core_type<tc>} {
    %c0 = arith.constant 0 : index
    %c0_0 = arith.constant 0 : index
    %0 = vector.load %arg0[%c0, %c0_0] : memref<16x34xf32, #tpu.memory_space<vmem>>, vector<16x34xf32>
    %c0_1 = arith.constant 0 : index
    %c0_2 = arith.constant 0 : index
    %1 = vector.load %arg1[%c0_1, %c0_2] : memref<34x512xf32, #tpu.memory_space<vmem>>, vector<34x512xf32>
    %cst = arith.constant dense<0.000000e+00> : vector<16x512xf32>
    %2 = tpu.matmul %0, %1, %cst {dimension_numbers = #tpu.dot_dimension_numbers<[1], [0], [0], [1], [0, 0, 1, 1], [], []>} : vector<16x34xf32>, vector<34x512xf32>, vector<16x512xf32> -> vector<16x512xf32>
    %c0_3 = arith.constant 0 : index
    %c0_4 = arith.constant 0 : index
    %3 = vector.load %arg3[%c0_3, %c0_4] : memref<1x512xf32, #tpu.memory_space<vmem>>, vector<1x512xf32>
    %4 = vector.broadcast %3 : vector<1x512xf32> to vector<16x512xf32>
    %5 = arith.addf %2, %4 : vector<16x512xf32>
    %c0_5 = arith.constant 0 : index
    %c0_6 = arith.constant 0 : index
    %6 = vector.load %arg2[%c0_5, %c0_6] : memref<128x512xf32, #tpu.memory_space<vmem>>, vector<128x512xf32>
    %cst_7 = arith.constant 0.000000e+00 : f32
    %7 = vector.broadcast %cst_7 : f32 to vector<2x128xf32>
    %cst_8 = arith.constant 0.000000e+00 : f32
    %8 = vector.broadcast %cst_8 : f32 to vector<2x128xf32>
    %9 = vector.extract_strided_slice %5 {offsets = [0, 0], sizes = [2, 512], strides = [1, 1]} : vector<16x512xf32> to vector<2x512xf32>
    %cst_9 = arith.constant dense<0.000000e+00> : vector<2x512xf32>
    %10 = tpu.matmul %7, %6, %cst_9 {dimension_numbers = #tpu.dot_dimension_numbers<[1], [0], [0], [1], [0, 0, 1, 1], [], []>} : vector<2x128xf32>, vector<128x512xf32>, vector<2x512xf32> -> vector<2x512xf32>
    %11 = arith.addf %9, %10 : vector<2x512xf32>
    %12 = vector.extract_strided_slice %11 {offsets = [0, 0], sizes = [2, 128], strides = [1, 1]} : vector<2x512xf32> to vector<2x128xf32>
    %13 = arith.negf %12 : vector<2x128xf32>
    %14 = math.exp %13 : vector<2x128xf32>
    %cst_10 = arith.constant 1.000000e+00 : f32
    %15 = vector.broadcast %cst_10 : f32 to vector<2x128xf32>
    %16 = arith.addf %15, %14 : vector<2x128xf32>
    %17 = arith.divf %15, %16 : vector<2x128xf32>
    %18 = vector.extract_strided_slice %11 {offsets = [0, 128], sizes = [2, 128], strides = [1, 1]} : vector<2x512xf32> to vector<2x128xf32>
    %19 = arith.negf %18 : vector<2x128xf32>
    %20 = math.exp %19 : vector<2x128xf32>
    %cst_11 = arith.constant 1.000000e+00 : f32
    %21 = vector.broadcast %cst_11 : f32 to vector<2x128xf32>
    %22 = arith.addf %21, %20 : vector<2x128xf32>
    %23 = arith.divf %21, %22 : vector<2x128xf32>
    %24 = vector.extract_strided_slice %11 {offsets = [0, 256], sizes = [2, 128], strides = [1, 1]} : vector<2x512xf32> to vector<2x128xf32>
    %25 = math.tanh %24 : vector<2x128xf32>
    %26 = vector.extract_strided_slice %11 {offsets = [0, 384], sizes = [2, 128], strides = [1, 1]} : vector<2x512xf32> to vector<2x128xf32>
    %27 = arith.negf %26 : vector<2x128xf32>
    %28 = math.exp %27 : vector<2x128xf32>
    %cst_12 = arith.constant 1.000000e+00 : f32
    %29 = vector.broadcast %cst_12 : f32 to vector<2x128xf32>
    %30 = arith.addf %29, %28 : vector<2x128xf32>
    %31 = arith.divf %29, %30 : vector<2x128xf32>
    %32 = arith.mulf %23, %8 : vector<2x128xf32>
    %33 = arith.mulf %17, %25 : vector<2x128xf32>
    %34 = arith.addf %32, %33 : vector<2x128xf32>
    %35 = math.tanh %34 : vector<2x128xf32>
    %36 = arith.mulf %31, %35 : vector<2x128xf32>
    %c0_13 = arith.constant 0 : index
    %c0_14 = arith.constant 0 : index
    %37 = vector.load %arg13[%c0_13, %c0_14] : memref<16x128xf32, #tpu.memory_space<vmem>>, vector<2x128xf32>
    tpu.vector_store %arg13[%c0_13, %c0_14], %36 {strides = array<i32>} : memref<16x128xf32, #tpu.memory_space<vmem>>, vector<2x128xf32>,
    %38 = vector.extract_strided_slice %5 {offsets = [2, 0], sizes = [2, 512], strides = [1, 1]} : vector<16x512xf32> to vector<2x512xf32>
    %cst_15 = arith.constant dense<0.000000e+00> : vector<2x512xf32>
    %39 = tpu.matmul %36, %6, %cst_15 {dimension_numbers = #tpu.dot_dimension_numbers<[1], [0], [0], [1], [0, 0, 1, 1], [], []>} : vector<2x128xf32>, vector<128x512xf32>, vector<2x512xf32> -> vector<2x512xf32>
    %40 = arith.addf %38, %39 : vector<2x512xf32>
    %41 = vector.extract_strided_slice %40 {offsets = [0, 0], sizes = [2, 128], strides = [1, 1]} : vector<2x512xf32> to vector<2x128xf32>
    %42 = arith.negf %41 : vector<2x128xf32>
    %43 = math.exp %42 : vector<2x128xf32>
    %cst_16 = arith.constant 1.000000e+00 : f32
    %44 = vector.broadcast %cst_16 : f32 to vector<2x128xf32>
    %45 = arith.addf %44, %43 : vector<2x128xf32>
    %46 = arith.divf %44, %45 : vector<2x128xf32>
    %47 = vector.extract_strided_slice %40 {offsets = [0, 128], sizes = [2, 128], strides = [1, 1]} : vector<2x512xf32> to vector<2x128xf32>
    %48 = arith.negf %47 : vector<2x128xf32>
    %49 = math.exp %48 : vector<2x128xf32>
    %cst_17 = arith.constant 1.000000e+00 : f32
    %50 = vector.broadcast %cst_17 : f32 to vector<2x128xf32>
    %51 = arith.addf %50, %49 : vector<2x128xf32>
    %52 = arith.divf %50, %51 : vector<2x128xf32>
    %53 = vector.extract_strided_slice %40 {offsets = [0, 256], sizes = [2, 128], strides = [1, 1]} : vector<2x512xf32> to vector<2x128xf32>
    %54 = math.tanh %53 : vector<2x128xf32>
    %55 = vector.extract_strided_slice %40 {offsets = [0, 384], sizes = [2, 128], strides = [1, 1]} : vector<2x512xf32> to vector<2x128xf32>
    %56 = arith.negf %55 : vector<2x128xf32>
    %57 = math.exp %56 : vector<2x128xf32>
    %cst_18 = arith.constant 1.000000e+00 : f32
    %58 = vector.broadcast %cst_18 : f32 to vector<2x128xf32>
    %59 = arith.addf %58, %57 : vector<2x128xf32>
    %60 = arith.divf %58, %59 : vector<2x128xf32>
    %61 = arith.mulf %52, %34 : vector<2x128xf32>
    %62 = arith.mulf %46, %54 : vector<2x128xf32>
    %63 = arith.addf %61, %62 : vector<2x128xf32>
    %64 = math.tanh %63 : vector<2x128xf32>
    %65 = arith.mulf %60, %64 : vector<2x128xf32>
    %c2 = arith.constant 2 : index
    %c0_19 = arith.constant 0 : index
    %66 = vector.load %arg13[%c2, %c0_19] : memref<16x128xf32, #tpu.memory_space<vmem>>, vector<2x128xf32>
    tpu.vector_store %arg13[%c2, %c0_19], %65 {strides = array<i32>} : memref<16x128xf32, #tpu.memory_space<vmem>>, vector<2x128xf32>,
    %67 = vector.extract_strided_slice %5 {offsets = [4, 0], sizes = [2, 512], strides = [1, 1]} : vector<16x512xf32> to vector<2x512xf32>
    %cst_20 = arith.constant dense<0.000000e+00> : vector<2x512xf32>
    %68 = tpu.matmul %65, %6, %cst_20 {dimension_numbers = #tpu.dot_dimension_numbers<[1], [0], [0], [1], [0, 0, 1, 1], [], []>} : vector<2x128xf32>, vector<128x512xf32>, vector<2x512xf32> -> vector<2x512xf32>
    %69 = arith.addf %67, %68 : vector<2x512xf32>
    %70 = vector.extract_strided_slice %69 {offsets = [0, 0], sizes = [2, 128], strides = [1, 1]} : vector<2x512xf32> to vector<2x128xf32>
    %71 = arith.negf %70 : vector<2x128xf32>
    %72 = math.exp %71 : vector<2x128xf32>
    %cst_21 = arith.constant 1.000000e+00 : f32
    %73 = vector.broadcast %cst_21 : f32 to vector<2x128xf32>
    %74 = arith.addf %73, %72 : vector<2x128xf32>
    %75 = arith.divf %73, %74 : vector<2x128xf32>
    %76 = vector.extract_strided_slice %69 {offsets = [0, 128], sizes = [2, 128], strides = [1, 1]} : vector<2x512xf32> to vector<2x128xf32>
    %77 = arith.negf %76 : vector<2x128xf32>
    %78 = math.exp %77 : vector<2x128xf32>
    %cst_22 = arith.constant 1.000000e+00 : f32
    %79 = vector.broadcast %cst_22 : f32 to vector<2x128xf32>
    %80 = arith.addf %79, %78 : vector<2x128xf32>
    %81 = arith.divf %79, %80 : vector<2x128xf32>
    %82 = vector.extract_strided_slice %69 {offsets = [0, 256], sizes = [2, 128], strides = [1, 1]} : vector<2x512xf32> to vector<2x128xf32>
    %83 = math.tanh %82 : vector<2x128xf32>
    %84 = vector.extract_strided_slice %69 {offsets = [0, 384], sizes = [2, 128], strides = [1, 1]} : vector<2x512xf32> to vector<2x128xf32>
    %85 = arith.negf %84 : vector<2x128xf32>
    %86 = math.exp %85 : vector<2x128xf32>
    %cst_23 = arith.constant 1.000000e+00 : f32
    %87 = vector.broadcast %cst_23 : f32 to vector<2x128xf32>
    %88 = arith.addf %87, %86 : vector<2x128xf32>
    %89 = arith.divf %87, %88 : vector<2x128xf32>
    %90 = arith.mulf %81, %63 : vector<2x128xf32>
    %91 = arith.mulf %75, %83 : vector<2x128xf32>
    %92 = arith.addf %90, %91 : vector<2x128xf32>
    %93 = math.tanh %92 : vector<2x128xf32>
    %94 = arith.mulf %89, %93 : vector<2x128xf32>
    %c4 = arith.constant 4 : index
    %c0_24 = arith.constant 0 : index
    %95 = vector.load %arg13[%c4, %c0_24] : memref<16x128xf32, #tpu.memory_space<vmem>>, vector<2x128xf32>
    tpu.vector_store %arg13[%c4, %c0_24], %94 {strides = array<i32>} : memref<16x128xf32, #tpu.memory_space<vmem>>, vector<2x128xf32>,
    %96 = vector.extract_strided_slice %5 {offsets = [6, 0], sizes = [2, 512], strides = [1, 1]} : vector<16x512xf32> to vector<2x512xf32>
    %cst_25 = arith.constant dense<0.000000e+00> : vector<2x512xf32>
    %97 = tpu.matmul %94, %6, %cst_25 {dimension_numbers = #tpu.dot_dimension_numbers<[1], [0], [0], [1], [0, 0, 1, 1], [], []>} : vector<2x128xf32>, vector<128x512xf32>, vector<2x512xf32> -> vector<2x512xf32>
    %98 = arith.addf %96, %97 : vector<2x512xf32>
    %99 = vector.extract_strided_slice %98 {offsets = [0, 0], sizes = [2, 128], strides = [1, 1]} : vector<2x512xf32> to vector<2x128xf32>
    %100 = arith.negf %99 : vector<2x128xf32>
    %101 = math.exp %100 : vector<2x128xf32>
    %cst_26 = arith.constant 1.000000e+00 : f32
    %102 = vector.broadcast %cst_26 : f32 to vector<2x128xf32>
    %103 = arith.addf %102, %101 : vector<2x128xf32>
    %104 = arith.divf %102, %103 : vector<2x128xf32>
    %105 = vector.extract_strided_slice %98 {offsets = [0, 128], sizes = [2, 128], strides = [1, 1]} : vector<2x512xf32> to vector<2x128xf32>
    %106 = arith.negf %105 : vector<2x128xf32>
    %107 = math.exp %106 : vector<2x128xf32>
    %cst_27 = arith.constant 1.000000e+00 : f32
    %108 = vector.broadcast %cst_27 : f32 to vector<2x128xf32>
    %109 = arith.addf %108, %107 : vector<2x128xf32>
    %110 = arith.divf %108, %109 : vector<2x128xf32>
    %111 = vector.extract_strided_slice %98 {offsets = [0, 256], sizes = [2, 128], strides = [1, 1]} : vector<2x512xf32> to vector<2x128xf32>
    %112 = math.tanh %111 : vector<2x128xf32>
    %113 = vector.extract_strided_slice %98 {offsets = [0, 384], sizes = [2, 128], strides = [1, 1]} : vector<2x512xf32> to vector<2x128xf32>
    %114 = arith.negf %113 : vector<2x128xf32>
    %115 = math.exp %114 : vector<2x128xf32>
    %cst_28 = arith.constant 1.000000e+00 : f32
    %116 = vector.broadcast %cst_28 : f32 to vector<2x128xf32>
    %117 = arith.addf %116, %115 : vector<2x128xf32>
    %118 = arith.divf %116, %117 : vector<2x128xf32>
    %119 = arith.mulf %110, %92 : vector<2x128xf32>
    %120 = arith.mulf %104, %112 : vector<2x128xf32>
    %121 = arith.addf %119, %120 : vector<2x128xf32>
    %122 = math.tanh %121 : vector<2x128xf32>
    %123 = arith.mulf %118, %122 : vector<2x128xf32>
    %c6 = arith.constant 6 : index
    %c0_29 = arith.constant 0 : index
    %124 = vector.load %arg13[%c6, %c0_29] : memref<16x128xf32, #tpu.memory_space<vmem>>, vector<2x128xf32>
    tpu.vector_store %arg13[%c6, %c0_29], %123 {strides = array<i32>} : memref<16x128xf32, #tpu.memory_space<vmem>>, vector<2x128xf32>,
    %125 = vector.extract_strided_slice %5 {offsets = [8, 0], sizes = [2, 512], strides = [1, 1]} : vector<16x512xf32> to vector<2x512xf32>
    %cst_30 = arith.constant dense<0.000000e+00> : vector<2x512xf32>
    %126 = tpu.matmul %123, %6, %cst_30 {dimension_numbers = #tpu.dot_dimension_numbers<[1], [0], [0], [1], [0, 0, 1, 1], [], []>} : vector<2x128xf32>, vector<128x512xf32>, vector<2x512xf32> -> vector<2x512xf32>
    %127 = arith.addf %125, %126 : vector<2x512xf32>
    %128 = vector.extract_strided_slice %127 {offsets = [0, 0], sizes = [2, 128], strides = [1, 1]} : vector<2x512xf32> to vector<2x128xf32>
    %129 = arith.negf %128 : vector<2x128xf32>
    %130 = math.exp %129 : vector<2x128xf32>
    %cst_31 = arith.constant 1.000000e+00 : f32
    %131 = vector.broadcast %cst_31 : f32 to vector<2x128xf32>
    %132 = arith.addf %131, %130 : vector<2x128xf32>
    %133 = arith.divf %131, %132 : vector<2x128xf32>
    %134 = vector.extract_strided_slice %127 {offsets = [0, 128], sizes = [2, 128], strides = [1, 1]} : vector<2x512xf32> to vector<2x128xf32>
    %135 = arith.negf %134 : vector<2x128xf32>
    %136 = math.exp %135 : vector<2x128xf32>
    %cst_32 = arith.constant 1.000000e+00 : f32
    %137 = vector.broadcast %cst_32 : f32 to vector<2x128xf32>
    %138 = arith.addf %137, %136 : vector<2x128xf32>
    %139 = arith.divf %137, %138 : vector<2x128xf32>
    %140 = vector.extract_strided_slice %127 {offsets = [0, 256], sizes = [2, 128], strides = [1, 1]} : vector<2x512xf32> to vector<2x128xf32>
    %141 = math.tanh %140 : vector<2x128xf32>
    %142 = vector.extract_strided_slice %127 {offsets = [0, 384], sizes = [2, 128], strides = [1, 1]} : vector<2x512xf32> to vector<2x128xf32>
    %143 = arith.negf %142 : vector<2x128xf32>
    %144 = math.exp %143 : vector<2x128xf32>
    %cst_33 = arith.constant 1.000000e+00 : f32
    %145 = vector.broadcast %cst_33 : f32 to vector<2x128xf32>
    %146 = arith.addf %145, %144 : vector<2x128xf32>
    %147 = arith.divf %145, %146 : vector<2x128xf32>
    %148 = arith.mulf %139, %121 : vector<2x128xf32>
    %149 = arith.mulf %133, %141 : vector<2x128xf32>
    %150 = arith.addf %148, %149 : vector<2x128xf32>
    %151 = math.tanh %150 : vector<2x128xf32>
    %152 = arith.mulf %147, %151 : vector<2x128xf32>
    %c8 = arith.constant 8 : index
    %c0_34 = arith.constant 0 : index
    %153 = vector.load %arg13[%c8, %c0_34] : memref<16x128xf32, #tpu.memory_space<vmem>>, vector<2x128xf32>
    tpu.vector_store %arg13[%c8, %c0_34], %152 {strides = array<i32>} : memref<16x128xf32, #tpu.memory_space<vmem>>, vector<2x128xf32>,
    %154 = vector.extract_strided_slice %5 {offsets = [10, 0], sizes = [2, 512], strides = [1, 1]} : vector<16x512xf32> to vector<2x512xf32>
    %cst_35 = arith.constant dense<0.000000e+00> : vector<2x512xf32>
    %155 = tpu.matmul %152, %6, %cst_35 {dimension_numbers = #tpu.dot_dimension_numbers<[1], [0], [0], [1], [0, 0, 1, 1], [], []>} : vector<2x128xf32>, vector<128x512xf32>, vector<2x512xf32> -> vector<2x512xf32>
    %156 = arith.addf %154, %155 : vector<2x512xf32>
    %157 = vector.extract_strided_slice %156 {offsets = [0, 0], sizes = [2, 128], strides = [1, 1]} : vector<2x512xf32> to vector<2x128xf32>
    %158 = arith.negf %157 : vector<2x128xf32>
    %159 = math.exp %158 : vector<2x128xf32>
    %cst_36 = arith.constant 1.000000e+00 : f32
    %160 = vector.broadcast %cst_36 : f32 to vector<2x128xf32>
    %161 = arith.addf %160, %159 : vector<2x128xf32>
    %162 = arith.divf %160, %161 : vector<2x128xf32>
    %163 = vector.extract_strided_slice %156 {offsets = [0, 128], sizes = [2, 128], strides = [1, 1]} : vector<2x512xf32> to vector<2x128xf32>
    %164 = arith.negf %163 : vector<2x128xf32>
    %165 = math.exp %164 : vector<2x128xf32>
    %cst_37 = arith.constant 1.000000e+00 : f32
    %166 = vector.broadcast %cst_37 : f32 to vector<2x128xf32>
    %167 = arith.addf %166, %165 : vector<2x128xf32>
    %168 = arith.divf %166, %167 : vector<2x128xf32>
    %169 = vector.extract_strided_slice %156 {offsets = [0, 256], sizes = [2, 128], strides = [1, 1]} : vector<2x512xf32> to vector<2x128xf32>
    %170 = math.tanh %169 : vector<2x128xf32>
    %171 = vector.extract_strided_slice %156 {offsets = [0, 384], sizes = [2, 128], strides = [1, 1]} : vector<2x512xf32> to vector<2x128xf32>
    %172 = arith.negf %171 : vector<2x128xf32>
    %173 = math.exp %172 : vector<2x128xf32>
    %cst_38 = arith.constant 1.000000e+00 : f32
    %174 = vector.broadcast %cst_38 : f32 to vector<2x128xf32>
    %175 = arith.addf %174, %173 : vector<2x128xf32>
    %176 = arith.divf %174, %175 : vector<2x128xf32>
    %177 = arith.mulf %168, %150 : vector<2x128xf32>
    %178 = arith.mulf %162, %170 : vector<2x128xf32>
    %179 = arith.addf %177, %178 : vector<2x128xf32>
    %180 = math.tanh %179 : vector<2x128xf32>
    %181 = arith.mulf %176, %180 : vector<2x128xf32>
    %c10 = arith.constant 10 : index
    %c0_39 = arith.constant 0 : index
    %182 = vector.load %arg13[%c10, %c0_39] : memref<16x128xf32, #tpu.memory_space<vmem>>, vector<2x128xf32>
    tpu.vector_store %arg13[%c10, %c0_39], %181 {strides = array<i32>} : memref<16x128xf32, #tpu.memory_space<vmem>>, vector<2x128xf32>,
    %183 = vector.extract_strided_slice %5 {offsets = [12, 0], sizes = [2, 512], strides = [1, 1]} : vector<16x512xf32> to vector<2x512xf32>
    %cst_40 = arith.constant dense<0.000000e+00> : vector<2x512xf32>
    %184 = tpu.matmul %181, %6, %cst_40 {dimension_numbers = #tpu.dot_dimension_numbers<[1], [0], [0], [1], [0, 0, 1, 1], [], []>} : vector<2x128xf32>, vector<128x512xf32>, vector<2x512xf32> -> vector<2x512xf32>
    %185 = arith.addf %183, %184 : vector<2x512xf32>
    %186 = vector.extract_strided_slice %185 {offsets = [0, 0], sizes = [2, 128], strides = [1, 1]} : vector<2x512xf32> to vector<2x128xf32>
    %187 = arith.negf %186 : vector<2x128xf32>
    %188 = math.exp %187 : vector<2x128xf32>
    %cst_41 = arith.constant 1.000000e+00 : f32
    %189 = vector.broadcast %cst_41 : f32 to vector<2x128xf32>
    %190 = arith.addf %189, %188 : vector<2x128xf32>
    %191 = arith.divf %189, %190 : vector<2x128xf32>
    %192 = vector.extract_strided_slice %185 {offsets = [0, 128], sizes = [2, 128], strides = [1, 1]} : vector<2x512xf32> to vector<2x128xf32>
    %193 = arith.negf %192 : vector<2x128xf32>
    %194 = math.exp %193 : vector<2x128xf32>
    %cst_42 = arith.constant 1.000000e+00 : f32
    %195 = vector.broadcast %cst_42 : f32 to vector<2x128xf32>
    %196 = arith.addf %195, %194 : vector<2x128xf32>
    %197 = arith.divf %195, %196 : vector<2x128xf32>
    %198 = vector.extract_strided_slice %185 {offsets = [0, 256], sizes = [2, 128], strides = [1, 1]} : vector<2x512xf32> to vector<2x128xf32>
    %199 = math.tanh %198 : vector<2x128xf32>
    %200 = vector.extract_strided_slice %185 {offsets = [0, 384], sizes = [2, 128], strides = [1, 1]} : vector<2x512xf32> to vector<2x128xf32>
    %201 = arith.negf %200 : vector<2x128xf32>
    %202 = math.exp %201 : vector<2x128xf32>
    %cst_43 = arith.constant 1.000000e+00 : f32
    %203 = vector.broadcast %cst_43 : f32 to vector<2x128xf32>
    %204 = arith.addf %203, %202 : vector<2x128xf32>
    %205 = arith.divf %203, %204 : vector<2x128xf32>
    %206 = arith.mulf %197, %179 : vector<2x128xf32>
    %207 = arith.mulf %191, %199 : vector<2x128xf32>
    %208 = arith.addf %206, %207 : vector<2x128xf32>
    %209 = math.tanh %208 : vector<2x128xf32>
    %210 = arith.mulf %205, %209 : vector<2x128xf32>
    %c12 = arith.constant 12 : index
    %c0_44 = arith.constant 0 : index
    %211 = vector.load %arg13[%c12, %c0_44] : memref<16x128xf32, #tpu.memory_space<vmem>>, vector<2x128xf32>
    tpu.vector_store %arg13[%c12, %c0_44], %210 {strides = array<i32>} : memref<16x128xf32, #tpu.memory_space<vmem>>, vector<2x128xf32>,
    %212 = vector.extract_strided_slice %5 {offsets = [14, 0], sizes = [2, 512], strides = [1, 1]} : vector<16x512xf32> to vector<2x512xf32>
    %cst_45 = arith.constant dense<0.000000e+00> : vector<2x512xf32>
    %213 = tpu.matmul %210, %6, %cst_45 {dimension_numbers = #tpu.dot_dimension_numbers<[1], [0], [0], [1], [0, 0, 1, 1], [], []>} : vector<2x128xf32>, vector<128x512xf32>, vector<2x512xf32> -> vector<2x512xf32>
    %214 = arith.addf %212, %213 : vector<2x512xf32>
    %215 = vector.extract_strided_slice %214 {offsets = [0, 0], sizes = [2, 128], strides = [1, 1]} : vector<2x512xf32> to vector<2x128xf32>
    %216 = arith.negf %215 : vector<2x128xf32>
    %217 = math.exp %216 : vector<2x128xf32>
    %cst_46 = arith.constant 1.000000e+00 : f32
    %218 = vector.broadcast %cst_46 : f32 to vector<2x128xf32>
    %219 = arith.addf %218, %217 : vector<2x128xf32>
    %220 = arith.divf %218, %219 : vector<2x128xf32>
    %221 = vector.extract_strided_slice %214 {offsets = [0, 128], sizes = [2, 128], strides = [1, 1]} : vector<2x512xf32> to vector<2x128xf32>
    %222 = arith.negf %221 : vector<2x128xf32>
    %223 = math.exp %222 : vector<2x128xf32>
    %cst_47 = arith.constant 1.000000e+00 : f32
    %224 = vector.broadcast %cst_47 : f32 to vector<2x128xf32>
    %225 = arith.addf %224, %223 : vector<2x128xf32>
    %226 = arith.divf %224, %225 : vector<2x128xf32>
    %227 = vector.extract_strided_slice %214 {offsets = [0, 256], sizes = [2, 128], strides = [1, 1]} : vector<2x512xf32> to vector<2x128xf32>
    %228 = math.tanh %227 : vector<2x128xf32>
    %229 = vector.extract_strided_slice %214 {offsets = [0, 384], sizes = [2, 128], strides = [1, 1]} : vector<2x512xf32> to vector<2x128xf32>
    %230 = arith.negf %229 : vector<2x128xf32>
    %231 = math.exp %230 : vector<2x128xf32>
    %cst_48 = arith.constant 1.000000e+00 : f32
    %232 = vector.broadcast %cst_48 : f32 to vector<2x128xf32>
    %233 = arith.addf %232, %231 : vector<2x128xf32>
    %234 = arith.divf %232, %233 : vector<2x128xf32>
    %235 = arith.mulf %226, %208 : vector<2x128xf32>
    %236 = arith.mulf %220, %228 : vector<2x128xf32>
    %237 = arith.addf %235, %236 : vector<2x128xf32>
    %238 = math.tanh %237 : vector<2x128xf32>
    %239 = arith.mulf %234, %238 : vector<2x128xf32>
    %c14 = arith.constant 14 : index
    %c0_49 = arith.constant 0 : index
    %240 = vector.load %arg13[%c14, %c0_49] : memref<16x128xf32, #tpu.memory_space<vmem>>, vector<2x128xf32>
    tpu.vector_store %arg13[%c14, %c0_49], %239 {strides = array<i32>} : memref<16x128xf32, #tpu.memory_space<vmem>>, vector<2x128xf32>,
    %c0_50 = arith.constant 0 : index
    %c0_51 = arith.constant 0 : index
    %241 = vector.load %arg13[%c0_50, %c0_51] : memref<16x128xf32, #tpu.memory_space<vmem>>, vector<16x128xf32>
    %c0_52 = arith.constant 0 : index
    %c0_53 = arith.constant 0 : index
    %242 = vector.load %arg4[%c0_52, %c0_53] : memref<128x1024xf32, #tpu.memory_space<vmem>>, vector<128x1024xf32>
    %cst_54 = arith.constant dense<0.000000e+00> : vector<16x1024xf32>
    %243 = tpu.matmul %241, %242, %cst_54 {dimension_numbers = #tpu.dot_dimension_numbers<[1], [0], [0], [1], [0, 0, 1, 1], [], []>} : vector<16x128xf32>, vector<128x1024xf32>, vector<16x1024xf32> -> vector<16x1024xf32>
    %c0_55 = arith.constant 0 : index
    %c0_56 = arith.constant 0 : index
    %244 = vector.load %arg6[%c0_55, %c0_56] : memref<1x1024xf32, #tpu.memory_space<vmem>>, vector<1x1024xf32>
    %245 = vector.broadcast %244 : vector<1x1024xf32> to vector<16x1024xf32>
    %246 = arith.addf %243, %245 : vector<16x1024xf32>
    %c0_57 = arith.constant 0 : index
    %c0_58 = arith.constant 0 : index
    %247 = vector.load %arg5[%c0_57, %c0_58] : memref<256x1024xf32, #tpu.memory_space<vmem>>, vector<256x1024xf32>
    %cst_59 = arith.constant 0.000000e+00 : f32
    %248 = vector.broadcast %cst_59 : f32 to vector<2x256xf32>
    %cst_60 = arith.constant 0.000000e+00 : f32
    %249 = vector.broadcast %cst_60 : f32 to vector<2x256xf32>
    %250 = vector.extract_strided_slice %246 {offsets = [0, 0], sizes = [2, 1024], strides = [1, 1]} : vector<16x1024xf32> to vector<2x1024xf32>
    %cst_61 = arith.constant dense<0.000000e+00> : vector<2x1024xf32>
    %251 = tpu.matmul %248, %247, %cst_61 {dimension_numbers = #tpu.dot_dimension_numbers<[1], [0], [0], [1], [0, 0, 1, 1], [], []>} : vector<2x256xf32>, vector<256x1024xf32>, vector<2x1024xf32> -> vector<2x1024xf32>
    %252 = arith.addf %250, %251 : vector<2x1024xf32>
    %253 = vector.extract_strided_slice %252 {offsets = [0, 0], sizes = [2, 256], strides = [1, 1]} : vector<2x1024xf32> to vector<2x256xf32>
    %254 = arith.negf %253 : vector<2x256xf32>
    %255 = math.exp %254 : vector<2x256xf32>
    %cst_62 = arith.constant 1.000000e+00 : f32
    %256 = vector.broadcast %cst_62 : f32 to vector<2x256xf32>
    %257 = arith.addf %256, %255 : vector<2x256xf32>
    %258 = arith.divf %256, %257 : vector<2x256xf32>
    %259 = vector.extract_strided_slice %252 {offsets = [0, 256], sizes = [2, 256], strides = [1, 1]} : vector<2x1024xf32> to vector<2x256xf32>
    %260 = arith.negf %259 : vector<2x256xf32>
    %261 = math.exp %260 : vector<2x256xf32>
    %cst_63 = arith.constant 1.000000e+00 : f32
    %262 = vector.broadcast %cst_63 : f32 to vector<2x256xf32>
    %263 = arith.addf %262, %261 : vector<2x256xf32>
    %264 = arith.divf %262, %263 : vector<2x256xf32>
    %265 = vector.extract_strided_slice %252 {offsets = [0, 512], sizes = [2, 256], strides = [1, 1]} : vector<2x1024xf32> to vector<2x256xf32>
    %266 = math.tanh %265 : vector<2x256xf32>
    %267 = vector.extract_strided_slice %252 {offsets = [0, 768], sizes = [2, 256], strides = [1, 1]} : vector<2x1024xf32> to vector<2x256xf32>
    %268 = arith.negf %267 : vector<2x256xf32>
    %269 = math.exp %268 : vector<2x256xf32>
    %cst_64 = arith.constant 1.000000e+00 : f32
    %270 = vector.broadcast %cst_64 : f32 to vector<2x256xf32>
    %271 = arith.addf %270, %269 : vector<2x256xf32>
    %272 = arith.divf %270, %271 : vector<2x256xf32>
    %273 = arith.mulf %264, %249 : vector<2x256xf32>
    %274 = arith.mulf %258, %266 : vector<2x256xf32>
    %275 = arith.addf %273, %274 : vector<2x256xf32>
    %276 = math.tanh %275 : vector<2x256xf32>
    %277 = arith.mulf %272, %276 : vector<2x256xf32>
    %c0_65 = arith.constant 0 : index
    %c0_66 = arith.constant 0 : index
    %278 = vector.load %arg14[%c0_65, %c0_66] : memref<16x256xf32, #tpu.memory_space<vmem>>, vector<2x256xf32>
    tpu.vector_store %arg14[%c0_65, %c0_66], %277 {strides = array<i32>} : memref<16x256xf32, #tpu.memory_space<vmem>>, vector<2x256xf32>,
    %279 = vector.extract_strided_slice %246 {offsets = [2, 0], sizes = [2, 1024], strides = [1, 1]} : vector<16x1024xf32> to vector<2x1024xf32>
    %cst_67 = arith.constant dense<0.000000e+00> : vector<2x1024xf32>
    %280 = tpu.matmul %277, %247, %cst_67 {dimension_numbers = #tpu.dot_dimension_numbers<[1], [0], [0], [1], [0, 0, 1, 1], [], []>} : vector<2x256xf32>, vector<256x1024xf32>, vector<2x1024xf32> -> vector<2x1024xf32>
    %281 = arith.addf %279, %280 : vector<2x1024xf32>
    %282 = vector.extract_strided_slice %281 {offsets = [0, 0], sizes = [2, 256], strides = [1, 1]} : vector<2x1024xf32> to vector<2x256xf32>
    %283 = arith.negf %282 : vector<2x256xf32>
    %284 = math.exp %283 : vector<2x256xf32>
    %cst_68 = arith.constant 1.000000e+00 : f32
    %285 = vector.broadcast %cst_68 : f32 to vector<2x256xf32>
    %286 = arith.addf %285, %284 : vector<2x256xf32>
    %287 = arith.divf %285, %286 : vector<2x256xf32>
    %288 = vector.extract_strided_slice %281 {offsets = [0, 256], sizes = [2, 256], strides = [1, 1]} : vector<2x1024xf32> to vector<2x256xf32>
    %289 = arith.negf %288 : vector<2x256xf32>
    %290 = math.exp %289 : vector<2x256xf32>
    %cst_69 = arith.constant 1.000000e+00 : f32
    %291 = vector.broadcast %cst_69 : f32 to vector<2x256xf32>
    %292 = arith.addf %291, %290 : vector<2x256xf32>
    %293 = arith.divf %291, %292 : vector<2x256xf32>
    %294 = vector.extract_strided_slice %281 {offsets = [0, 512], sizes = [2, 256], strides = [1, 1]} : vector<2x1024xf32> to vector<2x256xf32>
    %295 = math.tanh %294 : vector<2x256xf32>
    %296 = vector.extract_strided_slice %281 {offsets = [0, 768], sizes = [2, 256], strides = [1, 1]} : vector<2x1024xf32> to vector<2x256xf32>
    %297 = arith.negf %296 : vector<2x256xf32>
    %298 = math.exp %297 : vector<2x256xf32>
    %cst_70 = arith.constant 1.000000e+00 : f32
    %299 = vector.broadcast %cst_70 : f32 to vector<2x256xf32>
    %300 = arith.addf %299, %298 : vector<2x256xf32>
    %301 = arith.divf %299, %300 : vector<2x256xf32>
    %302 = arith.mulf %293, %275 : vector<2x256xf32>
    %303 = arith.mulf %287, %295 : vector<2x256xf32>
    %304 = arith.addf %302, %303 : vector<2x256xf32>
    %305 = math.tanh %304 : vector<2x256xf32>
    %306 = arith.mulf %301, %305 : vector<2x256xf32>
    %c2_71 = arith.constant 2 : index
    %c0_72 = arith.constant 0 : index
    %307 = vector.load %arg14[%c2_71, %c0_72] : memref<16x256xf32, #tpu.memory_space<vmem>>, vector<2x256xf32>
    tpu.vector_store %arg14[%c2_71, %c0_72], %306 {strides = array<i32>} : memref<16x256xf32, #tpu.memory_space<vmem>>, vector<2x256xf32>,
    %308 = vector.extract_strided_slice %246 {offsets = [4, 0], sizes = [2, 1024], strides = [1, 1]} : vector<16x1024xf32> to vector<2x1024xf32>
    %cst_73 = arith.constant dense<0.000000e+00> : vector<2x1024xf32>
    %309 = tpu.matmul %306, %247, %cst_73 {dimension_numbers = #tpu.dot_dimension_numbers<[1], [0], [0], [1], [0, 0, 1, 1], [], []>} : vector<2x256xf32>, vector<256x1024xf32>, vector<2x1024xf32> -> vector<2x1024xf32>
    %310 = arith.addf %308, %309 : vector<2x1024xf32>
    %311 = vector.extract_strided_slice %310 {offsets = [0, 0], sizes = [2, 256], strides = [1, 1]} : vector<2x1024xf32> to vector<2x256xf32>
    %312 = arith.negf %311 : vector<2x256xf32>
    %313 = math.exp %312 : vector<2x256xf32>
    %cst_74 = arith.constant 1.000000e+00 : f32
    %314 = vector.broadcast %cst_74 : f32 to vector<2x256xf32>
    %315 = arith.addf %314, %313 : vector<2x256xf32>
    %316 = arith.divf %314, %315 : vector<2x256xf32>
    %317 = vector.extract_strided_slice %310 {offsets = [0, 256], sizes = [2, 256], strides = [1, 1]} : vector<2x1024xf32> to vector<2x256xf32>
    %318 = arith.negf %317 : vector<2x256xf32>
    %319 = math.exp %318 : vector<2x256xf32>
    %cst_75 = arith.constant 1.000000e+00 : f32
    %320 = vector.broadcast %cst_75 : f32 to vector<2x256xf32>
    %321 = arith.addf %320, %319 : vector<2x256xf32>
    %322 = arith.divf %320, %321 : vector<2x256xf32>
    %323 = vector.extract_strided_slice %310 {offsets = [0, 512], sizes = [2, 256], strides = [1, 1]} : vector<2x1024xf32> to vector<2x256xf32>
    %324 = math.tanh %323 : vector<2x256xf32>
    %325 = vector.extract_strided_slice %310 {offsets = [0, 768], sizes = [2, 256], strides = [1, 1]} : vector<2x1024xf32> to vector<2x256xf32>
    %326 = arith.negf %325 : vector<2x256xf32>
    %327 = math.exp %326 : vector<2x256xf32>
    %cst_76 = arith.constant 1.000000e+00 : f32
    %328 = vector.broadcast %cst_76 : f32 to vector<2x256xf32>
    %329 = arith.addf %328, %327 : vector<2x256xf32>
    %330 = arith.divf %328, %329 : vector<2x256xf32>
    %331 = arith.mulf %322, %304 : vector<2x256xf32>
    %332 = arith.mulf %316, %324 : vector<2x256xf32>
    %333 = arith.addf %331, %332 : vector<2x256xf32>
    %334 = math.tanh %333 : vector<2x256xf32>
    %335 = arith.mulf %330, %334 : vector<2x256xf32>
    %c4_77 = arith.constant 4 : index
    %c0_78 = arith.constant 0 : index
    %336 = vector.load %arg14[%c4_77, %c0_78] : memref<16x256xf32, #tpu.memory_space<vmem>>, vector<2x256xf32>
    tpu.vector_store %arg14[%c4_77, %c0_78], %335 {strides = array<i32>} : memref<16x256xf32, #tpu.memory_space<vmem>>, vector<2x256xf32>,
    %337 = vector.extract_strided_slice %246 {offsets = [6, 0], sizes = [2, 1024], strides = [1, 1]} : vector<16x1024xf32> to vector<2x1024xf32>
    %cst_79 = arith.constant dense<0.000000e+00> : vector<2x1024xf32>
    %338 = tpu.matmul %335, %247, %cst_79 {dimension_numbers = #tpu.dot_dimension_numbers<[1], [0], [0], [1], [0, 0, 1, 1], [], []>} : vector<2x256xf32>, vector<256x1024xf32>, vector<2x1024xf32> -> vector<2x1024xf32>
    %339 = arith.addf %337, %338 : vector<2x1024xf32>
    %340 = vector.extract_strided_slice %339 {offsets = [0, 0], sizes = [2, 256], strides = [1, 1]} : vector<2x1024xf32> to vector<2x256xf32>
    %341 = arith.negf %340 : vector<2x256xf32>
    %342 = math.exp %341 : vector<2x256xf32>
    %cst_80 = arith.constant 1.000000e+00 : f32
    %343 = vector.broadcast %cst_80 : f32 to vector<2x256xf32>
    %344 = arith.addf %343, %342 : vector<2x256xf32>
    %345 = arith.divf %343, %344 : vector<2x256xf32>
    %346 = vector.extract_strided_slice %339 {offsets = [0, 256], sizes = [2, 256], strides = [1, 1]} : vector<2x1024xf32> to vector<2x256xf32>
    %347 = arith.negf %346 : vector<2x256xf32>
    %348 = math.exp %347 : vector<2x256xf32>
    %cst_81 = arith.constant 1.000000e+00 : f32
    %349 = vector.broadcast %cst_81 : f32 to vector<2x256xf32>
    %350 = arith.addf %349, %348 : vector<2x256xf32>
    %351 = arith.divf %349, %350 : vector<2x256xf32>
    %352 = vector.extract_strided_slice %339 {offsets = [0, 512], sizes = [2, 256], strides = [1, 1]} : vector<2x1024xf32> to vector<2x256xf32>
    %353 = math.tanh %352 : vector<2x256xf32>
    %354 = vector.extract_strided_slice %339 {offsets = [0, 768], sizes = [2, 256], strides = [1, 1]} : vector<2x1024xf32> to vector<2x256xf32>
    %355 = arith.negf %354 : vector<2x256xf32>
    %356 = math.exp %355 : vector<2x256xf32>
    %cst_82 = arith.constant 1.000000e+00 : f32
    %357 = vector.broadcast %cst_82 : f32 to vector<2x256xf32>
    %358 = arith.addf %357, %356 : vector<2x256xf32>
    %359 = arith.divf %357, %358 : vector<2x256xf32>
    %360 = arith.mulf %351, %333 : vector<2x256xf32>
    %361 = arith.mulf %345, %353 : vector<2x256xf32>
    %362 = arith.addf %360, %361 : vector<2x256xf32>
    %363 = math.tanh %362 : vector<2x256xf32>
    %364 = arith.mulf %359, %363 : vector<2x256xf32>
    %c6_83 = arith.constant 6 : index
    %c0_84 = arith.constant 0 : index
    %365 = vector.load %arg14[%c6_83, %c0_84] : memref<16x256xf32, #tpu.memory_space<vmem>>, vector<2x256xf32>
    tpu.vector_store %arg14[%c6_83, %c0_84], %364 {strides = array<i32>} : memref<16x256xf32, #tpu.memory_space<vmem>>, vector<2x256xf32>,
    %366 = vector.extract_strided_slice %246 {offsets = [8, 0], sizes = [2, 1024], strides = [1, 1]} : vector<16x1024xf32> to vector<2x1024xf32>
    %cst_85 = arith.constant dense<0.000000e+00> : vector<2x1024xf32>
    %367 = tpu.matmul %364, %247, %cst_85 {dimension_numbers = #tpu.dot_dimension_numbers<[1], [0], [0], [1], [0, 0, 1, 1], [], []>} : vector<2x256xf32>, vector<256x1024xf32>, vector<2x1024xf32> -> vector<2x1024xf32>
    %368 = arith.addf %366, %367 : vector<2x1024xf32>
    %369 = vector.extract_strided_slice %368 {offsets = [0, 0], sizes = [2, 256], strides = [1, 1]} : vector<2x1024xf32> to vector<2x256xf32>
    %370 = arith.negf %369 : vector<2x256xf32>
    %371 = math.exp %370 : vector<2x256xf32>
    %cst_86 = arith.constant 1.000000e+00 : f32
    %372 = vector.broadcast %cst_86 : f32 to vector<2x256xf32>
    %373 = arith.addf %372, %371 : vector<2x256xf32>
    %374 = arith.divf %372, %373 : vector<2x256xf32>
    %375 = vector.extract_strided_slice %368 {offsets = [0, 256], sizes = [2, 256], strides = [1, 1]} : vector<2x1024xf32> to vector<2x256xf32>
    %376 = arith.negf %375 : vector<2x256xf32>
    %377 = math.exp %376 : vector<2x256xf32>
    %cst_87 = arith.constant 1.000000e+00 : f32
    %378 = vector.broadcast %cst_87 : f32 to vector<2x256xf32>
    %379 = arith.addf %378, %377 : vector<2x256xf32>
    %380 = arith.divf %378, %379 : vector<2x256xf32>
    %381 = vector.extract_strided_slice %368 {offsets = [0, 512], sizes = [2, 256], strides = [1, 1]} : vector<2x1024xf32> to vector<2x256xf32>
    %382 = math.tanh %381 : vector<2x256xf32>
    %383 = vector.extract_strided_slice %368 {offsets = [0, 768], sizes = [2, 256], strides = [1, 1]} : vector<2x1024xf32> to vector<2x256xf32>
    %384 = arith.negf %383 : vector<2x256xf32>
    %385 = math.exp %384 : vector<2x256xf32>
    %cst_88 = arith.constant 1.000000e+00 : f32
    %386 = vector.broadcast %cst_88 : f32 to vector<2x256xf32>
    %387 = arith.addf %386, %385 : vector<2x256xf32>
    %388 = arith.divf %386, %387 : vector<2x256xf32>
    %389 = arith.mulf %380, %362 : vector<2x256xf32>
    %390 = arith.mulf %374, %382 : vector<2x256xf32>
    %391 = arith.addf %389, %390 : vector<2x256xf32>
    %392 = math.tanh %391 : vector<2x256xf32>
    %393 = arith.mulf %388, %392 : vector<2x256xf32>
    %c8_89 = arith.constant 8 : index
    %c0_90 = arith.constant 0 : index
    %394 = vector.load %arg14[%c8_89, %c0_90] : memref<16x256xf32, #tpu.memory_space<vmem>>, vector<2x256xf32>
    tpu.vector_store %arg14[%c8_89, %c0_90], %393 {strides = array<i32>} : memref<16x256xf32, #tpu.memory_space<vmem>>, vector<2x256xf32>,
    %395 = vector.extract_strided_slice %246 {offsets = [10, 0], sizes = [2, 1024], strides = [1, 1]} : vector<16x1024xf32> to vector<2x1024xf32>
    %cst_91 = arith.constant dense<0.000000e+00> : vector<2x1024xf32>
    %396 = tpu.matmul %393, %247, %cst_91 {dimension_numbers = #tpu.dot_dimension_numbers<[1], [0], [0], [1], [0, 0, 1, 1], [], []>} : vector<2x256xf32>, vector<256x1024xf32>, vector<2x1024xf32> -> vector<2x1024xf32>
    %397 = arith.addf %395, %396 : vector<2x1024xf32>
    %398 = vector.extract_strided_slice %397 {offsets = [0, 0], sizes = [2, 256], strides = [1, 1]} : vector<2x1024xf32> to vector<2x256xf32>
    %399 = arith.negf %398 : vector<2x256xf32>
    %400 = math.exp %399 : vector<2x256xf32>
    %cst_92 = arith.constant 1.000000e+00 : f32
    %401 = vector.broadcast %cst_92 : f32 to vector<2x256xf32>
    %402 = arith.addf %401, %400 : vector<2x256xf32>
    %403 = arith.divf %401, %402 : vector<2x256xf32>
    %404 = vector.extract_strided_slice %397 {offsets = [0, 256], sizes = [2, 256], strides = [1, 1]} : vector<2x1024xf32> to vector<2x256xf32>
    %405 = arith.negf %404 : vector<2x256xf32>
    %406 = math.exp %405 : vector<2x256xf32>
    %cst_93 = arith.constant 1.000000e+00 : f32
    %407 = vector.broadcast %cst_93 : f32 to vector<2x256xf32>
    %408 = arith.addf %407, %406 : vector<2x256xf32>
    %409 = arith.divf %407, %408 : vector<2x256xf32>
    %410 = vector.extract_strided_slice %397 {offsets = [0, 512], sizes = [2, 256], strides = [1, 1]} : vector<2x1024xf32> to vector<2x256xf32>
    %411 = math.tanh %410 : vector<2x256xf32>
    %412 = vector.extract_strided_slice %397 {offsets = [0, 768], sizes = [2, 256], strides = [1, 1]} : vector<2x1024xf32> to vector<2x256xf32>
    %413 = arith.negf %412 : vector<2x256xf32>
    %414 = math.exp %413 : vector<2x256xf32>
    %cst_94 = arith.constant 1.000000e+00 : f32
    %415 = vector.broadcast %cst_94 : f32 to vector<2x256xf32>
    %416 = arith.addf %415, %414 : vector<2x256xf32>
    %417 = arith.divf %415, %416 : vector<2x256xf32>
    %418 = arith.mulf %409, %391 : vector<2x256xf32>
    %419 = arith.mulf %403, %411 : vector<2x256xf32>
    %420 = arith.addf %418, %419 : vector<2x256xf32>
    %421 = math.tanh %420 : vector<2x256xf32>
    %422 = arith.mulf %417, %421 : vector<2x256xf32>
    %c10_95 = arith.constant 10 : index
    %c0_96 = arith.constant 0 : index
    %423 = vector.load %arg14[%c10_95, %c0_96] : memref<16x256xf32, #tpu.memory_space<vmem>>, vector<2x256xf32>
    tpu.vector_store %arg14[%c10_95, %c0_96], %422 {strides = array<i32>} : memref<16x256xf32, #tpu.memory_space<vmem>>, vector<2x256xf32>,
    %424 = vector.extract_strided_slice %246 {offsets = [12, 0], sizes = [2, 1024], strides = [1, 1]} : vector<16x1024xf32> to vector<2x1024xf32>
    %cst_97 = arith.constant dense<0.000000e+00> : vector<2x1024xf32>
    %425 = tpu.matmul %422, %247, %cst_97 {dimension_numbers = #tpu.dot_dimension_numbers<[1], [0], [0], [1], [0, 0, 1, 1], [], []>} : vector<2x256xf32>, vector<256x1024xf32>, vector<2x1024xf32> -> vector<2x1024xf32>
    %426 = arith.addf %424, %425 : vector<2x1024xf32>
    %427 = vector.extract_strided_slice %426 {offsets = [0, 0], sizes = [2, 256], strides = [1, 1]} : vector<2x1024xf32> to vector<2x256xf32>
    %428 = arith.negf %427 : vector<2x256xf32>
    %429 = math.exp %428 : vector<2x256xf32>
    %cst_98 = arith.constant 1.000000e+00 : f32
    %430 = vector.broadcast %cst_98 : f32 to vector<2x256xf32>
    %431 = arith.addf %430, %429 : vector<2x256xf32>
    %432 = arith.divf %430, %431 : vector<2x256xf32>
    %433 = vector.extract_strided_slice %426 {offsets = [0, 256], sizes = [2, 256], strides = [1, 1]} : vector<2x1024xf32> to vector<2x256xf32>
    %434 = arith.negf %433 : vector<2x256xf32>
    %435 = math.exp %434 : vector<2x256xf32>
    %cst_99 = arith.constant 1.000000e+00 : f32
    %436 = vector.broadcast %cst_99 : f32 to vector<2x256xf32>
    %437 = arith.addf %436, %435 : vector<2x256xf32>
    %438 = arith.divf %436, %437 : vector<2x256xf32>
    %439 = vector.extract_strided_slice %426 {offsets = [0, 512], sizes = [2, 256], strides = [1, 1]} : vector<2x1024xf32> to vector<2x256xf32>
    %440 = math.tanh %439 : vector<2x256xf32>
    %441 = vector.extract_strided_slice %426 {offsets = [0, 768], sizes = [2, 256], strides = [1, 1]} : vector<2x1024xf32> to vector<2x256xf32>
    %442 = arith.negf %441 : vector<2x256xf32>
    %443 = math.exp %442 : vector<2x256xf32>
    %cst_100 = arith.constant 1.000000e+00 : f32
    %444 = vector.broadcast %cst_100 : f32 to vector<2x256xf32>
    %445 = arith.addf %444, %443 : vector<2x256xf32>
    %446 = arith.divf %444, %445 : vector<2x256xf32>
    %447 = arith.mulf %438, %420 : vector<2x256xf32>
    %448 = arith.mulf %432, %440 : vector<2x256xf32>
    %449 = arith.addf %447, %448 : vector<2x256xf32>
    %450 = math.tanh %449 : vector<2x256xf32>
    %451 = arith.mulf %446, %450 : vector<2x256xf32>
    %c12_101 = arith.constant 12 : index
    %c0_102 = arith.constant 0 : index
    %452 = vector.load %arg14[%c12_101, %c0_102] : memref<16x256xf32, #tpu.memory_space<vmem>>, vector<2x256xf32>
    tpu.vector_store %arg14[%c12_101, %c0_102], %451 {strides = array<i32>} : memref<16x256xf32, #tpu.memory_space<vmem>>, vector<2x256xf32>,
    %453 = vector.extract_strided_slice %246 {offsets = [14, 0], sizes = [2, 1024], strides = [1, 1]} : vector<16x1024xf32> to vector<2x1024xf32>
    %cst_103 = arith.constant dense<0.000000e+00> : vector<2x1024xf32>
    %454 = tpu.matmul %451, %247, %cst_103 {dimension_numbers = #tpu.dot_dimension_numbers<[1], [0], [0], [1], [0, 0, 1, 1], [], []>} : vector<2x256xf32>, vector<256x1024xf32>, vector<2x1024xf32> -> vector<2x1024xf32>
    %455 = arith.addf %453, %454 : vector<2x1024xf32>
    %456 = vector.extract_strided_slice %455 {offsets = [0, 0], sizes = [2, 256], strides = [1, 1]} : vector<2x1024xf32> to vector<2x256xf32>
    %457 = arith.negf %456 : vector<2x256xf32>
    %458 = math.exp %457 : vector<2x256xf32>
    %cst_104 = arith.constant 1.000000e+00 : f32
    %459 = vector.broadcast %cst_104 : f32 to vector<2x256xf32>
    %460 = arith.addf %459, %458 : vector<2x256xf32>
    %461 = arith.divf %459, %460 : vector<2x256xf32>
    %462 = vector.extract_strided_slice %455 {offsets = [0, 256], sizes = [2, 256], strides = [1, 1]} : vector<2x1024xf32> to vector<2x256xf32>
    %463 = arith.negf %462 : vector<2x256xf32>
    %464 = math.exp %463 : vector<2x256xf32>
    %cst_105 = arith.constant 1.000000e+00 : f32
    %465 = vector.broadcast %cst_105 : f32 to vector<2x256xf32>
    %466 = arith.addf %465, %464 : vector<2x256xf32>
    %467 = arith.divf %465, %466 : vector<2x256xf32>
    %468 = vector.extract_strided_slice %455 {offsets = [0, 512], sizes = [2, 256], strides = [1, 1]} : vector<2x1024xf32> to vector<2x256xf32>
    %469 = math.tanh %468 : vector<2x256xf32>
    %470 = vector.extract_strided_slice %455 {offsets = [0, 768], sizes = [2, 256], strides = [1, 1]} : vector<2x1024xf32> to vector<2x256xf32>
    %471 = arith.negf %470 : vector<2x256xf32>
    %472 = math.exp %471 : vector<2x256xf32>
    %cst_106 = arith.constant 1.000000e+00 : f32
    %473 = vector.broadcast %cst_106 : f32 to vector<2x256xf32>
    %474 = arith.addf %473, %472 : vector<2x256xf32>
    %475 = arith.divf %473, %474 : vector<2x256xf32>
    %476 = arith.mulf %467, %449 : vector<2x256xf32>
    %477 = arith.mulf %461, %469 : vector<2x256xf32>
    %478 = arith.addf %476, %477 : vector<2x256xf32>
    %479 = math.tanh %478 : vector<2x256xf32>
    %480 = arith.mulf %475, %479 : vector<2x256xf32>
    %c14_107 = arith.constant 14 : index
    %c0_108 = arith.constant 0 : index
    %481 = vector.load %arg14[%c14_107, %c0_108] : memref<16x256xf32, #tpu.memory_space<vmem>>, vector<2x256xf32>
    tpu.vector_store %arg14[%c14_107, %c0_108], %480 {strides = array<i32>} : memref<16x256xf32, #tpu.memory_space<vmem>>, vector<2x256xf32>,
    %c0_109 = arith.constant 0 : index
    %c0_110 = arith.constant 0 : index
    %482 = vector.load %arg14[%c0_109, %c0_110] : memref<16x256xf32, #tpu.memory_space<vmem>>, vector<16x256xf32>
    %c0_111 = arith.constant 0 : index
    %c0_112 = arith.constant 0 : index
    %483 = vector.load %arg7[%c0_111, %c0_112] : memref<256x512xf32, #tpu.memory_space<vmem>>, vector<256x512xf32>
    %cst_113 = arith.constant dense<0.000000e+00> : vector<16x512xf32>
    %484 = tpu.matmul %482, %483, %cst_113 {dimension_numbers = #tpu.dot_dimension_numbers<[1], [0], [0], [1], [0, 0, 1, 1], [], []>} : vector<16x256xf32>, vector<256x512xf32>, vector<16x512xf32> -> vector<16x512xf32>
    %c0_114 = arith.constant 0 : index
    %c0_115 = arith.constant 0 : index
    %485 = vector.load %arg9[%c0_114, %c0_115] : memref<1x512xf32, #tpu.memory_space<vmem>>, vector<1x512xf32>
    %486 = vector.broadcast %485 : vector<1x512xf32> to vector<16x512xf32>
    %487 = arith.addf %484, %486 : vector<16x512xf32>
    %c0_116 = arith.constant 0 : index
    %c0_117 = arith.constant 0 : index
    %488 = vector.load %arg8[%c0_116, %c0_117] : memref<128x512xf32, #tpu.memory_space<vmem>>, vector<128x512xf32>
    %cst_118 = arith.constant 0.000000e+00 : f32
    %489 = vector.broadcast %cst_118 : f32 to vector<2x128xf32>
    %cst_119 = arith.constant 0.000000e+00 : f32
    %490 = vector.broadcast %cst_119 : f32 to vector<2x128xf32>
    %491 = vector.extract_strided_slice %487 {offsets = [0, 0], sizes = [2, 512], strides = [1, 1]} : vector<16x512xf32> to vector<2x512xf32>
    %cst_120 = arith.constant dense<0.000000e+00> : vector<2x512xf32>
    %492 = tpu.matmul %489, %488, %cst_120 {dimension_numbers = #tpu.dot_dimension_numbers<[1], [0], [0], [1], [0, 0, 1, 1], [], []>} : vector<2x128xf32>, vector<128x512xf32>, vector<2x512xf32> -> vector<2x512xf32>
    %493 = arith.addf %491, %492 : vector<2x512xf32>
    %494 = vector.extract_strided_slice %493 {offsets = [0, 0], sizes = [2, 128], strides = [1, 1]} : vector<2x512xf32> to vector<2x128xf32>
    %495 = arith.negf %494 : vector<2x128xf32>
    %496 = math.exp %495 : vector<2x128xf32>
    %cst_121 = arith.constant 1.000000e+00 : f32
    %497 = vector.broadcast %cst_121 : f32 to vector<2x128xf32>
    %498 = arith.addf %497, %496 : vector<2x128xf32>
    %499 = arith.divf %497, %498 : vector<2x128xf32>
    %500 = vector.extract_strided_slice %493 {offsets = [0, 128], sizes = [2, 128], strides = [1, 1]} : vector<2x512xf32> to vector<2x128xf32>
    %501 = arith.negf %500 : vector<2x128xf32>
    %502 = math.exp %501 : vector<2x128xf32>
    %cst_122 = arith.constant 1.000000e+00 : f32
    %503 = vector.broadcast %cst_122 : f32 to vector<2x128xf32>
    %504 = arith.addf %503, %502 : vector<2x128xf32>
    %505 = arith.divf %503, %504 : vector<2x128xf32>
    %506 = vector.extract_strided_slice %493 {offsets = [0, 256], sizes = [2, 128], strides = [1, 1]} : vector<2x512xf32> to vector<2x128xf32>
    %507 = math.tanh %506 : vector<2x128xf32>
    %508 = vector.extract_strided_slice %493 {offsets = [0, 384], sizes = [2, 128], strides = [1, 1]} : vector<2x512xf32> to vector<2x128xf32>
    %509 = arith.negf %508 : vector<2x128xf32>
    %510 = math.exp %509 : vector<2x128xf32>
    %cst_123 = arith.constant 1.000000e+00 : f32
    %511 = vector.broadcast %cst_123 : f32 to vector<2x128xf32>
    %512 = arith.addf %511, %510 : vector<2x128xf32>
    %513 = arith.divf %511, %512 : vector<2x128xf32>
    %514 = arith.mulf %505, %490 : vector<2x128xf32>
    %515 = arith.mulf %499, %507 : vector<2x128xf32>
    %516 = arith.addf %514, %515 : vector<2x128xf32>
    %517 = math.tanh %516 : vector<2x128xf32>
    %518 = arith.mulf %513, %517 : vector<2x128xf32>
    %519 = vector.extract_strided_slice %487 {offsets = [2, 0], sizes = [2, 512], strides = [1, 1]} : vector<16x512xf32> to vector<2x512xf32>
    %cst_124 = arith.constant dense<0.000000e+00> : vector<2x512xf32>
    %520 = tpu.matmul %518, %488, %cst_124 {dimension_numbers = #tpu.dot_dimension_numbers<[1], [0], [0], [1], [0, 0, 1, 1], [], []>} : vector<2x128xf32>, vector<128x512xf32>, vector<2x512xf32> -> vector<2x512xf32>
    %521 = arith.addf %519, %520 : vector<2x512xf32>
    %522 = vector.extract_strided_slice %521 {offsets = [0, 0], sizes = [2, 128], strides = [1, 1]} : vector<2x512xf32> to vector<2x128xf32>
    %523 = arith.negf %522 : vector<2x128xf32>
    %524 = math.exp %523 : vector<2x128xf32>
    %cst_125 = arith.constant 1.000000e+00 : f32
    %525 = vector.broadcast %cst_125 : f32 to vector<2x128xf32>
    %526 = arith.addf %525, %524 : vector<2x128xf32>
    %527 = arith.divf %525, %526 : vector<2x128xf32>
    %528 = vector.extract_strided_slice %521 {offsets = [0, 128], sizes = [2, 128], strides = [1, 1]} : vector<2x512xf32> to vector<2x128xf32>
    %529 = arith.negf %528 : vector<2x128xf32>
    %530 = math.exp %529 : vector<2x128xf32>
    %cst_126 = arith.constant 1.000000e+00 : f32
    %531 = vector.broadcast %cst_126 : f32 to vector<2x128xf32>
    %532 = arith.addf %531, %530 : vector<2x128xf32>
    %533 = arith.divf %531, %532 : vector<2x128xf32>
    %534 = vector.extract_strided_slice %521 {offsets = [0, 256], sizes = [2, 128], strides = [1, 1]} : vector<2x512xf32> to vector<2x128xf32>
    %535 = math.tanh %534 : vector<2x128xf32>
    %536 = vector.extract_strided_slice %521 {offsets = [0, 384], sizes = [2, 128], strides = [1, 1]} : vector<2x512xf32> to vector<2x128xf32>
    %537 = arith.negf %536 : vector<2x128xf32>
    %538 = math.exp %537 : vector<2x128xf32>
    %cst_127 = arith.constant 1.000000e+00 : f32
    %539 = vector.broadcast %cst_127 : f32 to vector<2x128xf32>
    %540 = arith.addf %539, %538 : vector<2x128xf32>
    %541 = arith.divf %539, %540 : vector<2x128xf32>
    %542 = arith.mulf %533, %516 : vector<2x128xf32>
    %543 = arith.mulf %527, %535 : vector<2x128xf32>
    %544 = arith.addf %542, %543 : vector<2x128xf32>
    %545 = math.tanh %544 : vector<2x128xf32>
    %546 = arith.mulf %541, %545 : vector<2x128xf32>
    %547 = vector.extract_strided_slice %487 {offsets = [4, 0], sizes = [2, 512], strides = [1, 1]} : vector<16x512xf32> to vector<2x512xf32>
    %cst_128 = arith.constant dense<0.000000e+00> : vector<2x512xf32>
    %548 = tpu.matmul %546, %488, %cst_128 {dimension_numbers = #tpu.dot_dimension_numbers<[1], [0], [0], [1], [0, 0, 1, 1], [], []>} : vector<2x128xf32>, vector<128x512xf32>, vector<2x512xf32> -> vector<2x512xf32>
    %549 = arith.addf %547, %548 : vector<2x512xf32>
    %550 = vector.extract_strided_slice %549 {offsets = [0, 0], sizes = [2, 128], strides = [1, 1]} : vector<2x512xf32> to vector<2x128xf32>
    %551 = arith.negf %550 : vector<2x128xf32>
    %552 = math.exp %551 : vector<2x128xf32>
    %cst_129 = arith.constant 1.000000e+00 : f32
    %553 = vector.broadcast %cst_129 : f32 to vector<2x128xf32>
    %554 = arith.addf %553, %552 : vector<2x128xf32>
    %555 = arith.divf %553, %554 : vector<2x128xf32>
    %556 = vector.extract_strided_slice %549 {offsets = [0, 128], sizes = [2, 128], strides = [1, 1]} : vector<2x512xf32> to vector<2x128xf32>
    %557 = arith.negf %556 : vector<2x128xf32>
    %558 = math.exp %557 : vector<2x128xf32>
    %cst_130 = arith.constant 1.000000e+00 : f32
    %559 = vector.broadcast %cst_130 : f32 to vector<2x128xf32>
    %560 = arith.addf %559, %558 : vector<2x128xf32>
    %561 = arith.divf %559, %560 : vector<2x128xf32>
    %562 = vector.extract_strided_slice %549 {offsets = [0, 256], sizes = [2, 128], strides = [1, 1]} : vector<2x512xf32> to vector<2x128xf32>
    %563 = math.tanh %562 : vector<2x128xf32>
    %564 = vector.extract_strided_slice %549 {offsets = [0, 384], sizes = [2, 128], strides = [1, 1]} : vector<2x512xf32> to vector<2x128xf32>
    %565 = arith.negf %564 : vector<2x128xf32>
    %566 = math.exp %565 : vector<2x128xf32>
    %cst_131 = arith.constant 1.000000e+00 : f32
    %567 = vector.broadcast %cst_131 : f32 to vector<2x128xf32>
    %568 = arith.addf %567, %566 : vector<2x128xf32>
    %569 = arith.divf %567, %568 : vector<2x128xf32>
    %570 = arith.mulf %561, %544 : vector<2x128xf32>
    %571 = arith.mulf %555, %563 : vector<2x128xf32>
    %572 = arith.addf %570, %571 : vector<2x128xf32>
    %573 = math.tanh %572 : vector<2x128xf32>
    %574 = arith.mulf %569, %573 : vector<2x128xf32>
    %575 = vector.extract_strided_slice %487 {offsets = [6, 0], sizes = [2, 512], strides = [1, 1]} : vector<16x512xf32> to vector<2x512xf32>
    %cst_132 = arith.constant dense<0.000000e+00> : vector<2x512xf32>
    %576 = tpu.matmul %574, %488, %cst_132 {dimension_numbers = #tpu.dot_dimension_numbers<[1], [0], [0], [1], [0, 0, 1, 1], [], []>} : vector<2x128xf32>, vector<128x512xf32>, vector<2x512xf32> -> vector<2x512xf32>
    %577 = arith.addf %575, %576 : vector<2x512xf32>
    %578 = vector.extract_strided_slice %577 {offsets = [0, 0], sizes = [2, 128], strides = [1, 1]} : vector<2x512xf32> to vector<2x128xf32>
    %579 = arith.negf %578 : vector<2x128xf32>
    %580 = math.exp %579 : vector<2x128xf32>
    %cst_133 = arith.constant 1.000000e+00 : f32
    %581 = vector.broadcast %cst_133 : f32 to vector<2x128xf32>
    %582 = arith.addf %581, %580 : vector<2x128xf32>
    %583 = arith.divf %581, %582 : vector<2x128xf32>
    %584 = vector.extract_strided_slice %577 {offsets = [0, 128], sizes = [2, 128], strides = [1, 1]} : vector<2x512xf32> to vector<2x128xf32>
    %585 = arith.negf %584 : vector<2x128xf32>
    %586 = math.exp %585 : vector<2x128xf32>
    %cst_134 = arith.constant 1.000000e+00 : f32
    %587 = vector.broadcast %cst_134 : f32 to vector<2x128xf32>
    %588 = arith.addf %587, %586 : vector<2x128xf32>
    %589 = arith.divf %587, %588 : vector<2x128xf32>
    %590 = vector.extract_strided_slice %577 {offsets = [0, 256], sizes = [2, 128], strides = [1, 1]} : vector<2x512xf32> to vector<2x128xf32>
    %591 = math.tanh %590 : vector<2x128xf32>
    %592 = vector.extract_strided_slice %577 {offsets = [0, 384], sizes = [2, 128], strides = [1, 1]} : vector<2x512xf32> to vector<2x128xf32>
    %593 = arith.negf %592 : vector<2x128xf32>
    %594 = math.exp %593 : vector<2x128xf32>
    %cst_135 = arith.constant 1.000000e+00 : f32
    %595 = vector.broadcast %cst_135 : f32 to vector<2x128xf32>
    %596 = arith.addf %595, %594 : vector<2x128xf32>
    %597 = arith.divf %595, %596 : vector<2x128xf32>
    %598 = arith.mulf %589, %572 : vector<2x128xf32>
    %599 = arith.mulf %583, %591 : vector<2x128xf32>
    %600 = arith.addf %598, %599 : vector<2x128xf32>
    %601 = math.tanh %600 : vector<2x128xf32>
    %602 = arith.mulf %597, %601 : vector<2x128xf32>
    %603 = vector.extract_strided_slice %487 {offsets = [8, 0], sizes = [2, 512], strides = [1, 1]} : vector<16x512xf32> to vector<2x512xf32>
    %cst_136 = arith.constant dense<0.000000e+00> : vector<2x512xf32>
    %604 = tpu.matmul %602, %488, %cst_136 {dimension_numbers = #tpu.dot_dimension_numbers<[1], [0], [0], [1], [0, 0, 1, 1], [], []>} : vector<2x128xf32>, vector<128x512xf32>, vector<2x512xf32> -> vector<2x512xf32>
    %605 = arith.addf %603, %604 : vector<2x512xf32>
    %606 = vector.extract_strided_slice %605 {offsets = [0, 0], sizes = [2, 128], strides = [1, 1]} : vector<2x512xf32> to vector<2x128xf32>
    %607 = arith.negf %606 : vector<2x128xf32>
    %608 = math.exp %607 : vector<2x128xf32>
    %cst_137 = arith.constant 1.000000e+00 : f32
    %609 = vector.broadcast %cst_137 : f32 to vector<2x128xf32>
    %610 = arith.addf %609, %608 : vector<2x128xf32>
    %611 = arith.divf %609, %610 : vector<2x128xf32>
    %612 = vector.extract_strided_slice %605 {offsets = [0, 128], sizes = [2, 128], strides = [1, 1]} : vector<2x512xf32> to vector<2x128xf32>
    %613 = arith.negf %612 : vector<2x128xf32>
    %614 = math.exp %613 : vector<2x128xf32>
    %cst_138 = arith.constant 1.000000e+00 : f32
    %615 = vector.broadcast %cst_138 : f32 to vector<2x128xf32>
    %616 = arith.addf %615, %614 : vector<2x128xf32>
    %617 = arith.divf %615, %616 : vector<2x128xf32>
    %618 = vector.extract_strided_slice %605 {offsets = [0, 256], sizes = [2, 128], strides = [1, 1]} : vector<2x512xf32> to vector<2x128xf32>
    %619 = math.tanh %618 : vector<2x128xf32>
    %620 = vector.extract_strided_slice %605 {offsets = [0, 384], sizes = [2, 128], strides = [1, 1]} : vector<2x512xf32> to vector<2x128xf32>
    %621 = arith.negf %620 : vector<2x128xf32>
    %622 = math.exp %621 : vector<2x128xf32>
    %cst_139 = arith.constant 1.000000e+00 : f32
    %623 = vector.broadcast %cst_139 : f32 to vector<2x128xf32>
    %624 = arith.addf %623, %622 : vector<2x128xf32>
    %625 = arith.divf %623, %624 : vector<2x128xf32>
    %626 = arith.mulf %617, %600 : vector<2x128xf32>
    %627 = arith.mulf %611, %619 : vector<2x128xf32>
    %628 = arith.addf %626, %627 : vector<2x128xf32>
    %629 = math.tanh %628 : vector<2x128xf32>
    %630 = arith.mulf %625, %629 : vector<2x128xf32>
    %631 = vector.extract_strided_slice %487 {offsets = [10, 0], sizes = [2, 512], strides = [1, 1]} : vector<16x512xf32> to vector<2x512xf32>
    %cst_140 = arith.constant dense<0.000000e+00> : vector<2x512xf32>
    %632 = tpu.matmul %630, %488, %cst_140 {dimension_numbers = #tpu.dot_dimension_numbers<[1], [0], [0], [1], [0, 0, 1, 1], [], []>} : vector<2x128xf32>, vector<128x512xf32>, vector<2x512xf32> -> vector<2x512xf32>
    %633 = arith.addf %631, %632 : vector<2x512xf32>
    %634 = vector.extract_strided_slice %633 {offsets = [0, 0], sizes = [2, 128], strides = [1, 1]} : vector<2x512xf32> to vector<2x128xf32>
    %635 = arith.negf %634 : vector<2x128xf32>
    %636 = math.exp %635 : vector<2x128xf32>
    %cst_141 = arith.constant 1.000000e+00 : f32
    %637 = vector.broadcast %cst_141 : f32 to vector<2x128xf32>
    %638 = arith.addf %637, %636 : vector<2x128xf32>
    %639 = arith.divf %637, %638 : vector<2x128xf32>
    %640 = vector.extract_strided_slice %633 {offsets = [0, 128], sizes = [2, 128], strides = [1, 1]} : vector<2x512xf32> to vector<2x128xf32>
    %641 = arith.negf %640 : vector<2x128xf32>
    %642 = math.exp %641 : vector<2x128xf32>
    %cst_142 = arith.constant 1.000000e+00 : f32
    %643 = vector.broadcast %cst_142 : f32 to vector<2x128xf32>
    %644 = arith.addf %643, %642 : vector<2x128xf32>
    %645 = arith.divf %643, %644 : vector<2x128xf32>
    %646 = vector.extract_strided_slice %633 {offsets = [0, 256], sizes = [2, 128], strides = [1, 1]} : vector<2x512xf32> to vector<2x128xf32>
    %647 = math.tanh %646 : vector<2x128xf32>
    %648 = vector.extract_strided_slice %633 {offsets = [0, 384], sizes = [2, 128], strides = [1, 1]} : vector<2x512xf32> to vector<2x128xf32>
    %649 = arith.negf %648 : vector<2x128xf32>
    %650 = math.exp %649 : vector<2x128xf32>
    %cst_143 = arith.constant 1.000000e+00 : f32
    %651 = vector.broadcast %cst_143 : f32 to vector<2x128xf32>
    %652 = arith.addf %651, %650 : vector<2x128xf32>
    %653 = arith.divf %651, %652 : vector<2x128xf32>
    %654 = arith.mulf %645, %628 : vector<2x128xf32>
    %655 = arith.mulf %639, %647 : vector<2x128xf32>
    %656 = arith.addf %654, %655 : vector<2x128xf32>
    %657 = math.tanh %656 : vector<2x128xf32>
    %658 = arith.mulf %653, %657 : vector<2x128xf32>
    %659 = vector.extract_strided_slice %487 {offsets = [12, 0], sizes = [2, 512], strides = [1, 1]} : vector<16x512xf32> to vector<2x512xf32>
    %cst_144 = arith.constant dense<0.000000e+00> : vector<2x512xf32>
    %660 = tpu.matmul %658, %488, %cst_144 {dimension_numbers = #tpu.dot_dimension_numbers<[1], [0], [0], [1], [0, 0, 1, 1], [], []>} : vector<2x128xf32>, vector<128x512xf32>, vector<2x512xf32> -> vector<2x512xf32>
    %661 = arith.addf %659, %660 : vector<2x512xf32>
    %662 = vector.extract_strided_slice %661 {offsets = [0, 0], sizes = [2, 128], strides = [1, 1]} : vector<2x512xf32> to vector<2x128xf32>
    %663 = arith.negf %662 : vector<2x128xf32>
    %664 = math.exp %663 : vector<2x128xf32>
    %cst_145 = arith.constant 1.000000e+00 : f32
    %665 = vector.broadcast %cst_145 : f32 to vector<2x128xf32>
    %666 = arith.addf %665, %664 : vector<2x128xf32>
    %667 = arith.divf %665, %666 : vector<2x128xf32>
    %668 = vector.extract_strided_slice %661 {offsets = [0, 128], sizes = [2, 128], strides = [1, 1]} : vector<2x512xf32> to vector<2x128xf32>
    %669 = arith.negf %668 : vector<2x128xf32>
    %670 = math.exp %669 : vector<2x128xf32>
    %cst_146 = arith.constant 1.000000e+00 : f32
    %671 = vector.broadcast %cst_146 : f32 to vector<2x128xf32>
    %672 = arith.addf %671, %670 : vector<2x128xf32>
    %673 = arith.divf %671, %672 : vector<2x128xf32>
    %674 = vector.extract_strided_slice %661 {offsets = [0, 256], sizes = [2, 128], strides = [1, 1]} : vector<2x512xf32> to vector<2x128xf32>
    %675 = math.tanh %674 : vector<2x128xf32>
    %676 = vector.extract_strided_slice %661 {offsets = [0, 384], sizes = [2, 128], strides = [1, 1]} : vector<2x512xf32> to vector<2x128xf32>
    %677 = arith.negf %676 : vector<2x128xf32>
    %678 = math.exp %677 : vector<2x128xf32>
    %cst_147 = arith.constant 1.000000e+00 : f32
    %679 = vector.broadcast %cst_147 : f32 to vector<2x128xf32>
    %680 = arith.addf %679, %678 : vector<2x128xf32>
    %681 = arith.divf %679, %680 : vector<2x128xf32>
    %682 = arith.mulf %673, %656 : vector<2x128xf32>
    %683 = arith.mulf %667, %675 : vector<2x128xf32>
    %684 = arith.addf %682, %683 : vector<2x128xf32>
    %685 = math.tanh %684 : vector<2x128xf32>
    %686 = arith.mulf %681, %685 : vector<2x128xf32>
    %687 = vector.extract_strided_slice %487 {offsets = [14, 0], sizes = [2, 512], strides = [1, 1]} : vector<16x512xf32> to vector<2x512xf32>
    %cst_148 = arith.constant dense<0.000000e+00> : vector<2x512xf32>
    %688 = tpu.matmul %686, %488, %cst_148 {dimension_numbers = #tpu.dot_dimension_numbers<[1], [0], [0], [1], [0, 0, 1, 1], [], []>} : vector<2x128xf32>, vector<128x512xf32>, vector<2x512xf32> -> vector<2x512xf32>
    %689 = arith.addf %687, %688 : vector<2x512xf32>
    %690 = vector.extract_strided_slice %689 {offsets = [0, 0], sizes = [2, 128], strides = [1, 1]} : vector<2x512xf32> to vector<2x128xf32>
    %691 = arith.negf %690 : vector<2x128xf32>
    %692 = math.exp %691 : vector<2x128xf32>
    %cst_149 = arith.constant 1.000000e+00 : f32
    %693 = vector.broadcast %cst_149 : f32 to vector<2x128xf32>
    %694 = arith.addf %693, %692 : vector<2x128xf32>
    %695 = arith.divf %693, %694 : vector<2x128xf32>
    %696 = vector.extract_strided_slice %689 {offsets = [0, 128], sizes = [2, 128], strides = [1, 1]} : vector<2x512xf32> to vector<2x128xf32>
    %697 = arith.negf %696 : vector<2x128xf32>
    %698 = math.exp %697 : vector<2x128xf32>
    %cst_150 = arith.constant 1.000000e+00 : f32
    %699 = vector.broadcast %cst_150 : f32 to vector<2x128xf32>
    %700 = arith.addf %699, %698 : vector<2x128xf32>
    %701 = arith.divf %699, %700 : vector<2x128xf32>
    %702 = vector.extract_strided_slice %689 {offsets = [0, 256], sizes = [2, 128], strides = [1, 1]} : vector<2x512xf32> to vector<2x128xf32>
    %703 = math.tanh %702 : vector<2x128xf32>
    %704 = vector.extract_strided_slice %689 {offsets = [0, 384], sizes = [2, 128], strides = [1, 1]} : vector<2x512xf32> to vector<2x128xf32>
    %705 = arith.negf %704 : vector<2x128xf32>
    %706 = math.exp %705 : vector<2x128xf32>
    %cst_151 = arith.constant 1.000000e+00 : f32
    %707 = vector.broadcast %cst_151 : f32 to vector<2x128xf32>
    %708 = arith.addf %707, %706 : vector<2x128xf32>
    %709 = arith.divf %707, %708 : vector<2x128xf32>
    %710 = arith.mulf %701, %684 : vector<2x128xf32>
    %711 = arith.mulf %695, %703 : vector<2x128xf32>
    %712 = arith.addf %710, %711 : vector<2x128xf32>
    %713 = math.tanh %712 : vector<2x128xf32>
    %714 = arith.mulf %709, %713 : vector<2x128xf32>
    %c0_152 = arith.constant 0 : index
    %c0_153 = arith.constant 0 : index
    %715 = vector.load %arg10[%c0_152, %c0_153] : memref<128x2xf32, #tpu.memory_space<vmem>>, vector<128x2xf32>
    %cst_154 = arith.constant dense<0.000000e+00> : vector<2x2xf32>
    %716 = tpu.matmul %714, %715, %cst_154 {dimension_numbers = #tpu.dot_dimension_numbers<[1], [0], [0], [1], [0, 0, 1, 1], [], []>} : vector<2x128xf32>, vector<128x2xf32>, vector<2x2xf32> -> vector<2x2xf32>
    %c0_155 = arith.constant 0 : index
    %c0_156 = arith.constant 0 : index
    %717 = vector.load %arg11[%c0_155, %c0_156] : memref<1x2xf32, #tpu.memory_space<vmem>>, vector<1x2xf32>
    %718 = vector.broadcast %717 : vector<1x2xf32> to vector<2x2xf32>
    %719 = arith.addf %716, %718 : vector<2x2xf32>
    %c0_157 = arith.constant 0 : index
    %c0_158 = arith.constant 0 : index
    %720 = vector.load %arg12[%c0_157, %c0_158] : memref<2x2xf32, #tpu.memory_space<vmem>>, vector<2x2xf32>
    tpu.vector_store %arg12[%c0_157, %c0_158], %719 {strides = array<i32>} : memref<2x2xf32, #tpu.memory_space<vmem>>, vector<2x2xf32>,
    return
  }
}

</mosaic_0001>

<llo_original>
// kernel: skel_lstm_forward.1
$region0: #{skel_lstm_forward.1}
  #allocation0 [shape = 'u32[]', space=smem, size = 0x4, offset = 0x4, fixed_abs, tag = 'smem constant byte address 0x4 - core index']
  #allocation1 [shape = 'u32[144,128]{1,0:T(1,128)}', space=vmem, size = 0x12000, scoped, tag = 'internal scratch']
  #allocation2 [shape = 'f32[16,128]{1,0:T(8,128)}', space=vmem, size = 0x2000, scoped, tag = 'scratch operand']
  #allocation3 [shape = 'f32[16,256]{1,0:T(8,128)}', space=vmem, size = 0x4000, scoped, tag = 'scratch operand']
  %s0 = inlined_call_operand.vmem [shape: f32[16,34], index: 0, kind: input, shape index: {}]
  %s1 = inlined_call_operand.vmem [shape: f32[34,512], index: 1, kind: input, shape index: {}]
  %s2 = inlined_call_operand.hbm [shape: f32[128,512], index: 2, kind: input, shape index: {}]
  %s3 = inlined_call_operand.vmem [shape: f32[1,512], index: 3, kind: input, shape index: {}]
  %s4 = inlined_call_operand.hbm [shape: f32[128,1024], index: 4, kind: input, shape index: {}]
  %s5 = inlined_call_operand.hbm [shape: f32[256,1024], index: 5, kind: input, shape index: {}]
  %s6 = inlined_call_operand.vmem [shape: f32[1,1024], index: 6, kind: input, shape index: {}]
  %s7 = inlined_call_operand.hbm [shape: f32[256,512], index: 7, kind: input, shape index: {}]
  %s8 = inlined_call_operand.hbm [shape: f32[128,512], index: 8, kind: input, shape index: {}]
  %s9 = inlined_call_operand.vmem [shape: f32[1,512], index: 9, kind: input, shape index: {}]
  %s10 = inlined_call_operand.vmem [shape: f32[128,2], index: 10, kind: input, shape index: {}]
  %s11 = inlined_call_operand.vmem [shape: f32[1,2], index: 11, kind: input, shape index: {}]
  %s12 = inlined_call_operand.hbm [shape: f32[2,2], index: 12, kind: output, shape index: {}]
  %s13 = sld [smem:[#allocation0]]
  $region78: #{skel_lstm_forward.1} parent=0
    _
  %s15 = ssub.s32 1, %s13
  %s16 = scalar_select 0, %s15, %s13
  $region1: #{skel_lstm_forward.1} parent=0
    #allocation4 [shape = 'u8[262144]{0}', space=vmem, size = 0x40000, scoped, tag = 'input window, operand 2, single buffered']
    #allocation5 [shape = 's32[1]{0}', space=sflag, size = 0x4, scoped, tag = 'scoped memory for skel_lstm_forward.1']
    #allocation6 [shape = 's32[1]{0}', space=sflag, size = 0x4, scoped, tag = 'scoped memory for skel_lstm_forward.1']
    #allocation7 [shape = 'u8[524288]{0}', space=vmem, size = 0x80000, scoped, tag = 'input window, operand 4, single buffered']
    #allocation8 [shape = 's32[1]{0}', space=sflag, size = 0x4, scoped, tag = 'scoped memory for skel_lstm_forward.1']
    #allocation9 [shape = 'u8[1048576]{0}', space=vmem, size = 0x100000, scoped, tag = 'input window, operand 5, single buffered']
    #allocation10 [shape = 'u8[524288]{0}', space=vmem, size = 0x80000, scoped, tag = 'input window, operand 7, single buffered']
    #allocation11 [shape = 's32[1]{0}', space=sflag, size = 0x4, scoped, tag = 'scoped memory for skel_lstm_forward.1']
    #allocation12 [shape = 'u8[262144]{0}', space=vmem, size = 0x40000, scoped, tag = 'input window, operand 8, single buffered']
    #allocation13 [shape = 'u8[1024]{0}', space=vmem, size = 0x400, scoped, tag = 'output window, operand 0, single buffered']
    %17 = vsyncpa [#allocation5], 0
    %18 = vsyncpa [#allocation8], 0
    %19 = vsyncpa [#allocation11], 0
    %20 = vsyncpa [#allocation6], 0
    // Predicated region
    $region2: #{skel_lstm_forward.1} parent=1 // pred_check
      _
    $region3: #{skel_lstm_forward.1} parent=1 // pred_check_branch
      %22 = sbr.rel (0) target = $region5
    $region4: #{skel_lstm_forward.1} parent=1 // pred_region
      _
    $region5: #{skel_lstm_forward.1} parent=1 // pred_fallthru
      _
    // Predicated region
    $region6: #{skel_lstm_forward.1} parent=1 // pred_check
      _
    $region7: #{skel_lstm_forward.1} parent=1 // pred_check_branch
      %24 = sbr.rel (0) target = $region9
    $region8: #{skel_lstm_forward.1} parent=1 // pred_region
      _
    $region9: #{skel_lstm_forward.1} parent=1 // pred_fallthru
      _
    // Predicated region
    $region10: #{skel_lstm_forward.1} parent=1 // pred_check
      _
    $region11: #{skel_lstm_forward.1} parent=1 // pred_check_branch
      %26 = sbr.rel (0) target = $region13
    $region12: #{skel_lstm_forward.1} parent=1 // pred_region
      %s28 = ssub.s32 8192, 8192
      %29 = vsyncadd [#allocation5], %s28
      %s30 = sshll.u32 [#allocation4], 4
      %s31 = int_to_ptr.vmem [resolvable:$true] %s30
      %36 = dma.hbm_to_vmem [thread:$0]  %s2, 8192, %s31, [#allocation5], 512, 512, 32
    $region13: #{skel_lstm_forward.1} parent=1 // pred_fallthru
      _
    // Predicated region
    $region14: #{skel_lstm_forward.1} parent=1 // pred_check
      _
    $region15: #{skel_lstm_forward.1} parent=1 // pred_check_branch
      %38 = sbr.rel (0) target = $region17
    $region16: #{skel_lstm_forward.1} parent=1 // pred_region
      _
    $region17: #{skel_lstm_forward.1} parent=1 // pred_fallthru
      _
    // Predicated region
    $region18: #{skel_lstm_forward.1} parent=1 // pred_check
      _
    $region19: #{skel_lstm_forward.1} parent=1 // pred_check_branch
      %40 = sbr.rel (0) target = $region21
    $region20: #{skel_lstm_forward.1} parent=1 // pred_region
      %s42 = ssub.s32 16384, 16384
      %43 = vsyncadd [#allocation8], %s42
      %s44 = sshll.u32 [#allocation7], 4
      %s45 = int_to_ptr.vmem [resolvable:$true] %s44
      %50 = dma.hbm_to_vmem [thread:$0]  %s4, 16384, %s45, [#allocation8], 1024, 1024, 64
    $region21: #{skel_lstm_forward.1} parent=1 // pred_fallthru
      _
    // Predicated region
    $region22: #{skel_lstm_forward.1} parent=1 // pred_check
      _
    $region23: #{skel_lstm_forward.1} parent=1 // pred_check_branch
      %52 = sbr.rel (0) target = $region25
    $region24: #{skel_lstm_forward.1} parent=1 // pred_region
      %s54 = ssub.s32 32768, 32768
      %55 = vsyncadd [#allocation8], %s54
      %s56 = sshll.u32 [#allocation9], 4
      %s57 = int_to_ptr.vmem [resolvable:$true] %s56
      %62 = dma.hbm_to_vmem [thread:$0]  %s5, 32768, %s57, [#allocation8], 1024, 1024, 64
    $region25: #{skel_lstm_forward.1} parent=1 // pred_fallthru
      _
    // Predicated region
    $region26: #{skel_lstm_forward.1} parent=1 // pred_check
      _
    $region27: #{skel_lstm_forward.1} parent=1 // pred_check_branch
      %64 = sbr.rel (0) target = $region29
    $region28: #{skel_lstm_forward.1} parent=1 // pred_region
      _
    $region29: #{skel_lstm_forward.1} parent=1 // pred_fallthru
      _
    // Predicated region
    $region30: #{skel_lstm_forward.1} parent=1 // pred_check
      _
    $region31: #{skel_lstm_forward.1} parent=1 // pred_check_branch
      %66 = sbr.rel (0) target = $region33
    $region32: #{skel_lstm_forward.1} parent=1 // pred_region
      %s68 = ssub.s32 16384, 16384
      %69 = vsyncadd [#allocation11], %s68
      %s70 = sshll.u32 [#allocation10], 4
      %s71 = int_to_ptr.vmem [resolvable:$true] %s70
      %76 = dma.hbm_to_vmem [thread:$0]  %s7, 16384, %s71, [#allocation11], 512, 512, 32
    $region33: #{skel_lstm_forward.1} parent=1 // pred_fallthru
      _
    // Predicated region
    $region34: #{skel_lstm_forward.1} parent=1 // pred_check
      _
    $region35: #{skel_lstm_forward.1} parent=1 // pred_check_branch
      %78 = sbr.rel (0) target = $region37
    $region36: #{skel_lstm_forward.1} parent=1 // pred_region
      %s80 = ssub.s32 8192, 8192
      %81 = vsyncadd [#allocation11], %s80
      %s82 = sshll.u32 [#allocation12], 4
      %s83 = int_to_ptr.vmem [resolvable:$true] %s82
      %88 = dma.hbm_to_vmem [thread:$0]  %s8, 8192, %s83, [#allocation11], 512, 512, 32
    $region37: #{skel_lstm_forward.1} parent=1 // pred_fallthru
      _
    // Predicated region
    $region38: #{skel_lstm_forward.1} parent=1 // pred_check
      _
    $region39: #{skel_lstm_forward.1} parent=1 // pred_check_branch
      %90 = sbr.rel (0) target = $region41
    $region40: #{skel_lstm_forward.1} parent=1 // pred_region
      _
    $region41: #{skel_lstm_forward.1} parent=1 // pred_fallthru
      _
    // Predicated region
    $region42: #{skel_lstm_forward.1} parent=1 // pred_check
      _
    $region43: #{skel_lstm_forward.1} parent=1 // pred_check_branch
      %92 = sbr.rel (0) target = $region45
    $region44: #{skel_lstm_forward.1} parent=1 // pred_region
      _
    $region45: #{skel_lstm_forward.1} parent=1 // pred_fallthru
      _
    // Predicated region
    $region46: #{skel_lstm_forward.1} parent=1 // pred_check
      _
    $region47: #{skel_lstm_forward.1} parent=1 // pred_check_branch
      %94 = sbr.rel (0) target = $region49
    $region48: #{skel_lstm_forward.1} parent=1 // pred_region
      _
    $region49: #{skel_lstm_forward.1} parent=1 // pred_fallthru
      _
    // Predicated region
    $region50: #{skel_lstm_forward.1} parent=1 // pred_check
      _
    $region51: #{skel_lstm_forward.1} parent=1 // pred_check_branch
      %96 = sbr.rel (0) target = $region53
    $region52: #{skel_lstm_forward.1} parent=1 // pred_region
      %97 = dma.done [#allocation5], 8192
    $region53: #{skel_lstm_forward.1} parent=1 // pred_fallthru
      _
    // Predicated region
    $region54: #{skel_lstm_forward.1} parent=1 // pred_check
      _
    $region55: #{skel_lstm_forward.1} parent=1 // pred_check_branch
      %99 = sbr.rel (0) target = $region57
    $region56: #{skel_lstm_forward.1} parent=1 // pred_region
      %100 = dma.done [#allocation8], 16384
    $region57: #{skel_lstm_forward.1} parent=1 // pred_fallthru
      _
    // Predicated region
    $region58: #{skel_lstm_forward.1} parent=1 // pred_check
      _
    $region59: #{skel_lstm_forward.1} parent=1 // pred_check_branch
      %102 = sbr.rel (0) target = $region61
    $region60: #{skel_lstm_forward.1} parent=1 // pred_region
      %103 = dma.done [#allocation8], 32768
    $region61: #{skel_lstm_forward.1} parent=1 // pred_fallthru
      _
    // Predicated region
    $region62: #{skel_lstm_forward.1} parent=1 // pred_check
      _
    $region63: #{skel_lstm_forward.1} parent=1 // pred_check_branch
      %105 = sbr.rel (0) target = $region65
    $region64: #{skel_lstm_forward.1} parent=1 // pred_region
      %106 = dma.done [#allocation11], 16384
    $region65: #{skel_lstm_forward.1} parent=1 // pred_fallthru
      _
    // Predicated region
    $region66: #{skel_lstm_forward.1} parent=1 // pred_check
      _
    $region67: #{skel_lstm_forward.1} parent=1 // pred_check_branch
      %108 = sbr.rel (0) target = $region69
    $region68: #{skel_lstm_forward.1} parent=1 // pred_region
      %109 = dma.done [#allocation11], 8192
    $region69: #{skel_lstm_forward.1} parent=1 // pred_fallthru
      _
    %v110 = vld [vmem:[%s0] sm:$0xff]
    %v111 = vld [vmem:[%s0 + $0x8] sm:$0xff]
    %v112 = vld [vmem:[%s1] sm:$0xff]
    %v113 = vld [vmem:[%s1 + $0x8] sm:$0xff]
    %v114 = vld [vmem:[%s1 + $0x10] sm:$0xff]
    %v115 = vld [vmem:[%s1 + $0x18] sm:$0xff]
    %v116 = vld [vmem:[%s1 + $0x20] sm:$0xff]
    %v117 = vld [vmem:[%s1 + $0x28] sm:$0xff]
    %v118 = vld [vmem:[%s1 + $0x30] sm:$0xff]
    %v119 = vld [vmem:[%s1 + $0x38] sm:$0xff]
    %v120 = vld [vmem:[%s1 + $0x40] sm:$0xff]
    %v121 = vld [vmem:[%s1 + $0x48] sm:$0xff]
    %v122 = vld [vmem:[%s1 + $0x50] sm:$0xff]
    %v123 = vld [vmem:[%s1 + $0x58] sm:$0xff]
    %v124 = vld [vmem:[%s1 + $0x60] sm:$0xff]
    %v125 = vld [vmem:[%s1 + $0x68] sm:$0xff]
    %v126 = vld [vmem:[%s1 + $0x70] sm:$0xff]
    %v127 = vld [vmem:[%s1 + $0x78] sm:$0xff]
    %v128 = vld [vmem:[%s1 + $0x80] sm:$0x3]
    %v129 = vld [vmem:[%s1 + $0x88] sm:$0x3]
    %v130 = vld [vmem:[%s1 + $0x90] sm:$0x3]
    %v131 = vld [vmem:[%s1 + $0x98] sm:$0x3]
    %v132 = vld [vmem:[%s3] sm:$0xf]
    %v134 = vlaneseq
    %v135 = vshrl.u32 %v134, 7
    %v136 = vsub.s32 0, %v135
    %v137 = vrot.slane %v132, %v136
    %v138 = vlaneseq
    %v139 = vshrl.u32 %v138, 7
    %v140 = vsub.s32 1, %v139
    %v141 = vrot.slane %v132, %v140
    %v142 = vlaneseq
    %v143 = vshrl.u32 %v142, 7
    %v144 = vsub.s32 2, %v143
    %v145 = vrot.slane %v132, %v144
    %v146 = vlaneseq
    %v147 = vshrl.u32 %v146, 7
    %v148 = vsub.s32 3, %v147
    %v149 = vrot.slane %v132, %v148
    %vm154 = vcmask 277504
    %v156 = vsel %vm154, %v110, 0
    %v159 = vsel %vm154, %v111, 0
    %vm161 = vcmask 1041408
    %v163 = vsel %vm161, %v128, 0
    %v166 = vsel %vm161, %v129, 0
    %v169 = vsel %vm161, %v130, 0
    %v172 = vsel %vm161, %v131, 0
    %174 = vmatprep.subr.mxu0 %v113
    %175 = vmatpush1.msra.mxu0 %v112
    %176 = vmatprep.subr.mxu0 %v117
    %177 = vmatpush1.msra.mxu0 %v116
    %178 = vmatprep.subr.mxu0 %v121
    %179 = vmatpush1.msra.mxu0 %v120
    %180 = vmatprep.subr.mxu0 %v125
    %181 = vmatpush1.msra.mxu0 %v124
    %182 = vmatprep.subr.mxu0 %v166
    %183 = vmatpush1.msra.mxu0 %v163
    %184 = vmatprep.subr.mxu0 0.0
    %185 = vmatpush1.msra.mxu0 0.0
    %186 = vmatprep.subr.mxu0 0.0
    %187 = vmatpush1.msra.mxu0 0.0
    %188 = vmatprep.subr.mxu0 0.0
    %189 = vmatpush1.msra.mxu0 0.0
    %190 = vmatprep.subr.mxu0 0.0
    %191 = vmatpush1.msra.mxu0 0.0
    %192 = vmatprep.subr.mxu0 0.0
    %193 = vmatpush1.msra.mxu0 0.0
    %194 = vmatprep.subr.mxu0 0.0
    %195 = vmatpush1.msra.mxu0 0.0
    %196 = vmatprep.subr.mxu0 0.0
    %197 = vmatpush1.msra.mxu0 0.0
    %198 = vmatprep.subr.mxu0 0.0
    %199 = vmatpush1.msra.mxu0 0.0
    %200 = vmatprep.subr.mxu0 0.0
    %201 = vmatpush1.msra.mxu0 0.0
    %202 = vmatprep.subr.mxu0 0.0
    %203 = vmatpush1.msra.mxu0 0.0
    %204 = vmatprep.subr.mxu0 0.0
    %205 = vmatpush1.msra.mxu0 0.0
    %206 = vmatprep.subr.mxu0 0.0
    %207 = vmatpush1.msra.mxu0 0.0
    %208 = vmatprep.subr.mxu0 0.0
    %209 = vmatpush1.msra.mxu0 0.0
    %210 = vmatprep.subr.mxu0 0.0
    %211 = vmatpush1.msra.mxu0 0.0
    %212 = vmatprep.subr.mxu0 0.0
    %213 = vmatpush1.msra.mxu0 0.0
    %214 = vmatprep.subr.mxu0 0.0
    %215 = vmatpush1.msra.mxu0 0.0
    %216 = vmatprep.subr.mxu0 0.0
    %217 = vmatpush1.msra.mxu0 0.0
    %218 = vmatprep.subr.mxu0 0.0
    %219 = vmatpush1.msra.mxu0 0.0
    %220 = vmatprep.subr.mxu0 0.0
    %221 = vmatpush1.msra.mxu0 0.0
    %222 = vmatprep.subr.mxu0 0.0
    %223 = vmatpush1.msra.mxu0 0.0
    %224 = vmatprep.subr.mxu0 0.0
    %225 = vmatpush1.msra.mxu0 0.0
    %226 = vmatprep.subr.mxu0 0.0
    %227 = vmatpush1.msra.mxu0 0.0
    %228 = vmatprep.subr.mxu0 0.0
    %229 = vmatpush1.msra.mxu0 0.0
    %230 = vmatprep.subr.mxu0 0.0
    %231 = vmatpush1.msra.mxu0 0.0
    %232 = vmatprep.subr.mxu0 0.0
    %233 = vmatpush1.msra.mxu0 0.0
    %234 = vmatprep.subr.mxu0 0.0
    %235 = vmatpush1.msra.mxu0 0.0
    %236 = vmatprep.subr.mxu0 0.0
    %237 = vmatpush1.msra.mxu0 0.0
    %238 = vmatprep.mubr.f32.mxu0 0.0
    %239 = vmatmul.mubr.f32.gmra.mrb[0].mxu0 %v156
    %v240 = vpop.f32.mrb[0].mxu0
    %v241 = vadd.f32 %v137, %v240
    %v242 = vpop.f32.mrb[0].mxu0
    %v243 = vadd.f32 %v141, %v242
    %244 = vmatprep.mubr.f32.mxu0 0.0
    %245 = vmatmul.mubr.f32.gmra.mrb[0].mxu0 %v159
    %v246 = vpop.f32.mrb[0].mxu0
    %v247 = vadd.f32 %v137, %v246
    %v248 = vpop.f32.mrb[0].mxu0
    %v249 = vadd.f32 %v141, %v248
    %250 = vdwg.mxu0
    %251 = vmatprep.subr.mxu0 %v115
    %252 = vmatpush1.msra.mxu0 %v114
    %253 = vmatprep.subr.mxu0 %v119
    %254 = vmatpush1.msra.mxu0 %v118
    %255 = vmatprep.subr.mxu0 %v123
    %256 = vmatpush1.msra.mxu0 %v122
    %257 = vmatprep.subr.mxu0 %v127
    %258 = vmatpush1.msra.mxu0 %v126
    %259 = vmatprep.subr.mxu0 %v172
    %260 = vmatpush1.msra.mxu0 %v169
    %261 = vmatprep.subr.mxu0 0.0
    %262 = vmatpush1.msra.mxu0 0.0
    %263 = vmatprep.subr.mxu0 0.0
    %264 = vmatpush1.msra.mxu0 0.0
    %265 = vmatprep.subr.mxu0 0.0
    %266 = vmatpush1.msra.mxu0 0.0
    %267 = vmatprep.subr.mxu0 0.0
    %268 = vmatpush1.msra.mxu0 0.0
    %269 = vmatprep.subr.mxu0 0.0
    %270 = vmatpush1.msra.mxu0 0.0
    %271 = vmatprep.subr.mxu0 0.0
    %272 = vmatpush1.msra.mxu0 0.0
    %273 = vmatprep.subr.mxu0 0.0
    %274 = vmatpush1.msra.mxu0 0.0
    %275 = vmatprep.subr.mxu0 0.0
    %276 = vmatpush1.msra.mxu0 0.0
    %277 = vmatprep.subr.mxu0 0.0
    %278 = vmatpush1.msra.mxu0 0.0
    %279 = vmatprep.subr.mxu0 0.0
    %280 = vmatpush1.msra.mxu0 0.0
    %281 = vmatprep.subr.mxu0 0.0
    %282 = vmatpush1.msra.mxu0 0.0
    %283 = vmatprep.subr.mxu0 0.0
    %284 = vmatpush1.msra.mxu0 0.0
    %285 = vmatprep.subr.mxu0 0.0
    %286 = vmatpush1.msra.mxu0 0.0
    %287 = vmatprep.subr.mxu0 0.0
    %288 = vmatpush1.msra.mxu0 0.0
    %289 = vmatprep.subr.mxu0 0.0
    %290 = vmatpush1.msra.mxu0 0.0
    %291 = vmatprep.subr.mxu0 0.0
    %292 = vmatpush1.msra.mxu0 0.0
    %293 = vmatprep.subr.mxu0 0.0
    %294 = vmatpush1.msra.mxu0 0.0
    %295 = vmatprep.subr.mxu0 0.0
    %296 = vmatpush1.msra.mxu0 0.0
    %297 = vmatprep.subr.mxu0 0.0
    %298 = vmatpush1.msra.mxu0 0.0
    %299 = vmatprep.subr.mxu0 0.0
    %300 = vmatpush1.msra.mxu0 0.0
    %301 = vmatprep.subr.mxu0 0.0
    %302 = vmatpush1.msra.mxu0 0.0
    %303 = vmatprep.subr.mxu0 0.0
    %304 = vmatpush1.msra.mxu0 0.0
    %305 = vmatprep.subr.mxu0 0.0
    %306 = vmatpush1.msra.mxu0 0.0
    %307 = vmatprep.subr.mxu0 0.0
    %308 = vmatpush1.msra.mxu0 0.0
    %309 = vmatprep.subr.mxu0 0.0
    %310 = vmatpush1.msra.mxu0 0.0
    %311 = vmatprep.subr.mxu0 0.0
    %312 = vmatpush1.msra.mxu0 0.0
    %313 = vmatprep.subr.mxu0 0.0
    %314 = vmatpush1.msra.mxu0 0.0
    %315 = vmatprep.mubr.f32.mxu0 0.0
    %316 = vmatmul.mubr.f32.gmra.mrb[0].mxu0 %v156
    %v317 = vpop.f32.mrb[0].mxu0
    %v318 = vadd.f32 %v145, %v317
    %v319 = vpop.f32.mrb[0].mxu0
    %v320 = vadd.f32 %v149, %v319
    %321 = vmatprep.mubr.f32.mxu0 0.0
    %322 = vmatmul.mubr.f32.gmra.mrb[0].mxu0 %v159
    %v323 = vpop.f32.mrb[0].mxu0
    %v324 = vadd.f32 %v145, %v323
    %v325 = vpop.f32.mrb[0].mxu0
    %v326 = vadd.f32 %v149, %v325
    %327 = vdwg.mxu0
    %v328 = vld [vmem:[#allocation4] sm:$0xff]
    %v329 = vld [vmem:[#allocation4 + $0x8] sm:$0xff]
    %v330 = vld [vmem:[#allocation4 + $0x10] sm:$0xff]
    %v331 = vld [vmem:[#allocation4 + $0x18] sm:$0xff]
    %v332 = vld [vmem:[#allocation4 + $0x20] sm:$0xff]
    %v333 = vld [vmem:[#allocation4 + $0x28] sm:$0xff]
    %v334 = vld [vmem:[#allocation4 + $0x30] sm:$0xff]
    %v335 = vld [vmem:[#allocation4 + $0x38] sm:$0xff]
    %v336 = vld [vmem:[#allocation4 + $0x40] sm:$0xff]
    %v337 = vld [vmem:[#allocation4 + $0x48] sm:$0xff]
    %v338 = vld [vmem:[#allocation4 + $0x50] sm:$0xff]
    %v339 = vld [vmem:[#allocation4 + $0x58] sm:$0xff]
    %v340 = vld [vmem:[#allocation4 + $0x60] sm:$0xff]
    %v341 = vld [vmem:[#allocation4 + $0x68] sm:$0xff]
    %v342 = vld [vmem:[#allocation4 + $0x70] sm:$0xff]
    %v343 = vld [vmem:[#allocation4 + $0x78] sm:$0xff]
    %v344 = vld [vmem:[#allocation4 + $0x80] sm:$0xff]
    %v345 = vld [vmem:[#allocation4 + $0x88] sm:$0xff]
    %v346 = vld [vmem:[#allocation4 + $0x90] sm:$0xff]
    %v347 = vld [vmem:[#allocation4 + $0x98] sm:$0xff]
    %v348 = vld [vmem:[#allocation4 + $0xa0] sm:$0xff]
    %v349 = vld [vmem:[#allocation4 + $0xa8] sm:$0xff]
    %v350 = vld [vmem:[#allocation4 + $0xb0] sm:$0xff]
    %v351 = vld [vmem:[#allocation4 + $0xb8] sm:$0xff]
    %v352 = vld [vmem:[#allocation4 + $0xc0] sm:$0xff]
    %v353 = vld [vmem:[#allocation4 + $0xc8] sm:$0xff]
    %v354 = vld [vmem:[#allocation4 + $0xd0] sm:$0xff]
    %v355 = vld [vmem:[#allocation4 + $0xd8] sm:$0xff]
    %v356 = vld [vmem:[#allocation4 + $0xe0] sm:$0xff]
    %v357 = vld [vmem:[#allocation4 + $0xe8] sm:$0xff]
    %v358 = vld [vmem:[#allocation4 + $0xf0] sm:$0xff]
    %v359 = vld [vmem:[#allocation4 + $0xf8] sm:$0xff]
    %v360 = vld [vmem:[#allocation4 + $0x100] sm:$0xff]
    %v361 = vld [vmem:[#allocation4 + $0x108] sm:$0xff]
    %v362 = vld [vmem:[#allocation4 + $0x110] sm:$0xff]
    %v363 = vld [vmem:[#allocation4 + $0x118] sm:$0xff]
    %v364 = vld [vmem:[#allocation4 + $0x120] sm:$0xff]
    %v365 = vld [vmem:[#allocation4 + $0x128] sm:$0xff]
    %v366 = vld [vmem:[#allocation4 + $0x130] sm:$0xff]
    %v367 = vld [vmem:[#allocation4 + $0x138] sm:$0xff]
    %v368 = vld [vmem:[#allocation4 + $0x140] sm:$0xff]
    %v369 = vld [vmem:[#allocation4 + $0x148] sm:$0xff]
    %v370 = vld [vmem:[#allocation4 + $0x150] sm:$0xff]
    %v371 = vld [vmem:[#allocation4 + $0x158] sm:$0xff]
    %v372 = vld [vmem:[#allocation4 + $0x160] sm:$0xff]
    %v373 = vld [vmem:[#allocation4 + $0x168] sm:$0xff]
    %v374 = vld [vmem:[#allocation4 + $0x170] sm:$0xff]
    %v375 = vld [vmem:[#allocation4 + $0x178] sm:$0xff]
    %v376 = vld [vmem:[#allocation4 + $0x180] sm:$0xff]
    %v377 = vld [vmem:[#allocation4 + $0x188] sm:$0xff]
    %v378 = vld [vmem:[#allocation4 + $0x190] sm:$0xff]
    %v379 = vld [vmem:[#allocation4 + $0x198] sm:$0xff]
    %v380 = vld [vmem:[#allocation4 + $0x1a0] sm:$0xff]
    %v381 = vld [vmem:[#allocation4 + $0x1a8] sm:$0xff]
    %v382 = vld [vmem:[#allocation4 + $0x1b0] sm:$0xff]
    %v383 = vld [vmem:[#allocation4 + $0x1b8] sm:$0xff]
    %v384 = vld [vmem:[#allocation4 + $0x1c0] sm:$0xff]
    %v385 = vld [vmem:[#allocation4 + $0x1c8] sm:$0xff]
    %v386 = vld [vmem:[#allocation4 + $0x1d0] sm:$0xff]
    %v387 = vld [vmem:[#allocation4 + $0x1d8] sm:$0xff]
    %v388 = vld [vmem:[#allocation4 + $0x1e0] sm:$0xff]
    %v389 = vld [vmem:[#allocation4 + $0x1e8] sm:$0xff]
    %v390 = vld [vmem:[#allocation4 + $0x1f0] sm:$0xff]
    %v391 = vld [vmem:[#allocation4 + $0x1f8] sm:$0xff]
    %392 = vmatprep.subr.mxu0 %v329
    %393 = vmatpush1.msra.mxu0 %v328
    %394 = vmatprep.subr.mxu0 %v333
    %395 = vmatpush1.msra.mxu0 %v332
    %396 = vmatprep.subr.mxu0 %v337
    %397 = vmatpush1.msra.mxu0 %v336
    %398 = vmatprep.subr.mxu0 %v341
    %399 = vmatpush1.msra.mxu0 %v340
    %400 = vmatprep.subr.mxu0 %v345
    %401 = vmatpush1.msra.mxu0 %v344
    %402 = vmatprep.subr.mxu0 %v349
    %403 = vmatpush1.msra.mxu0 %v348
    %404 = vmatprep.subr.mxu0 %v353
    %405 = vmatpush1.msra.mxu0 %v352
    %406 = vmatprep.subr.mxu0 %v357
    %407 = vmatpush1.msra.mxu0 %v356
    %408 = vmatprep.subr.mxu0 %v361
    %409 = vmatpush1.msra.mxu0 %v360
    %410 = vmatprep.subr.mxu0 %v365
    %411 = vmatpush1.msra.mxu0 %v364
    %412 = vmatprep.subr.mxu0 %v369
    %413 = vmatpush1.msra.mxu0 %v368
    %414 = vmatprep.subr.mxu0 %v373
    %415 = vmatpush1.msra.mxu0 %v372
    %416 = vmatprep.subr.mxu0 %v377
    %417 = vmatpush1.msra.mxu0 %v376
    %418 = vmatprep.subr.mxu0 %v381
    %419 = vmatpush1.msra.mxu0 %v380
    %420 = vmatprep.subr.mxu0 %v385
    %421 = vmatpush1.msra.mxu0 %v384
    %422 = vmatprep.subr.mxu0 %v389
    %423 = vmatpush1.msra.mxu0 %v388
    %424 = vmatprep.subr.mxu0 0.0
    %425 = vmatpush1.msra.mxu0 0.0
    %426 = vmatprep.subr.mxu0 0.0
    %427 = vmatpush1.msra.mxu0 0.0
    %428 = vmatprep.subr.mxu0 0.0
    %429 = vmatpush1.msra.mxu0 0.0
    %430 = vmatprep.subr.mxu0 0.0
    %431 = vmatpush1.msra.mxu0 0.0
    %432 = vmatprep.subr.mxu0 0.0
    %433 = vmatpush1.msra.mxu0 0.0
    %434 = vmatprep.subr.mxu0 0.0
    %435 = vmatpush1.msra.mxu0 0.0
    %436 = vmatprep.subr.mxu0 0.0
    %437 = vmatpush1.msra.mxu0 0.0
    %438 = vmatprep.subr.mxu0 0.0
    %439 = vmatpush1.msra.mxu0 0.0
    %440 = vmatprep.subr.mxu0 0.0
    %441 = vmatpush1.msra.mxu0 0.0
    %442 = vmatprep.subr.mxu0 0.0
    %443 = vmatpush1.msra.mxu0 0.0
    %444 = vmatprep.subr.mxu0 0.0
    %445 = vmatpush1.msra.mxu0 0.0
    %446 = vmatprep.subr.mxu0 0.0
    %447 = vmatpush1.msra.mxu0 0.0
    %448 = vmatprep.subr.mxu0 0.0
    %449 = vmatpush1.msra.mxu0 0.0
    %450 = vmatprep.subr.mxu0 0.0
    %451 = vmatpush1.msra.mxu0 0.0
    %452 = vmatprep.subr.mxu0 0.0
    %453 = vmatpush1.msra.mxu0 0.0
    %454 = vmatprep.subr.mxu0 0.0
    %455 = vmatpush1.msra.mxu0 0.0
    %456 = vmatprep.mubr.f32.mxu0 0.0
    %457 = vmatmul.mubr.f32.gmra.mrb[0].mxu0 0.0
    %v458 = vpop.f32.mrb[0].mxu0
    %v459 = vadd.f32 0.0, %v458
    %v460 = vpop.f32.mrb[0].mxu0
    %v461 = vadd.f32 0.0, %v460
    %462 = vdwg.mxu0
    %463 = vmatprep.subr.mxu0 %v331
    %464 = vmatpush1.msra.mxu0 %v330
    %465 = vmatprep.subr.mxu0 %v335
    %466 = vmatpush1.msra.mxu0 %v334
    %467 = vmatprep.subr.mxu0 %v339
    %468 = vmatpush1.msra.mxu0 %v338
    %469 = vmatprep.subr.mxu0 %v343
    %470 = vmatpush1.msra.mxu0 %v342
    %471 = vmatprep.subr.mxu0 %v347
    %472 = vmatpush1.msra.mxu0 %v346
    %473 = vmatprep.subr.mxu0 %v351
    %474 = vmatpush1.msra.mxu0 %v350
    %475 = vmatprep.subr.mxu0 %v355
    %476 = vmatpush1.msra.mxu0 %v354
    %477 = vmatprep.subr.mxu0 %v359
    %478 = vmatpush1.msra.mxu0 %v358
    %479 = vmatprep.subr.mxu0 %v363
    %480 = vmatpush1.msra.mxu0 %v362
    %481 = vmatprep.subr.mxu0 %v367
    %482 = vmatpush1.msra.mxu0 %v366
    %483 = vmatprep.subr.mxu0 %v371
    %484 = vmatpush1.msra.mxu0 %v370
    %485 = vmatprep.subr.mxu0 %v375
    %486 = vmatpush1.msra.mxu0 %v374
    %487 = vmatprep.subr.mxu0 %v379
    %488 = vmatpush1.msra.mxu0 %v378
    %489 = vmatprep.subr.mxu0 %v383
    %490 = vmatpush1.msra.mxu0 %v382
    %491 = vmatprep.subr.mxu0 %v387
    %492 = vmatpush1.msra.mxu0 %v386
    %493 = vmatprep.subr.mxu0 %v391
    %494 = vmatpush1.msra.mxu0 %v390
    %495 = vmatprep.subr.mxu0 0.0
    %496 = vmatpush1.msra.mxu0 0.0
    %497 = vmatprep.subr.mxu0 0.0
    %498 = vmatpush1.msra.mxu0 0.0
    %499 = vmatprep.subr.mxu0 0.0
    %500 = vmatpush1.msra.mxu0 0.0
    %501 = vmatprep.subr.mxu0 0.0
    %502 = vmatpush1.msra.mxu0 0.0
    %503 = vmatprep.subr.mxu0 0.0
    %504 = vmatpush1.msra.mxu0 0.0
    %505 = vmatprep.subr.mxu0 0.0
    %506 = vmatpush1.msra.mxu0 0.0
    %507 = vmatprep.subr.mxu0 0.0
    %508 = vmatpush1.msra.mxu0 0.0
    %509 = vmatprep.subr.mxu0 0.0
    %510 = vmatpush1.msra.mxu0 0.0
    %511 = vmatprep.subr.mxu0 0.0
    %512 = vmatpush1.msra.mxu0 0.0
    %513 = vmatprep.subr.mxu0 0.0
    %514 = vmatpush1.msra.mxu0 0.0
    %515 = vmatprep.subr.mxu0 0.0
    %516 = vmatpush1.msra.mxu0 0.0
    %517 = vmatprep.subr.mxu0 0.0
    %518 = vmatpush1.msra.mxu0 0.0
    %519 = vmatprep.subr.mxu0 0.0
    %520 = vmatpush1.msra.mxu0 0.0
    %521 = vmatprep.subr.mxu0 0.0
    %522 = vmatpush1.msra.mxu0 0.0
    %523 = vmatprep.subr.mxu0 0.0
    %524 = vmatpush1.msra.mxu0 0.0
    %525 = vmatprep.subr.mxu0 0.0
    %526 = vmatpush1.msra.mxu0 0.0
    %527 = vmatprep.mubr.f32.mxu0 0.0
    %528 = vmatmul.mubr.f32.gmra.mrb[0].mxu0 0.0
    %v529 = vpop.f32.mrb[0].mxu0
    %v530 = vadd.f32 0.0, %v529
    %v531 = vpop.f32.mrb[0].mxu0
    %v532 = vadd.f32 0.0, %v531
    %533 = vdwg.mxu0
    %v534 = vadd.f32 %v241, %v459
    %v535 = vadd.f32 %v243, %v461
    %v536 = vadd.f32 %v318, %v530
    %v537 = vadd.f32 %v320, %v532
    %v538 = vxor.u32 %v534, 2147483648
    %v539 = vmul.f32 %v538, 1.442695
    %v540 = vpow.pop %v539
    %v541 = vadd.f32 %v540, 1.0
    %v542 = vrcp.pop %v541
    %v543 = vmul.f32 1.0, %v542
    %v544 = vxor.u32 %v535, 2147483648
    %v545 = vmul.f32 %v544, 1.442695
    %v546 = vpow.pop %v545
    %v547 = vadd.f32 %v546, 1.0
    %v548 = vrcp.pop %v547
    %v549 = vmul.f32 1.0, %v548
    %v550 = vtanh.pop %v536
    %v551 = vxor.u32 %v537, 2147483648
    %v552 = vmul.f32 %v551, 1.442695
    %v553 = vpow.pop %v552
    %v554 = vadd.f32 %v553, 1.0
    %v555 = vrcp.pop %v554
    %v556 = vmul.f32 1.0, %v555
    %v557 = vmul.f32 %v549, 0.0
    %v558 = vmul.f32 %v543, %v550
    %v559 = vadd.f32 %v557, %v558
    %v560 = vtanh.pop %v559
    %v561 = vmul.f32 %v556, %v560
    %562 = vst [vmem:[#allocation2] sm:$0x3] %v561
    %563 = vmatprep.subr.mxu0 %v329
    %564 = vmatpush1.msra.mxu0 %v328
    %565 = vmatprep.subr.mxu0 %v333
    %566 = vmatpush1.msra.mxu0 %v332
    %567 = vmatprep.subr.mxu0 %v337
    %568 = vmatpush1.msra.mxu0 %v336
    %569 = vmatprep.subr.mxu0 %v341
    %570 = vmatpush1.msra.mxu0 %v340
    %571 = vmatprep.subr.mxu0 %v345
    %572 = vmatpush1.msra.mxu0 %v344
    %573 = vmatprep.subr.mxu0 %v349
    %574 = vmatpush1.msra.mxu0 %v348
    %575 = vmatprep.subr.mxu0 %v353
    %576 = vmatpush1.msra.mxu0 %v352
    %577 = vmatprep.subr.mxu0 %v357
    %578 = vmatpush1.msra.mxu0 %v356
    %579 = vmatprep.subr.mxu0 %v361
    %580 = vmatpush1.msra.mxu0 %v360
    %581 = vmatprep.subr.mxu0 %v365
    %582 = vmatpush1.msra.mxu0 %v364
    %583 = vmatprep.subr.mxu0 %v369
    %584 = vmatpush1.msra.mxu0 %v368
    %585 = vmatprep.subr.mxu0 %v373
    %586 = vmatpush1.msra.mxu0 %v372
    %587 = vmatprep.subr.mxu0 %v377
    %588 = vmatpush1.msra.mxu0 %v376
    %589 = vmatprep.subr.mxu0 %v381
    %590 = vmatpush1.msra.mxu0 %v380
    %591 = vmatprep.subr.mxu0 %v385
    %592 = vmatpush1.msra.mxu0 %v384
    %593 = vmatprep.subr.mxu0 %v389
    %594 = vmatpush1.msra.mxu0 %v388
    %595 = vmatprep.subr.mxu0 0.0
    %596 = vmatpush1.msra.mxu0 0.0
    %597 = vmatprep.subr.mxu0 0.0
    %598 = vmatpush1.msra.mxu0 0.0
    %599 = vmatprep.subr.mxu0 0.0
    %600 = vmatpush1.msra.mxu0 0.0
    %601 = vmatprep.subr.mxu0 0.0
    %602 = vmatpush1.msra.mxu0 0.0
    %603 = vmatprep.subr.mxu0 0.0
    %604 = vmatpush1.msra.mxu0 0.0
    %605 = vmatprep.subr.mxu0 0.0
    %606 = vmatpush1.msra.mxu0 0.0
    %607 = vmatprep.subr.mxu0 0.0
    %608 = vmatpush1.msra.mxu0 0.0
    %609 = vmatprep.subr.mxu0 0.0
    %610 = vmatpush1.msra.mxu0 0.0
    %611 = vmatprep.subr.mxu0 0.0
    %612 = vmatpush1.msra.mxu0 0.0
    %613 = vmatprep.subr.mxu0 0.0
    %614 = vmatpush1.msra.mxu0 0.0
    %615 = vmatprep.subr.mxu0 0.0
    %616 = vmatpush1.msra.mxu0 0.0
    %617 = vmatprep.subr.mxu0 0.0
    %618 = vmatpush1.msra.mxu0 0.0
    %619 = vmatprep.subr.mxu0 0.0
    %620 = vmatpush1.msra.mxu0 0.0
    %621 = vmatprep.subr.mxu0 0.0
    %622 = vmatpush1.msra.mxu0 0.0
    %623 = vmatprep.subr.mxu0 0.0
    %624 = vmatpush1.msra.mxu0 0.0
    %625 = vmatprep.subr.mxu0 0.0
    %626 = vmatpush1.msra.mxu0 0.0
    %627 = vmatprep.mubr.f32.mxu0 0.0
    %628 = vmatmul.mubr.f32.gmra.mrb[0].mxu0 %v561
    %v629 = vpop.f32.mrb[0].mxu0
    %v630 = vadd.f32 0.0, %v629
    %v631 = vpop.f32.mrb[0].mxu0
    %v632 = vadd.f32 0.0, %v631
    %633 = vdwg.mxu0
    %634 = vmatprep.subr.mxu0 %v331
    %635 = vmatpush1.msra.mxu0 %v330
    %636 = vmatprep.subr.mxu0 %v335
    %637 = vmatpush1.msra.mxu0 %v334
    %638 = vmatprep.subr.mxu0 %v339
    %639 = vmatpush1.msra.mxu0 %v338
    %640 = vmatprep.subr.mxu0 %v343
    %641 = vmatpush1.msra.mxu0 %v342
    %642 = vmatprep.subr.mxu0 %v347
    %643 = vmatpush1.msra.mxu0 %v346
    %644 = vmatprep.subr.mxu0 %v351
    %645 = vmatpush1.msra.mxu0 %v350
    %646 = vmatprep.subr.mxu0 %v355
    %647 = vmatpush1.msra.mxu0 %v354
    %648 = vmatprep.subr.mxu0 %v359
    %649 = vmatpush1.msra.mxu0 %v358
    %650 = vmatprep.subr.mxu0 %v363
    %651 = vmatpush1.msra.mxu0 %v362
    %652 = vmatprep.subr.mxu0 %v367
    %653 = vmatpush1.msra.mxu0 %v366
    %654 = vmatprep.subr.mxu0 %v371
    %655 = vmatpush1.msra.mxu0 %v370
    %656 = vmatprep.subr.mxu0 %v375
    %657 = vmatpush1.msra.mxu0 %v374
    %658 = vmatprep.subr.mxu0 %v379
    %659 = vmatpush1.msra.mxu0 %v378
    %660 = vmatprep.subr.mxu0 %v383
    %661 = vmatpush1.msra.mxu0 %v382
    %662 = vmatprep.subr.mxu0 %v387
    %663 = vmatpush1.msra.mxu0 %v386
    %664 = vmatprep.subr.mxu0 %v391
    %665 = vmatpush1.msra.mxu0 %v390
    %666 = vmatprep.subr.mxu0 0.0
    %667 = vmatpush1.msra.mxu0 0.0
    %668 = vmatprep.subr.mxu0 0.0
    %669 = vmatpush1.msra.mxu0 0.0
    %670 = vmatprep.subr.mxu0 0.0
    %671 = vmatpush1.msra.mxu0 0.0
    %672 = vmatprep.subr.mxu0 0.0
    %673 = vmatpush1.msra.mxu0 0.0
    %674 = vmatprep.subr.mxu0 0.0
    %675 = vmatpush1.msra.mxu0 0.0
    %676 = vmatprep.subr.mxu0 0.0
    %677 = vmatpush1.msra.mxu0 0.0
    %678 = vmatprep.subr.mxu0 0.0
    %679 = vmatpush1.msra.mxu0 0.0
    %680 = vmatprep.subr.mxu0 0.0
    %681 = vmatpush1.msra.mxu0 0.0
    %682 = vmatprep.subr.mxu0 0.0
    %683 = vmatpush1.msra.mxu0 0.0
    %684 = vmatprep.subr.mxu0 0.0
    %685 = vmatpush1.msra.mxu0 0.0
    %686 = vmatprep.subr.mxu0 0.0
    %687 = vmatpush1.msra.mxu0 0.0
    %688 = vmatprep.subr.mxu0 0.0
    %689 = vmatpush1.msra.mxu0 0.0
    %690 = vmatprep.subr.mxu0 0.0
    %691 = vmatpush1.msra.mxu0 0.0
    %692 = vmatprep.subr.mxu0 0.0
    %693 = vmatpush1.msra.mxu0 0.0
    %694 = vmatprep.subr.mxu0 0.0
    %695 = vmatpush1.msra.mxu0 0.0
    %696 = vmatprep.subr.mxu0 0.0
    %697 = vmatpush1.msra.mxu0 0.0
    %698 = vmatprep.mubr.f32.mxu0 0.0
    %699 = vmatmul.mubr.f32.gmra.mrb[0].mxu0 %v561
    %v700 = vpop.f32.mrb[0].mxu0
    %v701 = vadd.f32 0.0, %v700
    %v702 = vpop.f32.mrb[0].mxu0
    %v703 = vadd.f32 0.0, %v702
    %704 = vdwg.mxu0
    %v709 = vrot.slane %v630, 6
    %v710 = vrot.slane %v632, 6
    %v711 = vrot.slane %v701, 6
    %v712 = vrot.slane %v703, 6
    %v717 = vadd.f32 %v241, %v709
    %v718 = vadd.f32 %v243, %v710
    %v719 = vadd.f32 %v318, %v711
    %v720 = vadd.f32 %v320, %v712
    %v721 = vxor.u32 %v717, 2147483648
    %v722 = vmul.f32 %v721, 1.442695
    %v723 = vpow.pop %v722
    %v724 = vadd.f32 %v723, 1.0
    %v725 = vrcp.pop %v724
    %v726 = vmul.f32 1.0, %v725
    %v727 = vxor.u32 %v718, 2147483648
    %v728 = vmul.f32 %v727, 1.442695
    %v729 = vpow.pop %v728
    %v730 = vadd.f32 %v729, 1.0
    %v731 = vrcp.pop %v730
    %v732 = vmul.f32 1.0, %v731
    %v733 = vtanh.pop %v719
    %v734 = vxor.u32 %v720, 2147483648
    %v735 = vmul.f32 %v734, 1.442695
    %v736 = vpow.pop %v735
    %v737 = vadd.f32 %v736, 1.0
    %v738 = vrcp.pop %v737
    %v739 = vmul.f32 1.0, %v738
    %v741 = vrot.slane %v559, 6
    %v743 = vmul.f32 %v732, %v741
    %v744 = vmul.f32 %v726, %v733
    %v745 = vadd.f32 %v743, %v744
    %v746 = vtanh.pop %v745
    %v747 = vmul.f32 %v739, %v746
    %748 = vst [vmem:[#allocation2] sm:$0xc] %v747
    %v750 = vrot.slane %v747, 2
    %752 = vmatprep.subr.mxu0 %v329
    %753 = vmatpush1.msra.mxu0 %v328
    %754 = vmatprep.subr.mxu0 %v333
    %755 = vmatpush1.msra.mxu0 %v332
    %756 = vmatprep.subr.mxu0 %v337
    %757 = vmatpush1.msra.mxu0 %v336
    %758 = vmatprep.subr.mxu0 %v341
    %759 = vmatpush1.msra.mxu0 %v340
    %760 = vmatprep.subr.mxu0 %v345
    %761 = vmatpush1.msra.mxu0 %v344
    %762 = vmatprep.subr.mxu0 %v349
    %763 = vmatpush1.msra.mxu0 %v348
    %764 = vmatprep.subr.mxu0 %v353
    %765 = vmatpush1.msra.mxu0 %v352
    %766 = vmatprep.subr.mxu0 %v357
    %767 = vmatpush1.msra.mxu0 %v356
    %768 = vmatprep.subr.mxu0 %v361
    %769 = vmatpush1.msra.mxu0 %v360
    %770 = vmatprep.subr.mxu0 %v365
    %771 = vmatpush1.msra.mxu0 %v364
    %772 = vmatprep.subr.mxu0 %v369
    %773 = vmatpush1.msra.mxu0 %v368
    %774 = vmatprep.subr.mxu0 %v373
    %775 = vmatpush1.msra.mxu0 %v372
    %776 = vmatprep.subr.mxu0 %v377
    %777 = vmatpush1.msra.mxu0 %v376
    %778 = vmatprep.subr.mxu0 %v381
    %779 = vmatpush1.msra.mxu0 %v380
    %780 = vmatprep.subr.mxu0 %v385
    %781 = vmatpush1.msra.mxu0 %v384
    %782 = vmatprep.subr.mxu0 %v389
    %783 = vmatpush1.msra.mxu0 %v388
    %784 = vmatprep.subr.mxu0 0.0
    %785 = vmatpush1.msra.mxu0 0.0
    %786 = vmatprep.subr.mxu0 0.0
    %787 = vmatpush1.msra.mxu0 0.0
    %788 = vmatprep.subr.mxu0 0.0
    %789 = vmatpush1.msra.mxu0 0.0
    %790 = vmatprep.subr.mxu0 0.0
    %791 = vmatpush1.msra.mxu0 0.0
    %792 = vmatprep.subr.mxu0 0.0
    %793 = vmatpush1.msra.mxu0 0.0
    %794 = vmatprep.subr.mxu0 0.0
    %795 = vmatpush1.msra.mxu0 0.0
    %796 = vmatprep.subr.mxu0 0.0
    %797 = vmatpush1.msra.mxu0 0.0
    %798 = vmatprep.subr.mxu0 0.0
    %799 = vmatpush1.msra.mxu0 0.0
    %800 = vmatprep.subr.mxu0 0.0
    %801 = vmatpush1.msra.mxu0 0.0
    %802 = vmatprep.subr.mxu0 0.0
    %803 = vmatpush1.msra.mxu0 0.0
    %804 = vmatprep.subr.mxu0 0.0
    %805 = vmatpush1.msra.mxu0 0.0
    %806 = vmatprep.subr.mxu0 0.0
    %807 = vmatpush1.msra.mxu0 0.0
    %808 = vmatprep.subr.mxu0 0.0
    %809 = vmatpush1.msra.mxu0 0.0
    %810 = vmatprep.subr.mxu0 0.0
    %811 = vmatpush1.msra.mxu0 0.0
    %812 = vmatprep.subr.mxu0 0.0
    %813 = vmatpush1.msra.mxu0 0.0
    %814 = vmatprep.subr.mxu0 0.0
    %815 = vmatpush1.msra.mxu0 0.0
    %816 = vmatprep.mubr.f32.mxu0 0.0
    %817 = vmatmul.mubr.f32.gmra.mrb[0].mxu0 %v750
    %v818 = vpop.f32.mrb[0].mxu0
    %v819 = vadd.f32 0.0, %v818
    %v820 = vpop.f32.mrb[0].mxu0
    %v821 = vadd.f32 0.0, %v820
    %822 = vdwg.mxu0
    %823 = vmatprep.subr.mxu0 %v331
    %824 = vmatpush1.msra.mxu0 %v330
    %825 = vmatprep.subr.mxu0 %v335
    %826 = vmatpush1.msra.mxu0 %v334
    %827 = vmatprep.subr.mxu0 %v339
    %828 = vmatpush1.msra.mxu0 %v338
    %829 = vmatprep.subr.mxu0 %v343
    %830 = vmatpush1.msra.mxu0 %v342
    %831 = vmatprep.subr.mxu0 %v347
    %832 = vmatpush1.msra.mxu0 %v346
    %833 = vmatprep.subr.mxu0 %v351
    %834 = vmatpush1.msra.mxu0 %v350
    %835 = vmatprep.subr.mxu0 %v355
    %836 = vmatpush1.msra.mxu0 %v354
    %837 = vmatprep.subr.mxu0 %v359
    %838 = vmatpush1.msra.mxu0 %v358
    %839 = vmatprep.subr.mxu0 %v363
    %840 = vmatpush1.msra.mxu0 %v362
    %841 = vmatprep.subr.mxu0 %v367
    %842 = vmatpush1.msra.mxu0 %v366
    %843 = vmatprep.subr.mxu0 %v371
    %844 = vmatpush1.msra.mxu0 %v370
    %845 = vmatprep.subr.mxu0 %v375
    %846 = vmatpush1.msra.mxu0 %v374
    %847 = vmatprep.subr.mxu0 %v379
    %848 = vmatpush1.msra.mxu0 %v378
    %849 = vmatprep.subr.mxu0 %v383
    %850 = vmatpush1.msra.mxu0 %v382
    %851 = vmatprep.subr.mxu0 %v387
    %852 = vmatpush1.msra.mxu0 %v386
    %853 = vmatprep.subr.mxu0 %v391
    %854 = vmatpush1.msra.mxu0 %v390
    %855 = vmatprep.subr.mxu0 0.0
    %856 = vmatpush1.msra.mxu0 0.0
    %857 = vmatprep.subr.mxu0 0.0
    %858 = vmatpush1.msra.mxu0 0.0
    %859 = vmatprep.subr.mxu0 0.0
    %860 = vmatpush1.msra.mxu0 0.0
    %861 = vmatprep.subr.mxu0 0.0
    %862 = vmatpush1.msra.mxu0 0.0
    %863 = vmatprep.subr.mxu0 0.0
    %864 = vmatpush1.msra.mxu0 0.0
    %865 = vmatprep.subr.mxu0 0.0
    %866 = vmatpush1.msra.mxu0 0.0
    %867 = vmatprep.subr.mxu0 0.0
    %868 = vmatpush1.msra.mxu0 0.0
    %869 = vmatprep.subr.mxu0 0.0
    %870 = vmatpush1.msra.mxu0 0.0
    %871 = vmatprep.subr.mxu0 0.0
    %872 = vmatpush1.msra.mxu0 0.0
    %873 = vmatprep.subr.mxu0 0.0
    %874 = vmatpush1.msra.mxu0 0.0
    %875 = vmatprep.subr.mxu0 0.0
    %876 = vmatpush1.msra.mxu0 0.0
    %877 = vmatprep.subr.mxu0 0.0
    %878 = vmatpush1.msra.mxu0 0.0
    %879 = vmatprep.subr.mxu0 0.0
    %880 = vmatpush1.msra.mxu0 0.0
    %881 = vmatprep.subr.mxu0 0.0
    %882 = vmatpush1.msra.mxu0 0.0
    %883 = vmatprep.subr.mxu0 0.0
    %884 = vmatpush1.msra.mxu0 0.0
    %885 = vmatprep.subr.mxu0 0.0
    %886 = vmatpush1.msra.mxu0 0.0
    %887 = vmatprep.mubr.f32.mxu0 0.0
    %888 = vmatmul.mubr.f32.gmra.mrb[0].mxu0 %v750
    %v889 = vpop.f32.mrb[0].mxu0
    %v890 = vadd.f32 0.0, %v889
    %v891 = vpop.f32.mrb[0].mxu0
    %v892 = vadd.f32 0.0, %v891
    %893 = vdwg.mxu0
    %v898 = vrot.slane %v819, 4
    %v899 = vrot.slane %v821, 4
    %v900 = vrot.slane %v890, 4
    %v901 = vrot.slane %v892, 4
    %v906 = vadd.f32 %v241, %v898
    %v907 = vadd.f32 %v243, %v899
    %v908 = vadd.f32 %v318, %v900
    %v909 = vadd.f32 %v320, %v901
    %v910 = vxor.u32 %v906, 2147483648
    %v911 = vmul.f32 %v910, 1.442695
    %v912 = vpow.pop %v911
    %v913 = vadd.f32 %v912, 1.0
    %v914 = vrcp.pop %v913
    %v915 = vmul.f32 1.0, %v914
    %v916 = vxor.u32 %v907, 2147483648
    %v917 = vmul.f32 %v916, 1.442695
    %v918 = vpow.pop %v917
    %v919 = vadd.f32 %v918, 1.0
    %v920 = vrcp.pop %v919
    %v921 = vmul.f32 1.0, %v920
    %v922 = vtanh.pop %v908
    %v923 = vxor.u32 %v909, 2147483648
    %v924 = vmul.f32 %v923, 1.442695
    %v925 = vpow.pop %v924
    %v926 = vadd.f32 %v925, 1.0
    %v927 = vrcp.pop %v926
    %v928 = vmul.f32 1.0, %v927
    %v930 = vrot.slane %v745, 6
    %v932 = vmul.f32 %v921, %v930
    %v933 = vmul.f32 %v915, %v922
    %v934 = vadd.f32 %v932, %v933
    %v935 = vtanh.pop %v934
    %v936 = vmul.f32 %v928, %v935
    %937 = vst [vmem:[#allocation2] sm:$0x30] %v936
    %v939 = vrot.slane %v936, 4
    %941 = vmatprep.subr.mxu0 %v329
    %942 = vmatpush1.msra.mxu0 %v328
    %943 = vmatprep.subr.mxu0 %v333
    %944 = vmatpush1.msra.mxu0 %v332
    %945 = vmatprep.subr.mxu0 %v337
    %946 = vmatpush1.msra.mxu0 %v336
    %947 = vmatprep.subr.mxu0 %v341
    %948 = vmatpush1.msra.mxu0 %v340
    %949 = vmatprep.subr.mxu0 %v345
    %950 = vmatpush1.msra.mxu0 %v344
    %951 = vmatprep.subr.mxu0 %v349
    %952 = vmatpush1.msra.mxu0 %v348
    %953 = vmatprep.subr.mxu0 %v353
    %954 = vmatpush1.msra.mxu0 %v352
    %955 = vmatprep.subr.mxu0 %v357
    %956 = vmatpush1.msra.mxu0 %v356
    %957 = vmatprep.subr.mxu0 %v361
    %958 = vmatpush1.msra.mxu0 %v360
    %959 = vmatprep.subr.mxu0 %v365
    %960 = vmatpush1.msra.mxu0 %v364
    %961 = vmatprep.subr.mxu0 %v369
    %962 = vmatpush1.msra.mxu0 %v368
    %963 = vmatprep.subr.mxu0 %v373
    %964 = vmatpush1.msra.mxu0 %v372
    %965 = vmatprep.subr.mxu0 %v377
    %966 = vmatpush1.msra.mxu0 %v376
    %967 = vmatprep.subr.mxu0 %v381
    %968 = vmatpush1.msra.mxu0 %v380
    %969 = vmatprep.subr.mxu0 %v385
    %970 = vmatpush1.msra.mxu0 %v384
    %971 = vmatprep.subr.mxu0 %v389
    %972 = vmatpush1.msra.mxu0 %v388
    %973 = vmatprep.subr.mxu0 0.0
    %974 = vmatpush1.msra.mxu0 0.0
    %975 = vmatprep.subr.mxu0 0.0
    %976 = vmatpush1.msra.mxu0 0.0
    %977 = vmatprep.subr.mxu0 0.0
    %978 = vmatpush1.msra.mxu0 0.0
    %979 = vmatprep.subr.mxu0 0.0
    %980 = vmatpush1.msra.mxu0 0.0
    %981 = vmatprep.subr.mxu0 0.0
    %982 = vmatpush1.msra.mxu0 0.0
    %983 = vmatprep.subr.mxu0 0.0
    %984 = vmatpush1.msra.mxu0 0.0
    %985 = vmatprep.subr.mxu0 0.0
    %986 = vmatpush1.msra.mxu0 0.0
    %987 = vmatprep.subr.mxu0 0.0
    %988 = vmatpush1.msra.mxu0 0.0
    %989 = vmatprep.subr.mxu0 0.0
    %990 = vmatpush1.msra.mxu0 0.0
    %991 = vmatprep.subr.mxu0 0.0
    %992 = vmatpush1.msra.mxu0 0.0
    %993 = vmatprep.subr.mxu0 0.0
    %994 = vmatpush1.msra.mxu0 0.0
    %995 = vmatprep.subr.mxu0 0.0
    %996 = vmatpush1.msra.mxu0 0.0
    %997 = vmatprep.subr.mxu0 0.0
    %998 = vmatpush1.msra.mxu0 0.0
    %999 = vmatprep.subr.mxu0 0.0
    %1000 = vmatpush1.msra.mxu0 0.0
    %1001 = vmatprep.subr.mxu0 0.0
    %1002 = vmatpush1.msra.mxu0 0.0
    %1003 = vmatprep.subr.mxu0 0.0
    %1004 = vmatpush1.msra.mxu0 0.0
    %1005 = vmatprep.mubr.f32.mxu0 0.0
    %1006 = vmatmul.mubr.f32.gmra.mrb[0].mxu0 %v939
    %v1007 = vpop.f32.mrb[0].mxu0
    %v1008 = vadd.f32 0.0, %v1007
    %v1009 = vpop.f32.mrb[0].mxu0
    %v1010 = vadd.f32 0.0, %v1009
    %1011 = vdwg.mxu0
    %1012 = vmatprep.subr.mxu0 %v331
    %1013 = vmatpush1.msra.mxu0 %v330
    %1014 = vmatprep.subr.mxu0 %v335
    %1015 = vmatpush1.msra.mxu0 %v334
    %1016 = vmatprep.subr.mxu0 %v339
    %1017 = vmatpush1.msra.mxu0 %v338
    %1018 = vmatprep.subr.mxu0 %v343
    %1019 = vmatpush1.msra.mxu0 %v342
    %1020 = vmatprep.subr.mxu0 %v347
    %1021 = vmatpush1.msra.mxu0 %v346
    %1022 = vmatprep.subr.mxu0 %v351
    %1023 = vmatpush1.msra.mxu0 %v350
    %1024 = vmatprep.subr.mxu0 %v355
    %1025 = vmatpush1.msra.mxu0 %v354
    %1026 = vmatprep.subr.mxu0 %v359
    %1027 = vmatpush1.msra.mxu0 %v358
    %1028 = vmatprep.subr.mxu0 %v363
    %1029 = vmatpush1.msra.mxu0 %v362
    %1030 = vmatprep.subr.mxu0 %v367
    %1031 = vmatpush1.msra.mxu0 %v366
    %1032 = vmatprep.subr.mxu0 %v371
    %1033 = vmatpush1.msra.mxu0 %v370
    %1034 = vmatprep.subr.mxu0 %v375
    %1035 = vmatpush1.msra.mxu0 %v374
    %1036 = vmatprep.subr.mxu0 %v379
    %1037 = vmatpush1.msra.mxu0 %v378
    %1038 = vmatprep.subr.mxu0 %v383
    %1039 = vmatpush1.msra.mxu0 %v382
    %1040 = vmatprep.subr.mxu0 %v387
    %1041 = vmatpush1.msra.mxu0 %v386
    %1042 = vmatprep.subr.mxu0 %v391
    %1043 = vmatpush1.msra.mxu0 %v390
    %1044 = vmatprep.subr.mxu0 0.0
    %1045 = vmatpush1.msra.mxu0 0.0
    %1046 = vmatprep.subr.mxu0 0.0
    %1047 = vmatpush1.msra.mxu0 0.0
    %1048 = vmatprep.subr.mxu0 0.0
    %1049 = vmatpush1.msra.mxu0 0.0
    %1050 = vmatprep.subr.mxu0 0.0
    %1051 = vmatpush1.msra.mxu0 0.0
    %1052 = vmatprep.subr.mxu0 0.0
    %1053 = vmatpush1.msra.mxu0 0.0
    %1054 = vmatprep.subr.mxu0 0.0
    %1055 = vmatpush1.msra.mxu0 0.0
    %1056 = vmatprep.subr.mxu0 0.0
    %1057 = vmatpush1.msra.mxu0 0.0
    %1058 = vmatprep.subr.mxu0 0.0
    %1059 = vmatpush1.msra.mxu0 0.0
    %1060 = vmatprep.subr.mxu0 0.0
    %1061 = vmatpush1.msra.mxu0 0.0
    %1062 = vmatprep.subr.mxu0 0.0
    %1063 = vmatpush1.msra.mxu0 0.0
    %1064 = vmatprep.subr.mxu0 0.0
    %1065 = vmatpush1.msra.mxu0 0.0
    %1066 = vmatprep.subr.mxu0 0.0
    %1067 = vmatpush1.msra.mxu0 0.0
    %1068 = vmatprep.subr.mxu0 0.0
    %1069 = vmatpush1.msra.mxu0 0.0
    %1070 = vmatprep.subr.mxu0 0.0
    %1071 = vmatpush1.msra.mxu0 0.0
    %1072 = vmatprep.subr.mxu0 0.0
    %1073 = vmatpush1.msra.mxu0 0.0
    %1074 = vmatprep.subr.mxu0 0.0
    %1075 = vmatpush1.msra.mxu0 0.0
    %1076 = vmatprep.mubr.f32.mxu0 0.0
    %1077 = vmatmul.mubr.f32.gmra.mrb[0].mxu0 %v939
    %v1078 = vpop.f32.mrb[0].mxu0
    %v1079 = vadd.f32 0.0, %v1078
    %v1080 = vpop.f32.mrb[0].mxu0
    %v1081 = vadd.f32 0.0, %v1080
    %1082 = vdwg.mxu0
    %v1087 = vrot.slane %v1008, 2
    %v1088 = vrot.slane %v1010, 2
    %v1089 = vrot.slane %v1079, 2
    %v1090 = vrot.slane %v1081, 2
    %v1095 = vadd.f32 %v241, %v1087
    %v1096 = vadd.f32 %v243, %v1088
    %v1097 = vadd.f32 %v318, %v1089
    %v1098 = vadd.f32 %v320, %v1090
    %v1099 = vxor.u32 %v1095, 2147483648
    %v1100 = vmul.f32 %v1099, 1.442695
    %v1101 = vpow.pop %v1100
    %v1102 = vadd.f32 %v1101, 1.0
    %v1103 = vrcp.pop %v1102
    %v1104 = vmul.f32 1.0, %v1103
    %v1105 = vxor.u32 %v1096, 2147483648
    %v1106 = vmul.f32 %v1105, 1.442695
    %v1107 = vpow.pop %v1106
    %v1108 = vadd.f32 %v1107, 1.0
    %v1109 = vrcp.pop %v1108
    %v1110 = vmul.f32 1.0, %v1109
    %v1111 = vtanh.pop %v1097
    %v1112 = vxor.u32 %v1098, 2147483648
    %v1113 = vmul.f32 %v1112, 1.442695
    %v1114 = vpow.pop %v1113
    %v1115 = vadd.f32 %v1114, 1.0
    %v1116 = vrcp.pop %v1115
    %v1117 = vmul.f32 1.0, %v1116
    %v1119 = vrot.slane %v934, 6
    %v1121 = vmul.f32 %v1110, %v1119
    %v1122 = vmul.f32 %v1104, %v1111
    %v1123 = vadd.f32 %v1121, %v1122
    %v1124 = vtanh.pop %v1123
    %v1125 = vmul.f32 %v1117, %v1124
    %1126 = vst [vmem:[#allocation2] sm:$0xc0] %v1125
    %v1128 = vrot.slane %v1125, 6
    %1130 = vmatprep.subr.mxu0 %v329
    %1131 = vmatpush1.msra.mxu0 %v328
    %1132 = vmatprep.subr.mxu0 %v333
    %1133 = vmatpush1.msra.mxu0 %v332
    %1134 = vmatprep.subr.mxu0 %v337
    %1135 = vmatpush1.msra.mxu0 %v336
    %1136 = vmatprep.subr.mxu0 %v341
    %1137 = vmatpush1.msra.mxu0 %v340
    %1138 = vmatprep.subr.mxu0 %v345
    %1139 = vmatpush1.msra.mxu0 %v344
    %1140 = vmatprep.subr.mxu0 %v349
    %1141 = vmatpush1.msra.mxu0 %v348
    %1142 = vmatprep.subr.mxu0 %v353
    %1143 = vmatpush1.msra.mxu0 %v352
    %1144 = vmatprep.subr.mxu0 %v357
    %1145 = vmatpush1.msra.mxu0 %v356
    %1146 = vmatprep.subr.mxu0 %v361
    %1147 = vmatpush1.msra.mxu0 %v360
    %1148 = vmatprep.subr.mxu0 %v365
    %1149 = vmatpush1.msra.mxu0 %v364
    %1150 = vmatprep.subr.mxu0 %v369
    %1151 = vmatpush1.msra.mxu0 %v368
    %1152 = vmatprep.subr.mxu0 %v373
    %1153 = vmatpush1.msra.mxu0 %v372
    %1154 = vmatprep.subr.mxu0 %v377
    %1155 = vmatpush1.msra.mxu0 %v376
    %1156 = vmatprep.subr.mxu0 %v381
    %1157 = vmatpush1.msra.mxu0 %v380
    %1158 = vmatprep.subr.mxu0 %v385
    %1159 = vmatpush1.msra.mxu0 %v384
    %1160 = vmatprep.subr.mxu0 %v389
    %1161 = vmatpush1.msra.mxu0 %v388
    %1162 = vmatprep.subr.mxu0 0.0
    %1163 = vmatpush1.msra.mxu0 0.0
    %1164 = vmatprep.subr.mxu0 0.0
    %1165 = vmatpush1.msra.mxu0 0.0
    %1166 = vmatprep.subr.mxu0 0.0
    %1167 = vmatpush1.msra.mxu0 0.0
    %1168 = vmatprep.subr.mxu0 0.0
    %1169 = vmatpush1.msra.mxu0 0.0
    %1170 = vmatprep.subr.mxu0 0.0
    %1171 = vmatpush1.msra.mxu0 0.0
    %1172 = vmatprep.subr.mxu0 0.0
    %1173 = vmatpush1.msra.mxu0 0.0
    %1174 = vmatprep.subr.mxu0 0.0
    %1175 = vmatpush1.msra.mxu0 0.0
    %1176 = vmatprep.subr.mxu0 0.0
    %1177 = vmatpush1.msra.mxu0 0.0
    %1178 = vmatprep.subr.mxu0 0.0
    %1179 = vmatpush1.msra.mxu0 0.0
    %1180 = vmatprep.subr.mxu0 0.0
    %1181 = vmatpush1.msra.mxu0 0.0
    %1182 = vmatprep.subr.mxu0 0.0
    %1183 = vmatpush1.msra.mxu0 0.0
    %1184 = vmatprep.subr.mxu0 0.0
    %1185 = vmatpush1.msra.mxu0 0.0
    %1186 = vmatprep.subr.mxu0 0.0
    %1187 = vmatpush1.msra.mxu0 0.0
    %1188 = vmatprep.subr.mxu0 0.0
    %1189 = vmatpush1.msra.mxu0 0.0
    %1190 = vmatprep.subr.mxu0 0.0
    %1191 = vmatpush1.msra.mxu0 0.0
    %1192 = vmatprep.subr.mxu0 0.0
    %1193 = vmatpush1.msra.mxu0 0.0
    %1194 = vmatprep.mubr.f32.mxu0 0.0
    %1195 = vmatmul.mubr.f32.gmra.mrb[0].mxu0 %v1128
    %v1196 = vpop.f32.mrb[0].mxu0
    %v1197 = vadd.f32 0.0, %v1196
    %v1198 = vpop.f32.mrb[0].mxu0
    %v1199 = vadd.f32 0.0, %v1198
    %1200 = vdwg.mxu0
    %1201 = vmatprep.subr.mxu0 %v331
    %1202 = vmatpush1.msra.mxu0 %v330
    %1203 = vmatprep.subr.mxu0 %v335
    %1204 = vmatpush1.msra.mxu0 %v334
    %1205 = vmatprep.subr.mxu0 %v339
    %1206 = vmatpush1.msra.mxu0 %v338
    %1207 = vmatprep.subr.mxu0 %v343
    %1208 = vmatpush1.msra.mxu0 %v342
    %1209 = vmatprep.subr.mxu0 %v347
    %1210 = vmatpush1.msra.mxu0 %v346
    %1211 = vmatprep.subr.mxu0 %v351
    %1212 = vmatpush1.msra.mxu0 %v350
    %1213 = vmatprep.subr.mxu0 %v355
    %1214 = vmatpush1.msra.mxu0 %v354
    %1215 = vmatprep.subr.mxu0 %v359
    %1216 = vmatpush1.msra.mxu0 %v358
    %1217 = vmatprep.subr.mxu0 %v363
    %1218 = vmatpush1.msra.mxu0 %v362
    %1219 = vmatprep.subr.mxu0 %v367
    %1220 = vmatpush1.msra.mxu0 %v366
    %1221 = vmatprep.subr.mxu0 %v371
    %1222 = vmatpush1.msra.mxu0 %v370
    %1223 = vmatprep.subr.mxu0 %v375
    %1224 = vmatpush1.msra.mxu0 %v374
    %1225 = vmatprep.subr.mxu0 %v379
    %1226 = vmatpush1.msra.mxu0 %v378
    %1227 = vmatprep.subr.mxu0 %v383
    %1228 = vmatpush1.msra.mxu0 %v382
    %1229 = vmatprep.subr.mxu0 %v387
    %1230 = vmatpush1.msra.mxu0 %v386
    %1231 = vmatprep.subr.mxu0 %v391
    %1232 = vmatpush1.msra.mxu0 %v390
    %1233 = vmatprep.subr.mxu0 0.0
    %1234 = vmatpush1.msra.mxu0 0.0
    %1235 = vmatprep.subr.mxu0 0.0
    %1236 = vmatpush1.msra.mxu0 0.0
    %1237 = vmatprep.subr.mxu0 0.0
    %1238 = vmatpush1.msra.mxu0 0.0
    %1239 = vmatprep.subr.mxu0 0.0
    %1240 = vmatpush1.msra.mxu0 0.0
    %1241 = vmatprep.subr.mxu0 0.0
    %1242 = vmatpush1.msra.mxu0 0.0
    %1243 = vmatprep.subr.mxu0 0.0
    %1244 = vmatpush1.msra.mxu0 0.0
    %1245 = vmatprep.subr.mxu0 0.0
    %1246 = vmatpush1.msra.mxu0 0.0
    %1247 = vmatprep.subr.mxu0 0.0
    %1248 = vmatpush1.msra.mxu0 0.0
    %1249 = vmatprep.subr.mxu0 0.0
    %1250 = vmatpush1.msra.mxu0 0.0
    %1251 = vmatprep.subr.mxu0 0.0
    %1252 = vmatpush1.msra.mxu0 0.0
    %1253 = vmatprep.subr.mxu0 0.0
    %1254 = vmatpush1.msra.mxu0 0.0
    %1255 = vmatprep.subr.mxu0 0.0
    %1256 = vmatpush1.msra.mxu0 0.0
    %1257 = vmatprep.subr.mxu0 0.0
    %1258 = vmatpush1.msra.mxu0 0.0
    %1259 = vmatprep.subr.mxu0 0.0
    %1260 = vmatpush1.msra.mxu0 0.0
    %1261 = vmatprep.subr.mxu0 0.0
    %1262 = vmatpush1.msra.mxu0 0.0
    %1263 = vmatprep.subr.mxu0 0.0
    %1264 = vmatpush1.msra.mxu0 0.0
    %1265 = vmatprep.mubr.f32.mxu0 0.0
    %1266 = vmatmul.mubr.f32.gmra.mrb[0].mxu0 %v1128
    %v1267 = vpop.f32.mrb[0].mxu0
    %v1268 = vadd.f32 0.0, %v1267
    %v1269 = vpop.f32.mrb[0].mxu0
    %v1270 = vadd.f32 0.0, %v1269
    %1271 = vdwg.mxu0
    %v1272 = vadd.f32 %v247, %v1197
    %v1273 = vadd.f32 %v249, %v1199
    %v1274 = vadd.f32 %v324, %v1268
    %v1275 = vadd.f32 %v326, %v1270
    %v1276 = vxor.u32 %v1272, 2147483648
    %v1277 = vmul.f32 %v1276, 1.442695
    %v1278 = vpow.pop %v1277
    %v1279 = vadd.f32 %v1278, 1.0
    %v1280 = vrcp.pop %v1279
    %v1281 = vmul.f32 1.0, %v1280
    %v1282 = vxor.u32 %v1273, 2147483648
    %v1283 = vmul.f32 %v1282, 1.442695
    %v1284 = vpow.pop %v1283
    %v1285 = vadd.f32 %v1284, 1.0
    %v1286 = vrcp.pop %v1285
    %v1287 = vmul.f32 1.0, %v1286
    %v1288 = vtanh.pop %v1274
    %v1289 = vxor.u32 %v1275, 2147483648
    %v1290 = vmul.f32 %v1289, 1.442695
    %v1291 = vpow.pop %v1290
    %v1292 = vadd.f32 %v1291, 1.0
    %v1293 = vrcp.pop %v1292
    %v1294 = vmul.f32 1.0, %v1293
    %v1296 = vrot.slane %v1123, 6
    %v1298 = vmul.f32 %v1287, %v1296
    %v1299 = vmul.f32 %v1281, %v1288
    %v1300 = vadd.f32 %v1298, %v1299
    %v1301 = vtanh.pop %v1300
    %v1302 = vmul.f32 %v1294, %v1301
    %1303 = vst [vmem:[#allocation2 + $0x8] sm:$0x3] %v1302
    %1304 = vmatprep.subr.mxu0 %v329
    %1305 = vmatpush1.msra.mxu0 %v328
    %1306 = vmatprep.subr.mxu0 %v333
    %1307 = vmatpush1.msra.mxu0 %v332
    %1308 = vmatprep.subr.mxu0 %v337
    %1309 = vmatpush1.msra.mxu0 %v336
    %1310 = vmatprep.subr.mxu0 %v341
    %1311 = vmatpush1.msra.mxu0 %v340
    %1312 = vmatprep.subr.mxu0 %v345
    %1313 = vmatpush1.msra.mxu0 %v344
    %1314 = vmatprep.subr.mxu0 %v349
    %1315 = vmatpush1.msra.mxu0 %v348
    %1316 = vmatprep.subr.mxu0 %v353
    %1317 = vmatpush1.msra.mxu0 %v352
    %1318 = vmatprep.subr.mxu0 %v357
    %1319 = vmatpush1.msra.mxu0 %v356
    %1320 = vmatprep.subr.mxu0 %v361
    %1321 = vmatpush1.msra.mxu0 %v360
    %1322 = vmatprep.subr.mxu0 %v365
    %1323 = vmatpush1.msra.mxu0 %v364
    %1324 = vmatprep.subr.mxu0 %v369
    %1325 = vmatpush1.msra.mxu0 %v368
    %1326 = vmatprep.subr.mxu0 %v373
    %1327 = vmatpush1.msra.mxu0 %v372
    %1328 = vmatprep.subr.mxu0 %v377
    %1329 = vmatpush1.msra.mxu0 %v376
    %1330 = vmatprep.subr.mxu0 %v381
    %1331 = vmatpush1.msra.mxu0 %v380
    %1332 = vmatprep.subr.mxu0 %v385
    %1333 = vmatpush1.msra.mxu0 %v384
    %1334 = vmatprep.subr.mxu0 %v389
    %1335 = vmatpush1.msra.mxu0 %v388
    %1336 = vmatprep.subr.mxu0 0.0
    %1337 = vmatpush1.msra.mxu0 0.0
    %1338 = vmatprep.subr.mxu0 0.0
    %1339 = vmatpush1.msra.mxu0 0.0
    %1340 = vmatprep.subr.mxu0 0.0
    %1341 = vmatpush1.msra.mxu0 0.0
    %1342 = vmatprep.subr.mxu0 0.0
    %1343 = vmatpush1.msra.mxu0 0.0
    %1344 = vmatprep.subr.mxu0 0.0
    %1345 = vmatpush1.msra.mxu0 0.0
    %1346 = vmatprep.subr.mxu0 0.0
    %1347 = vmatpush1.msra.mxu0 0.0
    %1348 = vmatprep.subr.mxu0 0.0
    %1349 = vmatpush1.msra.mxu0 0.0
    %1350 = vmatprep.subr.mxu0 0.0
    %1351 = vmatpush1.msra.mxu0 0.0
    %1352 = vmatprep.subr.mxu0 0.0
    %1353 = vmatpush1.msra.mxu0 0.0
    %1354 = vmatprep.subr.mxu0 0.0
    %1355 = vmatpush1.msra.mxu0 0.0
    %1356 = vmatprep.subr.mxu0 0.0
    %1357 = vmatpush1.msra.mxu0 0.0
    %1358 = vmatprep.subr.mxu0 0.0
    %1359 = vmatpush1.msra.mxu0 0.0
    %1360 = vmatprep.subr.mxu0 0.0
    %1361 = vmatpush1.msra.mxu0 0.0
    %1362 = vmatprep.subr.mxu0 0.0
    %1363 = vmatpush1.msra.mxu0 0.0
    %1364 = vmatprep.subr.mxu0 0.0
    %1365 = vmatpush1.msra.mxu0 0.0
    %1366 = vmatprep.subr.mxu0 0.0
    %1367 = vmatpush1.msra.mxu0 0.0
    %1368 = vmatprep.mubr.f32.mxu0 0.0
    %1369 = vmatmul.mubr.f32.gmra.mrb[0].mxu0 %v1302
    %v1370 = vpop.f32.mrb[0].mxu0
    %v1371 = vadd.f32 0.0, %v1370
    %v1372 = vpop.f32.mrb[0].mxu0
    %v1373 = vadd.f32 0.0, %v1372
    %1374 = vdwg.mxu0
    %1375 = vmatprep.subr.mxu0 %v331
    %1376 = vmatpush1.msra.mxu0 %v330
    %1377 = vmatprep.subr.mxu0 %v335
    %1378 = vmatpush1.msra.mxu0 %v334
    %1379 = vmatprep.subr.mxu0 %v339
    %1380 = vmatpush1.msra.mxu0 %v338
    %1381 = vmatprep.subr.mxu0 %v343
    %1382 = vmatpush1.msra.mxu0 %v342
    %1383 = vmatprep.subr.mxu0 %v347
    %1384 = vmatpush1.msra.mxu0 %v346
    %1385 = vmatprep.subr.mxu0 %v351
    %1386 = vmatpush1.msra.mxu0 %v350
    %1387 = vmatprep.subr.mxu0 %v355
    %1388 = vmatpush1.msra.mxu0 %v354
    %1389 = vmatprep.subr.mxu0 %v359
    %1390 = vmatpush1.msra.mxu0 %v358
    %1391 = vmatprep.subr.mxu0 %v363
    %1392 = vmatpush1.msra.mxu0 %v362
    %1393 = vmatprep.subr.mxu0 %v367
    %1394 = vmatpush1.msra.mxu0 %v366
    %1395 = vmatprep.subr.mxu0 %v371
    %1396 = vmatpush1.msra.mxu0 %v370
    %1397 = vmatprep.subr.mxu0 %v375
    %1398 = vmatpush1.msra.mxu0 %v374
    %1399 = vmatprep.subr.mxu0 %v379
    %1400 = vmatpush1.msra.mxu0 %v378
    %1401 = vmatprep.subr.mxu0 %v383
    %1402 = vmatpush1.msra.mxu0 %v382
    %1403 = vmatprep.subr.mxu0 %v387
    %1404 = vmatpush1.msra.mxu0 %v386
    %1405 = vmatprep.subr.mxu0 %v391
    %1406 = vmatpush1.msra.mxu0 %v390
    %1407 = vmatprep.subr.mxu0 0.0
    %1408 = vmatpush1.msra.mxu0 0.0
    %1409 = vmatprep.subr.mxu0 0.0
    %1410 = vmatpush1.msra.mxu0 0.0
    %1411 = vmatprep.subr.mxu0 0.0
    %1412 = vmatpush1.msra.mxu0 0.0
    %1413 = vmatprep.subr.mxu0 0.0
    %1414 = vmatpush1.msra.mxu0 0.0
    %1415 = vmatprep.subr.mxu0 0.0
    %1416 = vmatpush1.msra.mxu0 0.0
    %1417 = vmatprep.subr.mxu0 0.0
    %1418 = vmatpush1.msra.mxu0 0.0
    %1419 = vmatprep.subr.mxu0 0.0
    %1420 = vmatpush1.msra.mxu0 0.0
    %1421 = vmatprep.subr.mxu0 0.0
    %1422 = vmatpush1.msra.mxu0 0.0
    %1423 = vmatprep.subr.mxu0 0.0
    %1424 = vmatpush1.msra.mxu0 0.0
    %1425 = vmatprep.subr.mxu0 0.0
    %1426 = vmatpush1.msra.mxu0 0.0
    %1427 = vmatprep.subr.mxu0 0.0
    %1428 = vmatpush1.msra.mxu0 0.0
    %1429 = vmatprep.subr.mxu0 0.0
    %1430 = vmatpush1.msra.mxu0 0.0
    %1431 = vmatprep.subr.mxu0 0.0
    %1432 = vmatpush1.msra.mxu0 0.0
    %1433 = vmatprep.subr.mxu0 0.0
    %1434 = vmatpush1.msra.mxu0 0.0
    %1435 = vmatprep.subr.mxu0 0.0
    %1436 = vmatpush1.msra.mxu0 0.0
    %1437 = vmatprep.subr.mxu0 0.0
    %1438 = vmatpush1.msra.mxu0 0.0
    %1439 = vmatprep.mubr.f32.mxu0 0.0
    %1440 = vmatmul.mubr.f32.gmra.mrb[0].mxu0 %v1302
    %v1441 = vpop.f32.mrb[0].mxu0
    %v1442 = vadd.f32 0.0, %v1441
    %v1443 = vpop.f32.mrb[0].mxu0
    %v1444 = vadd.f32 0.0, %v1443
    %1445 = vdwg.mxu0
    %v1450 = vrot.slane %v1371, 6
    %v1451 = vrot.slane %v1373, 6
    %v1452 = vrot.slane %v1442, 6
    %v1453 = vrot.slane %v1444, 6
    %v1458 = vadd.f32 %v247, %v1450
    %v1459 = vadd.f32 %v249, %v1451
    %v1460 = vadd.f32 %v324, %v1452
    %v1461 = vadd.f32 %v326, %v1453
    %v1462 = vxor.u32 %v1458, 2147483648
    %v1463 = vmul.f32 %v1462, 1.442695
    %v1464 = vpow.pop %v1463
    %v1465 = vadd.f32 %v1464, 1.0
    %v1466 = vrcp.pop %v1465
    %v1467 = vmul.f32 1.0, %v1466
    %v1468 = vxor.u32 %v1459, 2147483648
    %v1469 = vmul.f32 %v1468, 1.442695
    %v1470 = vpow.pop %v1469
    %v1471 = vadd.f32 %v1470, 1.0
    %v1472 = vrcp.pop %v1471
    %v1473 = vmul.f32 1.0, %v1472
    %v1474 = vtanh.pop %v1460
    %v1475 = vxor.u32 %v1461, 2147483648
    %v1476 = vmul.f32 %v1475, 1.442695
    %v1477 = vpow.pop %v1476
    %v1478 = vadd.f32 %v1477, 1.0
    %v1479 = vrcp.pop %v1478
    %v1480 = vmul.f32 1.0, %v1479
    %v1482 = vrot.slane %v1300, 6
    %v1484 = vmul.f32 %v1473, %v1482
    %v1485 = vmul.f32 %v1467, %v1474
    %v1486 = vadd.f32 %v1484, %v1485
    %v1487 = vtanh.pop %v1486
    %v1488 = vmul.f32 %v1480, %v1487
    %1489 = vst [vmem:[#allocation2 + $0x8] sm:$0xc] %v1488
    %v1491 = vrot.slane %v1488, 2
    %1493 = vmatprep.subr.mxu0 %v329
    %1494 = vmatpush1.msra.mxu0 %v328
    %1495 = vmatprep.subr.mxu0 %v333
    %1496 = vmatpush1.msra.mxu0 %v332
    %1497 = vmatprep.subr.mxu0 %v337
    %1498 = vmatpush1.msra.mxu0 %v336
    %1499 = vmatprep.subr.mxu0 %v341
    %1500 = vmatpush1.msra.mxu0 %v340
    %1501 = vmatprep.subr.mxu0 %v345
    %1502 = vmatpush1.msra.mxu0 %v344
    %1503 = vmatprep.subr.mxu0 %v349
    %1504 = vmatpush1.msra.mxu0 %v348
    %1505 = vmatprep.subr.mxu0 %v353
    %1506 = vmatpush1.msra.mxu0 %v352
    %1507 = vmatprep.subr.mxu0 %v357
    %1508 = vmatpush1.msra.mxu0 %v356
    %1509 = vmatprep.subr.mxu0 %v361
    %1510 = vmatpush1.msra.mxu0 %v360
    %1511 = vmatprep.subr.mxu0 %v365
    %1512 = vmatpush1.msra.mxu0 %v364
    %1513 = vmatprep.subr.mxu0 %v369
    %1514 = vmatpush1.msra.mxu0 %v368
    %1515 = vmatprep.subr.mxu0 %v373
    %1516 = vmatpush1.msra.mxu0 %v372
    %1517 = vmatprep.subr.mxu0 %v377
    %1518 = vmatpush1.msra.mxu0 %v376
    %1519 = vmatprep.subr.mxu0 %v381
    %1520 = vmatpush1.msra.mxu0 %v380
    %1521 = vmatprep.subr.mxu0 %v385
    %1522 = vmatpush1.msra.mxu0 %v384
    %1523 = vmatprep.subr.mxu0 %v389
    %1524 = vmatpush1.msra.mxu0 %v388
    %1525 = vmatprep.subr.mxu0 0.0
    %1526 = vmatpush1.msra.mxu0 0.0
    %1527 = vmatprep.subr.mxu0 0.0
    %1528 = vmatpush1.msra.mxu0 0.0
    %1529 = vmatprep.subr.mxu0 0.0
    %1530 = vmatpush1.msra.mxu0 0.0
    %1531 = vmatprep.subr.mxu0 0.0
    %1532 = vmatpush1.msra.mxu0 0.0
    %1533 = vmatprep.subr.mxu0 0.0
    %1534 = vmatpush1.msra.mxu0 0.0
    %1535 = vmatprep.subr.mxu0 0.0
    %1536 = vmatpush1.msra.mxu0 0.0
    %1537 = vmatprep.subr.mxu0 0.0
    %1538 = vmatpush1.msra.mxu0 0.0
    %1539 = vmatprep.subr.mxu0 0.0
    %1540 = vmatpush1.msra.mxu0 0.0
    %1541 = vmatprep.subr.mxu0 0.0
    %1542 = vmatpush1.msra.mxu0 0.0
    %1543 = vmatprep.subr.mxu0 0.0
    %1544 = vmatpush1.msra.mxu0 0.0
    %1545 = vmatprep.subr.mxu0 0.0
    %1546 = vmatpush1.msra.mxu0 0.0
    %1547 = vmatprep.subr.mxu0 0.0
    %1548 = vmatpush1.msra.mxu0 0.0
    %1549 = vmatprep.subr.mxu0 0.0
    %1550 = vmatpush1.msra.mxu0 0.0
    %1551 = vmatprep.subr.mxu0 0.0
    %1552 = vmatpush1.msra.mxu0 0.0
    %1553 = vmatprep.subr.mxu0 0.0
    %1554 = vmatpush1.msra.mxu0 0.0
    %1555 = vmatprep.subr.mxu0 0.0
    %1556 = vmatpush1.msra.mxu0 0.0
    %1557 = vmatprep.mubr.f32.mxu0 0.0
    %1558 = vmatmul.mubr.f32.gmra.mrb[0].mxu0 %v1491
    %v1559 = vpop.f32.mrb[0].mxu0
    %v1560 = vadd.f32 0.0, %v1559
    %v1561 = vpop.f32.mrb[0].mxu0
    %v1562 = vadd.f32 0.0, %v1561
    %1563 = vdwg.mxu0
    %1564 = vmatprep.subr.mxu0 %v331
    %1565 = vmatpush1.msra.mxu0 %v330
    %1566 = vmatprep.subr.mxu0 %v335
    %1567 = vmatpush1.msra.mxu0 %v334
    %1568 = vmatprep.subr.mxu0 %v339
    %1569 = vmatpush1.msra.mxu0 %v338
    %1570 = vmatprep.subr.mxu0 %v343
    %1571 = vmatpush1.msra.mxu0 %v342
    %1572 = vmatprep.subr.mxu0 %v347
    %1573 = vmatpush1.msra.mxu0 %v346
    %1574 = vmatprep.subr.mxu0 %v351
    %1575 = vmatpush1.msra.mxu0 %v350
    %1576 = vmatprep.subr.mxu0 %v355
    %1577 = vmatpush1.msra.mxu0 %v354
    %1578 = vmatprep.subr.mxu0 %v359
    %1579 = vmatpush1.msra.mxu0 %v358
    %1580 = vmatprep.subr.mxu0 %v363
    %1581 = vmatpush1.msra.mxu0 %v362
    %1582 = vmatprep.subr.mxu0 %v367
    %1583 = vmatpush1.msra.mxu0 %v366
    %1584 = vmatprep.subr.mxu0 %v371
    %1585 = vmatpush1.msra.mxu0 %v370
    %1586 = vmatprep.subr.mxu0 %v375
    %1587 = vmatpush1.msra.mxu0 %v374
    %1588 = vmatprep.subr.mxu0 %v379
    %1589 = vmatpush1.msra.mxu0 %v378
    %1590 = vmatprep.subr.mxu0 %v383
    %1591 = vmatpush1.msra.mxu0 %v382
    %1592 = vmatprep.subr.mxu0 %v387
    %1593 = vmatpush1.msra.mxu0 %v386
    %1594 = vmatprep.subr.mxu0 %v391
    %1595 = vmatpush1.msra.mxu0 %v390
    %1596 = vmatprep.subr.mxu0 0.0
    %1597 = vmatpush1.msra.mxu0 0.0
    %1598 = vmatprep.subr.mxu0 0.0
    %1599 = vmatpush1.msra.mxu0 0.0
    %1600 = vmatprep.subr.mxu0 0.0
    %1601 = vmatpush1.msra.mxu0 0.0
    %1602 = vmatprep.subr.mxu0 0.0
    %1603 = vmatpush1.msra.mxu0 0.0
    %1604 = vmatprep.subr.mxu0 0.0
    %1605 = vmatpush1.msra.mxu0 0.0
    %1606 = vmatprep.subr.mxu0 0.0
    %1607 = vmatpush1.msra.mxu0 0.0
    %1608 = vmatprep.subr.mxu0 0.0
    %1609 = vmatpush1.msra.mxu0 0.0
    %1610 = vmatprep.subr.mxu0 0.0
    %1611 = vmatpush1.msra.mxu0 0.0
    %1612 = vmatprep.subr.mxu0 0.0
    %1613 = vmatpush1.msra.mxu0 0.0
    %1614 = vmatprep.subr.mxu0 0.0
    %1615 = vmatpush1.msra.mxu0 0.0
    %1616 = vmatprep.subr.mxu0 0.0
    %1617 = vmatpush1.msra.mxu0 0.0
    %1618 = vmatprep.subr.mxu0 0.0
    %1619 = vmatpush1.msra.mxu0 0.0
    %1620 = vmatprep.subr.mxu0 0.0
    %1621 = vmatpush1.msra.mxu0 0.0
    %1622 = vmatprep.subr.mxu0 0.0
    %1623 = vmatpush1.msra.mxu0 0.0
    %1624 = vmatprep.subr.mxu0 0.0
    %1625 = vmatpush1.msra.mxu0 0.0
    %1626 = vmatprep.subr.mxu0 0.0
    %1627 = vmatpush1.msra.mxu0 0.0
    %1628 = vmatprep.mubr.f32.mxu0 0.0
    %1629 = vmatmul.mubr.f32.gmra.mrb[0].mxu0 %v1491
    %v1630 = vpop.f32.mrb[0].mxu0
    %v1631 = vadd.f32 0.0, %v1630
    %v1632 = vpop.f32.mrb[0].mxu0
    %v1633 = vadd.f32 0.0, %v1632
    %1634 = vdwg.mxu0
    %v1639 = vrot.slane %v1560, 4
    %v1640 = vrot.slane %v1562, 4
    %v1641 = vrot.slane %v1631, 4
    %v1642 = vrot.slane %v1633, 4
    %v1647 = vadd.f32 %v247, %v1639
    %v1648 = vadd.f32 %v249, %v1640
    %v1649 = vadd.f32 %v324, %v1641
    %v1650 = vadd.f32 %v326, %v1642
    %v1651 = vxor.u32 %v1647, 2147483648
    %v1652 = vmul.f32 %v1651, 1.442695
    %v1653 = vpow.pop %v1652
    %v1654 = vadd.f32 %v1653, 1.0
    %v1655 = vrcp.pop %v1654
    %v1656 = vmul.f32 1.0, %v1655
    %v1657 = vxor.u32 %v1648, 2147483648
    %v1658 = vmul.f32 %v1657, 1.442695
    %v1659 = vpow.pop %v1658
    %v1660 = vadd.f32 %v1659, 1.0
    %v1661 = vrcp.pop %v1660
    %v1662 = vmul.f32 1.0, %v1661
    %v1663 = vtanh.pop %v1649
    %v1664 = vxor.u32 %v1650, 2147483648
    %v1665 = vmul.f32 %v1664, 1.442695
    %v1666 = vpow.pop %v1665
    %v1667 = vadd.f32 %v1666, 1.0
    %v1668 = vrcp.pop %v1667
    %v1669 = vmul.f32 1.0, %v1668
    %v1671 = vrot.slane %v1486, 6
    %v1673 = vmul.f32 %v1662, %v1671
    %v1674 = vmul.f32 %v1656, %v1663
    %v1675 = vadd.f32 %v1673, %v1674
    %v1676 = vtanh.pop %v1675
    %v1677 = vmul.f32 %v1669, %v1676
    %1678 = vst [vmem:[#allocation2 + $0x8] sm:$0x30] %v1677
    %v1680 = vrot.slane %v1677, 4
    %1682 = vmatprep.subr.mxu0 %v329
    %1683 = vmatpush1.msra.mxu0 %v328
    %1684 = vmatprep.subr.mxu0 %v333
    %1685 = vmatpush1.msra.mxu0 %v332
    %1686 = vmatprep.subr.mxu0 %v337
    %1687 = vmatpush1.msra.mxu0 %v336
    %1688 = vmatprep.subr.mxu0 %v341
    %1689 = vmatpush1.msra.mxu0 %v340
    %1690 = vmatprep.subr.mxu0 %v345
    %1691 = vmatpush1.msra.mxu0 %v344
    %1692 = vmatprep.subr.mxu0 %v349
    %1693 = vmatpush1.msra.mxu0 %v348
    %1694 = vmatprep.subr.mxu0 %v353
    %1695 = vmatpush1.msra.mxu0 %v352
    %1696 = vmatprep.subr.mxu0 %v357
    %1697 = vmatpush1.msra.mxu0 %v356
    %1698 = vmatprep.subr.mxu0 %v361
    %1699 = vmatpush1.msra.mxu0 %v360
    %1700 = vmatprep.subr.mxu0 %v365
    %1701 = vmatpush1.msra.mxu0 %v364
    %1702 = vmatprep.subr.mxu0 %v369
    %1703 = vmatpush1.msra.mxu0 %v368
    %1704 = vmatprep.subr.mxu0 %v373
    %1705 = vmatpush1.msra.mxu0 %v372
    %1706 = vmatprep.subr.mxu0 %v377
    %1707 = vmatpush1.msra.mxu0 %v376
    %1708 = vmatprep.subr.mxu0 %v381
    %1709 = vmatpush1.msra.mxu0 %v380
    %1710 = vmatprep.subr.mxu0 %v385
    %1711 = vmatpush1.msra.mxu0 %v384
    %1712 = vmatprep.subr.mxu0 %v389
    %1713 = vmatpush1.msra.mxu0 %v388
    %1714 = vmatprep.subr.mxu0 0.0
    %1715 = vmatpush1.msra.mxu0 0.0
    %1716 = vmatprep.subr.mxu0 0.0
    %1717 = vmatpush1.msra.mxu0 0.0
    %1718 = vmatprep.subr.mxu0 0.0
    %1719 = vmatpush1.msra.mxu0 0.0
    %1720 = vmatprep.subr.mxu0 0.0
    %1721 = vmatpush1.msra.mxu0 0.0
    %1722 = vmatprep.subr.mxu0 0.0
    %1723 = vmatpush1.msra.mxu0 0.0
    %1724 = vmatprep.subr.mxu0 0.0
    %1725 = vmatpush1.msra.mxu0 0.0
    %1726 = vmatprep.subr.mxu0 0.0
    %1727 = vmatpush1.msra.mxu0 0.0
    %1728 = vmatprep.subr.mxu0 0.0
    %1729 = vmatpush1.msra.mxu0 0.0
    %1730 = vmatprep.subr.mxu0 0.0
    %1731 = vmatpush1.msra.mxu0 0.0
    %1732 = vmatprep.subr.mxu0 0.0
    %1733 = vmatpush1.msra.mxu0 0.0
    %1734 = vmatprep.subr.mxu0 0.0
    %1735 = vmatpush1.msra.mxu0 0.0
    %1736 = vmatprep.subr.mxu0 0.0
    %1737 = vmatpush1.msra.mxu0 0.0
    %1738 = vmatprep.subr.mxu0 0.0
    %1739 = vmatpush1.msra.mxu0 0.0
    %1740 = vmatprep.subr.mxu0 0.0
    %1741 = vmatpush1.msra.mxu0 0.0
    %1742 = vmatprep.subr.mxu0 0.0
    %1743 = vmatpush1.msra.mxu0 0.0
    %1744 = vmatprep.subr.mxu0 0.0
    %1745 = vmatpush1.msra.mxu0 0.0
    %1746 = vmatprep.mubr.f32.mxu0 0.0
    %1747 = vmatmul.mubr.f32.gmra.mrb[0].mxu0 %v1680
    %v1748 = vpop.f32.mrb[0].mxu0
    %v1749 = vadd.f32 0.0, %v1748
    %v1750 = vpop.f32.mrb[0].mxu0
    %v1751 = vadd.f32 0.0, %v1750
    %1752 = vdwg.mxu0
    %1753 = vmatprep.subr.mxu0 %v331
    %1754 = vmatpush1.msra.mxu0 %v330
    %1755 = vmatprep.subr.mxu0 %v335
    %1756 = vmatpush1.msra.mxu0 %v334
    %1757 = vmatprep.subr.mxu0 %v339
    %1758 = vmatpush1.msra.mxu0 %v338
    %1759 = vmatprep.subr.mxu0 %v343
    %1760 = vmatpush1.msra.mxu0 %v342
    %1761 = vmatprep.subr.mxu0 %v347
    %1762 = vmatpush1.msra.mxu0 %v346
    %1763 = vmatprep.subr.mxu0 %v351
    %1764 = vmatpush1.msra.mxu0 %v350
    %1765 = vmatprep.subr.mxu0 %v355
    %1766 = vmatpush1.msra.mxu0 %v354
    %1767 = vmatprep.subr.mxu0 %v359
    %1768 = vmatpush1.msra.mxu0 %v358
    %1769 = vmatprep.subr.mxu0 %v363
    %1770 = vmatpush1.msra.mxu0 %v362
    %1771 = vmatprep.subr.mxu0 %v367
    %1772 = vmatpush1.msra.mxu0 %v366
    %1773 = vmatprep.subr.mxu0 %v371
    %1774 = vmatpush1.msra.mxu0 %v370
    %1775 = vmatprep.subr.mxu0 %v375
    %1776 = vmatpush1.msra.mxu0 %v374
    %1777 = vmatprep.subr.mxu0 %v379
    %1778 = vmatpush1.msra.mxu0 %v378
    %1779 = vmatprep.subr.mxu0 %v383
    %1780 = vmatpush1.msra.mxu0 %v382
    %1781 = vmatprep.subr.mxu0 %v387
    %1782 = vmatpush1.msra.mxu0 %v386
    %1783 = vmatprep.subr.mxu0 %v391
    %1784 = vmatpush1.msra.mxu0 %v390
    %1785 = vmatprep.subr.mxu0 0.0
    %1786 = vmatpush1.msra.mxu0 0.0
    %1787 = vmatprep.subr.mxu0 0.0
    %1788 = vmatpush1.msra.mxu0 0.0
    %1789 = vmatprep.subr.mxu0 0.0
    %1790 = vmatpush1.msra.mxu0 0.0
    %1791 = vmatprep.subr.mxu0 0.0
    %1792 = vmatpush1.msra.mxu0 0.0
    %1793 = vmatprep.subr.mxu0 0.0
    %1794 = vmatpush1.msra.mxu0 0.0
    %1795 = vmatprep.subr.mxu0 0.0
    %1796 = vmatpush1.msra.mxu0 0.0
    %1797 = vmatprep.subr.mxu0 0.0
    %1798 = vmatpush1.msra.mxu0 0.0
    %1799 = vmatprep.subr.mxu0 0.0
    %1800 = vmatpush1.msra.mxu0 0.0
    %1801 = vmatprep.subr.mxu0 0.0
    %1802 = vmatpush1.msra.mxu0 0.0
    %1803 = vmatprep.subr.mxu0 0.0
    %1804 = vmatpush1.msra.mxu0 0.0
    %1805 = vmatprep.subr.mxu0 0.0
    %1806 = vmatpush1.msra.mxu0 0.0
    %1807 = vmatprep.subr.mxu0 0.0
    %1808 = vmatpush1.msra.mxu0 0.0
    %1809 = vmatprep.subr.mxu0 0.0
    %1810 = vmatpush1.msra.mxu0 0.0
    %1811 = vmatprep.subr.mxu0 0.0
    %1812 = vmatpush1.msra.mxu0 0.0
    %1813 = vmatprep.subr.mxu0 0.0
    %1814 = vmatpush1.msra.mxu0 0.0
    %1815 = vmatprep.subr.mxu0 0.0
    %1816 = vmatpush1.msra.mxu0 0.0
    %1817 = vmatprep.mubr.f32.mxu0 0.0
    %1818 = vmatmul.mubr.f32.gmra.mrb[0].mxu0 %v1680
    %v1819 = vpop.f32.mrb[0].mxu0
    %v1820 = vadd.f32 0.0, %v1819
    %v1821 = vpop.f32.mrb[0].mxu0
    %v1822 = vadd.f32 0.0, %v1821
    %1823 = vdwg.mxu0
    %v1828 = vrot.slane %v1749, 2
    %v1829 = vrot.slane %v1751, 2
    %v1830 = vrot.slane %v1820, 2
    %v1831 = vrot.slane %v1822, 2
    %v1836 = vadd.f32 %v247, %v1828
    %v1837 = vadd.f32 %v249, %v1829
    %v1838 = vadd.f32 %v324, %v1830
    %v1839 = vadd.f32 %v326, %v1831
    %v1840 = vxor.u32 %v1836, 2147483648
    %v1841 = vmul.f32 %v1840, 1.442695
    %v1842 = vpow.pop %v1841
    %v1843 = vadd.f32 %v1842, 1.0
    %v1844 = vrcp.pop %v1843
    %v1845 = vmul.f32 1.0, %v1844
    %v1846 = vxor.u32 %v1837, 2147483648
    %v1847 = vmul.f32 %v1846, 1.442695
    %v1848 = vpow.pop %v1847
    %v1849 = vadd.f32 %v1848, 1.0
    %v1850 = vrcp.pop %v1849
    %v1851 = vmul.f32 1.0, %v1850
    %v1852 = vtanh.pop %v1838
    %v1853 = vxor.u32 %v1839, 2147483648
    %v1854 = vmul.f32 %v1853, 1.442695
    %v1855 = vpow.pop %v1854
    %v1856 = vadd.f32 %v1855, 1.0
    %v1857 = vrcp.pop %v1856
    %v1858 = vmul.f32 1.0, %v1857
    %v1860 = vrot.slane %v1675, 6
    %v1862 = vmul.f32 %v1851, %v1860
    %v1863 = vmul.f32 %v1845, %v1852
    %v1864 = vadd.f32 %v1862, %v1863
    %v1865 = vtanh.pop %v1864
    %v1866 = vmul.f32 %v1858, %v1865
    %1867 = vst [vmem:[#allocation2 + $0x8] sm:$0xc0] %v1866
    %v1868 = vld [vmem:[#allocation2] sm:$0xff]
    %v1869 = vld [vmem:[#allocation2 + $0x8] sm:$0xff]
    %v1870 = vld [vmem:[#allocation7] sm:$0xff]
    %v1871 = vld [vmem:[#allocation7 + $0x8] sm:$0xff]
    %v1872 = vld [vmem:[#allocation7 + $0x10] sm:$0xff]
    %v1873 = vld [vmem:[#allocation7 + $0x18] sm:$0xff]
    %v1874 = vld [vmem:[#allocation7 + $0x20] sm:$0xff]
    %v1875 = vld [vmem:[#allocation7 + $0x28] sm:$0xff]
    %v1876 = vld [vmem:[#allocation7 + $0x30] sm:$0xff]
    %v1877 = vld [vmem:[#allocation7 + $0x38] sm:$0xff]
    %v1878 = vld [vmem:[#allocation7 + $0x40] sm:$0xff]
    %v1879 = vld [vmem:[#allocation7 + $0x48] sm:$0xff]
    %v1880 = vld [vmem:[#allocation7 + $0x50] sm:$0xff]
    %v1881 = vld [vmem:[#allocation7 + $0x58] sm:$0xff]
    %v1882 = vld [vmem:[#allocation7 + $0x60] sm:$0xff]
    %v1883 = vld [vmem:[#allocation7 + $0x68] sm:$0xff]
    %v1884 = vld [vmem:[#allocation7 + $0x70] sm:$0xff]
    %v1885 = vld [vmem:[#allocation7 + $0x78] sm:$0xff]
    %v1886 = vld [vmem:[#allocation7 + $0x80] sm:$0xff]
    %v1887 = vld [vmem:[#allocation7 + $0x88] sm:$0xff]
    %v1888 = vld [vmem:[#allocation7 + $0x90] sm:$0xff]
    %v1889 = vld [vmem:[#allocation7 + $0x98] sm:$0xff]
    %v1890 = vld [vmem:[#allocation7 + $0xa0] sm:$0xff]
    %v1891 = vld [vmem:[#allocation7 + $0xa8] sm:$0xff]
    %v1892 = vld [vmem:[#allocation7 + $0xb0] sm:$0xff]
    %v1893 = vld [vmem:[#allocation7 + $0xb8] sm:$0xff]
    %v1894 = vld [vmem:[#allocation7 + $0xc0] sm:$0xff]
    %v1895 = vld [vmem:[#allocation7 + $0xc8] sm:$0xff]
    %v1896 = vld [vmem:[#allocation7 + $0xd0] sm:$0xff]
    %v1897 = vld [vmem:[#allocation7 + $0xd8] sm:$0xff]
    %v1898 = vld [vmem:[#allocation7 + $0xe0] sm:$0xff]
    %v1899 = vld [vmem:[#allocation7 + $0xe8] sm:$0xff]
    %v1900 = vld [vmem:[#allocation7 + $0xf0] sm:$0xff]
    %v1901 = vld [vmem:[#allocation7 + $0xf8] sm:$0xff]
    %v1902 = vld [vmem:[#allocation7 + $0x100] sm:$0xff]
    %v1903 = vld [vmem:[#allocation7 + $0x108] sm:$0xff]
    %v1904 = vld [vmem:[#allocation7 + $0x110] sm:$0xff]
    %v1905 = vld [vmem:[#allocation7 + $0x118] sm:$0xff]
    %v1906 = vld [vmem:[#allocation7 + $0x120] sm:$0xff]
    %v1907 = vld [vmem:[#allocation7 + $0x128] sm:$0xff]
    %v1908 = vld [vmem:[#allocation7 + $0x130] sm:$0xff]
    %v1909 = vld [vmem:[#allocation7 + $0x138] sm:$0xff]
    %v1910 = vld [vmem:[#allocation7 + $0x140] sm:$0xff]
    %v1911 = vld [vmem:[#allocation7 + $0x148] sm:$0xff]
    %v1912 = vld [vmem:[#allocation7 + $0x150] sm:$0xff]
    %v1913 = vld [vmem:[#allocation7 + $0x158] sm:$0xff]
    %v1914 = vld [vmem:[#allocation7 + $0x160] sm:$0xff]
    %v1915 = vld [vmem:[#allocation7 + $0x168] sm:$0xff]
    %v1916 = vld [vmem:[#allocation7 + $0x170] sm:$0xff]
    %v1917 = vld [vmem:[#allocation7 + $0x178] sm:$0xff]
    %v1918 = vld [vmem:[#allocation7 + $0x180] sm:$0xff]
    %v1919 = vld [vmem:[#allocation7 + $0x188] sm:$0xff]
    %v1920 = vld [vmem:[#allocation7 + $0x190] sm:$0xff]
    %v1921 = vld [vmem:[#allocation7 + $0x198] sm:$0xff]
    %v1922 = vld [vmem:[#allocation7 + $0x1a0] sm:$0xff]
    %v1923 = vld [vmem:[#allocation7 + $0x1a8] sm:$0xff]
    %v1924 = vld [vmem:[#allocation7 + $0x1b0] sm:$0xff]
    %v1925 = vld [vmem:[#allocation7 + $0x1b8] sm:$0xff]
    %v1926 = vld [vmem:[#allocation7 + $0x1c0] sm:$0xff]
    %v1927 = vld [vmem:[#allocation7 + $0x1c8] sm:$0xff]
    %v1928 = vld [vmem:[#allocation7 + $0x1d0] sm:$0xff]
    %v1929 = vld [vmem:[#allocation7 + $0x1d8] sm:$0xff]
    %v1930 = vld [vmem:[#allocation7 + $0x1e0] sm:$0xff]
    %v1931 = vld [vmem:[#allocation7 + $0x1e8] sm:$0xff]
    %v1932 = vld [vmem:[#allocation7 + $0x1f0] sm:$0xff]
    %v1933 = vld [vmem:[#allocation7 + $0x1f8] sm:$0xff]
    %v1934 = vld [vmem:[#allocation7 + $0x200] sm:$0xff]
    %v1935 = vld [vmem:[#allocation7 + $0x208] sm:$0xff]
    %v1936 = vld [vmem:[#allocation7 + $0x210] sm:$0xff]
    %v1937 = vld [vmem:[#allocation7 + $0x218] sm:$0xff]
    %v1938 = vld [vmem:[#allocation7 + $0x220] sm:$0xff]
    %v1939 = vld [vmem:[#allocation7 + $0x228] sm:$0xff]
    %v1940 = vld [vmem:[#allocation7 + $0x230] sm:$0xff]
    %v1941 = vld [vmem:[#allocation7 + $0x238] sm:$0xff]
    %v1942 = vld [vmem:[#allocation7 + $0x240] sm:$0xff]
    %v1943 = vld [vmem:[#allocation7 + $0x248] sm:$0xff]
    %v1944 = vld [vmem:[#allocation7 + $0x250] sm:$0xff]
    %v1945 = vld [vmem:[#allocation7 + $0x258] sm:$0xff]
    %v1946 = vld [vmem:[#allocation7 + $0x260] sm:$0xff]
    %v1947 = vld [vmem:[#allocation7 + $0x268] sm:$0xff]
    %v1948 = vld [vmem:[#allocation7 + $0x270] sm:$0xff]
    %v1949 = vld [vmem:[#allocation7 + $0x278] sm:$0xff]
    %v1950 = vld [vmem:[#allocation7 + $0x280] sm:$0xff]
    %v1951 = vld [vmem:[#allocation7 + $0x288] sm:$0xff]
    %v1952 = vld [vmem:[#allocation7 + $0x290] sm:$0xff]
    %v1953 = vld [vmem:[#allocation7 + $0x298] sm:$0xff]
    %v1954 = vld [vmem:[#allocation7 + $0x2a0] sm:$0xff]
    %v1955 = vld [vmem:[#allocation7 + $0x2a8] sm:$0xff]
    %v1956 = vld [vmem:[#allocation7 + $0x2b0] sm:$0xff]
    %v1957 = vld [vmem:[#allocation7 + $0x2b8] sm:$0xff]
    %v1958 = vld [vmem:[#allocation7 + $0x2c0] sm:$0xff]
    %v1959 = vld [vmem:[#allocation7 + $0x2c8] sm:$0xff]
    %v1960 = vld [vmem:[#allocation7 + $0x2d0] sm:$0xff]
    %v1961 = vld [vmem:[#allocation7 + $0x2d8] sm:$0xff]
    %v1962 = vld [vmem:[#allocation7 + $0x2e0] sm:$0xff]
    %v1963 = vld [vmem:[#allocation7 + $0x2e8] sm:$0xff]
    %v1964 = vld [vmem:[#allocation7 + $0x2f0] sm:$0xff]
    %v1965 = vld [vmem:[#allocation7 + $0x2f8] sm:$0xff]
    %v1966 = vld [vmem:[#allocation7 + $0x300] sm:$0xff]
    %v1967 = vld [vmem:[#allocation7 + $0x308] sm:$0xff]
    %v1968 = vld [vmem:[#allocation7 + $0x310] sm:$0xff]
    %v1969 = vld [vmem:[#allocation7 + $0x318] sm:$0xff]
    %v1970 = vld [vmem:[#allocation7 + $0x320] sm:$0xff]
    %v1971 = vld [vmem:[#allocation7 + $0x328] sm:$0xff]
    %v1972 = vld [vmem:[#allocation7 + $0x330] sm:$0xff]
    %v1973 = vld [vmem:[#allocation7 + $0x338] sm:$0xff]
    %v1974 = vld [vmem:[#allocation7 + $0x340] sm:$0xff]
    %v1975 = vld [vmem:[#allocation7 + $0x348] sm:$0xff]
    %v1976 = vld [vmem:[#allocation7 + $0x350] sm:$0xff]
    %v1977 = vld [vmem:[#allocation7 + $0x358] sm:$0xff]
    %v1978 = vld [vmem:[#allocation7 + $0x360] sm:$0xff]
    %v1979 = vld [vmem:[#allocation7 + $0x368] sm:$0xff]
    %v1980 = vld [vmem:[#allocation7 + $0x370] sm:$0xff]
    %v1981 = vld [vmem:[#allocation7 + $0x378] sm:$0xff]
    %v1982 = vld [vmem:[#allocation7 + $0x380] sm:$0xff]
    %v1983 = vld [vmem:[#allocation7 + $0x388] sm:$0xff]
    %v1984 = vld [vmem:[#allocation7 + $0x390] sm:$0xff]
    %v1985 = vld [vmem:[#allocation7 + $0x398] sm:$0xff]
    %v1986 = vld [vmem:[#allocation7 + $0x3a0] sm:$0xff]
    %v1987 = vld [vmem:[#allocation7 + $0x3a8] sm:$0xff]
    %v1988 = vld [vmem:[#allocation7 + $0x3b0] sm:$0xff]
    %v1989 = vld [vmem:[#allocation7 + $0x3b8] sm:$0xff]
    %v1990 = vld [vmem:[#allocation7 + $0x3c0] sm:$0xff]
    %v1991 = vld [vmem:[#allocation7 + $0x3c8] sm:$0xff]
    %v1992 = vld [vmem:[#allocation7 + $0x3d0] sm:$0xff]
    %v1993 = vld [vmem:[#allocation7 + $0x3d8] sm:$0xff]
    %v1994 = vld [vmem:[#allocation7 + $0x3e0] sm:$0xff]
    %v1995 = vld [vmem:[#allocation7 + $0x3e8] sm:$0xff]
    %v1996 = vld [vmem:[#allocation7 + $0x3f0] sm:$0xff]
    %v1997 = vld [vmem:[#allocation7 + $0x3f8] sm:$0xff]
    %v1998 = vld [vmem:[%s6] sm:$0xff]
    %v2000 = vlaneseq
    %v2001 = vshrl.u32 %v2000, 7
    %v2002 = vsub.s32 0, %v2001
    %v2003 = vrot.slane %v1998, %v2002
    %v2004 = vlaneseq
    %v2005 = vshrl.u32 %v2004, 7
    %v2006 = vsub.s32 1, %v2005
    %v2007 = vrot.slane %v1998, %v2006
    %v2008 = vlaneseq
    %v2009 = vshrl.u32 %v2008, 7
    %v2010 = vsub.s32 2, %v2009
    %v2011 = vrot.slane %v1998, %v2010
    %v2012 = vlaneseq
    %v2013 = vshrl.u32 %v2012, 7
    %v2014 = vsub.s32 3, %v2013
    %v2015 = vrot.slane %v1998, %v2014
    %v2016 = vlaneseq
    %v2017 = vshrl.u32 %v2016, 7
    %v2018 = vsub.s32 4, %v2017
    %v2019 = vrot.slane %v1998, %v2018
    %v2020 = vlaneseq
    %v2021 = vshrl.u32 %v2020, 7
    %v2022 = vsub.s32 5, %v2021
    %v2023 = vrot.slane %v1998, %v2022
    %v2024 = vlaneseq
    %v2025 = vshrl.u32 %v2024, 7
    %v2026 = vsub.s32 6, %v2025
    %v2027 = vrot.slane %v1998, %v2026
    %v2028 = vlaneseq
    %v2029 = vshrl.u32 %v2028, 7
    %v2030 = vsub.s32 7, %v2029
    %v2031 = vrot.slane %v1998, %v2030
    %2040 = vmatprep.subr.mxu0 %v1871
    %2041 = vmatpush1.msra.mxu0 %v1870
    %2042 = vmatprep.subr.mxu0 %v1879
    %2043 = vmatpush1.msra.mxu0 %v1878
    %2044 = vmatprep.subr.mxu0 %v1887
    %2045 = vmatpush1.msra.mxu0 %v1886
    %2046 = vmatprep.subr.mxu0 %v1895
    %2047 = vmatpush1.msra.mxu0 %v1894
    %2048 = vmatprep.subr.mxu0 %v1903
    %2049 = vmatpush1.msra.mxu0 %v1902
    %2050 = vmatprep.subr.mxu0 %v1911
    %2051 = vmatpush1.msra.mxu0 %v1910
    %2052 = vmatprep.subr.mxu0 %v1919
    %2053 = vmatpush1.msra.mxu0 %v1918
    %2054 = vmatprep.subr.mxu0 %v1927
    %2055 = vmatpush1.msra.mxu0 %v1926
    %2056 = vmatprep.subr.mxu0 %v1935
    %2057 = vmatpush1.msra.mxu0 %v1934
    %2058 = vmatprep.subr.mxu0 %v1943
    %2059 = vmatpush1.msra.mxu0 %v1942
    %2060 = vmatprep.subr.mxu0 %v1951
    %2061 = vmatpush1.msra.mxu0 %v1950
    %2062 = vmatprep.subr.mxu0 %v1959
    %2063 = vmatpush1.msra.mxu0 %v1958
    %2064 = vmatprep.subr.mxu0 %v1967
    %2065 = vmatpush1.msra.mxu0 %v1966
    %2066 = vmatprep.subr.mxu0 %v1975
    %2067 = vmatpush1.msra.mxu0 %v1974
    %2068 = vmatprep.subr.mxu0 %v1983
    %2069 = vmatpush1.msra.mxu0 %v1982
    %2070 = vmatprep.subr.mxu0 %v1991
    %2071 = vmatpush1.msra.mxu0 %v1990
    %2072 = vmatprep.subr.mxu0 0.0
    %2073 = vmatpush1.msra.mxu0 0.0
    %2074 = vmatprep.subr.mxu0 0.0
    %2075 = vmatpush1.msra.mxu0 0.0
    %2076 = vmatprep.subr.mxu0 0.0
    %2077 = vmatpush1.msra.mxu0 0.0
    %2078 = vmatprep.subr.mxu0 0.0
    %2079 = vmatpush1.msra.mxu0 0.0
    %2080 = vmatprep.subr.mxu0 0.0
    %2081 = vmatpush1.msra.mxu0 0.0
    %2082 = vmatprep.subr.mxu0 0.0
    %2083 = vmatpush1.msra.mxu0 0.0
    %2084 = vmatprep.subr.mxu0 0.0
    %2085 = vmatpush1.msra.mxu0 0.0
    %2086 = vmatprep.subr.mxu0 0.0
    %2087 = vmatpush1.msra.mxu0 0.0
    %2088 = vmatprep.subr.mxu0 0.0
    %2089 = vmatpush1.msra.mxu0 0.0
    %2090 = vmatprep.subr.mxu0 0.0
    %2091 = vmatpush1.msra.mxu0 0.0
    %2092 = vmatprep.subr.mxu0 0.0
    %2093 = vmatpush1.msra.mxu0 0.0
    %2094 = vmatprep.subr.mxu0 0.0
    %2095 = vmatpush1.msra.mxu0 0.0
    %2096 = vmatprep.subr.mxu0 0.0
    %2097 = vmatpush1.msra.mxu0 0.0
    %2098 = vmatprep.subr.mxu0 0.0
    %2099 = vmatpush1.msra.mxu0 0.0
    %2100 = vmatprep.subr.mxu0 0.0
    %2101 = vmatpush1.msra.mxu0 0.0
    %2102 = vmatprep.subr.mxu0 0.0
    %2103 = vmatpush1.msra.mxu0 0.0
    %2104 = vmatprep.mubr.f32.mxu0 0.0
    %2105 = vmatmul.mubr.f32.gmra.mrb[0].mxu0 %v1868
    %v2106 = vpop.f32.mrb[0].mxu0
    %v2107 = vadd.f32 %v2003, %v2106
    %v2108 = vpop.f32.mrb[0].mxu0
    %v2109 = vadd.f32 %v2007, %v2108
    %2110 = vmatprep.mubr.f32.mxu0 0.0
    %2111 = vmatmul.mubr.f32.gmra.mrb[0].mxu0 %v1869
    %v2112 = vpop.f32.mrb[0].mxu0
    %v2113 = vadd.f32 %v2003, %v2112
    %v2114 = vpop.f32.mrb[0].mxu0
    %v2115 = vadd.f32 %v2007, %v2114
    %2116 = vdwg.mxu0
    %2117 = vmatprep.subr.mxu0 %v1873
    %2118 = vmatpush1.msra.mxu0 %v1872
    %2119 = vmatprep.subr.mxu0 %v1881
    %2120 = vmatpush1.msra.mxu0 %v1880
    %2121 = vmatprep.subr.mxu0 %v1889
    %2122 = vmatpush1.msra.mxu0 %v1888
    %2123 = vmatprep.subr.mxu0 %v1897
    %2124 = vmatpush1.msra.mxu0 %v1896
    %2125 = vmatprep.subr.mxu0 %v1905
    %2126 = vmatpush1.msra.mxu0 %v1904
    %2127 = vmatprep.subr.mxu0 %v1913
    %2128 = vmatpush1.msra.mxu0 %v1912
    %2129 = vmatprep.subr.mxu0 %v1921
    %2130 = vmatpush1.msra.mxu0 %v1920
    %2131 = vmatprep.subr.mxu0 %v1929
    %2132 = vmatpush1.msra.mxu0 %v1928
    %2133 = vmatprep.subr.mxu0 %v1937
    %2134 = vmatpush1.msra.mxu0 %v1936
    %2135 = vmatprep.subr.mxu0 %v1945
    %2136 = vmatpush1.msra.mxu0 %v1944
    %2137 = vmatprep.subr.mxu0 %v1953
    %2138 = vmatpush1.msra.mxu0 %v1952
    %2139 = vmatprep.subr.mxu0 %v1961
    %2140 = vmatpush1.msra.mxu0 %v1960
    %2141 = vmatprep.subr.mxu0 %v1969
    %2142 = vmatpush1.msra.mxu0 %v1968
    %2143 = vmatprep.subr.mxu0 %v1977
    %2144 = vmatpush1.msra.mxu0 %v1976
    %2145 = vmatprep.subr.mxu0 %v1985
    %2146 = vmatpush1.msra.mxu0 %v1984
    %2147 = vmatprep.subr.mxu0 %v1993
    %2148 = vmatpush1.msra.mxu0 %v1992
    %2149 = vmatprep.subr.mxu0 0.0
    %2150 = vmatpush1.msra.mxu0 0.0
    %2151 = vmatprep.subr.mxu0 0.0
    %2152 = vmatpush1.msra.mxu0 0.0
    %2153 = vmatprep.subr.mxu0 0.0
    %2154 = vmatpush1.msra.mxu0 0.0
    %2155 = vmatprep.subr.mxu0 0.0
    %2156 = vmatpush1.msra.mxu0 0.0
    %2157 = vmatprep.subr.mxu0 0.0
    %2158 = vmatpush1.msra.mxu0 0.0
    %2159 = vmatprep.subr.mxu0 0.0
    %2160 = vmatpush1.msra.mxu0 0.0
    %2161 = vmatprep.subr.mxu0 0.0
    %2162 = vmatpush1.msra.mxu0 0.0
    %2163 = vmatprep.subr.mxu0 0.0
    %2164 = vmatpush1.msra.mxu0 0.0
    %2165 = vmatprep.subr.mxu0 0.0
    %2166 = vmatpush1.msra.mxu0 0.0
    %2167 = vmatprep.subr.mxu0 0.0
    %2168 = vmatpush1.msra.mxu0 0.0
    %2169 = vmatprep.subr.mxu0 0.0
    %2170 = vmatpush1.msra.mxu0 0.0
    %2171 = vmatprep.subr.mxu0 0.0
    %2172 = vmatpush1.msra.mxu0 0.0
    %2173 = vmatprep.subr.mxu0 0.0
    %2174 = vmatpush1.msra.mxu0 0.0
    %2175 = vmatprep.subr.mxu0 0.0
    %2176 = vmatpush1.msra.mxu0 0.0
    %2177 = vmatprep.subr.mxu0 0.0
    %2178 = vmatpush1.msra.mxu0 0.0
    %2179 = vmatprep.subr.mxu0 0.0
    %2180 = vmatpush1.msra.mxu0 0.0
    %2181 = vmatprep.mubr.f32.mxu0 0.0
    %2182 = vmatmul.mubr.f32.gmra.mrb[0].mxu0 %v1868
    %v2183 = vpop.f32.mrb[0].mxu0
    %v2184 = vadd.f32 %v2011, %v2183
    %v2185 = vpop.f32.mrb[0].mxu0
    %v2186 = vadd.f32 %v2015, %v2185
    %2187 = vmatprep.mubr.f32.mxu0 0.0
    %2188 = vmatmul.mubr.f32.gmra.mrb[0].mxu0 %v1869
    %v2189 = vpop.f32.mrb[0].mxu0
    %v2190 = vadd.f32 %v2011, %v2189
    %v2191 = vpop.f32.mrb[0].mxu0
    %v2192 = vadd.f32 %v2015, %v2191
    %2193 = vdwg.mxu0
    %2194 = vmatprep.subr.mxu0 %v1875
    %2195 = vmatpush1.msra.mxu0 %v1874
    %2196 = vmatprep.subr.mxu0 %v1883
    %2197 = vmatpush1.msra.mxu0 %v1882
    %2198 = vmatprep.subr.mxu0 %v1891
    %2199 = vmatpush1.msra.mxu0 %v1890
    %2200 = vmatprep.subr.mxu0 %v1899
    %2201 = vmatpush1.msra.mxu0 %v1898
    %2202 = vmatprep.subr.mxu0 %v1907
    %2203 = vmatpush1.msra.mxu0 %v1906
    %2204 = vmatprep.subr.mxu0 %v1915
    %2205 = vmatpush1.msra.mxu0 %v1914
    %2206 = vmatprep.subr.mxu0 %v1923
    %2207 = vmatpush1.msra.mxu0 %v1922
    %2208 = vmatprep.subr.mxu0 %v1931
    %2209 = vmatpush1.msra.mxu0 %v1930
    %2210 = vmatprep.subr.mxu0 %v1939
    %2211 = vmatpush1.msra.mxu0 %v1938
    %2212 = vmatprep.subr.mxu0 %v1947
    %2213 = vmatpush1.msra.mxu0 %v1946
    %2214 = vmatprep.subr.mxu0 %v1955
    %2215 = vmatpush1.msra.mxu0 %v1954
    %2216 = vmatprep.subr.mxu0 %v1963
    %2217 = vmatpush1.msra.mxu0 %v1962
    %2218 = vmatprep.subr.mxu0 %v1971
    %2219 = vmatpush1.msra.mxu0 %v1970
    %2220 = vmatprep.subr.mxu0 %v1979
    %2221 = vmatpush1.msra.mxu0 %v1978
    %2222 = vmatprep.subr.mxu0 %v1987
    %2223 = vmatpush1.msra.mxu0 %v1986
    %2224 = vmatprep.subr.mxu0 %v1995
    %2225 = vmatpush1.msra.mxu0 %v1994
    %2226 = vmatprep.subr.mxu0 0.0
    %2227 = vmatpush1.msra.mxu0 0.0
    %2228 = vmatprep.subr.mxu0 0.0
    %2229 = vmatpush1.msra.mxu0 0.0
    %2230 = vmatprep.subr.mxu0 0.0
    %2231 = vmatpush1.msra.mxu0 0.0
    %2232 = vmatprep.subr.mxu0 0.0
    %2233 = vmatpush1.msra.mxu0 0.0
    %2234 = vmatprep.subr.mxu0 0.0
    %2235 = vmatpush1.msra.mxu0 0.0
    %2236 = vmatprep.subr.mxu0 0.0
    %2237 = vmatpush1.msra.mxu0 0.0
    %2238 = vmatprep.subr.mxu0 0.0
    %2239 = vmatpush1.msra.mxu0 0.0
    %2240 = vmatprep.subr.mxu0 0.0
    %2241 = vmatpush1.msra.mxu0 0.0
    %2242 = vmatprep.subr.mxu0 0.0
    %2243 = vmatpush1.msra.mxu0 0.0
    %2244 = vmatprep.subr.mxu0 0.0
    %2245 = vmatpush1.msra.mxu0 0.0
    %2246 = vmatprep.subr.mxu0 0.0
    %2247 = vmatpush1.msra.mxu0 0.0
    %2248 = vmatprep.subr.mxu0 0.0
    %2249 = vmatpush1.msra.mxu0 0.0
    %2250 = vmatprep.subr.mxu0 0.0
    %2251 = vmatpush1.msra.mxu0 0.0
    %2252 = vmatprep.subr.mxu0 0.0
    %2253 = vmatpush1.msra.mxu0 0.0
    %2254 = vmatprep.subr.mxu0 0.0
    %2255 = vmatpush1.msra.mxu0 0.0
    %2256 = vmatprep.subr.mxu0 0.0
    %2257 = vmatpush1.msra.mxu0 0.0
    %2258 = vmatprep.mubr.f32.mxu0 0.0
    %2259 = vmatmul.mubr.f32.gmra.mrb[0].mxu0 %v1868
    %v2260 = vpop.f32.mrb[0].mxu0
    %v2261 = vadd.f32 %v2019, %v2260
    %v2262 = vpop.f32.mrb[0].mxu0
    %v2263 = vadd.f32 %v2023, %v2262
    %2264 = vmatprep.mubr.f32.mxu0 0.0
    %2265 = vmatmul.mubr.f32.gmra.mrb[0].mxu0 %v1869
    %v2266 = vpop.f32.mrb[0].mxu0
    %v2267 = vadd.f32 %v2019, %v2266
    %v2268 = vpop.f32.mrb[0].mxu0
    %v2269 = vadd.f32 %v2023, %v2268
    %2270 = vdwg.mxu0
    %2271 = vmatprep.subr.mxu0 %v1877
    %2272 = vmatpush1.msra.mxu0 %v1876
    %2273 = vmatprep.subr.mxu0 %v1885
    %2274 = vmatpush1.msra.mxu0 %v1884
    %2275 = vmatprep.subr.mxu0 %v1893
    %2276 = vmatpush1.msra.mxu0 %v1892
    %2277 = vmatprep.subr.mxu0 %v1901
    %2278 = vmatpush1.msra.mxu0 %v1900
    %2279 = vmatprep.subr.mxu0 %v1909
    %2280 = vmatpush1.msra.mxu0 %v1908
    %2281 = vmatprep.subr.mxu0 %v1917
    %2282 = vmatpush1.msra.mxu0 %v1916
    %2283 = vmatprep.subr.mxu0 %v1925
    %2284 = vmatpush1.msra.mxu0 %v1924
    %2285 = vmatprep.subr.mxu0 %v1933
    %2286 = vmatpush1.msra.mxu0 %v1932
    %2287 = vmatprep.subr.mxu0 %v1941
    %2288 = vmatpush1.msra.mxu0 %v1940
    %2289 = vmatprep.subr.mxu0 %v1949
    %2290 = vmatpush1.msra.mxu0 %v1948
    %2291 = vmatprep.subr.mxu0 %v1957
    %2292 = vmatpush1.msra.mxu0 %v1956
    %2293 = vmatprep.subr.mxu0 %v1965
    %2294 = vmatpush1.msra.mxu0 %v1964
    %2295 = vmatprep.subr.mxu0 %v1973
    %2296 = vmatpush1.msra.mxu0 %v1972
    %2297 = vmatprep.subr.mxu0 %v1981
    %2298 = vmatpush1.msra.mxu0 %v1980
    %2299 = vmatprep.subr.mxu0 %v1989
    %2300 = vmatpush1.msra.mxu0 %v1988
    %2301 = vmatprep.subr.mxu0 %v1997
    %2302 = vmatpush1.msra.mxu0 %v1996
    %2303 = vmatprep.subr.mxu0 0.0
    %2304 = vmatpush1.msra.mxu0 0.0
    %2305 = vmatprep.subr.mxu0 0.0
    %2306 = vmatpush1.msra.mxu0 0.0
    %2307 = vmatprep.subr.mxu0 0.0
    %2308 = vmatpush1.msra.mxu0 0.0
    %2309 = vmatprep.subr.mxu0 0.0
    %2310 = vmatpush1.msra.mxu0 0.0
    %2311 = vmatprep.subr.mxu0 0.0
    %2312 = vmatpush1.msra.mxu0 0.0
    %2313 = vmatprep.subr.mxu0 0.0
    %2314 = vmatpush1.msra.mxu0 0.0
    %2315 = vmatprep.subr.mxu0 0.0
    %2316 = vmatpush1.msra.mxu0 0.0
    %2317 = vmatprep.subr.mxu0 0.0
    %2318 = vmatpush1.msra.mxu0 0.0
    %2319 = vmatprep.subr.mxu0 0.0
    %2320 = vmatpush1.msra.mxu0 0.0
    %2321 = vmatprep.subr.mxu0 0.0
    %2322 = vmatpush1.msra.mxu0 0.0
    %2323 = vmatprep.subr.mxu0 0.0
    %2324 = vmatpush1.msra.mxu0 0.0
    %2325 = vmatprep.subr.mxu0 0.0
    %2326 = vmatpush1.msra.mxu0 0.0
    %2327 = vmatprep.subr.mxu0 0.0
    %2328 = vmatpush1.msra.mxu0 0.0
    %2329 = vmatprep.subr.mxu0 0.0
    %2330 = vmatpush1.msra.mxu0 0.0
    %2331 = vmatprep.subr.mxu0 0.0
    %2332 = vmatpush1.msra.mxu0 0.0
    %2333 = vmatprep.subr.mxu0 0.0
    %2334 = vmatpush1.msra.mxu0 0.0
    %2335 = vmatprep.mubr.f32.mxu0 0.0
    %2336 = vmatmul.mubr.f32.gmra.mrb[0].mxu0 %v1868
    %v2337 = vpop.f32.mrb[0].mxu0
    %v2338 = vadd.f32 %v2027, %v2337
    %v2339 = vpop.f32.mrb[0].mxu0
    %v2340 = vadd.f32 %v2031, %v2339
    %2341 = vmatprep.mubr.f32.mxu0 0.0
    %2342 = vmatmul.mubr.f32.gmra.mrb[0].mxu0 %v1869
    %v2343 = vpop.f32.mrb[0].mxu0
    %v2344 = vadd.f32 %v2027, %v2343
    %v2345 = vpop.f32.mrb[0].mxu0
    %v2346 = vadd.f32 %v2031, %v2345
    %2347 = vdwg.mxu0
    %v2348 = vld [vmem:[#allocation9] sm:$0xff]
    %v2349 = vld [vmem:[#allocation9 + $0x8] sm:$0xff]
    %v2350 = vld [vmem:[#allocation9 + $0x10] sm:$0xff]
    %v2351 = vld [vmem:[#allocation9 + $0x18] sm:$0xff]
    %v2352 = vld [vmem:[#allocation9 + $0x20] sm:$0xff]
    %v2353 = vld [vmem:[#allocation9 + $0x28] sm:$0xff]
    %v2354 = vld [vmem:[#allocation9 + $0x30] sm:$0xff]
    %v2355 = vld [vmem:[#allocation9 + $0x38] sm:$0xff]
    %v2356 = vld [vmem:[#allocation9 + $0x40] sm:$0xff]
    %v2357 = vld [vmem:[#allocation9 + $0x48] sm:$0xff]
    %v2358 = vld [vmem:[#allocation9 + $0x50] sm:$0xff]
    %v2359 = vld [vmem:[#allocation9 + $0x58] sm:$0xff]
    %v2360 = vld [vmem:[#allocation9 + $0x60] sm:$0xff]
    %v2361 = vld [vmem:[#allocation9 + $0x68] sm:$0xff]
    %v2362 = vld [vmem:[#allocation9 + $0x70] sm:$0xff]
    %v2363 = vld [vmem:[#allocation9 + $0x78] sm:$0xff]
    %v2364 = vld [vmem:[#allocation9 + $0x80] sm:$0xff]
    %v2365 = vld [vmem:[#allocation9 + $0x88] sm:$0xff]
    %v2366 = vld [vmem:[#allocation9 + $0x90] sm:$0xff]
    %v2367 = vld [vmem:[#allocation9 + $0x98] sm:$0xff]
    %v2368 = vld [vmem:[#allocation9 + $0xa0] sm:$0xff]
    %v2369 = vld [vmem:[#allocation9 + $0xa8] sm:$0xff]
    %v2370 = vld [vmem:[#allocation9 + $0xb0] sm:$0xff]
    %v2371 = vld [vmem:[#allocation9 + $0xb8] sm:$0xff]
    %v2372 = vld [vmem:[#allocation9 + $0xc0] sm:$0xff]
    %v2373 = vld [vmem:[#allocation9 + $0xc8] sm:$0xff]
    %v2374 = vld [vmem:[#allocation9 + $0xd0] sm:$0xff]
    %v2375 = vld [vmem:[#allocation9 + $0xd8] sm:$0xff]
    %v2376 = vld [vmem:[#allocation9 + $0xe0] sm:$0xff]
    %v2377 = vld [vmem:[#allocation9 + $0xe8] sm:$0xff]
    %v2378 = vld [vmem:[#allocation9 + $0xf0] sm:$0xff]
    %v2379 = vld [vmem:[#allocation9 + $0xf8] sm:$0xff]
    %v2380 = vld [vmem:[#allocation9 + $0x100] sm:$0xff]
    %v2381 = vld [vmem:[#allocation9 + $0x108] sm:$0xff]
    %v2382 = vld [vmem:[#allocation9 + $0x110] sm:$0xff]
    %v2383 = vld [vmem:[#allocation9 + $0x118] sm:$0xff]
    %v2384 = vld [vmem:[#allocation9 + $0x120] sm:$0xff]
    %v2385 = vld [vmem:[#allocation9 + $0x128] sm:$0xff]
    %v2386 = vld [vmem:[#allocation9 + $0x130] sm:$0xff]
    %v2387 = vld [vmem:[#allocation9 + $0x138] sm:$0xff]
    %v2388 = vld [vmem:[#allocation9 + $0x140] sm:$0xff]
    %v2389 = vld [vmem:[#allocation9 + $0x148] sm:$0xff]
    %v2390 = vld [vmem:[#allocation9 + $0x150] sm:$0xff]
    %v2391 = vld [vmem:[#allocation9 + $0x158] sm:$0xff]
    %v2392 = vld [vmem:[#allocation9 + $0x160] sm:$0xff]
    %v2393 = vld [vmem:[#allocation9 + $0x168] sm:$0xff]
    %v2394 = vld [vmem:[#allocation9 + $0x170] sm:$0xff]
    %v2395 = vld [vmem:[#allocation9 + $0x178] sm:$0xff]
    %v2396 = vld [vmem:[#allocation9 + $0x180] sm:$0xff]
    %v2397 = vld [vmem:[#allocation9 + $0x188] sm:$0xff]
    %v2398 = vld [vmem:[#allocation9 + $0x190] sm:$0xff]
    %v2399 = vld [vmem:[#allocation9 + $0x198] sm:$0xff]
    %v2400 = vld [vmem:[#allocation9 + $0x1a0] sm:$0xff]
    %v2401 = vld [vmem:[#allocation9 + $0x1a8] sm:$0xff]
    %v2402 = vld [vmem:[#allocation9 + $0x1b0] sm:$0xff]
    %v2403 = vld [vmem:[#allocation9 + $0x1b8] sm:$0xff]
    %v2404 = vld [vmem:[#allocation9 + $0x1c0] sm:$0xff]
    %v2405 = vld [vmem:[#allocation9 + $0x1c8] sm:$0xff]
    %v2406 = vld [vmem:[#allocation9 + $0x1d0] sm:$0xff]
    %v2407 = vld [vmem:[#allocation9 + $0x1d8] sm:$0xff]
    %v2408 = vld [vmem:[#allocation9 + $0x1e0] sm:$0xff]
    %v2409 = vld [vmem:[#allocation9 + $0x1e8] sm:$0xff]
    %v2410 = vld [vmem:[#allocation9 + $0x1f0] sm:$0xff]
    %v2411 = vld [vmem:[#allocation9 + $0x1f8] sm:$0xff]
    %v2412 = vld [vmem:[#allocation9 + $0x200] sm:$0xff]
    %v2413 = vld [vmem:[#allocation9 + $0x208] sm:$0xff]
    %v2414 = vld [vmem:[#allocation9 + $0x210] sm:$0xff]
    %v2415 = vld [vmem:[#allocation9 + $0x218] sm:$0xff]
    %v2416 = vld [vmem:[#allocation9 + $0x220] sm:$0xff]
    %v2417 = vld [vmem:[#allocation9 + $0x228] sm:$0xff]
    %v2418 = vld [vmem:[#allocation9 + $0x230] sm:$0xff]
    %v2419 = vld [vmem:[#allocation9 + $0x238] sm:$0xff]
    %v2420 = vld [vmem:[#allocation9 + $0x240] sm:$0xff]
    %v2421 = vld [vmem:[#allocation9 + $0x248] sm:$0xff]
    %v2422 = vld [vmem:[#allocation9 + $0x250] sm:$0xff]
    %v2423 = vld [vmem:[#allocation9 + $0x258] sm:$0xff]
    %v2424 = vld [vmem:[#allocation9 + $0x260] sm:$0xff]
    %v2425 = vld [vmem:[#allocation9 + $0x268] sm:$0xff]
    %v2426 = vld [vmem:[#allocation9 + $0x270] sm:$0xff]
    %v2427 = vld [vmem:[#allocation9 + $0x278] sm:$0xff]
    %v2428 = vld [vmem:[#allocation9 + $0x280] sm:$0xff]
    %v2429 = vld [vmem:[#allocation9 + $0x288] sm:$0xff]
    %v2430 = vld [vmem:[#allocation9 + $0x290] sm:$0xff]
    %v2431 = vld [vmem:[#allocation9 + $0x298] sm:$0xff]
    %v2432 = vld [vmem:[#allocation9 + $0x2a0] sm:$0xff]
    %v2433 = vld [vmem:[#allocation9 + $0x2a8] sm:$0xff]
    %v2434 = vld [vmem:[#allocation9 + $0x2b0] sm:$0xff]
    %v2435 = vld [vmem:[#allocation9 + $0x2b8] sm:$0xff]
    %v2436 = vld [vmem:[#allocation9 + $0x2c0] sm:$0xff]
    %v2437 = vld [vmem:[#allocation9 + $0x2c8] sm:$0xff]
    %v2438 = vld [vmem:[#allocation9 + $0x2d0] sm:$0xff]
    %v2439 = vld [vmem:[#allocation9 + $0x2d8] sm:$0xff]
    %v2440 = vld [vmem:[#allocation9 + $0x2e0] sm:$0xff]
    %v2441 = vld [vmem:[#allocation9 + $0x2e8] sm:$0xff]
    %v2442 = vld [vmem:[#allocation9 + $0x2f0] sm:$0xff]
    %v2443 = vld [vmem:[#allocation9 + $0x2f8] sm:$0xff]
    %v2444 = vld [vmem:[#allocation9 + $0x300] sm:$0xff]
    %v2445 = vld [vmem:[#allocation9 + $0x308] sm:$0xff]
    %v2446 = vld [vmem:[#allocation9 + $0x310] sm:$0xff]
    %v2447 = vld [vmem:[#allocation9 + $0x318] sm:$0xff]
    %v2448 = vld [vmem:[#allocation9 + $0x320] sm:$0xff]
    %v2449 = vld [vmem:[#allocation9 + $0x328] sm:$0xff]
    %v2450 = vld [vmem:[#allocation9 + $0x330] sm:$0xff]
    %v2451 = vld [vmem:[#allocation9 + $0x338] sm:$0xff]
    %v2452 = vld [vmem:[#allocation9 + $0x340] sm:$0xff]
    %v2453 = vld [vmem:[#allocation9 + $0x348] sm:$0xff]
    %v2454 = vld [vmem:[#allocation9 + $0x350] sm:$0xff]
    %v2455 = vld [vmem:[#allocation9 + $0x358] sm:$0xff]
    %v2456 = vld [vmem:[#allocation9 + $0x360] sm:$0xff]
    %v2457 = vld [vmem:[#allocation9 + $0x368] sm:$0xff]
    %v2458 = vld [vmem:[#allocation9 + $0x370] sm:$0xff]
    %v2459 = vld [vmem:[#allocation9 + $0x378] sm:$0xff]
    %v2460 = vld [vmem:[#allocation9 + $0x380] sm:$0xff]
    %v2461 = vld [vmem:[#allocation9 + $0x388] sm:$0xff]
    %v2462 = vld [vmem:[#allocation9 + $0x390] sm:$0xff]
    %v2463 = vld [vmem:[#allocation9 + $0x398] sm:$0xff]
    %v2464 = vld [vmem:[#allocation9 + $0x3a0] sm:$0xff]
    %v2465 = vld [vmem:[#allocation9 + $0x3a8] sm:$0xff]
    %v2466 = vld [vmem:[#allocation9 + $0x3b0] sm:$0xff]
    %v2467 = vld [vmem:[#allocation9 + $0x3b8] sm:$0xff]
    %v2468 = vld [vmem:[#allocation9 + $0x3c0] sm:$0xff]
    %v2469 = vld [vmem:[#allocation9 + $0x3c8] sm:$0xff]
    %v2470 = vld [vmem:[#allocation9 + $0x3d0] sm:$0xff]
    %v2471 = vld [vmem:[#allocation9 + $0x3d8] sm:$0xff]
    %v2472 = vld [vmem:[#allocation9 + $0x3e0] sm:$0xff]
    %v2473 = vld [vmem:[#allocation9 + $0x3e8] sm:$0xff]
    %v2474 = vld [vmem:[#allocation9 + $0x3f0] sm:$0xff]
    %v2475 = vld [vmem:[#allocation9 + $0x3f8] sm:$0xff]
    %v2476 = vld [vmem:[#allocation9 + $0x400] sm:$0xff]
    %v2477 = vld [vmem:[#allocation9 + $0x408] sm:$0xff]
    %v2478 = vld [vmem:[#allocation9 + $0x410] sm:$0xff]
    %v2479 = vld [vmem:[#allocation9 + $0x418] sm:$0xff]
    %v2480 = vld [vmem:[#allocation9 + $0x420] sm:$0xff]
    %v2481 = vld [vmem:[#allocation9 + $0x428] sm:$0xff]
    %v2482 = vld [vmem:[#allocation9 + $0x430] sm:$0xff]
    %v2483 = vld [vmem:[#allocation9 + $0x438] sm:$0xff]
    %v2484 = vld [vmem:[#allocation9 + $0x440] sm:$0xff]
    %v2485 = vld [vmem:[#allocation9 + $0x448] sm:$0xff]
    %v2486 = vld [vmem:[#allocation9 + $0x450] sm:$0xff]
    %v2487 = vld [vmem:[#allocation9 + $0x458] sm:$0xff]
    %v2488 = vld [vmem:[#allocation9 + $0x460] sm:$0xff]
    %v2489 = vld [vmem:[#allocation9 + $0x468] sm:$0xff]
    %v2490 = vld [vmem:[#allocation9 + $0x470] sm:$0xff]
    %v2491 = vld [vmem:[#allocation9 + $0x478] sm:$0xff]
    %v2492 = vld [vmem:[#allocation9 + $0x480] sm:$0xff]
    %v2493 = vld [vmem:[#allocation9 + $0x488] sm:$0xff]
    %v2494 = vld [vmem:[#allocation9 + $0x490] sm:$0xff]
    %v2495 = vld [vmem:[#allocation9 + $0x498] sm:$0xff]
    %v2496 = vld [vmem:[#allocation9 + $0x4a0] sm:$0xff]
    %v2497 = vld [vmem:[#allocation9 + $0x4a8] sm:$0xff]
    %v2498 = vld [vmem:[#allocation9 + $0x4b0] sm:$0xff]
    %v2499 = vld [vmem:[#allocation9 + $0x4b8] sm:$0xff]
    %v2500 = vld [vmem:[#allocation9 + $0x4c0] sm:$0xff]
    %v2501 = vld [vmem:[#allocation9 + $0x4c8] sm:$0xff]
    %v2502 = vld [vmem:[#allocation9 + $0x4d0] sm:$0xff]
    %v2503 = vld [vmem:[#allocation9 + $0x4d8] sm:$0xff]
    %v2504 = vld [vmem:[#allocation9 + $0x4e0] sm:$0xff]
    %v2505 = vld [vmem:[#allocation9 + $0x4e8] sm:$0xff]
    %v2506 = vld [vmem:[#allocation9 + $0x4f0] sm:$0xff]
    %v2507 = vld [vmem:[#allocation9 + $0x4f8] sm:$0xff]
    %v2508 = vld [vmem:[#allocation9 + $0x500] sm:$0xff]
    %v2509 = vld [vmem:[#allocation9 + $0x508] sm:$0xff]
    %v2510 = vld [vmem:[#allocation9 + $0x510] sm:$0xff]
    %v2511 = vld [vmem:[#allocation9 + $0x518] sm:$0xff]
    %v2512 = vld [vmem:[#allocation9 + $0x520] sm:$0xff]
    %v2513 = vld [vmem:[#allocation9 + $0x528] sm:$0xff]
    %v2514 = vld [vmem:[#allocation9 + $0x530] sm:$0xff]
    %v2515 = vld [vmem:[#allocation9 + $0x538] sm:$0xff]
    %v2516 = vld [vmem:[#allocation9 + $0x540] sm:$0xff]
    %v2517 = vld [vmem:[#allocation9 + $0x548] sm:$0xff]
    %v2518 = vld [vmem:[#allocation9 + $0x550] sm:$0xff]
    %v2519 = vld [vmem:[#allocation9 + $0x558] sm:$0xff]
    %v2520 = vld [vmem:[#allocation9 + $0x560] sm:$0xff]
    %v2521 = vld [vmem:[#allocation9 + $0x568] sm:$0xff]
    %v2522 = vld [vmem:[#allocation9 + $0x570] sm:$0xff]
    %v2523 = vld [vmem:[#allocation9 + $0x578] sm:$0xff]
    %v2524 = vld [vmem:[#allocation9 + $0x580] sm:$0xff]
    %v2525 = vld [vmem:[#allocation9 + $0x588] sm:$0xff]
    %v2526 = vld [vmem:[#allocation9 + $0x590] sm:$0xff]
    %v2527 = vld [vmem:[#allocation9 + $0x598] sm:$0xff]
    %v2528 = vld [vmem:[#allocation9 + $0x5a0] sm:$0xff]
    %v2529 = vld [vmem:[#allocation9 + $0x5a8] sm:$0xff]
    %v2530 = vld [vmem:[#allocation9 + $0x5b0] sm:$0xff]
    %v2531 = vld [vmem:[#allocation9 + $0x5b8] sm:$0xff]
    %v2532 = vld [vmem:[#allocation9 + $0x5c0] sm:$0xff]
    %v2533 = vld [vmem:[#allocation9 + $0x5c8] sm:$0xff]
    %v2534 = vld [vmem:[#allocation9 + $0x5d0] sm:$0xff]
    %v2535 = vld [vmem:[#allocation9 + $0x5d8] sm:$0xff]
    %v2536 = vld [vmem:[#allocation9 + $0x5e0] sm:$0xff]
    %v2537 = vld [vmem:[#allocation9 + $0x5e8] sm:$0xff]
    %v2538 = vld [vmem:[#allocation9 + $0x5f0] sm:$0xff]
    %v2539 = vld [vmem:[#allocation9 + $0x5f8] sm:$0xff]
    %v2540 = vld [vmem:[#allocation9 + $0x600] sm:$0xff]
    %v2541 = vld [vmem:[#allocation9 + $0x608] sm:$0xff]
    %v2542 = vld [vmem:[#allocation9 + $0x610] sm:$0xff]
    %v2543 = vld [vmem:[#allocation9 + $0x618] sm:$0xff]
    %v2544 = vld [vmem:[#allocation9 + $0x620] sm:$0xff]
    %v2545 = vld [vmem:[#allocation9 + $0x628] sm:$0xff]
    %v2546 = vld [vmem:[#allocation9 + $0x630] sm:$0xff]
    %v2547 = vld [vmem:[#allocation9 + $0x638] sm:$0xff]
    %v2548 = vld [vmem:[#allocation9 + $0x640] sm:$0xff]
    %v2549 = vld [vmem:[#allocation9 + $0x648] sm:$0xff]
    %v2550 = vld [vmem:[#allocation9 + $0x650] sm:$0xff]
    %v2551 = vld [vmem:[#allocation9 + $0x658] sm:$0xff]
    %v2552 = vld [vmem:[#allocation9 + $0x660] sm:$0xff]
    %v2553 = vld [vmem:[#allocation9 + $0x668] sm:$0xff]
    %v2554 = vld [vmem:[#allocation9 + $0x670] sm:$0xff]
    %v2555 = vld [vmem:[#allocation9 + $0x678] sm:$0xff]
    %v2556 = vld [vmem:[#allocation9 + $0x680] sm:$0xff]
    %v2557 = vld [vmem:[#allocation9 + $0x688] sm:$0xff]
    %v2558 = vld [vmem:[#allocation9 + $0x690] sm:$0xff]
    %v2559 = vld [vmem:[#allocation9 + $0x698] sm:$0xff]
    %v2560 = vld [vmem:[#allocation9 + $0x6a0] sm:$0xff]
    %v2561 = vld [vmem:[#allocation9 + $0x6a8] sm:$0xff]
    %v2562 = vld [vmem:[#allocation9 + $0x6b0] sm:$0xff]
    %v2563 = vld [vmem:[#allocation9 + $0x6b8] sm:$0xff]
    %v2564 = vld [vmem:[#allocation9 + $0x6c0] sm:$0xff]
    %v2565 = vld [vmem:[#allocation9 + $0x6c8] sm:$0xff]
    %v2566 = vld [vmem:[#allocation9 + $0x6d0] sm:$0xff]
    %v2567 = vld [vmem:[#allocation9 + $0x6d8] sm:$0xff]
    %v2568 = vld [vmem:[#allocation9 + $0x6e0] sm:$0xff]
    %v2569 = vld [vmem:[#allocation9 + $0x6e8] sm:$0xff]
    %v2570 = vld [vmem:[#allocation9 + $0x6f0] sm:$0xff]
    %v2571 = vld [vmem:[#allocation9 + $0x6f8] sm:$0xff]
    %v2572 = vld [vmem:[#allocation9 + $0x700] sm:$0xff]
    %v2573 = vld [vmem:[#allocation9 + $0x708] sm:$0xff]
    %v2574 = vld [vmem:[#allocation9 + $0x710] sm:$0xff]
    %v2575 = vld [vmem:[#allocation9 + $0x718] sm:$0xff]
    %v2576 = vld [vmem:[#allocation9 + $0x720] sm:$0xff]
    %v2577 = vld [vmem:[#allocation9 + $0x728] sm:$0xff]
    %v2578 = vld [vmem:[#allocation9 + $0x730] sm:$0xff]
    %v2579 = vld [vmem:[#allocation9 + $0x738] sm:$0xff]
    %v2580 = vld [vmem:[#allocation9 + $0x740] sm:$0xff]
    %v2581 = vld [vmem:[#allocation9 + $0x748] sm:$0xff]
    %v2582 = vld [vmem:[#allocation9 + $0x750] sm:$0xff]
    %v2583 = vld [vmem:[#allocation9 + $0x758] sm:$0xff]
    %v2584 = vld [vmem:[#allocation9 + $0x760] sm:$0xff]
    %v2585 = vld [vmem:[#allocation9 + $0x768] sm:$0xff]
    %v2586 = vld [vmem:[#allocation9 + $0x770] sm:$0xff]
    %v2587 = vld [vmem:[#allocation9 + $0x778] sm:$0xff]
    %v2588 = vld [vmem:[#allocation9 + $0x780] sm:$0xff]
    %v2589 = vld [vmem:[#allocation9 + $0x788] sm:$0xff]
    %v2590 = vld [vmem:[#allocation9 + $0x790] sm:$0xff]
    %v2591 = vld [vmem:[#allocation9 + $0x798] sm:$0xff]
    %v2592 = vld [vmem:[#allocation9 + $0x7a0] sm:$0xff]
    %v2593 = vld [vmem:[#allocation9 + $0x7a8] sm:$0xff]
    %v2594 = vld [vmem:[#allocation9 + $0x7b0] sm:$0xff]
    %v2595 = vld [vmem:[#allocation9 + $0x7b8] sm:$0xff]
    %v2596 = vld [vmem:[#allocation9 + $0x7c0] sm:$0xff]
    %v2597 = vld [vmem:[#allocation9 + $0x7c8] sm:$0xff]
    %v2598 = vld [vmem:[#allocation9 + $0x7d0] sm:$0xff]
    %v2599 = vld [vmem:[#allocation9 + $0x7d8] sm:$0xff]
    %v2600 = vld [vmem:[#allocation9 + $0x7e0] sm:$0xff]
    %v2601 = vld [vmem:[#allocation9 + $0x7e8] sm:$0xff]
    %v2602 = vld [vmem:[#allocation9 + $0x7f0] sm:$0xff]
    %v2603 = vld [vmem:[#allocation9 + $0x7f8] sm:$0xff]
    %2604 = vmatprep.subr.mxu0 %v2349
    %2605 = vmatpush1.msra.mxu0 %v2348
    %2606 = vmatprep.subr.mxu0 %v2357
    %2607 = vmatpush1.msra.mxu0 %v2356
    %2608 = vmatprep.subr.mxu0 %v2365
    %2609 = vmatpush1.msra.mxu0 %v2364
    %2610 = vmatprep.subr.mxu0 %v2373
    %2611 = vmatpush1.msra.mxu0 %v2372
    %2612 = vmatprep.subr.mxu0 %v2381
    %2613 = vmatpush1.msra.mxu0 %v2380
    %2614 = vmatprep.subr.mxu0 %v2389
    %2615 = vmatpush1.msra.mxu0 %v2388
    %2616 = vmatprep.subr.mxu0 %v2397
    %2617 = vmatpush1.msra.mxu0 %v2396
    %2618 = vmatprep.subr.mxu0 %v2405
    %2619 = vmatpush1.msra.mxu0 %v2404
    %2620 = vmatprep.subr.mxu0 %v2413
    %2621 = vmatpush1.msra.mxu0 %v2412
    %2622 = vmatprep.subr.mxu0 %v2421
    %2623 = vmatpush1.msra.mxu0 %v2420
    %2624 = vmatprep.subr.mxu0 %v2429
    %2625 = vmatpush1.msra.mxu0 %v2428
    %2626 = vmatprep.subr.mxu0 %v2437
    %2627 = vmatpush1.msra.mxu0 %v2436
    %2628 = vmatprep.subr.mxu0 %v2445
    %2629 = vmatpush1.msra.mxu0 %v2444
    %2630 = vmatprep.subr.mxu0 %v2453
    %2631 = vmatpush1.msra.mxu0 %v2452
    %2632 = vmatprep.subr.mxu0 %v2461
    %2633 = vmatpush1.msra.mxu0 %v2460
    %2634 = vmatprep.subr.mxu0 %v2469
    %2635 = vmatpush1.msra.mxu0 %v2468
    %2636 = vmatprep.subr.mxu0 %v2477
    %2637 = vmatpush1.msra.mxu0 %v2476
    %2638 = vmatprep.subr.mxu0 %v2485
    %2639 = vmatpush1.msra.mxu0 %v2484
    %2640 = vmatprep.subr.mxu0 %v2493
    %2641 = vmatpush1.msra.mxu0 %v2492
    %2642 = vmatprep.subr.mxu0 %v2501
    %2643 = vmatpush1.msra.mxu0 %v2500
    %2644 = vmatprep.subr.mxu0 %v2509
    %2645 = vmatpush1.msra.mxu0 %v2508
    %2646 = vmatprep.subr.mxu0 %v2517
    %2647 = vmatpush1.msra.mxu0 %v2516
    %2648 = vmatprep.subr.mxu0 %v2525
    %2649 = vmatpush1.msra.mxu0 %v2524
    %2650 = vmatprep.subr.mxu0 %v2533
    %2651 = vmatpush1.msra.mxu0 %v2532
    %2652 = vmatprep.subr.mxu0 %v2541
    %2653 = vmatpush1.msra.mxu0 %v2540
    %2654 = vmatprep.subr.mxu0 %v2549
    %2655 = vmatpush1.msra.mxu0 %v2548
    %2656 = vmatprep.subr.mxu0 %v2557
    %2657 = vmatpush1.msra.mxu0 %v2556
    %2658 = vmatprep.subr.mxu0 %v2565
    %2659 = vmatpush1.msra.mxu0 %v2564
    %2660 = vmatprep.subr.mxu0 %v2573
    %2661 = vmatpush1.msra.mxu0 %v2572
    %2662 = vmatprep.subr.mxu0 %v2581
    %2663 = vmatpush1.msra.mxu0 %v2580
    %2664 = vmatprep.subr.mxu0 %v2589
    %2665 = vmatpush1.msra.mxu0 %v2588
    %2666 = vmatprep.subr.mxu0 %v2597
    %2667 = vmatpush1.msra.mxu0 %v2596
    %2668 = vmatprep.mubr.f32.mxu0 0.0
    %2669 = vmatmul.mubr.f32.gmra.mrb[0].mxu0 0.0
    %v2670 = vpop.f32.mrb[0].mxu0
    %v2671 = vadd.f32 0.0, %v2670
    %v2672 = vpop.f32.mrb[0].mxu0
    %v2673 = vadd.f32 0.0, %v2672
    %2674 = vdwg.mxu0
    %2675 = vmatprep.subr.mxu0 %v2351
    %2676 = vmatpush1.msra.mxu0 %v2350
    %2677 = vmatprep.subr.mxu0 %v2359
    %2678 = vmatpush1.msra.mxu0 %v2358
    %2679 = vmatprep.subr.mxu0 %v2367
    %2680 = vmatpush1.msra.mxu0 %v2366
    %2681 = vmatprep.subr.mxu0 %v2375
    %2682 = vmatpush1.msra.mxu0 %v2374
    %2683 = vmatprep.subr.mxu0 %v2383
    %2684 = vmatpush1.msra.mxu0 %v2382
    %2685 = vmatprep.subr.mxu0 %v2391
    %2686 = vmatpush1.msra.mxu0 %v2390
    %2687 = vmatprep.subr.mxu0 %v2399
    %2688 = vmatpush1.msra.mxu0 %v2398
    %2689 = vmatprep.subr.mxu0 %v2407
    %2690 = vmatpush1.msra.mxu0 %v2406
    %2691 = vmatprep.subr.mxu0 %v2415
    %2692 = vmatpush1.msra.mxu0 %v2414
    %2693 = vmatprep.subr.mxu0 %v2423
    %2694 = vmatpush1.msra.mxu0 %v2422
    %2695 = vmatprep.subr.mxu0 %v2431
    %2696 = vmatpush1.msra.mxu0 %v2430
    %2697 = vmatprep.subr.mxu0 %v2439
    %2698 = vmatpush1.msra.mxu0 %v2438
    %2699 = vmatprep.subr.mxu0 %v2447
    %2700 = vmatpush1.msra.mxu0 %v2446
    %2701 = vmatprep.subr.mxu0 %v2455
    %2702 = vmatpush1.msra.mxu0 %v2454
    %2703 = vmatprep.subr.mxu0 %v2463
    %2704 = vmatpush1.msra.mxu0 %v2462
    %2705 = vmatprep.subr.mxu0 %v2471
    %2706 = vmatpush1.msra.mxu0 %v2470
    %2707 = vmatprep.subr.mxu0 %v2479
    %2708 = vmatpush1.msra.mxu0 %v2478
    %2709 = vmatprep.subr.mxu0 %v2487
    %2710 = vmatpush1.msra.mxu0 %v2486
    %2711 = vmatprep.subr.mxu0 %v2495
    %2712 = vmatpush1.msra.mxu0 %v2494
    %2713 = vmatprep.subr.mxu0 %v2503
    %2714 = vmatpush1.msra.mxu0 %v2502
    %2715 = vmatprep.subr.mxu0 %v2511
    %2716 = vmatpush1.msra.mxu0 %v2510
    %2717 = vmatprep.subr.mxu0 %v2519
    %2718 = vmatpush1.msra.mxu0 %v2518
    %2719 = vmatprep.subr.mxu0 %v2527
    %2720 = vmatpush1.msra.mxu0 %v2526
    %2721 = vmatprep.subr.mxu0 %v2535
    %2722 = vmatpush1.msra.mxu0 %v2534
    %2723 = vmatprep.subr.mxu0 %v2543
    %2724 = vmatpush1.msra.mxu0 %v2542
    %2725 = vmatprep.subr.mxu0 %v2551
    %2726 = vmatpush1.msra.mxu0 %v2550
    %2727 = vmatprep.subr.mxu0 %v2559
    %2728 = vmatpush1.msra.mxu0 %v2558
    %2729 = vmatprep.subr.mxu0 %v2567
    %2730 = vmatpush1.msra.mxu0 %v2566
    %2731 = vmatprep.subr.mxu0 %v2575
    %2732 = vmatpush1.msra.mxu0 %v2574
    %2733 = vmatprep.subr.mxu0 %v2583
    %2734 = vmatpush1.msra.mxu0 %v2582
    %2735 = vmatprep.subr.mxu0 %v2591
    %2736 = vmatpush1.msra.mxu0 %v2590
    %2737 = vmatprep.subr.mxu0 %v2599
    %2738 = vmatpush1.msra.mxu0 %v2598
    %2739 = vmatprep.mubr.f32.mxu0 0.0
    %2740 = vmatmul.mubr.f32.gmra.mrb[0].mxu0 0.0
    %v2741 = vpop.f32.mrb[0].mxu0
    %v2742 = vadd.f32 0.0, %v2741
    %v2743 = vpop.f32.mrb[0].mxu0
    %v2744 = vadd.f32 0.0, %v2743
    %2745 = vdwg.mxu0
    %2746 = vmatprep.subr.mxu0 %v2353
    %2747 = vmatpush1.msra.mxu0 %v2352
    %2748 = vmatprep.subr.mxu0 %v2361
    %2749 = vmatpush1.msra.mxu0 %v2360
    %2750 = vmatprep.subr.mxu0 %v2369
    %2751 = vmatpush1.msra.mxu0 %v2368
    %2752 = vmatprep.subr.mxu0 %v2377
    %2753 = vmatpush1.msra.mxu0 %v2376
    %2754 = vmatprep.subr.mxu0 %v2385
    %2755 = vmatpush1.msra.mxu0 %v2384
    %2756 = vmatprep.subr.mxu0 %v2393
    %2757 = vmatpush1.msra.mxu0 %v2392
    %2758 = vmatprep.subr.mxu0 %v2401
    %2759 = vmatpush1.msra.mxu0 %v2400
    %2760 = vmatprep.subr.mxu0 %v2409
    %2761 = vmatpush1.msra.mxu0 %v2408
    %2762 = vmatprep.subr.mxu0 %v2417
    %2763 = vmatpush1.msra.mxu0 %v2416
    %2764 = vmatprep.subr.mxu0 %v2425
    %2765 = vmatpush1.msra.mxu0 %v2424
    %2766 = vmatprep.subr.mxu0 %v2433
    %2767 = vmatpush1.msra.mxu0 %v2432
    %2768 = vmatprep.subr.mxu0 %v2441
    %2769 = vmatpush1.msra.mxu0 %v2440
    %2770 = vmatprep.subr.mxu0 %v2449
    %2771 = vmatpush1.msra.mxu0 %v2448
    %2772 = vmatprep.subr.mxu0 %v2457
    %2773 = vmatpush1.msra.mxu0 %v2456
    %2774 = vmatprep.subr.mxu0 %v2465
    %2775 = vmatpush1.msra.mxu0 %v2464
    %2776 = vmatprep.subr.mxu0 %v2473
    %2777 = vmatpush1.msra.mxu0 %v2472
    %2778 = vmatprep.subr.mxu0 %v2481
    %2779 = vmatpush1.msra.mxu0 %v2480
    %2780 = vmatprep.subr.mxu0 %v2489
    %2781 = vmatpush1.msra.mxu0 %v2488
    %2782 = vmatprep.subr.mxu0 %v2497
    %2783 = vmatpush1.msra.mxu0 %v2496
    %2784 = vmatprep.subr.mxu0 %v2505
    %2785 = vmatpush1.msra.mxu0 %v2504
    %2786 = vmatprep.subr.mxu0 %v2513
    %2787 = vmatpush1.msra.mxu0 %v2512
    %2788 = vmatprep.subr.mxu0 %v2521
    %2789 = vmatpush1.msra.mxu0 %v2520
    %2790 = vmatprep.subr.mxu0 %v2529
    %2791 = vmatpush1.msra.mxu0 %v2528
    %2792 = vmatprep.subr.mxu0 %v2537
    %2793 = vmatpush1.msra.mxu0 %v2536
    %2794 = vmatprep.subr.mxu0 %v2545
    %2795 = vmatpush1.msra.mxu0 %v2544
    %2796 = vmatprep.subr.mxu0 %v2553
    %2797 = vmatpush1.msra.mxu0 %v2552
    %2798 = vmatprep.subr.mxu0 %v2561
    %2799 = vmatpush1.msra.mxu0 %v2560
    %2800 = vmatprep.subr.mxu0 %v2569
    %2801 = vmatpush1.msra.mxu0 %v2568
    %2802 = vmatprep.subr.mxu0 %v2577
    %2803 = vmatpush1.msra.mxu0 %v2576
    %2804 = vmatprep.subr.mxu0 %v2585
    %2805 = vmatpush1.msra.mxu0 %v2584
    %2806 = vmatprep.subr.mxu0 %v2593
    %2807 = vmatpush1.msra.mxu0 %v2592
    %2808 = vmatprep.subr.mxu0 %v2601
    %2809 = vmatpush1.msra.mxu0 %v2600
    %2810 = vmatprep.mubr.f32.mxu0 0.0
    %2811 = vmatmul.mubr.f32.gmra.mrb[0].mxu0 0.0
    %v2812 = vpop.f32.mrb[0].mxu0
    %v2813 = vadd.f32 0.0, %v2812
    %v2814 = vpop.f32.mrb[0].mxu0
    %v2815 = vadd.f32 0.0, %v2814
    %2816 = vdwg.mxu0
    %2817 = vmatprep.subr.mxu0 %v2355
    %2818 = vmatpush1.msra.mxu0 %v2354
    %2819 = vmatprep.subr.mxu0 %v2363
    %2820 = vmatpush1.msra.mxu0 %v2362
    %2821 = vmatprep.subr.mxu0 %v2371
    %2822 = vmatpush1.msra.mxu0 %v2370
    %2823 = vmatprep.subr.mxu0 %v2379
    %2824 = vmatpush1.msra.mxu0 %v2378
    %2825 = vmatprep.subr.mxu0 %v2387
    %2826 = vmatpush1.msra.mxu0 %v2386
    %2827 = vmatprep.subr.mxu0 %v2395
    %2828 = vmatpush1.msra.mxu0 %v2394
    %2829 = vmatprep.subr.mxu0 %v2403
    %2830 = vmatpush1.msra.mxu0 %v2402
    %2831 = vmatprep.subr.mxu0 %v2411
    %2832 = vmatpush1.msra.mxu0 %v2410
    %2833 = vmatprep.subr.mxu0 %v2419
    %2834 = vmatpush1.msra.mxu0 %v2418
    %2835 = vmatprep.subr.mxu0 %v2427
    %2836 = vmatpush1.msra.mxu0 %v2426
    %2837 = vmatprep.subr.mxu0 %v2435
    %2838 = vmatpush1.msra.mxu0 %v2434
    %2839 = vmatprep.subr.mxu0 %v2443
    %2840 = vmatpush1.msra.mxu0 %v2442
    %2841 = vmatprep.subr.mxu0 %v2451
    %2842 = vmatpush1.msra.mxu0 %v2450
    %2843 = vmatprep.subr.mxu0 %v2459
    %2844 = vmatpush1.msra.mxu0 %v2458
    %2845 = vmatprep.subr.mxu0 %v2467
    %2846 = vmatpush1.msra.mxu0 %v2466
    %2847 = vmatprep.subr.mxu0 %v2475
    %2848 = vmatpush1.msra.mxu0 %v2474
    %2849 = vmatprep.subr.mxu0 %v2483
    %2850 = vmatpush1.msra.mxu0 %v2482
    %2851 = vmatprep.subr.mxu0 %v2491
    %2852 = vmatpush1.msra.mxu0 %v2490
    %2853 = vmatprep.subr.mxu0 %v2499
    %2854 = vmatpush1.msra.mxu0 %v2498
    %2855 = vmatprep.subr.mxu0 %v2507
    %2856 = vmatpush1.msra.mxu0 %v2506
    %2857 = vmatprep.subr.mxu0 %v2515
    %2858 = vmatpush1.msra.mxu0 %v2514
    %2859 = vmatprep.subr.mxu0 %v2523
    %2860 = vmatpush1.msra.mxu0 %v2522
    %2861 = vmatprep.subr.mxu0 %v2531
    %2862 = vmatpush1.msra.mxu0 %v2530
    %2863 = vmatprep.subr.mxu0 %v2539
    %2864 = vmatpush1.msra.mxu0 %v2538
    %2865 = vmatprep.subr.mxu0 %v2547
    %2866 = vmatpush1.msra.mxu0 %v2546
    %2867 = vmatprep.subr.mxu0 %v2555
    %2868 = vmatpush1.msra.mxu0 %v2554
    %2869 = vmatprep.subr.mxu0 %v2563
    %2870 = vmatpush1.msra.mxu0 %v2562
    %2871 = vmatprep.subr.mxu0 %v2571
    %2872 = vmatpush1.msra.mxu0 %v2570
    %2873 = vmatprep.subr.mxu0 %v2579
    %2874 = vmatpush1.msra.mxu0 %v2578
    %2875 = vmatprep.subr.mxu0 %v2587
    %2876 = vmatpush1.msra.mxu0 %v2586
    %2877 = vmatprep.subr.mxu0 %v2595
    %2878 = vmatpush1.msra.mxu0 %v2594
    %2879 = vmatprep.subr.mxu0 %v2603
    %2880 = vmatpush1.msra.mxu0 %v2602
    %2881 = vmatprep.mubr.f32.mxu0 0.0
    %2882 = vmatmul.mubr.f32.gmra.mrb[0].mxu0 0.0
    %v2883 = vpop.f32.mrb[0].mxu0
    %v2884 = vadd.f32 0.0, %v2883
    %v2885 = vpop.f32.mrb[0].mxu0
    %v2886 = vadd.f32 0.0, %v2885
    %2887 = vdwg.mxu0
    %v2888 = vadd.f32 %v2107, %v2671
    %v2889 = vadd.f32 %v2109, %v2673
    %v2890 = vadd.f32 %v2184, %v2742
    %v2891 = vadd.f32 %v2186, %v2744
    %v2892 = vadd.f32 %v2261, %v2813
    %v2893 = vadd.f32 %v2263, %v2815
    %v2894 = vadd.f32 %v2338, %v2884
    %v2895 = vadd.f32 %v2340, %v2886
    %v2896 = vxor.u32 %v2888, 2147483648
    %v2897 = vxor.u32 %v2889, 2147483648
    %v2898 = vmul.f32 %v2896, 1.442695
    %v2899 = vpow.pop %v2898
    %v2900 = vmul.f32 %v2897, 1.442695
    %v2901 = vpow.pop %v2900
    %v2902 = vadd.f32 %v2899, 1.0
    %v2903 = vadd.f32 %v2901, 1.0
    %v2904 = vrcp.pop %v2902
    %v2905 = vmul.f32 1.0, %v2904
    %v2906 = vrcp.pop %v2903
    %v2907 = vmul.f32 1.0, %v2906
    %v2908 = vxor.u32 %v2890, 2147483648
    %v2909 = vxor.u32 %v2891, 2147483648
    %v2910 = vmul.f32 %v2908, 1.442695
    %v2911 = vpow.pop %v2910
    %v2912 = vmul.f32 %v2909, 1.442695
    %v2913 = vpow.pop %v2912
    %v2914 = vadd.f32 %v2911, 1.0
    %v2915 = vadd.f32 %v2913, 1.0
    %v2916 = vrcp.pop %v2914
    %v2917 = vmul.f32 1.0, %v2916
    %v2918 = vrcp.pop %v2915
    %v2919 = vmul.f32 1.0, %v2918
    %v2920 = vtanh.pop %v2892
    %v2921 = vtanh.pop %v2893
    %v2922 = vxor.u32 %v2894, 2147483648
    %v2923 = vxor.u32 %v2895, 2147483648
    %v2924 = vmul.f32 %v2922, 1.442695
    %v2925 = vpow.pop %v2924
    %v2926 = vmul.f32 %v2923, 1.442695
    %v2927 = vpow.pop %v2926
    %v2928 = vadd.f32 %v2925, 1.0
    %v2929 = vadd.f32 %v2927, 1.0
    %v2930 = vrcp.pop %v2928
    %v2931 = vmul.f32 1.0, %v2930
    %v2932 = vrcp.pop %v2929
    %v2933 = vmul.f32 1.0, %v2932
    %v2934 = vmul.f32 %v2917, 0.0
    %v2935 = vmul.f32 %v2919, 0.0
    %v2936 = vmul.f32 %v2905, %v2920
    %v2937 = vmul.f32 %v2907, %v2921
    %v2938 = vadd.f32 %v2934, %v2936
    %v2939 = vadd.f32 %v2935, %v2937
    %v2940 = vtanh.pop %v2938
    %v2941 = vtanh.pop %v2939
    %v2942 = vmul.f32 %v2931, %v2940
    %v2943 = vmul.f32 %v2933, %v2941
    %2944 = vst [vmem:[#allocation3] sm:$0x3] %v2942
    %2945 = vst [vmem:[#allocation3 + $0x8] sm:$0x3] %v2943
    %2946 = vmatprep.subr.mxu0 %v2349
    %2947 = vmatpush1.msra.mxu0 %v2348
    %2948 = vmatprep.subr.mxu0 %v2357
    %2949 = vmatpush1.msra.mxu0 %v2356
    %2950 = vmatprep.subr.mxu0 %v2365
    %2951 = vmatpush1.msra.mxu0 %v2364
    %2952 = vmatprep.subr.mxu0 %v2373
    %2953 = vmatpush1.msra.mxu0 %v2372
    %2954 = vmatprep.subr.mxu0 %v2381
    %2955 = vmatpush1.msra.mxu0 %v2380
    %2956 = vmatprep.subr.mxu0 %v2389
    %2957 = vmatpush1.msra.mxu0 %v2388
    %2958 = vmatprep.subr.mxu0 %v2397
    %2959 = vmatpush1.msra.mxu0 %v2396
    %2960 = vmatprep.subr.mxu0 %v2405
    %2961 = vmatpush1.msra.mxu0 %v2404
    %2962 = vmatprep.subr.mxu0 %v2413
    %2963 = vmatpush1.msra.mxu0 %v2412
    %2964 = vmatprep.subr.mxu0 %v2421
    %2965 = vmatpush1.msra.mxu0 %v2420
    %2966 = vmatprep.subr.mxu0 %v2429
    %2967 = vmatpush1.msra.mxu0 %v2428
    %2968 = vmatprep.subr.mxu0 %v2437
    %2969 = vmatpush1.msra.mxu0 %v2436
    %2970 = vmatprep.subr.mxu0 %v2445
    %2971 = vmatpush1.msra.mxu0 %v2444
    %2972 = vmatprep.subr.mxu0 %v2453
    %2973 = vmatpush1.msra.mxu0 %v2452
    %2974 = vmatprep.subr.mxu0 %v2461
    %2975 = vmatpush1.msra.mxu0 %v2460
    %2976 = vmatprep.subr.mxu0 %v2469
    %2977 = vmatpush1.msra.mxu0 %v2468
    %2978 = vmatprep.subr.mxu0 %v2477
    %2979 = vmatpush1.msra.mxu0 %v2476
    %2980 = vmatprep.subr.mxu0 %v2485
    %2981 = vmatpush1.msra.mxu0 %v2484
    %2982 = vmatprep.subr.mxu0 %v2493
    %2983 = vmatpush1.msra.mxu0 %v2492
    %2984 = vmatprep.subr.mxu0 %v2501
    %2985 = vmatpush1.msra.mxu0 %v2500
    %2986 = vmatprep.subr.mxu0 %v2509
    %2987 = vmatpush1.msra.mxu0 %v2508
    %2988 = vmatprep.subr.mxu0 %v2517
    %2989 = vmatpush1.msra.mxu0 %v2516
    %2990 = vmatprep.subr.mxu0 %v2525
    %2991 = vmatpush1.msra.mxu0 %v2524
    %2992 = vmatprep.subr.mxu0 %v2533
    %2993 = vmatpush1.msra.mxu0 %v2532
    %2994 = vmatprep.subr.mxu0 %v2541
    %2995 = vmatpush1.msra.mxu0 %v2540
    %2996 = vmatprep.subr.mxu0 %v2549
    %2997 = vmatpush1.msra.mxu0 %v2548
    %2998 = vmatprep.subr.mxu0 %v2557
    %2999 = vmatpush1.msra.mxu0 %v2556
    %3000 = vmatprep.subr.mxu0 %v2565
    %3001 = vmatpush1.msra.mxu0 %v2564
    %3002 = vmatprep.subr.mxu0 %v2573
    %3003 = vmatpush1.msra.mxu0 %v2572
    %3004 = vmatprep.subr.mxu0 %v2581
    %3005 = vmatpush1.msra.mxu0 %v2580
    %3006 = vmatprep.subr.mxu0 %v2589
    %3007 = vmatpush1.msra.mxu0 %v2588
    %3008 = vmatprep.subr.mxu0 %v2597
    %3009 = vmatpush1.msra.mxu0 %v2596
    %3010 = vmatprep.mubr.f32.mxu0 %v2943
    %3011 = vmatmul.mubr.f32.gmra.mrb[0].mxu0 %v2942
    %v3012 = vpop.f32.mrb[0].mxu0
    %v3013 = vadd.f32 0.0, %v3012
    %v3014 = vpop.f32.mrb[0].mxu0
    %v3015 = vadd.f32 0.0, %v3014
    %3016 = vdwg.mxu0
    %3017 = vmatprep.subr.mxu0 %v2351
    %3018 = vmatpush1.msra.mxu0 %v2350
    %3019 = vmatprep.subr.mxu0 %v2359
    %3020 = vmatpush1.msra.mxu0 %v2358
    %3021 = vmatprep.subr.mxu0 %v2367
    %3022 = vmatpush1.msra.mxu0 %v2366
    %3023 = vmatprep.subr.mxu0 %v2375
    %3024 = vmatpush1.msra.mxu0 %v2374
    %3025 = vmatprep.subr.mxu0 %v2383
    %3026 = vmatpush1.msra.mxu0 %v2382
    %3027 = vmatprep.subr.mxu0 %v2391
    %3028 = vmatpush1.msra.mxu0 %v2390
    %3029 = vmatprep.subr.mxu0 %v2399
    %3030 = vmatpush1.msra.mxu0 %v2398
    %3031 = vmatprep.subr.mxu0 %v2407
    %3032 = vmatpush1.msra.mxu0 %v2406
    %3033 = vmatprep.subr.mxu0 %v2415
    %3034 = vmatpush1.msra.mxu0 %v2414
    %3035 = vmatprep.subr.mxu0 %v2423
    %3036 = vmatpush1.msra.mxu0 %v2422
    %3037 = vmatprep.subr.mxu0 %v2431
    %3038 = vmatpush1.msra.mxu0 %v2430
    %3039 = vmatprep.subr.mxu0 %v2439
    %3040 = vmatpush1.msra.mxu0 %v2438
    %3041 = vmatprep.subr.mxu0 %v2447
    %3042 = vmatpush1.msra.mxu0 %v2446
    %3043 = vmatprep.subr.mxu0 %v2455
    %3044 = vmatpush1.msra.mxu0 %v2454
    %3045 = vmatprep.subr.mxu0 %v2463
    %3046 = vmatpush1.msra.mxu0 %v2462
    %3047 = vmatprep.subr.mxu0 %v2471
    %3048 = vmatpush1.msra.mxu0 %v2470
    %3049 = vmatprep.subr.mxu0 %v2479
    %3050 = vmatpush1.msra.mxu0 %v2478
    %3051 = vmatprep.subr.mxu0 %v2487
    %3052 = vmatpush1.msra.mxu0 %v2486
    %3053 = vmatprep.subr.mxu0 %v2495
    %3054 = vmatpush1.msra.mxu0 %v2494
    %3055 = vmatprep.subr.mxu0 %v2503
    %3056 = vmatpush1.msra.mxu0 %v2502
    %3057 = vmatprep.subr.mxu0 %v2511
    %3058 = vmatpush1.msra.mxu0 %v2510
    %3059 = vmatprep.subr.mxu0 %v2519
    %3060 = vmatpush1.msra.mxu0 %v2518
    %3061 = vmatprep.subr.mxu0 %v2527
    %3062 = vmatpush1.msra.mxu0 %v2526
    %3063 = vmatprep.subr.mxu0 %v2535
    %3064 = vmatpush1.msra.mxu0 %v2534
    %3065 = vmatprep.subr.mxu0 %v2543
    %3066 = vmatpush1.msra.mxu0 %v2542
    %3067 = vmatprep.subr.mxu0 %v2551
    %3068 = vmatpush1.msra.mxu0 %v2550
    %3069 = vmatprep.subr.mxu0 %v2559
    %3070 = vmatpush1.msra.mxu0 %v2558
    %3071 = vmatprep.subr.mxu0 %v2567
    %3072 = vmatpush1.msra.mxu0 %v2566
    %3073 = vmatprep.subr.mxu0 %v2575
    %3074 = vmatpush1.msra.mxu0 %v2574
    %3075 = vmatprep.subr.mxu0 %v2583
    %3076 = vmatpush1.msra.mxu0 %v2582
    %3077 = vmatprep.subr.mxu0 %v2591
    %3078 = vmatpush1.msra.mxu0 %v2590
    %3079 = vmatprep.subr.mxu0 %v2599
    %3080 = vmatpush1.msra.mxu0 %v2598
    %3081 = vmatprep.mubr.f32.mxu0 %v2943
    %3082 = vmatmul.mubr.f32.gmra.mrb[0].mxu0 %v2942
    %v3083 = vpop.f32.mrb[0].mxu0
    %v3084 = vadd.f32 0.0, %v3083
    %v3085 = vpop.f32.mrb[0].mxu0
    %v3086 = vadd.f32 0.0, %v3085
    %3087 = vdwg.mxu0
    %3088 = vmatprep.subr.mxu0 %v2353
    %3089 = vmatpush1.msra.mxu0 %v2352
    %3090 = vmatprep.subr.mxu0 %v2361
    %3091 = vmatpush1.msra.mxu0 %v2360
    %3092 = vmatprep.subr.mxu0 %v2369
    %3093 = vmatpush1.msra.mxu0 %v2368
    %3094 = vmatprep.subr.mxu0 %v2377
    %3095 = vmatpush1.msra.mxu0 %v2376
    %3096 = vmatprep.subr.mxu0 %v2385
    %3097 = vmatpush1.msra.mxu0 %v2384
    %3098 = vmatprep.subr.mxu0 %v2393
    %3099 = vmatpush1.msra.mxu0 %v2392
    %3100 = vmatprep.subr.mxu0 %v2401
    %3101 = vmatpush1.msra.mxu0 %v2400
    %3102 = vmatprep.subr.mxu0 %v2409
    %3103 = vmatpush1.msra.mxu0 %v2408
    %3104 = vmatprep.subr.mxu0 %v2417
    %3105 = vmatpush1.msra.mxu0 %v2416
    %3106 = vmatprep.subr.mxu0 %v2425
    %3107 = vmatpush1.msra.mxu0 %v2424
    %3108 = vmatprep.subr.mxu0 %v2433
    %3109 = vmatpush1.msra.mxu0 %v2432
    %3110 = vmatprep.subr.mxu0 %v2441
    %3111 = vmatpush1.msra.mxu0 %v2440
    %3112 = vmatprep.subr.mxu0 %v2449
    %3113 = vmatpush1.msra.mxu0 %v2448
    %3114 = vmatprep.subr.mxu0 %v2457
    %3115 = vmatpush1.msra.mxu0 %v2456
    %3116 = vmatprep.subr.mxu0 %v2465
    %3117 = vmatpush1.msra.mxu0 %v2464
    %3118 = vmatprep.subr.mxu0 %v2473
    %3119 = vmatpush1.msra.mxu0 %v2472
    %3120 = vmatprep.subr.mxu0 %v2481
    %3121 = vmatpush1.msra.mxu0 %v2480
    %3122 = vmatprep.subr.mxu0 %v2489
    %3123 = vmatpush1.msra.mxu0 %v2488
    %3124 = vmatprep.subr.mxu0 %v2497
    %3125 = vmatpush1.msra.mxu0 %v2496
    %3126 = vmatprep.subr.mxu0 %v2505
    %3127 = vmatpush1.msra.mxu0 %v2504
    %3128 = vmatprep.subr.mxu0 %v2513
    %3129 = vmatpush1.msra.mxu0 %v2512
    %3130 = vmatprep.subr.mxu0 %v2521
    %3131 = vmatpush1.msra.mxu0 %v2520
    %3132 = vmatprep.subr.mxu0 %v2529
    %3133 = vmatpush1.msra.mxu0 %v2528
    %3134 = vmatprep.subr.mxu0 %v2537
    %3135 = vmatpush1.msra.mxu0 %v2536
    %3136 = vmatprep.subr.mxu0 %v2545
    %3137 = vmatpush1.msra.mxu0 %v2544
    %3138 = vmatprep.subr.mxu0 %v2553
    %3139 = vmatpush1.msra.mxu0 %v2552
    %3140 = vmatprep.subr.mxu0 %v2561
    %3141 = vmatpush1.msra.mxu0 %v2560
    %3142 = vmatprep.subr.mxu0 %v2569
    %3143 = vmatpush1.msra.mxu0 %v2568
    %3144 = vmatprep.subr.mxu0 %v2577
    %3145 = vmatpush1.msra.mxu0 %v2576
    %3146 = vmatprep.subr.mxu0 %v2585
    %3147 = vmatpush1.msra.mxu0 %v2584
    %3148 = vmatprep.subr.mxu0 %v2593
    %3149 = vmatpush1.msra.mxu0 %v2592
    %3150 = vmatprep.subr.mxu0 %v2601
    %3151 = vmatpush1.msra.mxu0 %v2600
    %3152 = vmatprep.mubr.f32.mxu0 %v2943
    %3153 = vmatmul.mubr.f32.gmra.mrb[0].mxu0 %v2942
    %v3154 = vpop.f32.mrb[0].mxu0
    %v3155 = vadd.f32 0.0, %v3154
    %v3156 = vpop.f32.mrb[0].mxu0
    %v3157 = vadd.f32 0.0, %v3156
    %3158 = vdwg.mxu0
    %3159 = vmatprep.subr.mxu0 %v2355
    %3160 = vmatpush1.msra.mxu0 %v2354
    %3161 = vmatprep.subr.mxu0 %v2363
    %3162 = vmatpush1.msra.mxu0 %v2362
    %3163 = vmatprep.subr.mxu0 %v2371
    %3164 = vmatpush1.msra.mxu0 %v2370
    %3165 = vmatprep.subr.mxu0 %v2379
    %3166 = vmatpush1.msra.mxu0 %v2378
    %3167 = vmatprep.subr.mxu0 %v2387
    %3168 = vmatpush1.msra.mxu0 %v2386
    %3169 = vmatprep.subr.mxu0 %v2395
    %3170 = vmatpush1.msra.mxu0 %v2394
    %3171 = vmatprep.subr.mxu0 %v2403
    %3172 = vmatpush1.msra.mxu0 %v2402
    %3173 = vmatprep.subr.mxu0 %v2411
    %3174 = vmatpush1.msra.mxu0 %v2410
    %3175 = vmatprep.subr.mxu0 %v2419
    %3176 = vmatpush1.msra.mxu0 %v2418
    %3177 = vmatprep.subr.mxu0 %v2427
    %3178 = vmatpush1.msra.mxu0 %v2426
    %3179 = vmatprep.subr.mxu0 %v2435
    %3180 = vmatpush1.msra.mxu0 %v2434
    %3181 = vmatprep.subr.mxu0 %v2443
    %3182 = vmatpush1.msra.mxu0 %v2442
    %3183 = vmatprep.subr.mxu0 %v2451
    %3184 = vmatpush1.msra.mxu0 %v2450
    %3185 = vmatprep.subr.mxu0 %v2459
    %3186 = vmatpush1.msra.mxu0 %v2458
    %3187 = vmatprep.subr.mxu0 %v2467
    %3188 = vmatpush1.msra.mxu0 %v2466
    %3189 = vmatprep.subr.mxu0 %v2475
    %3190 = vmatpush1.msra.mxu0 %v2474
    %3191 = vmatprep.subr.mxu0 %v2483
    %3192 = vmatpush1.msra.mxu0 %v2482
    %3193 = vmatprep.subr.mxu0 %v2491
    %3194 = vmatpush1.msra.mxu0 %v2490
    %3195 = vmatprep.subr.mxu0 %v2499
    %3196 = vmatpush1.msra.mxu0 %v2498
    %3197 = vmatprep.subr.mxu0 %v2507
    %3198 = vmatpush1.msra.mxu0 %v2506
    %3199 = vmatprep.subr.mxu0 %v2515
    %3200 = vmatpush1.msra.mxu0 %v2514
    %3201 = vmatprep.subr.mxu0 %v2523
    %3202 = vmatpush1.msra.mxu0 %v2522
    %3203 = vmatprep.subr.mxu0 %v2531
    %3204 = vmatpush1.msra.mxu0 %v2530
    %3205 = vmatprep.subr.mxu0 %v2539
    %3206 = vmatpush1.msra.mxu0 %v2538
    %3207 = vmatprep.subr.mxu0 %v2547
    %3208 = vmatpush1.msra.mxu0 %v2546
    %3209 = vmatprep.subr.mxu0 %v2555
    %3210 = vmatpush1.msra.mxu0 %v2554
    %3211 = vmatprep.subr.mxu0 %v2563
    %3212 = vmatpush1.msra.mxu0 %v2562
    %3213 = vmatprep.subr.mxu0 %v2571
    %3214 = vmatpush1.msra.mxu0 %v2570
    %3215 = vmatprep.subr.mxu0 %v2579
    %3216 = vmatpush1.msra.mxu0 %v2578
    %3217 = vmatprep.subr.mxu0 %v2587
    %3218 = vmatpush1.msra.mxu0 %v2586
    %3219 = vmatprep.subr.mxu0 %v2595
    %3220 = vmatpush1.msra.mxu0 %v2594
    %3221 = vmatprep.subr.mxu0 %v2603
    %3222 = vmatpush1.msra.mxu0 %v2602
    %3223 = vmatprep.mubr.f32.mxu0 %v2943
    %3224 = vmatmul.mubr.f32.gmra.mrb[0].mxu0 %v2942
    %v3225 = vpop.f32.mrb[0].mxu0
    %v3226 = vadd.f32 0.0, %v3225
    %v3227 = vpop.f32.mrb[0].mxu0
    %v3228 = vadd.f32 0.0, %v3227
    %3229 = vdwg.mxu0
    %v3238 = vrot.slane %v3013, 6
    %v3239 = vrot.slane %v3015, 6
    %v3240 = vrot.slane %v3084, 6
    %v3241 = vrot.slane %v3086, 6
    %v3242 = vrot.slane %v3155, 6
    %v3243 = vrot.slane %v3157, 6
    %v3244 = vrot.slane %v3226, 6
    %v3245 = vrot.slane %v3228, 6
    %v3254 = vadd.f32 %v2107, %v3238
    %v3255 = vadd.f32 %v2109, %v3239
    %v3256 = vadd.f32 %v2184, %v3240
    %v3257 = vadd.f32 %v2186, %v3241
    %v3258 = vadd.f32 %v2261, %v3242
    %v3259 = vadd.f32 %v2263, %v3243
    %v3260 = vadd.f32 %v2338, %v3244
    %v3261 = vadd.f32 %v2340, %v3245
    %v3262 = vxor.u32 %v3254, 2147483648
    %v3263 = vxor.u32 %v3255, 2147483648
    %v3264 = vmul.f32 %v3262, 1.442695
    %v3265 = vpow.pop %v3264
    %v3266 = vmul.f32 %v3263, 1.442695
    %v3267 = vpow.pop %v3266
    %v3268 = vadd.f32 %v3265, 1.0
    %v3269 = vadd.f32 %v3267, 1.0
    %v3270 = vrcp.pop %v3268
    %v3271 = vmul.f32 1.0, %v3270
    %v3272 = vrcp.pop %v3269
    %v3273 = vmul.f32 1.0, %v3272
    %v3274 = vxor.u32 %v3256, 2147483648
    %v3275 = vxor.u32 %v3257, 2147483648
    %v3276 = vmul.f32 %v3274, 1.442695
    %v3277 = vpow.pop %v3276
    %v3278 = vmul.f32 %v3275, 1.442695
    %v3279 = vpow.pop %v3278
    %v3280 = vadd.f32 %v3277, 1.0
    %v3281 = vadd.f32 %v3279, 1.0
    %v3282 = vrcp.pop %v3280
    %v3283 = vmul.f32 1.0, %v3282
    %v3284 = vrcp.pop %v3281
    %v3285 = vmul.f32 1.0, %v3284
    %v3286 = vtanh.pop %v3258
    %v3287 = vtanh.pop %v3259
    %v3288 = vxor.u32 %v3260, 2147483648
    %v3289 = vxor.u32 %v3261, 2147483648
    %v3290 = vmul.f32 %v3288, 1.442695
    %v3291 = vpow.pop %v3290
    %v3292 = vmul.f32 %v3289, 1.442695
    %v3293 = vpow.pop %v3292
    %v3294 = vadd.f32 %v3291, 1.0
    %v3295 = vadd.f32 %v3293, 1.0
    %v3296 = vrcp.pop %v3294
    %v3297 = vmul.f32 1.0, %v3296
    %v3298 = vrcp.pop %v3295
    %v3299 = vmul.f32 1.0, %v3298
    %v3302 = vrot.slane %v2938, 6
    %v3303 = vrot.slane %v2939, 6
    %v3306 = vmul.f32 %v3283, %v3302
    %v3307 = vmul.f32 %v3285, %v3303
    %v3308 = vmul.f32 %v3271, %v3286
    %v3309 = vmul.f32 %v3273, %v3287
    %v3310 = vadd.f32 %v3306, %v3308
    %v3311 = vadd.f32 %v3307, %v3309
    %v3312 = vtanh.pop %v3310
    %v3313 = vtanh.pop %v3311
    %v3314 = vmul.f32 %v3297, %v3312
    %v3315 = vmul.f32 %v3299, %v3313
    %3316 = vst [vmem:[#allocation3] sm:$0xc] %v3314
    %3317 = vst [vmem:[#allocation3 + $0x8] sm:$0xc] %v3315
    %v3320 = vrot.slane %v3314, 2
    %v3321 = vrot.slane %v3315, 2
    %3324 = vmatprep.subr.mxu0 %v2349
    %3325 = vmatpush1.msra.mxu0 %v2348
    %3326 = vmatprep.subr.mxu0 %v2357
    %3327 = vmatpush1.msra.mxu0 %v2356
    %3328 = vmatprep.subr.mxu0 %v2365
    %3329 = vmatpush1.msra.mxu0 %v2364
    %3330 = vmatprep.subr.mxu0 %v2373
    %3331 = vmatpush1.msra.mxu0 %v2372
    %3332 = vmatprep.subr.mxu0 %v2381
    %3333 = vmatpush1.msra.mxu0 %v2380
    %3334 = vmatprep.subr.mxu0 %v2389
    %3335 = vmatpush1.msra.mxu0 %v2388
    %3336 = vmatprep.subr.mxu0 %v2397
    %3337 = vmatpush1.msra.mxu0 %v2396
    %3338 = vmatprep.subr.mxu0 %v2405
    %3339 = vmatpush1.msra.mxu0 %v2404
    %3340 = vmatprep.subr.mxu0 %v2413
    %3341 = vmatpush1.msra.mxu0 %v2412
    %3342 = vmatprep.subr.mxu0 %v2421
    %3343 = vmatpush1.msra.mxu0 %v2420
    %3344 = vmatprep.subr.mxu0 %v2429
    %3345 = vmatpush1.msra.mxu0 %v2428
    %3346 = vmatprep.subr.mxu0 %v2437
    %3347 = vmatpush1.msra.mxu0 %v2436
    %3348 = vmatprep.subr.mxu0 %v2445
    %3349 = vmatpush1.msra.mxu0 %v2444
    %3350 = vmatprep.subr.mxu0 %v2453
    %3351 = vmatpush1.msra.mxu0 %v2452
    %3352 = vmatprep.subr.mxu0 %v2461
    %3353 = vmatpush1.msra.mxu0 %v2460
    %3354 = vmatprep.subr.mxu0 %v2469
    %3355 = vmatpush1.msra.mxu0 %v2468
    %3356 = vmatprep.subr.mxu0 %v2477
    %3357 = vmatpush1.msra.mxu0 %v2476
    %3358 = vmatprep.subr.mxu0 %v2485
    %3359 = vmatpush1.msra.mxu0 %v2484
    %3360 = vmatprep.subr.mxu0 %v2493
    %3361 = vmatpush1.msra.mxu0 %v2492
    %3362 = vmatprep.subr.mxu0 %v2501
    %3363 = vmatpush1.msra.mxu0 %v2500
    %3364 = vmatprep.subr.mxu0 %v2509
    %3365 = vmatpush1.msra.mxu0 %v2508
    %3366 = vmatprep.subr.mxu0 %v2517
    %3367 = vmatpush1.msra.mxu0 %v2516
    %3368 = vmatprep.subr.mxu0 %v2525
    %3369 = vmatpush1.msra.mxu0 %v2524
    %3370 = vmatprep.subr.mxu0 %v2533
    %3371 = vmatpush1.msra.mxu0 %v2532
    %3372 = vmatprep.subr.mxu0 %v2541
    %3373 = vmatpush1.msra.mxu0 %v2540
    %3374 = vmatprep.subr.mxu0 %v2549
    %3375 = vmatpush1.msra.mxu0 %v2548
    %3376 = vmatprep.subr.mxu0 %v2557
    %3377 = vmatpush1.msra.mxu0 %v2556
    %3378 = vmatprep.subr.mxu0 %v2565
    %3379 = vmatpush1.msra.mxu0 %v2564
    %3380 = vmatprep.subr.mxu0 %v2573
    %3381 = vmatpush1.msra.mxu0 %v2572
    %3382 = vmatprep.subr.mxu0 %v2581
    %3383 = vmatpush1.msra.mxu0 %v2580
    %3384 = vmatprep.subr.mxu0 %v2589
    %3385 = vmatpush1.msra.mxu0 %v2588
    %3386 = vmatprep.subr.mxu0 %v2597
    %3387 = vmatpush1.msra.mxu0 %v2596
    %3388 = vmatprep.mubr.f32.mxu0 %v3321
    %3389 = vmatmul.mubr.f32.gmra.mrb[0].mxu0 %v3320
    %v3390 = vpop.f32.mrb[0].mxu0
    %v3391 = vadd.f32 0.0, %v3390
    %v3392 = vpop.f32.mrb[0].mxu0
    %v3393 = vadd.f32 0.0, %v3392
    %3394 = vdwg.mxu0
    %3395 = vmatprep.subr.mxu0 %v2351
    %3396 = vmatpush1.msra.mxu0 %v2350
    %3397 = vmatprep.subr.mxu0 %v2359
    %3398 = vmatpush1.msra.mxu0 %v2358
    %3399 = vmatprep.subr.mxu0 %v2367
    %3400 = vmatpush1.msra.mxu0 %v2366
    %3401 = vmatprep.subr.mxu0 %v2375
    %3402 = vmatpush1.msra.mxu0 %v2374
    %3403 = vmatprep.subr.mxu0 %v2383
    %3404 = vmatpush1.msra.mxu0 %v2382
    %3405 = vmatprep.subr.mxu0 %v2391
    %3406 = vmatpush1.msra.mxu0 %v2390
    %3407 = vmatprep.subr.mxu0 %v2399
    %3408 = vmatpush1.msra.mxu0 %v2398
    %3409 = vmatprep.subr.mxu0 %v2407
    %3410 = vmatpush1.msra.mxu0 %v2406
    %3411 = vmatprep.subr.mxu0 %v2415
    %3412 = vmatpush1.msra.mxu0 %v2414
    %3413 = vmatprep.subr.mxu0 %v2423
    %3414 = vmatpush1.msra.mxu0 %v2422
    %3415 = vmatprep.subr.mxu0 %v2431
    %3416 = vmatpush1.msra.mxu0 %v2430
    %3417 = vmatprep.subr.mxu0 %v2439
    %3418 = vmatpush1.msra.mxu0 %v2438
    %3419 = vmatprep.subr.mxu0 %v2447
    %3420 = vmatpush1.msra.mxu0 %v2446
    %3421 = vmatprep.subr.mxu0 %v2455
    %3422 = vmatpush1.msra.mxu0 %v2454
    %3423 = vmatprep.subr.mxu0 %v2463
    %3424 = vmatpush1.msra.mxu0 %v2462
    %3425 = vmatprep.subr.mxu0 %v2471
    %3426 = vmatpush1.msra.mxu0 %v2470
    %3427 = vmatprep.subr.mxu0 %v2479
    %3428 = vmatpush1.msra.mxu0 %v2478
    %3429 = vmatprep.subr.mxu0 %v2487
    %3430 = vmatpush1.msra.mxu0 %v2486
    %3431 = vmatprep.subr.mxu0 %v2495
    %3432 = vmatpush1.msra.mxu0 %v2494
    %3433 = vmatprep.subr.mxu0 %v2503
    %3434 = vmatpush1.msra.mxu0 %v2502
    %3435 = vmatprep.subr.mxu0 %v2511
    %3436 = vmatpush1.msra.mxu0 %v2510
    %3437 = vmatprep.subr.mxu0 %v2519
    %3438 = vmatpush1.msra.mxu0 %v2518
    %3439 = vmatprep.subr.mxu0 %v2527
    %3440 = vmatpush1.msra.mxu0 %v2526
    %3441 = vmatprep.subr.mxu0 %v2535
    %3442 = vmatpush1.msra.mxu0 %v2534
    %3443 = vmatprep.subr.mxu0 %v2543
    %3444 = vmatpush1.msra.mxu0 %v2542
    %3445 = vmatprep.subr.mxu0 %v2551
    %3446 = vmatpush1.msra.mxu0 %v2550
    %3447 = vmatprep.subr.mxu0 %v2559
    %3448 = vmatpush1.msra.mxu0 %v2558
    %3449 = vmatprep.subr.mxu0 %v2567
    %3450 = vmatpush1.msra.mxu0 %v2566
    %3451 = vmatprep.subr.mxu0 %v2575
    %3452 = vmatpush1.msra.mxu0 %v2574
    %3453 = vmatprep.subr.mxu0 %v2583
    %3454 = vmatpush1.msra.mxu0 %v2582
    %3455 = vmatprep.subr.mxu0 %v2591
    %3456 = vmatpush1.msra.mxu0 %v2590
    %3457 = vmatprep.subr.mxu0 %v2599
    %3458 = vmatpush1.msra.mxu0 %v2598
    %3459 = vmatprep.mubr.f32.mxu0 %v3321
    %3460 = vmatmul.mubr.f32.gmra.mrb[0].mxu0 %v3320
    %v3461 = vpop.f32.mrb[0].mxu0
    %v3462 = vadd.f32 0.0, %v3461
    %v3463 = vpop.f32.mrb[0].mxu0
    %v3464 = vadd.f32 0.0, %v3463
    %3465 = vdwg.mxu0
    %3466 = vmatprep.subr.mxu0 %v2353
    %3467 = vmatpush1.msra.mxu0 %v2352
    %3468 = vmatprep.subr.mxu0 %v2361
    %3469 = vmatpush1.msra.mxu0 %v2360
    %3470 = vmatprep.subr.mxu0 %v2369
    %3471 = vmatpush1.msra.mxu0 %v2368
    %3472 = vmatprep.subr.mxu0 %v2377
    %3473 = vmatpush1.msra.mxu0 %v2376
    %3474 = vmatprep.subr.mxu0 %v2385
    %3475 = vmatpush1.msra.mxu0 %v2384
    %3476 = vmatprep.subr.mxu0 %v2393
    %3477 = vmatpush1.msra.mxu0 %v2392
    %3478 = vmatprep.subr.mxu0 %v2401
    %3479 = vmatpush1.msra.mxu0 %v2400
    %3480 = vmatprep.subr.mxu0 %v2409
    %3481 = vmatpush1.msra.mxu0 %v2408
    %3482 = vmatprep.subr.mxu0 %v2417
    %3483 = vmatpush1.msra.mxu0 %v2416
    %3484 = vmatprep.subr.mxu0 %v2425
    %3485 = vmatpush1.msra.mxu0 %v2424
    %3486 = vmatprep.subr.mxu0 %v2433
    %3487 = vmatpush1.msra.mxu0 %v2432
    %3488 = vmatprep.subr.mxu0 %v2441
    %3489 = vmatpush1.msra.mxu0 %v2440
    %3490 = vmatprep.subr.mxu0 %v2449
    %3491 = vmatpush1.msra.mxu0 %v2448
    %3492 = vmatprep.subr.mxu0 %v2457
    %3493 = vmatpush1.msra.mxu0 %v2456
    %3494 = vmatprep.subr.mxu0 %v2465
    %3495 = vmatpush1.msra.mxu0 %v2464
    %3496 = vmatprep.subr.mxu0 %v2473
    %3497 = vmatpush1.msra.mxu0 %v2472
    %3498 = vmatprep.subr.mxu0 %v2481
    %3499 = vmatpush1.msra.mxu0 %v2480
    %3500 = vmatprep.subr.mxu0 %v2489
    %3501 = vmatpush1.msra.mxu0 %v2488
    %3502 = vmatprep.subr.mxu0 %v2497
    %3503 = vmatpush1.msra.mxu0 %v2496
    %3504 = vmatprep.subr.mxu0 %v2505
    %3505 = vmatpush1.msra.mxu0 %v2504
    %3506 = vmatprep.subr.mxu0 %v2513
    %3507 = vmatpush1.msra.mxu0 %v2512
    %3508 = vmatprep.subr.mxu0 %v2521
    %3509 = vmatpush1.msra.mxu0 %v2520
    %3510 = vmatprep.subr.mxu0 %v2529
    %3511 = vmatpush1.msra.mxu0 %v2528
    %3512 = vmatprep.subr.mxu0 %v2537
    %3513 = vmatpush1.msra.mxu0 %v2536
    %3514 = vmatprep.subr.mxu0 %v2545
    %3515 = vmatpush1.msra.mxu0 %v2544
    %3516 = vmatprep.subr.mxu0 %v2553
    %3517 = vmatpush1.msra.mxu0 %v2552
    %3518 = vmatprep.subr.mxu0 %v2561
    %3519 = vmatpush1.msra.mxu0 %v2560
    %3520 = vmatprep.subr.mxu0 %v2569
    %3521 = vmatpush1.msra.mxu0 %v2568
    %3522 = vmatprep.subr.mxu0 %v2577
    %3523 = vmatpush1.msra.mxu0 %v2576
    %3524 = vmatprep.subr.mxu0 %v2585
    %3525 = vmatpush1.msra.mxu0 %v2584
    %3526 = vmatprep.subr.mxu0 %v2593
    %3527 = vmatpush1.msra.mxu0 %v2592
    %3528 = vmatprep.subr.mxu0 %v2601
    %3529 = vmatpush1.msra.mxu0 %v2600
    %3530 = vmatprep.mubr.f32.mxu0 %v3321
    %3531 = vmatmul.mubr.f32.gmra.mrb[0].mxu0 %v3320
    %v3532 = vpop.f32.mrb[0].mxu0
    %v3533 = vadd.f32 0.0, %v3532
    %v3534 = vpop.f32.mrb[0].mxu0
    %v3535 = vadd.f32 0.0, %v3534
    %3536 = vdwg.mxu0
    %3537 = vmatprep.subr.mxu0 %v2355
    %3538 = vmatpush1.msra.mxu0 %v2354
    %3539 = vmatprep.subr.mxu0 %v2363
    %3540 = vmatpush1.msra.mxu0 %v2362
    %3541 = vmatprep.subr.mxu0 %v2371
    %3542 = vmatpush1.msra.mxu0 %v2370
    %3543 = vmatprep.subr.mxu0 %v2379
    %3544 = vmatpush1.msra.mxu0 %v2378
    %3545 = vmatprep.subr.mxu0 %v2387
    %3546 = vmatpush1.msra.mxu0 %v2386
    %3547 = vmatprep.subr.mxu0 %v2395
    %3548 = vmatpush1.msra.mxu0 %v2394
    %3549 = vmatprep.subr.mxu0 %v2403
    %3550 = vmatpush1.msra.mxu0 %v2402
    %3551 = vmatprep.subr.mxu0 %v2411
    %3552 = vmatpush1.msra.mxu0 %v2410
    %3553 = vmatprep.subr.mxu0 %v2419
    %3554 = vmatpush1.msra.mxu0 %v2418
    %3555 = vmatprep.subr.mxu0 %v2427
    %3556 = vmatpush1.msra.mxu0 %v2426
    %3557 = vmatprep.subr.mxu0 %v2435
    %3558 = vmatpush1.msra.mxu0 %v2434
    %3559 = vmatprep.subr.mxu0 %v2443
    %3560 = vmatpush1.msra.mxu0 %v2442
    %3561 = vmatprep.subr.mxu0 %v2451
    %3562 = vmatpush1.msra.mxu0 %v2450
    %3563 = vmatprep.subr.mxu0 %v2459
    %3564 = vmatpush1.msra.mxu0 %v2458
    %3565 = vmatprep.subr.mxu0 %v2467
    %3566 = vmatpush1.msra.mxu0 %v2466
    %3567 = vmatprep.subr.mxu0 %v2475
    %3568 = vmatpush1.msra.mxu0 %v2474
    %3569 = vmatprep.subr.mxu0 %v2483
    %3570 = vmatpush1.msra.mxu0 %v2482
    %3571 = vmatprep.subr.mxu0 %v2491
    %3572 = vmatpush1.msra.mxu0 %v2490
    %3573 = vmatprep.subr.mxu0 %v2499
    %3574 = vmatpush1.msra.mxu0 %v2498
    %3575 = vmatprep.subr.mxu0 %v2507
    %3576 = vmatpush1.msra.mxu0 %v2506
    %3577 = vmatprep.subr.mxu0 %v2515
    %3578 = vmatpush1.msra.mxu0 %v2514
    %3579 = vmatprep.subr.mxu0 %v2523
    %3580 = vmatpush1.msra.mxu0 %v2522
    %3581 = vmatprep.subr.mxu0 %v2531
    %3582 = vmatpush1.msra.mxu0 %v2530
    %3583 = vmatprep.subr.mxu0 %v2539
    %3584 = vmatpush1.msra.mxu0 %v2538
    %3585 = vmatprep.subr.mxu0 %v2547
    %3586 = vmatpush1.msra.mxu0 %v2546
    %3587 = vmatprep.subr.mxu0 %v2555
    %3588 = vmatpush1.msra.mxu0 %v2554
    %3589 = vmatprep.subr.mxu0 %v2563
    %3590 = vmatpush1.msra.mxu0 %v2562
    %3591 = vmatprep.subr.mxu0 %v2571
    %3592 = vmatpush1.msra.mxu0 %v2570
    %3593 = vmatprep.subr.mxu0 %v2579
    %3594 = vmatpush1.msra.mxu0 %v2578
    %3595 = vmatprep.subr.mxu0 %v2587
    %3596 = vmatpush1.msra.mxu0 %v2586
    %3597 = vmatprep.subr.mxu0 %v2595
    %3598 = vmatpush1.msra.mxu0 %v2594
    %3599 = vmatprep.subr.mxu0 %v2603
    %3600 = vmatpush1.msra.mxu0 %v2602
    %3601 = vmatprep.mubr.f32.mxu0 %v3321
    %3602 = vmatmul.mubr.f32.gmra.mrb[0].mxu0 %v3320
    %v3603 = vpop.f32.mrb[0].mxu0
    %v3604 = vadd.f32 0.0, %v3603
    %v3605 = vpop.f32.mrb[0].mxu0
    %v3606 = vadd.f32 0.0, %v3605
    %3607 = vdwg.mxu0
    %v3616 = vrot.slane %v3391, 4
    %v3617 = vrot.slane %v3393, 4
    %v3618 = vrot.slane %v3462, 4
    %v3619 = vrot.slane %v3464, 4
    %v3620 = vrot.slane %v3533, 4
    %v3621 = vrot.slane %v3535, 4
    %v3622 = vrot.slane %v3604, 4
    %v3623 = vrot.slane %v3606, 4
    %v3632 = vadd.f32 %v2107, %v3616
    %v3633 = vadd.f32 %v2109, %v3617
    %v3634 = vadd.f32 %v2184, %v3618
    %v3635 = vadd.f32 %v2186, %v3619
    %v3636 = vadd.f32 %v2261, %v3620
    %v3637 = vadd.f32 %v2263, %v3621
    %v3638 = vadd.f32 %v2338, %v3622
    %v3639 = vadd.f32 %v2340, %v3623
    %v3640 = vxor.u32 %v3632, 2147483648
    %v3641 = vxor.u32 %v3633, 2147483648
    %v3642 = vmul.f32 %v3640, 1.442695
    %v3643 = vpow.pop %v3642
    %v3644 = vmul.f32 %v3641, 1.442695
    %v3645 = vpow.pop %v3644
    %v3646 = vadd.f32 %v3643, 1.0
    %v3647 = vadd.f32 %v3645, 1.0
    %v3648 = vrcp.pop %v3646
    %v3649 = vmul.f32 1.0, %v3648
    %v3650 = vrcp.pop %v3647
    %v3651 = vmul.f32 1.0, %v3650
    %v3652 = vxor.u32 %v3634, 2147483648
    %v3653 = vxor.u32 %v3635, 2147483648
    %v3654 = vmul.f32 %v3652, 1.442695
    %v3655 = vpow.pop %v3654
    %v3656 = vmul.f32 %v3653, 1.442695
    %v3657 = vpow.pop %v3656
    %v3658 = vadd.f32 %v3655, 1.0
    %v3659 = vadd.f32 %v3657, 1.0
    %v3660 = vrcp.pop %v3658
    %v3661 = vmul.f32 1.0, %v3660
    %v3662 = vrcp.pop %v3659
    %v3663 = vmul.f32 1.0, %v3662
    %v3664 = vtanh.pop %v3636
    %v3665 = vtanh.pop %v3637
    %v3666 = vxor.u32 %v3638, 2147483648
    %v3667 = vxor.u32 %v3639, 2147483648
    %v3668 = vmul.f32 %v3666, 1.442695
    %v3669 = vpow.pop %v3668
    %v3670 = vmul.f32 %v3667, 1.442695
    %v3671 = vpow.pop %v3670
    %v3672 = vadd.f32 %v3669, 1.0
    %v3673 = vadd.f32 %v3671, 1.0
    %v3674 = vrcp.pop %v3672
    %v3675 = vmul.f32 1.0, %v3674
    %v3676 = vrcp.pop %v3673
    %v3677 = vmul.f32 1.0, %v3676
    %v3680 = vrot.slane %v3310, 6
    %v3681 = vrot.slane %v3311, 6
    %v3684 = vmul.f32 %v3661, %v3680
    %v3685 = vmul.f32 %v3663, %v3681
    %v3686 = vmul.f32 %v3649, %v3664
    %v3687 = vmul.f32 %v3651, %v3665
    %v3688 = vadd.f32 %v3684, %v3686
    %v3689 = vadd.f32 %v3685, %v3687
    %v3690 = vtanh.pop %v3688
    %v3691 = vtanh.pop %v3689
    %v3692 = vmul.f32 %v3675, %v3690
    %v3693 = vmul.f32 %v3677, %v3691
    %3694 = vst [vmem:[#allocation3] sm:$0x30] %v3692
    %3695 = vst [vmem:[#allocation3 + $0x8] sm:$0x30] %v3693
    %v3698 = vrot.slane %v3692, 4
    %v3699 = vrot.slane %v3693, 4
    %3702 = vmatprep.subr.mxu0 %v2349
    %3703 = vmatpush1.msra.mxu0 %v2348
    %3704 = vmatprep.subr.mxu0 %v2357
    %3705 = vmatpush1.msra.mxu0 %v2356
    %3706 = vmatprep.subr.mxu0 %v2365
    %3707 = vmatpush1.msra.mxu0 %v2364
    %3708 = vmatprep.subr.mxu0 %v2373
    %3709 = vmatpush1.msra.mxu0 %v2372
    %3710 = vmatprep.subr.mxu0 %v2381
    %3711 = vmatpush1.msra.mxu0 %v2380
    %3712 = vmatprep.subr.mxu0 %v2389
    %3713 = vmatpush1.msra.mxu0 %v2388
    %3714 = vmatprep.subr.mxu0 %v2397
    %3715 = vmatpush1.msra.mxu0 %v2396
    %3716 = vmatprep.subr.mxu0 %v2405
    %3717 = vmatpush1.msra.mxu0 %v2404
    %3718 = vmatprep.subr.mxu0 %v2413
    %3719 = vmatpush1.msra.mxu0 %v2412
    %3720 = vmatprep.subr.mxu0 %v2421
    %3721 = vmatpush1.msra.mxu0 %v2420
    %3722 = vmatprep.subr.mxu0 %v2429
    %3723 = vmatpush1.msra.mxu0 %v2428
    %3724 = vmatprep.subr.mxu0 %v2437
    %3725 = vmatpush1.msra.mxu0 %v2436
    %3726 = vmatprep.subr.mxu0 %v2445
    %3727 = vmatpush1.msra.mxu0 %v2444
    %3728 = vmatprep.subr.mxu0 %v2453
    %3729 = vmatpush1.msra.mxu0 %v2452
    %3730 = vmatprep.subr.mxu0 %v2461
    %3731 = vmatpush1.msra.mxu0 %v2460
    %3732 = vmatprep.subr.mxu0 %v2469
    %3733 = vmatpush1.msra.mxu0 %v2468
    %3734 = vmatprep.subr.mxu0 %v2477
    %3735 = vmatpush1.msra.mxu0 %v2476
    %3736 = vmatprep.subr.mxu0 %v2485
    %3737 = vmatpush1.msra.mxu0 %v2484
    %3738 = vmatprep.subr.mxu0 %v2493
    %3739 = vmatpush1.msra.mxu0 %v2492
    %3740 = vmatprep.subr.mxu0 %v2501
    %3741 = vmatpush1.msra.mxu0 %v2500
    %3742 = vmatprep.subr.mxu0 %v2509
    %3743 = vmatpush1.msra.mxu0 %v2508
    %3744 = vmatprep.subr.mxu0 %v2517
    %3745 = vmatpush1.msra.mxu0 %v2516
    %3746 = vmatprep.subr.mxu0 %v2525
    %3747 = vmatpush1.msra.mxu0 %v2524
    %3748 = vmatprep.subr.mxu0 %v2533
    %3749 = vmatpush1.msra.mxu0 %v2532
    %3750 = vmatprep.subr.mxu0 %v2541
    %3751 = vmatpush1.msra.mxu0 %v2540
    %3752 = vmatprep.subr.mxu0 %v2549
    %3753 = vmatpush1.msra.mxu0 %v2548
    %3754 = vmatprep.subr.mxu0 %v2557
    %3755 = vmatpush1.msra.mxu0 %v2556
    %3756 = vmatprep.subr.mxu0 %v2565
    %3757 = vmatpush1.msra.mxu0 %v2564
    %3758 = vmatprep.subr.mxu0 %v2573
    %3759 = vmatpush1.msra.mxu0 %v2572
    %3760 = vmatprep.subr.mxu0 %v2581
    %3761 = vmatpush1.msra.mxu0 %v2580
    %3762 = vmatprep.subr.mxu0 %v2589
    %3763 = vmatpush1.msra.mxu0 %v2588
    %3764 = vmatprep.subr.mxu0 %v2597
    %3765 = vmatpush1.msra.mxu0 %v2596
    %3766 = vmatprep.mubr.f32.mxu0 %v3699
    %3767 = vmatmul.mubr.f32.gmra.mrb[0].mxu0 %v3698
    %v3768 = vpop.f32.mrb[0].mxu0
    %v3769 = vadd.f32 0.0, %v3768
    %v3770 = vpop.f32.mrb[0].mxu0
    %v3771 = vadd.f32 0.0, %v3770
    %3772 = vdwg.mxu0
    %3773 = vmatprep.subr.mxu0 %v2351
    %3774 = vmatpush1.msra.mxu0 %v2350
    %3775 = vmatprep.subr.mxu0 %v2359
    %3776 = vmatpush1.msra.mxu0 %v2358
    %3777 = vmatprep.subr.mxu0 %v2367
    %3778 = vmatpush1.msra.mxu0 %v2366
    %3779 = vmatprep.subr.mxu0 %v2375
    %3780 = vmatpush1.msra.mxu0 %v2374
    %3781 = vmatprep.subr.mxu0 %v2383
    %3782 = vmatpush1.msra.mxu0 %v2382
    %3783 = vmatprep.subr.mxu0 %v2391
    %3784 = vmatpush1.msra.mxu0 %v2390
    %3785 = vmatprep.subr.mxu0 %v2399
    %3786 = vmatpush1.msra.mxu0 %v2398
    %3787 = vmatprep.subr.mxu0 %v2407
    %3788 = vmatpush1.msra.mxu0 %v2406
    %3789 = vmatprep.subr.mxu0 %v2415
    %3790 = vmatpush1.msra.mxu0 %v2414
    %3791 = vmatprep.subr.mxu0 %v2423
    %3792 = vmatpush1.msra.mxu0 %v2422
    %3793 = vmatprep.subr.mxu0 %v2431
    %3794 = vmatpush1.msra.mxu0 %v2430
    %3795 = vmatprep.subr.mxu0 %v2439
    %3796 = vmatpush1.msra.mxu0 %v2438
    %3797 = vmatprep.subr.mxu0 %v2447
    %3798 = vmatpush1.msra.mxu0 %v2446
    %3799 = vmatprep.subr.mxu0 %v2455
    %3800 = vmatpush1.msra.mxu0 %v2454
    %3801 = vmatprep.subr.mxu0 %v2463
    %3802 = vmatpush1.msra.mxu0 %v2462
    %3803 = vmatprep.subr.mxu0 %v2471
    %3804 = vmatpush1.msra.mxu0 %v2470
    %3805 = vmatprep.subr.mxu0 %v2479
    %3806 = vmatpush1.msra.mxu0 %v2478
    %3807 = vmatprep.subr.mxu0 %v2487
    %3808 = vmatpush1.msra.mxu0 %v2486
    %3809 = vmatprep.subr.mxu0 %v2495
    %3810 = vmatpush1.msra.mxu0 %v2494
    %3811 = vmatprep.subr.mxu0 %v2503
    %3812 = vmatpush1.msra.mxu0 %v2502
    %3813 = vmatprep.subr.mxu0 %v2511
    %3814 = vmatpush1.msra.mxu0 %v2510
    %3815 = vmatprep.subr.mxu0 %v2519
    %3816 = vmatpush1.msra.mxu0 %v2518
    %3817 = vmatprep.subr.mxu0 %v2527
    %3818 = vmatpush1.msra.mxu0 %v2526
    %3819 = vmatprep.subr.mxu0 %v2535
    %3820 = vmatpush1.msra.mxu0 %v2534
    %3821 = vmatprep.subr.mxu0 %v2543
    %3822 = vmatpush1.msra.mxu0 %v2542
    %3823 = vmatprep.subr.mxu0 %v2551
    %3824 = vmatpush1.msra.mxu0 %v2550
    %3825 = vmatprep.subr.mxu0 %v2559
    %3826 = vmatpush1.msra.mxu0 %v2558
    %3827 = vmatprep.subr.mxu0 %v2567
    %3828 = vmatpush1.msra.mxu0 %v2566
    %3829 = vmatprep.subr.mxu0 %v2575
    %3830 = vmatpush1.msra.mxu0 %v2574
    %3831 = vmatprep.subr.mxu0 %v2583
    %3832 = vmatpush1.msra.mxu0 %v2582
    %3833 = vmatprep.subr.mxu0 %v2591
    %3834 = vmatpush1.msra.mxu0 %v2590
    %3835 = vmatprep.subr.mxu0 %v2599
    %3836 = vmatpush1.msra.mxu0 %v2598
    %3837 = vmatprep.mubr.f32.mxu0 %v3699
    %3838 = vmatmul.mubr.f32.gmra.mrb[0].mxu0 %v3698
    %v3839 = vpop.f32.mrb[0].mxu0
    %v3840 = vadd.f32 0.0, %v3839
    %v3841 = vpop.f32.mrb[0].mxu0
    %v3842 = vadd.f32 0.0, %v3841
    %3843 = vdwg.mxu0
    %3844 = vmatprep.subr.mxu0 %v2353
    %3845 = vmatpush1.msra.mxu0 %v2352
    %3846 = vmatprep.subr.mxu0 %v2361
    %3847 = vmatpush1.msra.mxu0 %v2360
    %3848 = vmatprep.subr.mxu0 %v2369
    %3849 = vmatpush1.msra.mxu0 %v2368
    %3850 = vmatprep.subr.mxu0 %v2377
    %3851 = vmatpush1.msra.mxu0 %v2376
    %3852 = vmatprep.subr.mxu0 %v2385
    %3853 = vmatpush1.msra.mxu0 %v2384
    %3854 = vmatprep.subr.mxu0 %v2393
    %3855 = vmatpush1.msra.mxu0 %v2392
    %3856 = vmatprep.subr.mxu0 %v2401
    %3857 = vmatpush1.msra.mxu0 %v2400
    %3858 = vmatprep.subr.mxu0 %v2409
    %3859 = vmatpush1.msra.mxu0 %v2408
    %3860 = vmatprep.subr.mxu0 %v2417
    %3861 = vmatpush1.msra.mxu0 %v2416
    %3862 = vmatprep.subr.mxu0 %v2425
    %3863 = vmatpush1.msra.mxu0 %v2424
    %3864 = vmatprep.subr.mxu0 %v2433
    %3865 = vmatpush1.msra.mxu0 %v2432
    %3866 = vmatprep.subr.mxu0 %v2441
    %3867 = vmatpush1.msra.mxu0 %v2440
    %3868 = vmatprep.subr.mxu0 %v2449
    %3869 = vmatpush1.msra.mxu0 %v2448
    %3870 = vmatprep.subr.mxu0 %v2457
    %3871 = vmatpush1.msra.mxu0 %v2456
    %3872 = vmatprep.subr.mxu0 %v2465
    %3873 = vmatpush1.msra.mxu0 %v2464
    %3874 = vmatprep.subr.mxu0 %v2473
    %3875 = vmatpush1.msra.mxu0 %v2472
    %3876 = vmatprep.subr.mxu0 %v2481
    %3877 = vmatpush1.msra.mxu0 %v2480
    %3878 = vmatprep.subr.mxu0 %v2489
    %3879 = vmatpush1.msra.mxu0 %v2488
    %3880 = vmatprep.subr.mxu0 %v2497
    %3881 = vmatpush1.msra.mxu0 %v2496
    %3882 = vmatprep.subr.mxu0 %v2505
    %3883 = vmatpush1.msra.mxu0 %v2504
    %3884 = vmatprep.subr.mxu0 %v2513
    %3885 = vmatpush1.msra.mxu0 %v2512
    %3886 = vmatprep.subr.mxu0 %v2521
    %3887 = vmatpush1.msra.mxu0 %v2520
    %3888 = vmatprep.subr.mxu0 %v2529
    %3889 = vmatpush1.msra.mxu0 %v2528
    %3890 = vmatprep.subr.mxu0 %v2537
    %3891 = vmatpush1.msra.mxu0 %v2536
    %3892 = vmatprep.subr.mxu0 %v2545
    %3893 = vmatpush1.msra.mxu0 %v2544
    %3894 = vmatprep.subr.mxu0 %v2553
    %3895 = vmatpush1.msra.mxu0 %v2552
    %3896 = vmatprep.subr.mxu0 %v2561
    %3897 = vmatpush1.msra.mxu0 %v2560
    %3898 = vmatprep.subr.mxu0 %v2569
    %3899 = vmatpush1.msra.mxu0 %v2568
    %3900 = vmatprep.subr.mxu0 %v2577
    %3901 = vmatpush1.msra.mxu0 %v2576
    %3902 = vmatprep.subr.mxu0 %v2585
    %3903 = vmatpush1.msra.mxu0 %v2584
    %3904 = vmatprep.subr.mxu0 %v2593
    %3905 = vmatpush1.msra.mxu0 %v2592
    %3906 = vmatprep.subr.mxu0 %v2601
    %3907 = vmatpush1.msra.mxu0 %v2600
    %3908 = vmatprep.mubr.f32.mxu0 %v3699
    %3909 = vmatmul.mubr.f32.gmra.mrb[0].mxu0 %v3698
    %v3910 = vpop.f32.mrb[0].mxu0
    %v3911 = vadd.f32 0.0, %v3910
    %v3912 = vpop.f32.mrb[0].mxu0
    %v3913 = vadd.f32 0.0, %v3912
    %3914 = vdwg.mxu0
    %3915 = vmatprep.subr.mxu0 %v2355
    %3916 = vmatpush1.msra.mxu0 %v2354
    %3917 = vmatprep.subr.mxu0 %v2363
    %3918 = vmatpush1.msra.mxu0 %v2362
    %3919 = vmatprep.subr.mxu0 %v2371
    %3920 = vmatpush1.msra.mxu0 %v2370
    %3921 = vmatprep.subr.mxu0 %v2379
    %3922 = vmatpush1.msra.mxu0 %v2378
    %3923 = vmatprep.subr.mxu0 %v2387
    %3924 = vmatpush1.msra.mxu0 %v2386
    %3925 = vmatprep.subr.mxu0 %v2395
    %3926 = vmatpush1.msra.mxu0 %v2394
    %3927 = vmatprep.subr.mxu0 %v2403
    %3928 = vmatpush1.msra.mxu0 %v2402
    %3929 = vmatprep.subr.mxu0 %v2411
    %3930 = vmatpush1.msra.mxu0 %v2410
    %3931 = vmatprep.subr.mxu0 %v2419
    %3932 = vmatpush1.msra.mxu0 %v2418
    %3933 = vmatprep.subr.mxu0 %v2427
    %3934 = vmatpush1.msra.mxu0 %v2426
    %3935 = vmatprep.subr.mxu0 %v2435
    %3936 = vmatpush1.msra.mxu0 %v2434
    %3937 = vmatprep.subr.mxu0 %v2443
    %3938 = vmatpush1.msra.mxu0 %v2442
    %3939 = vmatprep.subr.mxu0 %v2451
    %3940 = vmatpush1.msra.mxu0 %v2450
    %3941 = vmatprep.subr.mxu0 %v2459
    %3942 = vmatpush1.msra.mxu0 %v2458
    %3943 = vmatprep.subr.mxu0 %v2467
    %3944 = vmatpush1.msra.mxu0 %v2466
    %3945 = vmatprep.subr.mxu0 %v2475
    %3946 = vmatpush1.msra.mxu0 %v2474
    %3947 = vmatprep.subr.mxu0 %v2483
    %3948 = vmatpush1.msra.mxu0 %v2482
    %3949 = vmatprep.subr.mxu0 %v2491
    %3950 = vmatpush1.msra.mxu0 %v2490
    %3951 = vmatprep.subr.mxu0 %v2499
    %3952 = vmatpush1.msra.mxu0 %v2498
    %3953 = vmatprep.subr.mxu0 %v2507
    %3954 = vmatpush1.msra.mxu0 %v2506
    %3955 = vmatprep.subr.mxu0 %v2515
    %3956 = vmatpush1.msra.mxu0 %v2514
    %3957 = vmatprep.subr.mxu0 %v2523
    %3958 = vmatpush1.msra.mxu0 %v2522
    %3959 = vmatprep.subr.mxu0 %v2531
    %3960 = vmatpush1.msra.mxu0 %v2530
    %3961 = vmatprep.subr.mxu0 %v2539
    %3962 = vmatpush1.msra.mxu0 %v2538
    %3963 = vmatprep.subr.mxu0 %v2547
    %3964 = vmatpush1.msra.mxu0 %v2546
    %3965 = vmatprep.subr.mxu0 %v2555
    %3966 = vmatpush1.msra.mxu0 %v2554
    %3967 = vmatprep.subr.mxu0 %v2563
    %3968 = vmatpush1.msra.mxu0 %v2562
    %3969 = vmatprep.subr.mxu0 %v2571
    %3970 = vmatpush1.msra.mxu0 %v2570
    %3971 = vmatprep.subr.mxu0 %v2579
    %3972 = vmatpush1.msra.mxu0 %v2578
    %3973 = vmatprep.subr.mxu0 %v2587
    %3974 = vmatpush1.msra.mxu0 %v2586
    %3975 = vmatprep.subr.mxu0 %v2595
    %3976 = vmatpush1.msra.mxu0 %v2594
    %3977 = vmatprep.subr.mxu0 %v2603
    %3978 = vmatpush1.msra.mxu0 %v2602
    %3979 = vmatprep.mubr.f32.mxu0 %v3699
    %3980 = vmatmul.mubr.f32.gmra.mrb[0].mxu0 %v3698
    %v3981 = vpop.f32.mrb[0].mxu0
    %v3982 = vadd.f32 0.0, %v3981
    %v3983 = vpop.f32.mrb[0].mxu0
    %v3984 = vadd.f32 0.0, %v3983
    %3985 = vdwg.mxu0
    %v3994 = vrot.slane %v3769, 2
    %v3995 = vrot.slane %v3771, 2
    %v3996 = vrot.slane %v3840, 2
    %v3997 = vrot.slane %v3842, 2
    %v3998 = vrot.slane %v3911, 2
    %v3999 = vrot.slane %v3913, 2
    %v4000 = vrot.slane %v3982, 2
    %v4001 = vrot.slane %v3984, 2
    %v4010 = vadd.f32 %v2107, %v3994
    %v4011 = vadd.f32 %v2109, %v3995
    %v4012 = vadd.f32 %v2184, %v3996
    %v4013 = vadd.f32 %v2186, %v3997
    %v4014 = vadd.f32 %v2261, %v3998
    %v4015 = vadd.f32 %v2263, %v3999
    %v4016 = vadd.f32 %v2338, %v4000
    %v4017 = vadd.f32 %v2340, %v4001
    %v4018 = vxor.u32 %v4010, 2147483648
    %v4019 = vxor.u32 %v4011, 2147483648
    %v4020 = vmul.f32 %v4018, 1.442695
    %v4021 = vpow.pop %v4020
    %v4022 = vmul.f32 %v4019, 1.442695
    %v4023 = vpow.pop %v4022
    %v4024 = vadd.f32 %v4021, 1.0
    %v4025 = vadd.f32 %v4023, 1.0
    %v4026 = vrcp.pop %v4024
    %v4027 = vmul.f32 1.0, %v4026
    %v4028 = vrcp.pop %v4025
    %v4029 = vmul.f32 1.0, %v4028
    %v4030 = vxor.u32 %v4012, 2147483648
    %v4031 = vxor.u32 %v4013, 2147483648
    %v4032 = vmul.f32 %v4030, 1.442695
    %v4033 = vpow.pop %v4032
    %v4034 = vmul.f32 %v4031, 1.442695
    %v4035 = vpow.pop %v4034
    %v4036 = vadd.f32 %v4033, 1.0
    %v4037 = vadd.f32 %v4035, 1.0
    %v4038 = vrcp.pop %v4036
    %v4039 = vmul.f32 1.0, %v4038
    %v4040 = vrcp.pop %v4037
    %v4041 = vmul.f32 1.0, %v4040
    %v4042 = vtanh.pop %v4014
    %v4043 = vtanh.pop %v4015
    %v4044 = vxor.u32 %v4016, 2147483648
    %v4045 = vxor.u32 %v4017, 2147483648
    %v4046 = vmul.f32 %v4044, 1.442695
    %v4047 = vpow.pop %v4046
    %v4048 = vmul.f32 %v4045, 1.442695
    %v4049 = vpow.pop %v4048
    %v4050 = vadd.f32 %v4047, 1.0
    %v4051 = vadd.f32 %v4049, 1.0
    %v4052 = vrcp.pop %v4050
    %v4053 = vmul.f32 1.0, %v4052
    %v4054 = vrcp.pop %v4051
    %v4055 = vmul.f32 1.0, %v4054
    %v4058 = vrot.slane %v3688, 6
    %v4059 = vrot.slane %v3689, 6
    %v4062 = vmul.f32 %v4039, %v4058
    %v4063 = vmul.f32 %v4041, %v4059
    %v4064 = vmul.f32 %v4027, %v4042
    %v4065 = vmul.f32 %v4029, %v4043
    %v4066 = vadd.f32 %v4062, %v4064
    %v4067 = vadd.f32 %v4063, %v4065
    %v4068 = vtanh.pop %v4066
    %v4069 = vtanh.pop %v4067
    %v4070 = vmul.f32 %v4053, %v4068
    %v4071 = vmul.f32 %v4055, %v4069
    %4072 = vst [vmem:[#allocation3] sm:$0xc0] %v4070
    %4073 = vst [vmem:[#allocation3 + $0x8] sm:$0xc0] %v4071
    %v4076 = vrot.slane %v4070, 6
    %v4077 = vrot.slane %v4071, 6
    %4080 = vmatprep.subr.mxu0 %v2349
    %4081 = vmatpush1.msra.mxu0 %v2348
    %4082 = vmatprep.subr.mxu0 %v2357
    %4083 = vmatpush1.msra.mxu0 %v2356
    %4084 = vmatprep.subr.mxu0 %v2365
    %4085 = vmatpush1.msra.mxu0 %v2364
    %4086 = vmatprep.subr.mxu0 %v2373
    %4087 = vmatpush1.msra.mxu0 %v2372
    %4088 = vmatprep.subr.mxu0 %v2381
    %4089 = vmatpush1.msra.mxu0 %v2380
    %4090 = vmatprep.subr.mxu0 %v2389
    %4091 = vmatpush1.msra.mxu0 %v2388
    %4092 = vmatprep.subr.mxu0 %v2397
    %4093 = vmatpush1.msra.mxu0 %v2396
    %4094 = vmatprep.subr.mxu0 %v2405
    %4095 = vmatpush1.msra.mxu0 %v2404
    %4096 = vmatprep.subr.mxu0 %v2413
    %4097 = vmatpush1.msra.mxu0 %v2412
    %4098 = vmatprep.subr.mxu0 %v2421
    %4099 = vmatpush1.msra.mxu0 %v2420
    %4100 = vmatprep.subr.mxu0 %v2429
    %4101 = vmatpush1.msra.mxu0 %v2428
    %4102 = vmatprep.subr.mxu0 %v2437
    %4103 = vmatpush1.msra.mxu0 %v2436
    %4104 = vmatprep.subr.mxu0 %v2445
    %4105 = vmatpush1.msra.mxu0 %v2444
    %4106 = vmatprep.subr.mxu0 %v2453
    %4107 = vmatpush1.msra.mxu0 %v2452
    %4108 = vmatprep.subr.mxu0 %v2461
    %4109 = vmatpush1.msra.mxu0 %v2460
    %4110 = vmatprep.subr.mxu0 %v2469
    %4111 = vmatpush1.msra.mxu0 %v2468
    %4112 = vmatprep.subr.mxu0 %v2477
    %4113 = vmatpush1.msra.mxu0 %v2476
    %4114 = vmatprep.subr.mxu0 %v2485
    %4115 = vmatpush1.msra.mxu0 %v2484
    %4116 = vmatprep.subr.mxu0 %v2493
    %4117 = vmatpush1.msra.mxu0 %v2492
    %4118 = vmatprep.subr.mxu0 %v2501
    %4119 = vmatpush1.msra.mxu0 %v2500
    %4120 = vmatprep.subr.mxu0 %v2509
    %4121 = vmatpush1.msra.mxu0 %v2508
    %4122 = vmatprep.subr.mxu0 %v2517
    %4123 = vmatpush1.msra.mxu0 %v2516
    %4124 = vmatprep.subr.mxu0 %v2525
    %4125 = vmatpush1.msra.mxu0 %v2524
    %4126 = vmatprep.subr.mxu0 %v2533
    %4127 = vmatpush1.msra.mxu0 %v2532
    %4128 = vmatprep.subr.mxu0 %v2541
    %4129 = vmatpush1.msra.mxu0 %v2540
    %4130 = vmatprep.subr.mxu0 %v2549
    %4131 = vmatpush1.msra.mxu0 %v2548
    %4132 = vmatprep.subr.mxu0 %v2557
    %4133 = vmatpush1.msra.mxu0 %v2556
    %4134 = vmatprep.subr.mxu0 %v2565
    %4135 = vmatpush1.msra.mxu0 %v2564
    %4136 = vmatprep.subr.mxu0 %v2573
    %4137 = vmatpush1.msra.mxu0 %v2572
    %4138 = vmatprep.subr.mxu0 %v2581
    %4139 = vmatpush1.msra.mxu0 %v2580
    %4140 = vmatprep.subr.mxu0 %v2589
    %4141 = vmatpush1.msra.mxu0 %v2588
    %4142 = vmatprep.subr.mxu0 %v2597
    %4143 = vmatpush1.msra.mxu0 %v2596
    %4144 = vmatprep.mubr.f32.mxu0 %v4077
    %4145 = vmatmul.mubr.f32.gmra.mrb[0].mxu0 %v4076
    %v4146 = vpop.f32.mrb[0].mxu0
    %v4147 = vadd.f32 0.0, %v4146
    %v4148 = vpop.f32.mrb[0].mxu0
    %v4149 = vadd.f32 0.0, %v4148
    %4150 = vdwg.mxu0
    %4151 = vmatprep.subr.mxu0 %v2351
    %4152 = vmatpush1.msra.mxu0 %v2350
    %4153 = vmatprep.subr.mxu0 %v2359
    %4154 = vmatpush1.msra.mxu0 %v2358
    %4155 = vmatprep.subr.mxu0 %v2367
    %4156 = vmatpush1.msra.mxu0 %v2366
    %4157 = vmatprep.subr.mxu0 %v2375
    %4158 = vmatpush1.msra.mxu0 %v2374
    %4159 = vmatprep.subr.mxu0 %v2383
    %4160 = vmatpush1.msra.mxu0 %v2382
    %4161 = vmatprep.subr.mxu0 %v2391
    %4162 = vmatpush1.msra.mxu0 %v2390
    %4163 = vmatprep.subr.mxu0 %v2399
    %4164 = vmatpush1.msra.mxu0 %v2398
    %4165 = vmatprep.subr.mxu0 %v2407
    %4166 = vmatpush1.msra.mxu0 %v2406
    %4167 = vmatprep.subr.mxu0 %v2415
    %4168 = vmatpush1.msra.mxu0 %v2414
    %4169 = vmatprep.subr.mxu0 %v2423
    %4170 = vmatpush1.msra.mxu0 %v2422
    %4171 = vmatprep.subr.mxu0 %v2431
    %4172 = vmatpush1.msra.mxu0 %v2430
    %4173 = vmatprep.subr.mxu0 %v2439
    %4174 = vmatpush1.msra.mxu0 %v2438
    %4175 = vmatprep.subr.mxu0 %v2447
    %4176 = vmatpush1.msra.mxu0 %v2446
    %4177 = vmatprep.subr.mxu0 %v2455
    %4178 = vmatpush1.msra.mxu0 %v2454
    %4179 = vmatprep.subr.mxu0 %v2463
    %4180 = vmatpush1.msra.mxu0 %v2462
    %4181 = vmatprep.subr.mxu0 %v2471
    %4182 = vmatpush1.msra.mxu0 %v2470
    %4183 = vmatprep.subr.mxu0 %v2479
    %4184 = vmatpush1.msra.mxu0 %v2478
    %4185 = vmatprep.subr.mxu0 %v2487
    %4186 = vmatpush1.msra.mxu0 %v2486
    %4187 = vmatprep.subr.mxu0 %v2495
    %4188 = vmatpush1.msra.mxu0 %v2494
    %4189 = vmatprep.subr.mxu0 %v2503
    %4190 = vmatpush1.msra.mxu0 %v2502
    %4191 = vmatprep.subr.mxu0 %v2511
    %4192 = vmatpush1.msra.mxu0 %v2510
    %4193 = vmatprep.subr.mxu0 %v2519
    %4194 = vmatpush1.msra.mxu0 %v2518
    %4195 = vmatprep.subr.mxu0 %v2527
    %4196 = vmatpush1.msra.mxu0 %v2526
    %4197 = vmatprep.subr.mxu0 %v2535
    %4198 = vmatpush1.msra.mxu0 %v2534
    %4199 = vmatprep.subr.mxu0 %v2543
    %4200 = vmatpush1.msra.mxu0 %v2542
    %4201 = vmatprep.subr.mxu0 %v2551
    %4202 = vmatpush1.msra.mxu0 %v2550
    %4203 = vmatprep.subr.mxu0 %v2559
    %4204 = vmatpush1.msra.mxu0 %v2558
    %4205 = vmatprep.subr.mxu0 %v2567
    %4206 = vmatpush1.msra.mxu0 %v2566
    %4207 = vmatprep.subr.mxu0 %v2575
    %4208 = vmatpush1.msra.mxu0 %v2574
    %4209 = vmatprep.subr.mxu0 %v2583
    %4210 = vmatpush1.msra.mxu0 %v2582
    %4211 = vmatprep.subr.mxu0 %v2591
    %4212 = vmatpush1.msra.mxu0 %v2590
    %4213 = vmatprep.subr.mxu0 %v2599
    %4214 = vmatpush1.msra.mxu0 %v2598
    %4215 = vmatprep.mubr.f32.mxu0 %v4077
    %4216 = vmatmul.mubr.f32.gmra.mrb[0].mxu0 %v4076
    %v4217 = vpop.f32.mrb[0].mxu0
    %v4218 = vadd.f32 0.0, %v4217
    %v4219 = vpop.f32.mrb[0].mxu0
    %v4220 = vadd.f32 0.0, %v4219
    %4221 = vdwg.mxu0
    %4222 = vmatprep.subr.mxu0 %v2353
    %4223 = vmatpush1.msra.mxu0 %v2352
    %4224 = vmatprep.subr.mxu0 %v2361
    %4225 = vmatpush1.msra.mxu0 %v2360
    %4226 = vmatprep.subr.mxu0 %v2369
    %4227 = vmatpush1.msra.mxu0 %v2368
    %4228 = vmatprep.subr.mxu0 %v2377
    %4229 = vmatpush1.msra.mxu0 %v2376
    %4230 = vmatprep.subr.mxu0 %v2385
    %4231 = vmatpush1.msra.mxu0 %v2384
    %4232 = vmatprep.subr.mxu0 %v2393
    %4233 = vmatpush1.msra.mxu0 %v2392
    %4234 = vmatprep.subr.mxu0 %v2401
    %4235 = vmatpush1.msra.mxu0 %v2400
    %4236 = vmatprep.subr.mxu0 %v2409
    %4237 = vmatpush1.msra.mxu0 %v2408
    %4238 = vmatprep.subr.mxu0 %v2417
    %4239 = vmatpush1.msra.mxu0 %v2416
    %4240 = vmatprep.subr.mxu0 %v2425
    %4241 = vmatpush1.msra.mxu0 %v2424
    %4242 = vmatprep.subr.mxu0 %v2433
    %4243 = vmatpush1.msra.mxu0 %v2432
    %4244 = vmatprep.subr.mxu0 %v2441
    %4245 = vmatpush1.msra.mxu0 %v2440
    %4246 = vmatprep.subr.mxu0 %v2449
    %4247 = vmatpush1.msra.mxu0 %v2448
    %4248 = vmatprep.subr.mxu0 %v2457
    %4249 = vmatpush1.msra.mxu0 %v2456
    %4250 = vmatprep.subr.mxu0 %v2465
    %4251 = vmatpush1.msra.mxu0 %v2464
    %4252 = vmatprep.subr.mxu0 %v2473
    %4253 = vmatpush1.msra.mxu0 %v2472
    %4254 = vmatprep.subr.mxu0 %v2481
    %4255 = vmatpush1.msra.mxu0 %v2480
    %4256 = vmatprep.subr.mxu0 %v2489
    %4257 = vmatpush1.msra.mxu0 %v2488
    %4258 = vmatprep.subr.mxu0 %v2497
    %4259 = vmatpush1.msra.mxu0 %v2496
    %4260 = vmatprep.subr.mxu0 %v2505
    %4261 = vmatpush1.msra.mxu0 %v2504
    %4262 = vmatprep.subr.mxu0 %v2513
    %4263 = vmatpush1.msra.mxu0 %v2512
    %4264 = vmatprep.subr.mxu0 %v2521
    %4265 = vmatpush1.msra.mxu0 %v2520
    %4266 = vmatprep.subr.mxu0 %v2529
    %4267 = vmatpush1.msra.mxu0 %v2528
    %4268 = vmatprep.subr.mxu0 %v2537
    %4269 = vmatpush1.msra.mxu0 %v2536
    %4270 = vmatprep.subr.mxu0 %v2545
    %4271 = vmatpush1.msra.mxu0 %v2544
    %4272 = vmatprep.subr.mxu0 %v2553
    %4273 = vmatpush1.msra.mxu0 %v2552
    %4274 = vmatprep.subr.mxu0 %v2561
    %4275 = vmatpush1.msra.mxu0 %v2560
    %4276 = vmatprep.subr.mxu0 %v2569
    %4277 = vmatpush1.msra.mxu0 %v2568
    %4278 = vmatprep.subr.mxu0 %v2577
    %4279 = vmatpush1.msra.mxu0 %v2576
    %4280 = vmatprep.subr.mxu0 %v2585
    %4281 = vmatpush1.msra.mxu0 %v2584
    %4282 = vmatprep.subr.mxu0 %v2593
    %4283 = vmatpush1.msra.mxu0 %v2592
    %4284 = vmatprep.subr.mxu0 %v2601
    %4285 = vmatpush1.msra.mxu0 %v2600
    %4286 = vmatprep.mubr.f32.mxu0 %v4077
    %4287 = vmatmul.mubr.f32.gmra.mrb[0].mxu0 %v4076
    %v4288 = vpop.f32.mrb[0].mxu0
    %v4289 = vadd.f32 0.0, %v4288
    %v4290 = vpop.f32.mrb[0].mxu0
    %v4291 = vadd.f32 0.0, %v4290
    %4292 = vdwg.mxu0
    %4293 = vmatprep.subr.mxu0 %v2355
    %4294 = vmatpush1.msra.mxu0 %v2354
    %4295 = vmatprep.subr.mxu0 %v2363
    %4296 = vmatpush1.msra.mxu0 %v2362
    %4297 = vmatprep.subr.mxu0 %v2371
    %4298 = vmatpush1.msra.mxu0 %v2370
    %4299 = vmatprep.subr.mxu0 %v2379
    %4300 = vmatpush1.msra.mxu0 %v2378
    %4301 = vmatprep.subr.mxu0 %v2387
    %4302 = vmatpush1.msra.mxu0 %v2386
    %4303 = vmatprep.subr.mxu0 %v2395
    %4304 = vmatpush1.msra.mxu0 %v2394
    %4305 = vmatprep.subr.mxu0 %v2403
    %4306 = vmatpush1.msra.mxu0 %v2402
    %4307 = vmatprep.subr.mxu0 %v2411
    %4308 = vmatpush1.msra.mxu0 %v2410
    %4309 = vmatprep.subr.mxu0 %v2419
    %4310 = vmatpush1.msra.mxu0 %v2418
    %4311 = vmatprep.subr.mxu0 %v2427
    %4312 = vmatpush1.msra.mxu0 %v2426
    %4313 = vmatprep.subr.mxu0 %v2435
    %4314 = vmatpush1.msra.mxu0 %v2434
    %4315 = vmatprep.subr.mxu0 %v2443
    %4316 = vmatpush1.msra.mxu0 %v2442
    %4317 = vmatprep.subr.mxu0 %v2451
    %4318 = vmatpush1.msra.mxu0 %v2450
    %4319 = vmatprep.subr.mxu0 %v2459
    %4320 = vmatpush1.msra.mxu0 %v2458
    %4321 = vmatprep.subr.mxu0 %v2467
    %4322 = vmatpush1.msra.mxu0 %v2466
    %4323 = vmatprep.subr.mxu0 %v2475
    %4324 = vmatpush1.msra.mxu0 %v2474
    %4325 = vmatprep.subr.mxu0 %v2483
    %4326 = vmatpush1.msra.mxu0 %v2482
    %4327 = vmatprep.subr.mxu0 %v2491
    %4328 = vmatpush1.msra.mxu0 %v2490
    %4329 = vmatprep.subr.mxu0 %v2499
    %4330 = vmatpush1.msra.mxu0 %v2498
    %4331 = vmatprep.subr.mxu0 %v2507
    %4332 = vmatpush1.msra.mxu0 %v2506
    %4333 = vmatprep.subr.mxu0 %v2515
    %4334 = vmatpush1.msra.mxu0 %v2514
    %4335 = vmatprep.subr.mxu0 %v2523
    %4336 = vmatpush1.msra.mxu0 %v2522
    %4337 = vmatprep.subr.mxu0 %v2531
    %4338 = vmatpush1.msra.mxu0 %v2530
    %4339 = vmatprep.subr.mxu0 %v2539
    %4340 = vmatpush1.msra.mxu0 %v2538
    %4341 = vmatprep.subr.mxu0 %v2547
    %4342 = vmatpush1.msra.mxu0 %v2546
    %4343 = vmatprep.subr.mxu0 %v2555
    %4344 = vmatpush1.msra.mxu0 %v2554
    %4345 = vmatprep.subr.mxu0 %v2563
    %4346 = vmatpush1.msra.mxu0 %v2562
    %4347 = vmatprep.subr.mxu0 %v2571
    %4348 = vmatpush1.msra.mxu0 %v2570
    %4349 = vmatprep.subr.mxu0 %v2579
    %4350 = vmatpush1.msra.mxu0 %v2578
    %4351 = vmatprep.subr.mxu0 %v2587
    %4352 = vmatpush1.msra.mxu0 %v2586
    %4353 = vmatprep.subr.mxu0 %v2595
    %4354 = vmatpush1.msra.mxu0 %v2594
    %4355 = vmatprep.subr.mxu0 %v2603
    %4356 = vmatpush1.msra.mxu0 %v2602
    %4357 = vmatprep.mubr.f32.mxu0 %v4077
    %4358 = vmatmul.mubr.f32.gmra.mrb[0].mxu0 %v4076
    %v4359 = vpop.f32.mrb[0].mxu0
    %v4360 = vadd.f32 0.0, %v4359
    %v4361 = vpop.f32.mrb[0].mxu0
    %v4362 = vadd.f32 0.0, %v4361
    %4363 = vdwg.mxu0
    %v4364 = vadd.f32 %v2113, %v4147
    %v4365 = vadd.f32 %v2115, %v4149
    %v4366 = vadd.f32 %v2190, %v4218
    %v4367 = vadd.f32 %v2192, %v4220
    %v4368 = vadd.f32 %v2267, %v4289
    %v4369 = vadd.f32 %v2269, %v4291
    %v4370 = vadd.f32 %v2344, %v4360
    %v4371 = vadd.f32 %v2346, %v4362
    %v4372 = vxor.u32 %v4364, 2147483648
    %v4373 = vxor.u32 %v4365, 2147483648
    %v4374 = vmul.f32 %v4372, 1.442695
    %v4375 = vpow.pop %v4374
    %v4376 = vmul.f32 %v4373, 1.442695
    %v4377 = vpow.pop %v4376
    %v4378 = vadd.f32 %v4375, 1.0
    %v4379 = vadd.f32 %v4377, 1.0
    %v4380 = vrcp.pop %v4378
    %v4381 = vmul.f32 1.0, %v4380
    %v4382 = vrcp.pop %v4379
    %v4383 = vmul.f32 1.0, %v4382
    %v4384 = vxor.u32 %v4366, 2147483648
    %v4385 = vxor.u32 %v4367, 2147483648
    %v4386 = vmul.f32 %v4384, 1.442695
    %v4387 = vpow.pop %v4386
    %v4388 = vmul.f32 %v4385, 1.442695
    %v4389 = vpow.pop %v4388
    %v4390 = vadd.f32 %v4387, 1.0
    %v4391 = vadd.f32 %v4389, 1.0
    %v4392 = vrcp.pop %v4390
    %v4393 = vmul.f32 1.0, %v4392
    %v4394 = vrcp.pop %v4391
    %v4395 = vmul.f32 1.0, %v4394
    %v4396 = vtanh.pop %v4368
    %v4397 = vtanh.pop %v4369
    %v4398 = vxor.u32 %v4370, 2147483648
    %v4399 = vxor.u32 %v4371, 2147483648
    %v4400 = vmul.f32 %v4398, 1.442695
    %v4401 = vpow.pop %v4400
    %v4402 = vmul.f32 %v4399, 1.442695
    %v4403 = vpow.pop %v4402
    %v4404 = vadd.f32 %v4401, 1.0
    %v4405 = vadd.f32 %v4403, 1.0
    %v4406 = vrcp.pop %v4404
    %v4407 = vmul.f32 1.0, %v4406
    %v4408 = vrcp.pop %v4405
    %v4409 = vmul.f32 1.0, %v4408
    %v4412 = vrot.slane %v4066, 6
    %v4413 = vrot.slane %v4067, 6
    %v4416 = vmul.f32 %v4393, %v4412
    %v4417 = vmul.f32 %v4395, %v4413
    %v4418 = vmul.f32 %v4381, %v4396
    %v4419 = vmul.f32 %v4383, %v4397
    %v4420 = vadd.f32 %v4416, %v4418
    %v4421 = vadd.f32 %v4417, %v4419
    %v4422 = vtanh.pop %v4420
    %v4423 = vtanh.pop %v4421
    %v4424 = vmul.f32 %v4407, %v4422
    %v4425 = vmul.f32 %v4409, %v4423
    %4426 = vst [vmem:[#allocation3 + $0x10] sm:$0x3] %v4424
    %4427 = vst [vmem:[#allocation3 + $0x18] sm:$0x3] %v4425
    %4428 = vmatprep.subr.mxu0 %v2349
    %4429 = vmatpush1.msra.mxu0 %v2348
    %4430 = vmatprep.subr.mxu0 %v2357
    %4431 = vmatpush1.msra.mxu0 %v2356
    %4432 = vmatprep.subr.mxu0 %v2365
    %4433 = vmatpush1.msra.mxu0 %v2364
    %4434 = vmatprep.subr.mxu0 %v2373
    %4435 = vmatpush1.msra.mxu0 %v2372
    %4436 = vmatprep.subr.mxu0 %v2381
    %4437 = vmatpush1.msra.mxu0 %v2380
    %4438 = vmatprep.subr.mxu0 %v2389
    %4439 = vmatpush1.msra.mxu0 %v2388
    %4440 = vmatprep.subr.mxu0 %v2397
    %4441 = vmatpush1.msra.mxu0 %v2396
    %4442 = vmatprep.subr.mxu0 %v2405
    %4443 = vmatpush1.msra.mxu0 %v2404
    %4444 = vmatprep.subr.mxu0 %v2413
    %4445 = vmatpush1.msra.mxu0 %v2412
    %4446 = vmatprep.subr.mxu0 %v2421
    %4447 = vmatpush1.msra.mxu0 %v2420
    %4448 = vmatprep.subr.mxu0 %v2429
    %4449 = vmatpush1.msra.mxu0 %v2428
    %4450 = vmatprep.subr.mxu0 %v2437
    %4451 = vmatpush1.msra.mxu0 %v2436
    %4452 = vmatprep.subr.mxu0 %v2445
    %4453 = vmatpush1.msra.mxu0 %v2444
    %4454 = vmatprep.subr.mxu0 %v2453
    %4455 = vmatpush1.msra.mxu0 %v2452
    %4456 = vmatprep.subr.mxu0 %v2461
    %4457 = vmatpush1.msra.mxu0 %v2460
    %4458 = vmatprep.subr.mxu0 %v2469
    %4459 = vmatpush1.msra.mxu0 %v2468
    %4460 = vmatprep.subr.mxu0 %v2477
    %4461 = vmatpush1.msra.mxu0 %v2476
    %4462 = vmatprep.subr.mxu0 %v2485
    %4463 = vmatpush1.msra.mxu0 %v2484
    %4464 = vmatprep.subr.mxu0 %v2493
    %4465 = vmatpush1.msra.mxu0 %v2492
    %4466 = vmatprep.subr.mxu0 %v2501
    %4467 = vmatpush1.msra.mxu0 %v2500
    %4468 = vmatprep.subr.mxu0 %v2509
    %4469 = vmatpush1.msra.mxu0 %v2508
    %4470 = vmatprep.subr.mxu0 %v2517
    %4471 = vmatpush1.msra.mxu0 %v2516
    %4472 = vmatprep.subr.mxu0 %v2525
    %4473 = vmatpush1.msra.mxu0 %v2524
    %4474 = vmatprep.subr.mxu0 %v2533
    %4475 = vmatpush1.msra.mxu0 %v2532
    %4476 = vmatprep.subr.mxu0 %v2541
    %4477 = vmatpush1.msra.mxu0 %v2540
    %4478 = vmatprep.subr.mxu0 %v2549
    %4479 = vmatpush1.msra.mxu0 %v2548
    %4480 = vmatprep.subr.mxu0 %v2557
    %4481 = vmatpush1.msra.mxu0 %v2556
    %4482 = vmatprep.subr.mxu0 %v2565
    %4483 = vmatpush1.msra.mxu0 %v2564
    %4484 = vmatprep.subr.mxu0 %v2573
    %4485 = vmatpush1.msra.mxu0 %v2572
    %4486 = vmatprep.subr.mxu0 %v2581
    %4487 = vmatpush1.msra.mxu0 %v2580
    %4488 = vmatprep.subr.mxu0 %v2589
    %4489 = vmatpush1.msra.mxu0 %v2588
    %4490 = vmatprep.subr.mxu0 %v2597
    %4491 = vmatpush1.msra.mxu0 %v2596
    %4492 = vmatprep.mubr.f32.mxu0 %v4425
    %4493 = vmatmul.mubr.f32.gmra.mrb[0].mxu0 %v4424
    %v4494 = vpop.f32.mrb[0].mxu0
    %v4495 = vadd.f32 0.0, %v4494
    %v4496 = vpop.f32.mrb[0].mxu0
    %v4497 = vadd.f32 0.0, %v4496
    %4498 = vdwg.mxu0
    %4499 = vmatprep.subr.mxu0 %v2351
    %4500 = vmatpush1.msra.mxu0 %v2350
    %4501 = vmatprep.subr.mxu0 %v2359
    %4502 = vmatpush1.msra.mxu0 %v2358
    %4503 = vmatprep.subr.mxu0 %v2367
    %4504 = vmatpush1.msra.mxu0 %v2366
    %4505 = vmatprep.subr.mxu0 %v2375
    %4506 = vmatpush1.msra.mxu0 %v2374
    %4507 = vmatprep.subr.mxu0 %v2383
    %4508 = vmatpush1.msra.mxu0 %v2382
    %4509 = vmatprep.subr.mxu0 %v2391
    %4510 = vmatpush1.msra.mxu0 %v2390
    %4511 = vmatprep.subr.mxu0 %v2399
    %4512 = vmatpush1.msra.mxu0 %v2398
    %4513 = vmatprep.subr.mxu0 %v2407
    %4514 = vmatpush1.msra.mxu0 %v2406
    %4515 = vmatprep.subr.mxu0 %v2415
    %4516 = vmatpush1.msra.mxu0 %v2414
    %4517 = vmatprep.subr.mxu0 %v2423
    %4518 = vmatpush1.msra.mxu0 %v2422
    %4519 = vmatprep.subr.mxu0 %v2431
    %4520 = vmatpush1.msra.mxu0 %v2430
    %4521 = vmatprep.subr.mxu0 %v2439
    %4522 = vmatpush1.msra.mxu0 %v2438
    %4523 = vmatprep.subr.mxu0 %v2447
    %4524 = vmatpush1.msra.mxu0 %v2446
    %4525 = vmatprep.subr.mxu0 %v2455
    %4526 = vmatpush1.msra.mxu0 %v2454
    %4527 = vmatprep.subr.mxu0 %v2463
    %4528 = vmatpush1.msra.mxu0 %v2462
    %4529 = vmatprep.subr.mxu0 %v2471
    %4530 = vmatpush1.msra.mxu0 %v2470
    %4531 = vmatprep.subr.mxu0 %v2479
    %4532 = vmatpush1.msra.mxu0 %v2478
    %4533 = vmatprep.subr.mxu0 %v2487
    %4534 = vmatpush1.msra.mxu0 %v2486
    %4535 = vmatprep.subr.mxu0 %v2495
    %4536 = vmatpush1.msra.mxu0 %v2494
    %4537 = vmatprep.subr.mxu0 %v2503
    %4538 = vmatpush1.msra.mxu0 %v2502
    %4539 = vmatprep.subr.mxu0 %v2511
    %4540 = vmatpush1.msra.mxu0 %v2510
    %4541 = vmatprep.subr.mxu0 %v2519
    %4542 = vmatpush1.msra.mxu0 %v2518
    %4543 = vmatprep.subr.mxu0 %v2527
    %4544 = vmatpush1.msra.mxu0 %v2526
    %4545 = vmatprep.subr.mxu0 %v2535
    %4546 = vmatpush1.msra.mxu0 %v2534
    %4547 = vmatprep.subr.mxu0 %v2543
    %4548 = vmatpush1.msra.mxu0 %v2542
    %4549 = vmatprep.subr.mxu0 %v2551
    %4550 = vmatpush1.msra.mxu0 %v2550
    %4551 = vmatprep.subr.mxu0 %v2559
    %4552 = vmatpush1.msra.mxu0 %v2558
    %4553 = vmatprep.subr.mxu0 %v2567
    %4554 = vmatpush1.msra.mxu0 %v2566
    %4555 = vmatprep.subr.mxu0 %v2575
    %4556 = vmatpush1.msra.mxu0 %v2574
    %4557 = vmatprep.subr.mxu0 %v2583
    %4558 = vmatpush1.msra.mxu0 %v2582
    %4559 = vmatprep.subr.mxu0 %v2591
    %4560 = vmatpush1.msra.mxu0 %v2590
    %4561 = vmatprep.subr.mxu0 %v2599
    %4562 = vmatpush1.msra.mxu0 %v2598
    %4563 = vmatprep.mubr.f32.mxu0 %v4425
    %4564 = vmatmul.mubr.f32.gmra.mrb[0].mxu0 %v4424
    %v4565 = vpop.f32.mrb[0].mxu0
    %v4566 = vadd.f32 0.0, %v4565
    %v4567 = vpop.f32.mrb[0].mxu0
    %v4568 = vadd.f32 0.0, %v4567
    %4569 = vdwg.mxu0
    %4570 = vmatprep.subr.mxu0 %v2353
    %4571 = vmatpush1.msra.mxu0 %v2352
    %4572 = vmatprep.subr.mxu0 %v2361
    %4573 = vmatpush1.msra.mxu0 %v2360
    %4574 = vmatprep.subr.mxu0 %v2369
    %4575 = vmatpush1.msra.mxu0 %v2368
    %4576 = vmatprep.subr.mxu0 %v2377
    %4577 = vmatpush1.msra.mxu0 %v2376
    %4578 = vmatprep.subr.mxu0 %v2385
    %4579 = vmatpush1.msra.mxu0 %v2384
    %4580 = vmatprep.subr.mxu0 %v2393
    %4581 = vmatpush1.msra.mxu0 %v2392
    %4582 = vmatprep.subr.mxu0 %v2401
    %4583 = vmatpush1.msra.mxu0 %v2400
    %4584 = vmatprep.subr.mxu0 %v2409
    %4585 = vmatpush1.msra.mxu0 %v2408
    %4586 = vmatprep.subr.mxu0 %v2417
    %4587 = vmatpush1.msra.mxu0 %v2416
    %4588 = vmatprep.subr.mxu0 %v2425
    %4589 = vmatpush1.msra.mxu0 %v2424
    %4590 = vmatprep.subr.mxu0 %v2433
    %4591 = vmatpush1.msra.mxu0 %v2432
    %4592 = vmatprep.subr.mxu0 %v2441
    %4593 = vmatpush1.msra.mxu0 %v2440
    %4594 = vmatprep.subr.mxu0 %v2449
    %4595 = vmatpush1.msra.mxu0 %v2448
    %4596 = vmatprep.subr.mxu0 %v2457
    %4597 = vmatpush1.msra.mxu0 %v2456
    %4598 = vmatprep.subr.mxu0 %v2465
    %4599 = vmatpush1.msra.mxu0 %v2464
    %4600 = vmatprep.subr.mxu0 %v2473
    %4601 = vmatpush1.msra.mxu0 %v2472
    %4602 = vmatprep.subr.mxu0 %v2481
    %4603 = vmatpush1.msra.mxu0 %v2480
    %4604 = vmatprep.subr.mxu0 %v2489
    %4605 = vmatpush1.msra.mxu0 %v2488
    %4606 = vmatprep.subr.mxu0 %v2497
    %4607 = vmatpush1.msra.mxu0 %v2496
    %4608 = vmatprep.subr.mxu0 %v2505
    %4609 = vmatpush1.msra.mxu0 %v2504
    %4610 = vmatprep.subr.mxu0 %v2513
    %4611 = vmatpush1.msra.mxu0 %v2512
    %4612 = vmatprep.subr.mxu0 %v2521
    %4613 = vmatpush1.msra.mxu0 %v2520
    %4614 = vmatprep.subr.mxu0 %v2529
    %4615 = vmatpush1.msra.mxu0 %v2528
    %4616 = vmatprep.subr.mxu0 %v2537
    %4617 = vmatpush1.msra.mxu0 %v2536
    %4618 = vmatprep.subr.mxu0 %v2545
    %4619 = vmatpush1.msra.mxu0 %v2544
    %4620 = vmatprep.subr.mxu0 %v2553
    %4621 = vmatpush1.msra.mxu0 %v2552
    %4622 = vmatprep.subr.mxu0 %v2561
    %4623 = vmatpush1.msra.mxu0 %v2560
    %4624 = vmatprep.subr.mxu0 %v2569
    %4625 = vmatpush1.msra.mxu0 %v2568
    %4626 = vmatprep.subr.mxu0 %v2577
    %4627 = vmatpush1.msra.mxu0 %v2576
    %4628 = vmatprep.subr.mxu0 %v2585
    %4629 = vmatpush1.msra.mxu0 %v2584
    %4630 = vmatprep.subr.mxu0 %v2593
    %4631 = vmatpush1.msra.mxu0 %v2592
    %4632 = vmatprep.subr.mxu0 %v2601
    %4633 = vmatpush1.msra.mxu0 %v2600
    %4634 = vmatprep.mubr.f32.mxu0 %v4425
    %4635 = vmatmul.mubr.f32.gmra.mrb[0].mxu0 %v4424
    %v4636 = vpop.f32.mrb[0].mxu0
    %v4637 = vadd.f32 0.0, %v4636
    %v4638 = vpop.f32.mrb[0].mxu0
    %v4639 = vadd.f32 0.0, %v4638
    %4640 = vdwg.mxu0
    %4641 = vmatprep.subr.mxu0 %v2355
    %4642 = vmatpush1.msra.mxu0 %v2354
    %4643 = vmatprep.subr.mxu0 %v2363
    %4644 = vmatpush1.msra.mxu0 %v2362
    %4645 = vmatprep.subr.mxu0 %v2371
    %4646 = vmatpush1.msra.mxu0 %v2370
    %4647 = vmatprep.subr.mxu0 %v2379
    %4648 = vmatpush1.msra.mxu0 %v2378
    %4649 = vmatprep.subr.mxu0 %v2387
    %4650 = vmatpush1.msra.mxu0 %v2386
    %4651 = vmatprep.subr.mxu0 %v2395
    %4652 = vmatpush1.msra.mxu0 %v2394
    %4653 = vmatprep.subr.mxu0 %v2403
    %4654 = vmatpush1.msra.mxu0 %v2402
    %4655 = vmatprep.subr.mxu0 %v2411
    %4656 = vmatpush1.msra.mxu0 %v2410
    %4657 = vmatprep.subr.mxu0 %v2419
    %4658 = vmatpush1.msra.mxu0 %v2418
    %4659 = vmatprep.subr.mxu0 %v2427
    %4660 = vmatpush1.msra.mxu0 %v2426
    %4661 = vmatprep.subr.mxu0 %v2435
    %4662 = vmatpush1.msra.mxu0 %v2434
    %4663 = vmatprep.subr.mxu0 %v2443
    %4664 = vmatpush1.msra.mxu0 %v2442
    %4665 = vmatprep.subr.mxu0 %v2451
    %4666 = vmatpush1.msra.mxu0 %v2450
    %4667 = vmatprep.subr.mxu0 %v2459
    %4668 = vmatpush1.msra.mxu0 %v2458
    %4669 = vmatprep.subr.mxu0 %v2467
    %4670 = vmatpush1.msra.mxu0 %v2466
    %4671 = vmatprep.subr.mxu0 %v2475
    %4672 = vmatpush1.msra.mxu0 %v2474
    %4673 = vmatprep.subr.mxu0 %v2483
    %4674 = vmatpush1.msra.mxu0 %v2482
    %4675 = vmatprep.subr.mxu0 %v2491
    %4676 = vmatpush1.msra.mxu0 %v2490
    %4677 = vmatprep.subr.mxu0 %v2499
    %4678 = vmatpush1.msra.mxu0 %v2498
    %4679 = vmatprep.subr.mxu0 %v2507
    %4680 = vmatpush1.msra.mxu0 %v2506
    %4681 = vmatprep.subr.mxu0 %v2515
    %4682 = vmatpush1.msra.mxu0 %v2514
    %4683 = vmatprep.subr.mxu0 %v2523
    %4684 = vmatpush1.msra.mxu0 %v2522
    %4685 = vmatprep.subr.mxu0 %v2531
    %4686 = vmatpush1.msra.mxu0 %v2530
    %4687 = vmatprep.subr.mxu0 %v2539
    %4688 = vmatpush1.msra.mxu0 %v2538
    %4689 = vmatprep.subr.mxu0 %v2547
    %4690 = vmatpush1.msra.mxu0 %v2546
    %4691 = vmatprep.subr.mxu0 %v2555
    %4692 = vmatpush1.msra.mxu0 %v2554
    %4693 = vmatprep.subr.mxu0 %v2563
    %4694 = vmatpush1.msra.mxu0 %v2562
    %4695 = vmatprep.subr.mxu0 %v2571
    %4696 = vmatpush1.msra.mxu0 %v2570
    %4697 = vmatprep.subr.mxu0 %v2579
    %4698 = vmatpush1.msra.mxu0 %v2578
    %4699 = vmatprep.subr.mxu0 %v2587
    %4700 = vmatpush1.msra.mxu0 %v2586
    %4701 = vmatprep.subr.mxu0 %v2595
    %4702 = vmatpush1.msra.mxu0 %v2594
    %4703 = vmatprep.subr.mxu0 %v2603
    %4704 = vmatpush1.msra.mxu0 %v2602
    %4705 = vmatprep.mubr.f32.mxu0 %v4425
    %4706 = vmatmul.mubr.f32.gmra.mrb[0].mxu0 %v4424
    %v4707 = vpop.f32.mrb[0].mxu0
    %v4708 = vadd.f32 0.0, %v4707
    %v4709 = vpop.f32.mrb[0].mxu0
    %v4710 = vadd.f32 0.0, %v4709
    %4711 = vdwg.mxu0
    %v4720 = vrot.slane %v4495, 6
    %v4721 = vrot.slane %v4497, 6
    %v4722 = vrot.slane %v4566, 6
    %v4723 = vrot.slane %v4568, 6
    %v4724 = vrot.slane %v4637, 6
    %v4725 = vrot.slane %v4639, 6
    %v4726 = vrot.slane %v4708, 6
    %v4727 = vrot.slane %v4710, 6
    %v4736 = vadd.f32 %v2113, %v4720
    %v4737 = vadd.f32 %v2115, %v4721
    %v4738 = vadd.f32 %v2190, %v4722
    %v4739 = vadd.f32 %v2192, %v4723
    %v4740 = vadd.f32 %v2267, %v4724
    %v4741 = vadd.f32 %v2269, %v4725
    %v4742 = vadd.f32 %v2344, %v4726
    %v4743 = vadd.f32 %v2346, %v4727
    %v4744 = vxor.u32 %v4736, 2147483648
    %v4745 = vxor.u32 %v4737, 2147483648
    %v4746 = vmul.f32 %v4744, 1.442695
    %v4747 = vpow.pop %v4746
    %v4748 = vmul.f32 %v4745, 1.442695
    %v4749 = vpow.pop %v4748
    %v4750 = vadd.f32 %v4747, 1.0
    %v4751 = vadd.f32 %v4749, 1.0
    %v4752 = vrcp.pop %v4750
    %v4753 = vmul.f32 1.0, %v4752
    %v4754 = vrcp.pop %v4751
    %v4755 = vmul.f32 1.0, %v4754
    %v4756 = vxor.u32 %v4738, 2147483648
    %v4757 = vxor.u32 %v4739, 2147483648
    %v4758 = vmul.f32 %v4756, 1.442695
    %v4759 = vpow.pop %v4758
    %v4760 = vmul.f32 %v4757, 1.442695
    %v4761 = vpow.pop %v4760
    %v4762 = vadd.f32 %v4759, 1.0
    %v4763 = vadd.f32 %v4761, 1.0
    %v4764 = vrcp.pop %v4762
    %v4765 = vmul.f32 1.0, %v4764
    %v4766 = vrcp.pop %v4763
    %v4767 = vmul.f32 1.0, %v4766
    %v4768 = vtanh.pop %v4740
    %v4769 = vtanh.pop %v4741
    %v4770 = vxor.u32 %v4742, 2147483648
    %v4771 = vxor.u32 %v4743, 2147483648
    %v4772 = vmul.f32 %v4770, 1.442695
    %v4773 = vpow.pop %v4772
    %v4774 = vmul.f32 %v4771, 1.442695
    %v4775 = vpow.pop %v4774
    %v4776 = vadd.f32 %v4773, 1.0
    %v4777 = vadd.f32 %v4775, 1.0
    %v4778 = vrcp.pop %v4776
    %v4779 = vmul.f32 1.0, %v4778
    %v4780 = vrcp.pop %v4777
    %v4781 = vmul.f32 1.0, %v4780
    %v4784 = vrot.slane %v4420, 6
    %v4785 = vrot.slane %v4421, 6
    %v4788 = vmul.f32 %v4765, %v4784
    %v4789 = vmul.f32 %v4767, %v4785
    %v4790 = vmul.f32 %v4753, %v4768
    %v4791 = vmul.f32 %v4755, %v4769
    %v4792 = vadd.f32 %v4788, %v4790
    %v4793 = vadd.f32 %v4789, %v4791
    %v4794 = vtanh.pop %v4792
    %v4795 = vtanh.pop %v4793
    %v4796 = vmul.f32 %v4779, %v4794
    %v4797 = vmul.f32 %v4781, %v4795
    %4798 = vst [vmem:[#allocation3 + $0x10] sm:$0xc] %v4796
    %4799 = vst [vmem:[#allocation3 + $0x18] sm:$0xc] %v4797
    %v4802 = vrot.slane %v4796, 2
    %v4803 = vrot.slane %v4797, 2
    %4806 = vmatprep.subr.mxu0 %v2349
    %4807 = vmatpush1.msra.mxu0 %v2348
    %4808 = vmatprep.subr.mxu0 %v2357
    %4809 = vmatpush1.msra.mxu0 %v2356
    %4810 = vmatprep.subr.mxu0 %v2365
    %4811 = vmatpush1.msra.mxu0 %v2364
    %4812 = vmatprep.subr.mxu0 %v2373
    %4813 = vmatpush1.msra.mxu0 %v2372
    %4814 = vmatprep.subr.mxu0 %v2381
    %4815 = vmatpush1.msra.mxu0 %v2380
    %4816 = vmatprep.subr.mxu0 %v2389
    %4817 = vmatpush1.msra.mxu0 %v2388
    %4818 = vmatprep.subr.mxu0 %v2397
    %4819 = vmatpush1.msra.mxu0 %v2396
    %4820 = vmatprep.subr.mxu0 %v2405
    %4821 = vmatpush1.msra.mxu0 %v2404
    %4822 = vmatprep.subr.mxu0 %v2413
    %4823 = vmatpush1.msra.mxu0 %v2412
    %4824 = vmatprep.subr.mxu0 %v2421
    %4825 = vmatpush1.msra.mxu0 %v2420
    %4826 = vmatprep.subr.mxu0 %v2429
    %4827 = vmatpush1.msra.mxu0 %v2428
    %4828 = vmatprep.subr.mxu0 %v2437
    %4829 = vmatpush1.msra.mxu0 %v2436
    %4830 = vmatprep.subr.mxu0 %v2445
    %4831 = vmatpush1.msra.mxu0 %v2444
    %4832 = vmatprep.subr.mxu0 %v2453
    %4833 = vmatpush1.msra.mxu0 %v2452
    %4834 = vmatprep.subr.mxu0 %v2461
    %4835 = vmatpush1.msra.mxu0 %v2460
    %4836 = vmatprep.subr.mxu0 %v2469
    %4837 = vmatpush1.msra.mxu0 %v2468
    %4838 = vmatprep.subr.mxu0 %v2477
    %4839 = vmatpush1.msra.mxu0 %v2476
    %4840 = vmatprep.subr.mxu0 %v2485
    %4841 = vmatpush1.msra.mxu0 %v2484
    %4842 = vmatprep.subr.mxu0 %v2493
    %4843 = vmatpush1.msra.mxu0 %v2492
    %4844 = vmatprep.subr.mxu0 %v2501
    %4845 = vmatpush1.msra.mxu0 %v2500
    %4846 = vmatprep.subr.mxu0 %v2509
    %4847 = vmatpush1.msra.mxu0 %v2508
    %4848 = vmatprep.subr.mxu0 %v2517
    %4849 = vmatpush1.msra.mxu0 %v2516
    %4850 = vmatprep.subr.mxu0 %v2525
    %4851 = vmatpush1.msra.mxu0 %v2524
    %4852 = vmatprep.subr.mxu0 %v2533
    %4853 = vmatpush1.msra.mxu0 %v2532
    %4854 = vmatprep.subr.mxu0 %v2541
    %4855 = vmatpush1.msra.mxu0 %v2540
    %4856 = vmatprep.subr.mxu0 %v2549
    %4857 = vmatpush1.msra.mxu0 %v2548
    %4858 = vmatprep.subr.mxu0 %v2557
    %4859 = vmatpush1.msra.mxu0 %v2556
    %4860 = vmatprep.subr.mxu0 %v2565
    %4861 = vmatpush1.msra.mxu0 %v2564
    %4862 = vmatprep.subr.mxu0 %v2573
    %4863 = vmatpush1.msra.mxu0 %v2572
    %4864 = vmatprep.subr.mxu0 %v2581
    %4865 = vmatpush1.msra.mxu0 %v2580
    %4866 = vmatprep.subr.mxu0 %v2589
    %4867 = vmatpush1.msra.mxu0 %v2588
    %4868 = vmatprep.subr.mxu0 %v2597
    %4869 = vmatpush1.msra.mxu0 %v2596
    %4870 = vmatprep.mubr.f32.mxu0 %v4803
    %4871 = vmatmul.mubr.f32.gmra.mrb[0].mxu0 %v4802
    %v4872 = vpop.f32.mrb[0].mxu0
    %v4873 = vadd.f32 0.0, %v4872
    %v4874 = vpop.f32.mrb[0].mxu0
    %v4875 = vadd.f32 0.0, %v4874
    %4876 = vdwg.mxu0
    %4877 = vmatprep.subr.mxu0 %v2351
    %4878 = vmatpush1.msra.mxu0 %v2350
    %4879 = vmatprep.subr.mxu0 %v2359
    %4880 = vmatpush1.msra.mxu0 %v2358
    %4881 = vmatprep.subr.mxu0 %v2367
    %4882 = vmatpush1.msra.mxu0 %v2366
    %4883 = vmatprep.subr.mxu0 %v2375
    %4884 = vmatpush1.msra.mxu0 %v2374
    %4885 = vmatprep.subr.mxu0 %v2383
    %4886 = vmatpush1.msra.mxu0 %v2382
    %4887 = vmatprep.subr.mxu0 %v2391
    %4888 = vmatpush1.msra.mxu0 %v2390
    %4889 = vmatprep.subr.mxu0 %v2399
    %4890 = vmatpush1.msra.mxu0 %v2398
    %4891 = vmatprep.subr.mxu0 %v2407
    %4892 = vmatpush1.msra.mxu0 %v2406
    %4893 = vmatprep.subr.mxu0 %v2415
    %4894 = vmatpush1.msra.mxu0 %v2414
    %4895 = vmatprep.subr.mxu0 %v2423
    %4896 = vmatpush1.msra.mxu0 %v2422
    %4897 = vmatprep.subr.mxu0 %v2431
    %4898 = vmatpush1.msra.mxu0 %v2430
    %4899 = vmatprep.subr.mxu0 %v2439
    %4900 = vmatpush1.msra.mxu0 %v2438
    %4901 = vmatprep.subr.mxu0 %v2447
    %4902 = vmatpush1.msra.mxu0 %v2446
    %4903 = vmatprep.subr.mxu0 %v2455
    %4904 = vmatpush1.msra.mxu0 %v2454
    %4905 = vmatprep.subr.mxu0 %v2463
    %4906 = vmatpush1.msra.mxu0 %v2462
    %4907 = vmatprep.subr.mxu0 %v2471
    %4908 = vmatpush1.msra.mxu0 %v2470
    %4909 = vmatprep.subr.mxu0 %v2479
    %4910 = vmatpush1.msra.mxu0 %v2478
    %4911 = vmatprep.subr.mxu0 %v2487
    %4912 = vmatpush1.msra.mxu0 %v2486
    %4913 = vmatprep.subr.mxu0 %v2495
    %4914 = vmatpush1.msra.mxu0 %v2494
    %4915 = vmatprep.subr.mxu0 %v2503
    %4916 = vmatpush1.msra.mxu0 %v2502
    %4917 = vmatprep.subr.mxu0 %v2511
    %4918 = vmatpush1.msra.mxu0 %v2510
    %4919 = vmatprep.subr.mxu0 %v2519
    %4920 = vmatpush1.msra.mxu0 %v2518
    %4921 = vmatprep.subr.mxu0 %v2527
    %4922 = vmatpush1.msra.mxu0 %v2526
    %4923 = vmatprep.subr.mxu0 %v2535
    %4924 = vmatpush1.msra.mxu0 %v2534
    %4925 = vmatprep.subr.mxu0 %v2543
    %4926 = vmatpush1.msra.mxu0 %v2542
    %4927 = vmatprep.subr.mxu0 %v2551
    %4928 = vmatpush1.msra.mxu0 %v2550
    %4929 = vmatprep.subr.mxu0 %v2559
    %4930 = vmatpush1.msra.mxu0 %v2558
    %4931 = vmatprep.subr.mxu0 %v2567
    %4932 = vmatpush1.msra.mxu0 %v2566
    %4933 = vmatprep.subr.mxu0 %v2575
    %4934 = vmatpush1.msra.mxu0 %v2574
    %4935 = vmatprep.subr.mxu0 %v2583
    %4936 = vmatpush1.msra.mxu0 %v2582
    %4937 = vmatprep.subr.mxu0 %v2591
    %4938 = vmatpush1.msra.mxu0 %v2590
    %4939 = vmatprep.subr.mxu0 %v2599
    %4940 = vmatpush1.msra.mxu0 %v2598
    %4941 = vmatprep.mubr.f32.mxu0 %v4803
    %4942 = vmatmul.mubr.f32.gmra.mrb[0].mxu0 %v4802
    %v4943 = vpop.f32.mrb[0].mxu0
    %v4944 = vadd.f32 0.0, %v4943
    %v4945 = vpop.f32.mrb[0].mxu0
    %v4946 = vadd.f32 0.0, %v4945
    %4947 = vdwg.mxu0
    %4948 = vmatprep.subr.mxu0 %v2353
    %4949 = vmatpush1.msra.mxu0 %v2352
    %4950 = vmatprep.subr.mxu0 %v2361
    %4951 = vmatpush1.msra.mxu0 %v2360
    %4952 = vmatprep.subr.mxu0 %v2369
    %4953 = vmatpush1.msra.mxu0 %v2368
    %4954 = vmatprep.subr.mxu0 %v2377
    %4955 = vmatpush1.msra.mxu0 %v2376
    %4956 = vmatprep.subr.mxu0 %v2385
    %4957 = vmatpush1.msra.mxu0 %v2384
    %4958 = vmatprep.subr.mxu0 %v2393
    %4959 = vmatpush1.msra.mxu0 %v2392
    %4960 = vmatprep.subr.mxu0 %v2401
    %4961 = vmatpush1.msra.mxu0 %v2400
    %4962 = vmatprep.subr.mxu0 %v2409
    %4963 = vmatpush1.msra.mxu0 %v2408
    %4964 = vmatprep.subr.mxu0 %v2417
    %4965 = vmatpush1.msra.mxu0 %v2416
    %4966 = vmatprep.subr.mxu0 %v2425
    %4967 = vmatpush1.msra.mxu0 %v2424
    %4968 = vmatprep.subr.mxu0 %v2433
    %4969 = vmatpush1.msra.mxu0 %v2432
    %4970 = vmatprep.subr.mxu0 %v2441
    %4971 = vmatpush1.msra.mxu0 %v2440
    %4972 = vmatprep.subr.mxu0 %v2449
    %4973 = vmatpush1.msra.mxu0 %v2448
    %4974 = vmatprep.subr.mxu0 %v2457
    %4975 = vmatpush1.msra.mxu0 %v2456
    %4976 = vmatprep.subr.mxu0 %v2465
    %4977 = vmatpush1.msra.mxu0 %v2464
    %4978 = vmatprep.subr.mxu0 %v2473
    %4979 = vmatpush1.msra.mxu0 %v2472
    %4980 = vmatprep.subr.mxu0 %v2481
    %4981 = vmatpush1.msra.mxu0 %v2480
    %4982 = vmatprep.subr.mxu0 %v2489
    %4983 = vmatpush1.msra.mxu0 %v2488
    %4984 = vmatprep.subr.mxu0 %v2497
    %4985 = vmatpush1.msra.mxu0 %v2496
    %4986 = vmatprep.subr.mxu0 %v2505
    %4987 = vmatpush1.msra.mxu0 %v2504
    %4988 = vmatprep.subr.mxu0 %v2513
    %4989 = vmatpush1.msra.mxu0 %v2512
    %4990 = vmatprep.subr.mxu0 %v2521
    %4991 = vmatpush1.msra.mxu0 %v2520
    %4992 = vmatprep.subr.mxu0 %v2529
    %4993 = vmatpush1.msra.mxu0 %v2528
    %4994 = vmatprep.subr.mxu0 %v2537
    %4995 = vmatpush1.msra.mxu0 %v2536
    %4996 = vmatprep.subr.mxu0 %v2545
    %4997 = vmatpush1.msra.mxu0 %v2544
    %4998 = vmatprep.subr.mxu0 %v2553
    %4999 = vmatpush1.msra.mxu0 %v2552
    %5000 = vmatprep.subr.mxu0 %v2561
    %5001 = vmatpush1.msra.mxu0 %v2560
    %5002 = vmatprep.subr.mxu0 %v2569
    %5003 = vmatpush1.msra.mxu0 %v2568
    %5004 = vmatprep.subr.mxu0 %v2577
    %5005 = vmatpush1.msra.mxu0 %v2576
    %5006 = vmatprep.subr.mxu0 %v2585
    %5007 = vmatpush1.msra.mxu0 %v2584
    %5008 = vmatprep.subr.mxu0 %v2593
    %5009 = vmatpush1.msra.mxu0 %v2592
    %5010 = vmatprep.subr.mxu0 %v2601
    %5011 = vmatpush1.msra.mxu0 %v2600
    %5012 = vmatprep.mubr.f32.mxu0 %v4803
    %5013 = vmatmul.mubr.f32.gmra.mrb[0].mxu0 %v4802
    %v5014 = vpop.f32.mrb[0].mxu0
    %v5015 = vadd.f32 0.0, %v5014
    %v5016 = vpop.f32.mrb[0].mxu0
    %v5017 = vadd.f32 0.0, %v5016
    %5018 = vdwg.mxu0
    %5019 = vmatprep.subr.mxu0 %v2355
    %5020 = vmatpush1.msra.mxu0 %v2354
    %5021 = vmatprep.subr.mxu0 %v2363
    %5022 = vmatpush1.msra.mxu0 %v2362
    %5023 = vmatprep.subr.mxu0 %v2371
    %5024 = vmatpush1.msra.mxu0 %v2370
    %5025 = vmatprep.subr.mxu0 %v2379
    %5026 = vmatpush1.msra.mxu0 %v2378
    %5027 = vmatprep.subr.mxu0 %v2387
    %5028 = vmatpush1.msra.mxu0 %v2386
    %5029 = vmatprep.subr.mxu0 %v2395
    %5030 = vmatpush1.msra.mxu0 %v2394
    %5031 = vmatprep.subr.mxu0 %v2403
    %5032 = vmatpush1.msra.mxu0 %v2402
    %5033 = vmatprep.subr.mxu0 %v2411
    %5034 = vmatpush1.msra.mxu0 %v2410
    %5035 = vmatprep.subr.mxu0 %v2419
    %5036 = vmatpush1.msra.mxu0 %v2418
    %5037 = vmatprep.subr.mxu0 %v2427
    %5038 = vmatpush1.msra.mxu0 %v2426
    %5039 = vmatprep.subr.mxu0 %v2435
    %5040 = vmatpush1.msra.mxu0 %v2434
    %5041 = vmatprep.subr.mxu0 %v2443
    %5042 = vmatpush1.msra.mxu0 %v2442
    %5043 = vmatprep.subr.mxu0 %v2451
    %5044 = vmatpush1.msra.mxu0 %v2450
    %5045 = vmatprep.subr.mxu0 %v2459
    %5046 = vmatpush1.msra.mxu0 %v2458
    %5047 = vmatprep.subr.mxu0 %v2467
    %5048 = vmatpush1.msra.mxu0 %v2466
    %5049 = vmatprep.subr.mxu0 %v2475
    %5050 = vmatpush1.msra.mxu0 %v2474
    %5051 = vmatprep.subr.mxu0 %v2483
    %5052 = vmatpush1.msra.mxu0 %v2482
    %5053 = vmatprep.subr.mxu0 %v2491
    %5054 = vmatpush1.msra.mxu0 %v2490
    %5055 = vmatprep.subr.mxu0 %v2499
    %5056 = vmatpush1.msra.mxu0 %v2498
    %5057 = vmatprep.subr.mxu0 %v2507
    %5058 = vmatpush1.msra.mxu0 %v2506
    %5059 = vmatprep.subr.mxu0 %v2515
    %5060 = vmatpush1.msra.mxu0 %v2514
    %5061 = vmatprep.subr.mxu0 %v2523
    %5062 = vmatpush1.msra.mxu0 %v2522
    %5063 = vmatprep.subr.mxu0 %v2531
    %5064 = vmatpush1.msra.mxu0 %v2530
    %5065 = vmatprep.subr.mxu0 %v2539
    %5066 = vmatpush1.msra.mxu0 %v2538
    %5067 = vmatprep.subr.mxu0 %v2547
    %5068 = vmatpush1.msra.mxu0 %v2546
    %5069 = vmatprep.subr.mxu0 %v2555
    %5070 = vmatpush1.msra.mxu0 %v2554
    %5071 = vmatprep.subr.mxu0 %v2563
    %5072 = vmatpush1.msra.mxu0 %v2562
    %5073 = vmatprep.subr.mxu0 %v2571
    %5074 = vmatpush1.msra.mxu0 %v2570
    %5075 = vmatprep.subr.mxu0 %v2579
    %5076 = vmatpush1.msra.mxu0 %v2578
    %5077 = vmatprep.subr.mxu0 %v2587
    %5078 = vmatpush1.msra.mxu0 %v2586
    %5079 = vmatprep.subr.mxu0 %v2595
    %5080 = vmatpush1.msra.mxu0 %v2594
    %5081 = vmatprep.subr.mxu0 %v2603
    %5082 = vmatpush1.msra.mxu0 %v2602
    %5083 = vmatprep.mubr.f32.mxu0 %v4803
    %5084 = vmatmul.mubr.f32.gmra.mrb[0].mxu0 %v4802
    %v5085 = vpop.f32.mrb[0].mxu0
    %v5086 = vadd.f32 0.0, %v5085
    %v5087 = vpop.f32.mrb[0].mxu0
    %v5088 = vadd.f32 0.0, %v5087
    %5089 = vdwg.mxu0
    %v5098 = vrot.slane %v4873, 4
    %v5099 = vrot.slane %v4875, 4
    %v5100 = vrot.slane %v4944, 4
    %v5101 = vrot.slane %v4946, 4
    %v5102 = vrot.slane %v5015, 4
    %v5103 = vrot.slane %v5017, 4
    %v5104 = vrot.slane %v5086, 4
    %v5105 = vrot.slane %v5088, 4
    %v5114 = vadd.f32 %v2113, %v5098
    %v5115 = vadd.f32 %v2115, %v5099
    %v5116 = vadd.f32 %v2190, %v5100
    %v5117 = vadd.f32 %v2192, %v5101
    %v5118 = vadd.f32 %v2267, %v5102
    %v5119 = vadd.f32 %v2269, %v5103
    %v5120 = vadd.f32 %v2344, %v5104
    %v5121 = vadd.f32 %v2346, %v5105
    %v5122 = vxor.u32 %v5114, 2147483648
    %v5123 = vxor.u32 %v5115, 2147483648
    %v5124 = vmul.f32 %v5122, 1.442695
    %v5125 = vpow.pop %v5124
    %v5126 = vmul.f32 %v5123, 1.442695
    %v5127 = vpow.pop %v5126
    %v5128 = vadd.f32 %v5125, 1.0
    %v5129 = vadd.f32 %v5127, 1.0
    %v5130 = vrcp.pop %v5128
    %v5131 = vmul.f32 1.0, %v5130
    %v5132 = vrcp.pop %v5129
    %v5133 = vmul.f32 1.0, %v5132
    %v5134 = vxor.u32 %v5116, 2147483648
    %v5135 = vxor.u32 %v5117, 2147483648
    %v5136 = vmul.f32 %v5134, 1.442695
    %v5137 = vpow.pop %v5136
    %v5138 = vmul.f32 %v5135, 1.442695
    %v5139 = vpow.pop %v5138
    %v5140 = vadd.f32 %v5137, 1.0
    %v5141 = vadd.f32 %v5139, 1.0
    %v5142 = vrcp.pop %v5140
    %v5143 = vmul.f32 1.0, %v5142
    %v5144 = vrcp.pop %v5141
    %v5145 = vmul.f32 1.0, %v5144
    %v5146 = vtanh.pop %v5118
    %v5147 = vtanh.pop %v5119
    %v5148 = vxor.u32 %v5120, 2147483648
    %v5149 = vxor.u32 %v5121, 2147483648
    %v5150 = vmul.f32 %v5148, 1.442695
    %v5151 = vpow.pop %v5150
    %v5152 = vmul.f32 %v5149, 1.442695
    %v5153 = vpow.pop %v5152
    %v5154 = vadd.f32 %v5151, 1.0
    %v5155 = vadd.f32 %v5153, 1.0
    %v5156 = vrcp.pop %v5154
    %v5157 = vmul.f32 1.0, %v5156
    %v5158 = vrcp.pop %v5155
    %v5159 = vmul.f32 1.0, %v5158
    %v5162 = vrot.slane %v4792, 6
    %v5163 = vrot.slane %v4793, 6
    %v5166 = vmul.f32 %v5143, %v5162
    %v5167 = vmul.f32 %v5145, %v5163
    %v5168 = vmul.f32 %v5131, %v5146
    %v5169 = vmul.f32 %v5133, %v5147
    %v5170 = vadd.f32 %v5166, %v5168
    %v5171 = vadd.f32 %v5167, %v5169
    %v5172 = vtanh.pop %v5170
    %v5173 = vtanh.pop %v5171
    %v5174 = vmul.f32 %v5157, %v5172
    %v5175 = vmul.f32 %v5159, %v5173
    %5176 = vst [vmem:[#allocation3 + $0x10] sm:$0x30] %v5174
    %5177 = vst [vmem:[#allocation3 + $0x18] sm:$0x30] %v5175
    %v5180 = vrot.slane %v5174, 4
    %v5181 = vrot.slane %v5175, 4
    %5184 = vmatprep.subr.mxu0 %v2349
    %5185 = vmatpush1.msra.mxu0 %v2348
    %5186 = vmatprep.subr.mxu0 %v2357
    %5187 = vmatpush1.msra.mxu0 %v2356
    %5188 = vmatprep.subr.mxu0 %v2365
    %5189 = vmatpush1.msra.mxu0 %v2364
    %5190 = vmatprep.subr.mxu0 %v2373
    %5191 = vmatpush1.msra.mxu0 %v2372
    %5192 = vmatprep.subr.mxu0 %v2381
    %5193 = vmatpush1.msra.mxu0 %v2380
    %5194 = vmatprep.subr.mxu0 %v2389
    %5195 = vmatpush1.msra.mxu0 %v2388
    %5196 = vmatprep.subr.mxu0 %v2397
    %5197 = vmatpush1.msra.mxu0 %v2396
    %5198 = vmatprep.subr.mxu0 %v2405
    %5199 = vmatpush1.msra.mxu0 %v2404
    %5200 = vmatprep.subr.mxu0 %v2413
    %5201 = vmatpush1.msra.mxu0 %v2412
    %5202 = vmatprep.subr.mxu0 %v2421
    %5203 = vmatpush1.msra.mxu0 %v2420
    %5204 = vmatprep.subr.mxu0 %v2429
    %5205 = vmatpush1.msra.mxu0 %v2428
    %5206 = vmatprep.subr.mxu0 %v2437
    %5207 = vmatpush1.msra.mxu0 %v2436
    %5208 = vmatprep.subr.mxu0 %v2445
    %5209 = vmatpush1.msra.mxu0 %v2444
    %5210 = vmatprep.subr.mxu0 %v2453
    %5211 = vmatpush1.msra.mxu0 %v2452
    %5212 = vmatprep.subr.mxu0 %v2461
    %5213 = vmatpush1.msra.mxu0 %v2460
    %5214 = vmatprep.subr.mxu0 %v2469
    %5215 = vmatpush1.msra.mxu0 %v2468
    %5216 = vmatprep.subr.mxu0 %v2477
    %5217 = vmatpush1.msra.mxu0 %v2476
    %5218 = vmatprep.subr.mxu0 %v2485
    %5219 = vmatpush1.msra.mxu0 %v2484
    %5220 = vmatprep.subr.mxu0 %v2493
    %5221 = vmatpush1.msra.mxu0 %v2492
    %5222 = vmatprep.subr.mxu0 %v2501
    %5223 = vmatpush1.msra.mxu0 %v2500
    %5224 = vmatprep.subr.mxu0 %v2509
    %5225 = vmatpush1.msra.mxu0 %v2508
    %5226 = vmatprep.subr.mxu0 %v2517
    %5227 = vmatpush1.msra.mxu0 %v2516
    %5228 = vmatprep.subr.mxu0 %v2525
    %5229 = vmatpush1.msra.mxu0 %v2524
    %5230 = vmatprep.subr.mxu0 %v2533
    %5231 = vmatpush1.msra.mxu0 %v2532
    %5232 = vmatprep.subr.mxu0 %v2541
    %5233 = vmatpush1.msra.mxu0 %v2540
    %5234 = vmatprep.subr.mxu0 %v2549
    %5235 = vmatpush1.msra.mxu0 %v2548
    %5236 = vmatprep.subr.mxu0 %v2557
    %5237 = vmatpush1.msra.mxu0 %v2556
    %5238 = vmatprep.subr.mxu0 %v2565
    %5239 = vmatpush1.msra.mxu0 %v2564
    %5240 = vmatprep.subr.mxu0 %v2573
    %5241 = vmatpush1.msra.mxu0 %v2572
    %5242 = vmatprep.subr.mxu0 %v2581
    %5243 = vmatpush1.msra.mxu0 %v2580
    %5244 = vmatprep.subr.mxu0 %v2589
    %5245 = vmatpush1.msra.mxu0 %v2588
    %5246 = vmatprep.subr.mxu0 %v2597
    %5247 = vmatpush1.msra.mxu0 %v2596
    %5248 = vmatprep.mubr.f32.mxu0 %v5181
    %5249 = vmatmul.mubr.f32.gmra.mrb[0].mxu0 %v5180
    %v5250 = vpop.f32.mrb[0].mxu0
    %v5251 = vadd.f32 0.0, %v5250
    %v5252 = vpop.f32.mrb[0].mxu0
    %v5253 = vadd.f32 0.0, %v5252
    %5254 = vdwg.mxu0
    %5255 = vmatprep.subr.mxu0 %v2351
    %5256 = vmatpush1.msra.mxu0 %v2350
    %5257 = vmatprep.subr.mxu0 %v2359
    %5258 = vmatpush1.msra.mxu0 %v2358
    %5259 = vmatprep.subr.mxu0 %v2367
    %5260 = vmatpush1.msra.mxu0 %v2366
    %5261 = vmatprep.subr.mxu0 %v2375
    %5262 = vmatpush1.msra.mxu0 %v2374
    %5263 = vmatprep.subr.mxu0 %v2383
    %5264 = vmatpush1.msra.mxu0 %v2382
    %5265 = vmatprep.subr.mxu0 %v2391
    %5266 = vmatpush1.msra.mxu0 %v2390
    %5267 = vmatprep.subr.mxu0 %v2399
    %5268 = vmatpush1.msra.mxu0 %v2398
    %5269 = vmatprep.subr.mxu0 %v2407
    %5270 = vmatpush1.msra.mxu0 %v2406
    %5271 = vmatprep.subr.mxu0 %v2415
    %5272 = vmatpush1.msra.mxu0 %v2414
    %5273 = vmatprep.subr.mxu0 %v2423
    %5274 = vmatpush1.msra.mxu0 %v2422
    %5275 = vmatprep.subr.mxu0 %v2431
    %5276 = vmatpush1.msra.mxu0 %v2430
    %5277 = vmatprep.subr.mxu0 %v2439
    %5278 = vmatpush1.msra.mxu0 %v2438
    %5279 = vmatprep.subr.mxu0 %v2447
    %5280 = vmatpush1.msra.mxu0 %v2446
    %5281 = vmatprep.subr.mxu0 %v2455
    %5282 = vmatpush1.msra.mxu0 %v2454
    %5283 = vmatprep.subr.mxu0 %v2463
    %5284 = vmatpush1.msra.mxu0 %v2462
    %5285 = vmatprep.subr.mxu0 %v2471
    %5286 = vmatpush1.msra.mxu0 %v2470
    %5287 = vmatprep.subr.mxu0 %v2479
    %5288 = vmatpush1.msra.mxu0 %v2478
    %5289 = vmatprep.subr.mxu0 %v2487
    %5290 = vmatpush1.msra.mxu0 %v2486
    %5291 = vmatprep.subr.mxu0 %v2495
    %5292 = vmatpush1.msra.mxu0 %v2494
    %5293 = vmatprep.subr.mxu0 %v2503
    %5294 = vmatpush1.msra.mxu0 %v2502
    %5295 = vmatprep.subr.mxu0 %v2511
    %5296 = vmatpush1.msra.mxu0 %v2510
    %5297 = vmatprep.subr.mxu0 %v2519
    %5298 = vmatpush1.msra.mxu0 %v2518
    %5299 = vmatprep.subr.mxu0 %v2527
    %5300 = vmatpush1.msra.mxu0 %v2526
    %5301 = vmatprep.subr.mxu0 %v2535
    %5302 = vmatpush1.msra.mxu0 %v2534
    %5303 = vmatprep.subr.mxu0 %v2543
    %5304 = vmatpush1.msra.mxu0 %v2542
    %5305 = vmatprep.subr.mxu0 %v2551
    %5306 = vmatpush1.msra.mxu0 %v2550
    %5307 = vmatprep.subr.mxu0 %v2559
    %5308 = vmatpush1.msra.mxu0 %v2558
    %5309 = vmatprep.subr.mxu0 %v2567
    %5310 = vmatpush1.msra.mxu0 %v2566
    %5311 = vmatprep.subr.mxu0 %v2575
    %5312 = vmatpush1.msra.mxu0 %v2574
    %5313 = vmatprep.subr.mxu0 %v2583
    %5314 = vmatpush1.msra.mxu0 %v2582
    %5315 = vmatprep.subr.mxu0 %v2591
    %5316 = vmatpush1.msra.mxu0 %v2590
    %5317 = vmatprep.subr.mxu0 %v2599
    %5318 = vmatpush1.msra.mxu0 %v2598
    %5319 = vmatprep.mubr.f32.mxu0 %v5181
    %5320 = vmatmul.mubr.f32.gmra.mrb[0].mxu0 %v5180
    %v5321 = vpop.f32.mrb[0].mxu0
    %v5322 = vadd.f32 0.0, %v5321
    %v5323 = vpop.f32.mrb[0].mxu0
    %v5324 = vadd.f32 0.0, %v5323
    %5325 = vdwg.mxu0
    %5326 = vmatprep.subr.mxu0 %v2353
    %5327 = vmatpush1.msra.mxu0 %v2352
    %5328 = vmatprep.subr.mxu0 %v2361
    %5329 = vmatpush1.msra.mxu0 %v2360
    %5330 = vmatprep.subr.mxu0 %v2369
    %5331 = vmatpush1.msra.mxu0 %v2368
    %5332 = vmatprep.subr.mxu0 %v2377
    %5333 = vmatpush1.msra.mxu0 %v2376
    %5334 = vmatprep.subr.mxu0 %v2385
    %5335 = vmatpush1.msra.mxu0 %v2384
    %5336 = vmatprep.subr.mxu0 %v2393
    %5337 = vmatpush1.msra.mxu0 %v2392
    %5338 = vmatprep.subr.mxu0 %v2401
    %5339 = vmatpush1.msra.mxu0 %v2400
    %5340 = vmatprep.subr.mxu0 %v2409
    %5341 = vmatpush1.msra.mxu0 %v2408
    %5342 = vmatprep.subr.mxu0 %v2417
    %5343 = vmatpush1.msra.mxu0 %v2416
    %5344 = vmatprep.subr.mxu0 %v2425
    %5345 = vmatpush1.msra.mxu0 %v2424
    %5346 = vmatprep.subr.mxu0 %v2433
    %5347 = vmatpush1.msra.mxu0 %v2432
    %5348 = vmatprep.subr.mxu0 %v2441
    %5349 = vmatpush1.msra.mxu0 %v2440
    %5350 = vmatprep.subr.mxu0 %v2449
    %5351 = vmatpush1.msra.mxu0 %v2448
    %5352 = vmatprep.subr.mxu0 %v2457
    %5353 = vmatpush1.msra.mxu0 %v2456
    %5354 = vmatprep.subr.mxu0 %v2465
    %5355 = vmatpush1.msra.mxu0 %v2464
    %5356 = vmatprep.subr.mxu0 %v2473
    %5357 = vmatpush1.msra.mxu0 %v2472
    %5358 = vmatprep.subr.mxu0 %v2481
    %5359 = vmatpush1.msra.mxu0 %v2480
    %5360 = vmatprep.subr.mxu0 %v2489
    %5361 = vmatpush1.msra.mxu0 %v2488
    %5362 = vmatprep.subr.mxu0 %v2497
    %5363 = vmatpush1.msra.mxu0 %v2496
    %5364 = vmatprep.subr.mxu0 %v2505
    %5365 = vmatpush1.msra.mxu0 %v2504
    %5366 = vmatprep.subr.mxu0 %v2513
    %5367 = vmatpush1.msra.mxu0 %v2512
    %5368 = vmatprep.subr.mxu0 %v2521
    %5369 = vmatpush1.msra.mxu0 %v2520
    %5370 = vmatprep.subr.mxu0 %v2529
    %5371 = vmatpush1.msra.mxu0 %v2528
    %5372 = vmatprep.subr.mxu0 %v2537
    %5373 = vmatpush1.msra.mxu0 %v2536
    %5374 = vmatprep.subr.mxu0 %v2545
    %5375 = vmatpush1.msra.mxu0 %v2544
    %5376 = vmatprep.subr.mxu0 %v2553
    %5377 = vmatpush1.msra.mxu0 %v2552
    %5378 = vmatprep.subr.mxu0 %v2561
    %5379 = vmatpush1.msra.mxu0 %v2560
    %5380 = vmatprep.subr.mxu0 %v2569
    %5381 = vmatpush1.msra.mxu0 %v2568
    %5382 = vmatprep.subr.mxu0 %v2577
    %5383 = vmatpush1.msra.mxu0 %v2576
    %5384 = vmatprep.subr.mxu0 %v2585
    %5385 = vmatpush1.msra.mxu0 %v2584
    %5386 = vmatprep.subr.mxu0 %v2593
    %5387 = vmatpush1.msra.mxu0 %v2592
    %5388 = vmatprep.subr.mxu0 %v2601
    %5389 = vmatpush1.msra.mxu0 %v2600
    %5390 = vmatprep.mubr.f32.mxu0 %v5181
    %5391 = vmatmul.mubr.f32.gmra.mrb[0].mxu0 %v5180
    %v5392 = vpop.f32.mrb[0].mxu0
    %v5393 = vadd.f32 0.0, %v5392
    %v5394 = vpop.f32.mrb[0].mxu0
    %v5395 = vadd.f32 0.0, %v5394
    %5396 = vdwg.mxu0
    %5397 = vmatprep.subr.mxu0 %v2355
    %5398 = vmatpush1.msra.mxu0 %v2354
    %5399 = vmatprep.subr.mxu0 %v2363
    %5400 = vmatpush1.msra.mxu0 %v2362
    %5401 = vmatprep.subr.mxu0 %v2371
    %5402 = vmatpush1.msra.mxu0 %v2370
    %5403 = vmatprep.subr.mxu0 %v2379
    %5404 = vmatpush1.msra.mxu0 %v2378
    %5405 = vmatprep.subr.mxu0 %v2387
    %5406 = vmatpush1.msra.mxu0 %v2386
    %5407 = vmatprep.subr.mxu0 %v2395
    %5408 = vmatpush1.msra.mxu0 %v2394
    %5409 = vmatprep.subr.mxu0 %v2403
    %5410 = vmatpush1.msra.mxu0 %v2402
    %5411 = vmatprep.subr.mxu0 %v2411
    %5412 = vmatpush1.msra.mxu0 %v2410
    %5413 = vmatprep.subr.mxu0 %v2419
    %5414 = vmatpush1.msra.mxu0 %v2418
    %5415 = vmatprep.subr.mxu0 %v2427
    %5416 = vmatpush1.msra.mxu0 %v2426
    %5417 = vmatprep.subr.mxu0 %v2435
    %5418 = vmatpush1.msra.mxu0 %v2434
    %5419 = vmatprep.subr.mxu0 %v2443
    %5420 = vmatpush1.msra.mxu0 %v2442
    %5421 = vmatprep.subr.mxu0 %v2451
    %5422 = vmatpush1.msra.mxu0 %v2450
    %5423 = vmatprep.subr.mxu0 %v2459
    %5424 = vmatpush1.msra.mxu0 %v2458
    %5425 = vmatprep.subr.mxu0 %v2467
    %5426 = vmatpush1.msra.mxu0 %v2466
    %5427 = vmatprep.subr.mxu0 %v2475
    %5428 = vmatpush1.msra.mxu0 %v2474
    %5429 = vmatprep.subr.mxu0 %v2483
    %5430 = vmatpush1.msra.mxu0 %v2482
    %5431 = vmatprep.subr.mxu0 %v2491
    %5432 = vmatpush1.msra.mxu0 %v2490
    %5433 = vmatprep.subr.mxu0 %v2499
    %5434 = vmatpush1.msra.mxu0 %v2498
    %5435 = vmatprep.subr.mxu0 %v2507
    %5436 = vmatpush1.msra.mxu0 %v2506
    %5437 = vmatprep.subr.mxu0 %v2515
    %5438 = vmatpush1.msra.mxu0 %v2514
    %5439 = vmatprep.subr.mxu0 %v2523
    %5440 = vmatpush1.msra.mxu0 %v2522
    %5441 = vmatprep.subr.mxu0 %v2531
    %5442 = vmatpush1.msra.mxu0 %v2530
    %5443 = vmatprep.subr.mxu0 %v2539
    %5444 = vmatpush1.msra.mxu0 %v2538
    %5445 = vmatprep.subr.mxu0 %v2547
    %5446 = vmatpush1.msra.mxu0 %v2546
    %5447 = vmatprep.subr.mxu0 %v2555
    %5448 = vmatpush1.msra.mxu0 %v2554
    %5449 = vmatprep.subr.mxu0 %v2563
    %5450 = vmatpush1.msra.mxu0 %v2562
    %5451 = vmatprep.subr.mxu0 %v2571
    %5452 = vmatpush1.msra.mxu0 %v2570
    %5453 = vmatprep.subr.mxu0 %v2579
    %5454 = vmatpush1.msra.mxu0 %v2578
    %5455 = vmatprep.subr.mxu0 %v2587
    %5456 = vmatpush1.msra.mxu0 %v2586
    %5457 = vmatprep.subr.mxu0 %v2595
    %5458 = vmatpush1.msra.mxu0 %v2594
    %5459 = vmatprep.subr.mxu0 %v2603
    %5460 = vmatpush1.msra.mxu0 %v2602
    %5461 = vmatprep.mubr.f32.mxu0 %v5181
    %5462 = vmatmul.mubr.f32.gmra.mrb[0].mxu0 %v5180
    %v5463 = vpop.f32.mrb[0].mxu0
    %v5464 = vadd.f32 0.0, %v5463
    %v5465 = vpop.f32.mrb[0].mxu0
    %v5466 = vadd.f32 0.0, %v5465
    %5467 = vdwg.mxu0
    %v5476 = vrot.slane %v5251, 2
    %v5477 = vrot.slane %v5253, 2
    %v5478 = vrot.slane %v5322, 2
    %v5479 = vrot.slane %v5324, 2
    %v5480 = vrot.slane %v5393, 2
    %v5481 = vrot.slane %v5395, 2
    %v5482 = vrot.slane %v5464, 2
    %v5483 = vrot.slane %v5466, 2
    %v5492 = vadd.f32 %v2113, %v5476
    %v5493 = vadd.f32 %v2115, %v5477
    %v5494 = vadd.f32 %v2190, %v5478
    %v5495 = vadd.f32 %v2192, %v5479
    %v5496 = vadd.f32 %v2267, %v5480
    %v5497 = vadd.f32 %v2269, %v5481
    %v5498 = vadd.f32 %v2344, %v5482
    %v5499 = vadd.f32 %v2346, %v5483
    %v5500 = vxor.u32 %v5492, 2147483648
    %v5501 = vxor.u32 %v5493, 2147483648
    %v5502 = vmul.f32 %v5500, 1.442695
    %v5503 = vpow.pop %v5502
    %v5504 = vmul.f32 %v5501, 1.442695
    %v5505 = vpow.pop %v5504
    %v5506 = vadd.f32 %v5503, 1.0
    %v5507 = vadd.f32 %v5505, 1.0
    %v5508 = vrcp.pop %v5506
    %v5509 = vmul.f32 1.0, %v5508
    %v5510 = vrcp.pop %v5507
    %v5511 = vmul.f32 1.0, %v5510
    %v5512 = vxor.u32 %v5494, 2147483648
    %v5513 = vxor.u32 %v5495, 2147483648
    %v5514 = vmul.f32 %v5512, 1.442695
    %v5515 = vpow.pop %v5514
    %v5516 = vmul.f32 %v5513, 1.442695
    %v5517 = vpow.pop %v5516
    %v5518 = vadd.f32 %v5515, 1.0
    %v5519 = vadd.f32 %v5517, 1.0
    %v5520 = vrcp.pop %v5518
    %v5521 = vmul.f32 1.0, %v5520
    %v5522 = vrcp.pop %v5519
    %v5523 = vmul.f32 1.0, %v5522
    %v5524 = vtanh.pop %v5496
    %v5525 = vtanh.pop %v5497
    %v5526 = vxor.u32 %v5498, 2147483648
    %v5527 = vxor.u32 %v5499, 2147483648
    %v5528 = vmul.f32 %v5526, 1.442695
    %v5529 = vpow.pop %v5528
    %v5530 = vmul.f32 %v5527, 1.442695
    %v5531 = vpow.pop %v5530
    %v5532 = vadd.f32 %v5529, 1.0
    %v5533 = vadd.f32 %v5531, 1.0
    %v5534 = vrcp.pop %v5532
    %v5535 = vmul.f32 1.0, %v5534
    %v5536 = vrcp.pop %v5533
    %v5537 = vmul.f32 1.0, %v5536
    %v5540 = vrot.slane %v5170, 6
    %v5541 = vrot.slane %v5171, 6
    %v5544 = vmul.f32 %v5521, %v5540
    %v5545 = vmul.f32 %v5523, %v5541
    %v5546 = vmul.f32 %v5509, %v5524
    %v5547 = vmul.f32 %v5511, %v5525
    %v5548 = vadd.f32 %v5544, %v5546
    %v5549 = vadd.f32 %v5545, %v5547
    %v5550 = vtanh.pop %v5548
    %v5551 = vtanh.pop %v5549
    %v5552 = vmul.f32 %v5535, %v5550
    %v5553 = vmul.f32 %v5537, %v5551
    %5554 = vst [vmem:[#allocation3 + $0x10] sm:$0xc0] %v5552
    %5555 = vst [vmem:[#allocation3 + $0x18] sm:$0xc0] %v5553
    %v5556 = vld [vmem:[#allocation3] sm:$0xff]
    %v5557 = vld [vmem:[#allocation3 + $0x8] sm:$0xff]
    %v5558 = vld [vmem:[#allocation3 + $0x10] sm:$0xff]
    %v5559 = vld [vmem:[#allocation3 + $0x18] sm:$0xff]
    %v5560 = vld [vmem:[#allocation10] sm:$0xff]
    %v5561 = vld [vmem:[#allocation10 + $0x8] sm:$0xff]
    %v5562 = vld [vmem:[#allocation10 + $0x10] sm:$0xff]
    %v5563 = vld [vmem:[#allocation10 + $0x18] sm:$0xff]
    %v5564 = vld [vmem:[#allocation10 + $0x20] sm:$0xff]
    %v5565 = vld [vmem:[#allocation10 + $0x28] sm:$0xff]
    %v5566 = vld [vmem:[#allocation10 + $0x30] sm:$0xff]
    %v5567 = vld [vmem:[#allocation10 + $0x38] sm:$0xff]
    %v5568 = vld [vmem:[#allocation10 + $0x40] sm:$0xff]
    %v5569 = vld [vmem:[#allocation10 + $0x48] sm:$0xff]
    %v5570 = vld [vmem:[#allocation10 + $0x50] sm:$0xff]
    %v5571 = vld [vmem:[#allocation10 + $0x58] sm:$0xff]
    %v5572 = vld [vmem:[#allocation10 + $0x60] sm:$0xff]
    %v5573 = vld [vmem:[#allocation10 + $0x68] sm:$0xff]
    %v5574 = vld [vmem:[#allocation10 + $0x70] sm:$0xff]
    %v5575 = vld [vmem:[#allocation10 + $0x78] sm:$0xff]
    %v5576 = vld [vmem:[#allocation10 + $0x80] sm:$0xff]
    %v5577 = vld [vmem:[#allocation10 + $0x88] sm:$0xff]
    %v5578 = vld [vmem:[#allocation10 + $0x90] sm:$0xff]
    %v5579 = vld [vmem:[#allocation10 + $0x98] sm:$0xff]
    %v5580 = vld [vmem:[#allocation10 + $0xa0] sm:$0xff]
    %v5581 = vld [vmem:[#allocation10 + $0xa8] sm:$0xff]
    %v5582 = vld [vmem:[#allocation10 + $0xb0] sm:$0xff]
    %v5583 = vld [vmem:[#allocation10 + $0xb8] sm:$0xff]
    %v5584 = vld [vmem:[#allocation10 + $0xc0] sm:$0xff]
    %v5585 = vld [vmem:[#allocation10 + $0xc8] sm:$0xff]
    %v5586 = vld [vmem:[#allocation10 + $0xd0] sm:$0xff]
    %v5587 = vld [vmem:[#allocation10 + $0xd8] sm:$0xff]
    %v5588 = vld [vmem:[#allocation10 + $0xe0] sm:$0xff]
    %v5589 = vld [vmem:[#allocation10 + $0xe8] sm:$0xff]
    %v5590 = vld [vmem:[#allocation10 + $0xf0] sm:$0xff]
    %v5591 = vld [vmem:[#allocation10 + $0xf8] sm:$0xff]
    %v5592 = vld [vmem:[#allocation10 + $0x100] sm:$0xff]
    %v5593 = vld [vmem:[#allocation10 + $0x108] sm:$0xff]
    %v5594 = vld [vmem:[#allocation10 + $0x110] sm:$0xff]
    %v5595 = vld [vmem:[#allocation10 + $0x118] sm:$0xff]
    %v5596 = vld [vmem:[#allocation10 + $0x120] sm:$0xff]
    %v5597 = vld [vmem:[#allocation10 + $0x128] sm:$0xff]
    %v5598 = vld [vmem:[#allocation10 + $0x130] sm:$0xff]
    %v5599 = vld [vmem:[#allocation10 + $0x138] sm:$0xff]
    %v5600 = vld [vmem:[#allocation10 + $0x140] sm:$0xff]
    %v5601 = vld [vmem:[#allocation10 + $0x148] sm:$0xff]
    %v5602 = vld [vmem:[#allocation10 + $0x150] sm:$0xff]
    %v5603 = vld [vmem:[#allocation10 + $0x158] sm:$0xff]
    %v5604 = vld [vmem:[#allocation10 + $0x160] sm:$0xff]
    %v5605 = vld [vmem:[#allocation10 + $0x168] sm:$0xff]
    %v5606 = vld [vmem:[#allocation10 + $0x170] sm:$0xff]
    %v5607 = vld [vmem:[#allocation10 + $0x178] sm:$0xff]
    %v5608 = vld [vmem:[#allocation10 + $0x180] sm:$0xff]
    %v5609 = vld [vmem:[#allocation10 + $0x188] sm:$0xff]
    %v5610 = vld [vmem:[#allocation10 + $0x190] sm:$0xff]
    %v5611 = vld [vmem:[#allocation10 + $0x198] sm:$0xff]
    %v5612 = vld [vmem:[#allocation10 + $0x1a0] sm:$0xff]
    %v5613 = vld [vmem:[#allocation10 + $0x1a8] sm:$0xff]
    %v5614 = vld [vmem:[#allocation10 + $0x1b0] sm:$0xff]
    %v5615 = vld [vmem:[#allocation10 + $0x1b8] sm:$0xff]
    %v5616 = vld [vmem:[#allocation10 + $0x1c0] sm:$0xff]
    %v5617 = vld [vmem:[#allocation10 + $0x1c8] sm:$0xff]
    %v5618 = vld [vmem:[#allocation10 + $0x1d0] sm:$0xff]
    %v5619 = vld [vmem:[#allocation10 + $0x1d8] sm:$0xff]
    %v5620 = vld [vmem:[#allocation10 + $0x1e0] sm:$0xff]
    %v5621 = vld [vmem:[#allocation10 + $0x1e8] sm:$0xff]
    %v5622 = vld [vmem:[#allocation10 + $0x1f0] sm:$0xff]
    %v5623 = vld [vmem:[#allocation10 + $0x1f8] sm:$0xff]
    %v5624 = vld [vmem:[#allocation10 + $0x200] sm:$0xff]
    %v5625 = vld [vmem:[#allocation10 + $0x208] sm:$0xff]
    %v5626 = vld [vmem:[#allocation10 + $0x210] sm:$0xff]
    %v5627 = vld [vmem:[#allocation10 + $0x218] sm:$0xff]
    %v5628 = vld [vmem:[#allocation10 + $0x220] sm:$0xff]
    %v5629 = vld [vmem:[#allocation10 + $0x228] sm:$0xff]
    %v5630 = vld [vmem:[#allocation10 + $0x230] sm:$0xff]
    %v5631 = vld [vmem:[#allocation10 + $0x238] sm:$0xff]
    %v5632 = vld [vmem:[#allocation10 + $0x240] sm:$0xff]
    %v5633 = vld [vmem:[#allocation10 + $0x248] sm:$0xff]
    %v5634 = vld [vmem:[#allocation10 + $0x250] sm:$0xff]
    %v5635 = vld [vmem:[#allocation10 + $0x258] sm:$0xff]
    %v5636 = vld [vmem:[#allocation10 + $0x260] sm:$0xff]
    %v5637 = vld [vmem:[#allocation10 + $0x268] sm:$0xff]
    %v5638 = vld [vmem:[#allocation10 + $0x270] sm:$0xff]
    %v5639 = vld [vmem:[#allocation10 + $0x278] sm:$0xff]
    %v5640 = vld [vmem:[#allocation10 + $0x280] sm:$0xff]
    %v5641 = vld [vmem:[#allocation10 + $0x288] sm:$0xff]
    %v5642 = vld [vmem:[#allocation10 + $0x290] sm:$0xff]
    %v5643 = vld [vmem:[#allocation10 + $0x298] sm:$0xff]
    %v5644 = vld [vmem:[#allocation10 + $0x2a0] sm:$0xff]
    %v5645 = vld [vmem:[#allocation10 + $0x2a8] sm:$0xff]
    %v5646 = vld [vmem:[#allocation10 + $0x2b0] sm:$0xff]
    %v5647 = vld [vmem:[#allocation10 + $0x2b8] sm:$0xff]
    %v5648 = vld [vmem:[#allocation10 + $0x2c0] sm:$0xff]
    %v5649 = vld [vmem:[#allocation10 + $0x2c8] sm:$0xff]
    %v5650 = vld [vmem:[#allocation10 + $0x2d0] sm:$0xff]
    %v5651 = vld [vmem:[#allocation10 + $0x2d8] sm:$0xff]
    %v5652 = vld [vmem:[#allocation10 + $0x2e0] sm:$0xff]
    %v5653 = vld [vmem:[#allocation10 + $0x2e8] sm:$0xff]
    %v5654 = vld [vmem:[#allocation10 + $0x2f0] sm:$0xff]
    %v5655 = vld [vmem:[#allocation10 + $0x2f8] sm:$0xff]
    %v5656 = vld [vmem:[#allocation10 + $0x300] sm:$0xff]
    %v5657 = vld [vmem:[#allocation10 + $0x308] sm:$0xff]
    %v5658 = vld [vmem:[#allocation10 + $0x310] sm:$0xff]
    %v5659 = vld [vmem:[#allocation10 + $0x318] sm:$0xff]
    %v5660 = vld [vmem:[#allocation10 + $0x320] sm:$0xff]
    %v5661 = vld [vmem:[#allocation10 + $0x328] sm:$0xff]
    %v5662 = vld [vmem:[#allocation10 + $0x330] sm:$0xff]
    %v5663 = vld [vmem:[#allocation10 + $0x338] sm:$0xff]
    %v5664 = vld [vmem:[#allocation10 + $0x340] sm:$0xff]
    %v5665 = vld [vmem:[#allocation10 + $0x348] sm:$0xff]
    %v5666 = vld [vmem:[#allocation10 + $0x350] sm:$0xff]
    %v5667 = vld [vmem:[#allocation10 + $0x358] sm:$0xff]
    %v5668 = vld [vmem:[#allocation10 + $0x360] sm:$0xff]
    %v5669 = vld [vmem:[#allocation10 + $0x368] sm:$0xff]
    %v5670 = vld [vmem:[#allocation10 + $0x370] sm:$0xff]
    %v5671 = vld [vmem:[#allocation10 + $0x378] sm:$0xff]
    %v5672 = vld [vmem:[#allocation10 + $0x380] sm:$0xff]
    %v5673 = vld [vmem:[#allocation10 + $0x388] sm:$0xff]
    %v5674 = vld [vmem:[#allocation10 + $0x390] sm:$0xff]
    %v5675 = vld [vmem:[#allocation10 + $0x398] sm:$0xff]
    %v5676 = vld [vmem:[#allocation10 + $0x3a0] sm:$0xff]
    %v5677 = vld [vmem:[#allocation10 + $0x3a8] sm:$0xff]
    %v5678 = vld [vmem:[#allocation10 + $0x3b0] sm:$0xff]
    %v5679 = vld [vmem:[#allocation10 + $0x3b8] sm:$0xff]
    %v5680 = vld [vmem:[#allocation10 + $0x3c0] sm:$0xff]
    %v5681 = vld [vmem:[#allocation10 + $0x3c8] sm:$0xff]
    %v5682 = vld [vmem:[#allocation10 + $0x3d0] sm:$0xff]
    %v5683 = vld [vmem:[#allocation10 + $0x3d8] sm:$0xff]
    %v5684 = vld [vmem:[#allocation10 + $0x3e0] sm:$0xff]
    %v5685 = vld [vmem:[#allocation10 + $0x3e8] sm:$0xff]
    %v5686 = vld [vmem:[#allocation10 + $0x3f0] sm:$0xff]
    %v5687 = vld [vmem:[#allocation10 + $0x3f8] sm:$0xff]
    %v5688 = vld [vmem:[%s9] sm:$0xf]
    %v5690 = vlaneseq
    %v5691 = vshrl.u32 %v5690, 7
    %v5692 = vsub.s32 0, %v5691
    %v5693 = vrot.slane %v5688, %v5692
    %v5694 = vlaneseq
    %v5695 = vshrl.u32 %v5694, 7
    %v5696 = vsub.s32 1, %v5695
    %v5697 = vrot.slane %v5688, %v5696
    %v5698 = vlaneseq
    %v5699 = vshrl.u32 %v5698, 7
    %v5700 = vsub.s32 2, %v5699
    %v5701 = vrot.slane %v5688, %v5700
    %v5702 = vlaneseq
    %v5703 = vshrl.u32 %v5702, 7
    %v5704 = vsub.s32 3, %v5703
    %v5705 = vrot.slane %v5688, %v5704
    %5710 = vmatprep.subr.mxu0 %v5561
    %5711 = vmatpush1.msra.mxu0 %v5560
    %5712 = vmatprep.subr.mxu0 %v5565
    %5713 = vmatpush1.msra.mxu0 %v5564
    %5714 = vmatprep.subr.mxu0 %v5569
    %5715 = vmatpush1.msra.mxu0 %v5568
    %5716 = vmatprep.subr.mxu0 %v5573
    %5717 = vmatpush1.msra.mxu0 %v5572
    %5718 = vmatprep.subr.mxu0 %v5577
    %5719 = vmatpush1.msra.mxu0 %v5576
    %5720 = vmatprep.subr.mxu0 %v5581
    %5721 = vmatpush1.msra.mxu0 %v5580
    %5722 = vmatprep.subr.mxu0 %v5585
    %5723 = vmatpush1.msra.mxu0 %v5584
    %5724 = vmatprep.subr.mxu0 %v5589
    %5725 = vmatpush1.msra.mxu0 %v5588
    %5726 = vmatprep.subr.mxu0 %v5593
    %5727 = vmatpush1.msra.mxu0 %v5592
    %5728 = vmatprep.subr.mxu0 %v5597
    %5729 = vmatpush1.msra.mxu0 %v5596
    %5730 = vmatprep.subr.mxu0 %v5601
    %5731 = vmatpush1.msra.mxu0 %v5600
    %5732 = vmatprep.subr.mxu0 %v5605
    %5733 = vmatpush1.msra.mxu0 %v5604
    %5734 = vmatprep.subr.mxu0 %v5609
    %5735 = vmatpush1.msra.mxu0 %v5608
    %5736 = vmatprep.subr.mxu0 %v5613
    %5737 = vmatpush1.msra.mxu0 %v5612
    %5738 = vmatprep.subr.mxu0 %v5617
    %5739 = vmatpush1.msra.mxu0 %v5616
    %5740 = vmatprep.subr.mxu0 %v5621
    %5741 = vmatpush1.msra.mxu0 %v5620
    %5742 = vmatprep.subr.mxu0 %v5625
    %5743 = vmatpush1.msra.mxu0 %v5624
    %5744 = vmatprep.subr.mxu0 %v5629
    %5745 = vmatpush1.msra.mxu0 %v5628
    %5746 = vmatprep.subr.mxu0 %v5633
    %5747 = vmatpush1.msra.mxu0 %v5632
    %5748 = vmatprep.subr.mxu0 %v5637
    %5749 = vmatpush1.msra.mxu0 %v5636
    %5750 = vmatprep.subr.mxu0 %v5641
    %5751 = vmatpush1.msra.mxu0 %v5640
    %5752 = vmatprep.subr.mxu0 %v5645
    %5753 = vmatpush1.msra.mxu0 %v5644
    %5754 = vmatprep.subr.mxu0 %v5649
    %5755 = vmatpush1.msra.mxu0 %v5648
    %5756 = vmatprep.subr.mxu0 %v5653
    %5757 = vmatpush1.msra.mxu0 %v5652
    %5758 = vmatprep.subr.mxu0 %v5657
    %5759 = vmatpush1.msra.mxu0 %v5656
    %5760 = vmatprep.subr.mxu0 %v5661
    %5761 = vmatpush1.msra.mxu0 %v5660
    %5762 = vmatprep.subr.mxu0 %v5665
    %5763 = vmatpush1.msra.mxu0 %v5664
    %5764 = vmatprep.subr.mxu0 %v5669
    %5765 = vmatpush1.msra.mxu0 %v5668
    %5766 = vmatprep.subr.mxu0 %v5673
    %5767 = vmatpush1.msra.mxu0 %v5672
    %5768 = vmatprep.subr.mxu0 %v5677
    %5769 = vmatpush1.msra.mxu0 %v5676
    %5770 = vmatprep.subr.mxu0 %v5681
    %5771 = vmatpush1.msra.mxu0 %v5680
    %5772 = vmatprep.subr.mxu0 %v5685
    %5773 = vmatpush1.msra.mxu0 %v5684
    %5774 = vmatprep.mubr.f32.mxu0 %v5557
    %5775 = vmatmul.mubr.f32.gmra.mrb[0].mxu0 %v5556
    %v5776 = vpop.f32.mrb[0].mxu0
    %v5777 = vadd.f32 %v5693, %v5776
    %v5778 = vpop.f32.mrb[0].mxu0
    %v5779 = vadd.f32 %v5697, %v5778
    %5780 = vmatprep.mubr.f32.mxu0 %v5559
    %5781 = vmatmul.mubr.f32.gmra.mrb[0].mxu0 %v5558
    %v5782 = vpop.f32.mrb[0].mxu0
    %v5783 = vadd.f32 %v5693, %v5782
    %v5784 = vpop.f32.mrb[0].mxu0
    %v5785 = vadd.f32 %v5697, %v5784
    %5786 = vdwg.mxu0
    %5787 = vmatprep.subr.mxu0 %v5563
    %5788 = vmatpush1.msra.mxu0 %v5562
    %5789 = vmatprep.subr.mxu0 %v5567
    %5790 = vmatpush1.msra.mxu0 %v5566
    %5791 = vmatprep.subr.mxu0 %v5571
    %5792 = vmatpush1.msra.mxu0 %v5570
    %5793 = vmatprep.subr.mxu0 %v5575
    %5794 = vmatpush1.msra.mxu0 %v5574
    %5795 = vmatprep.subr.mxu0 %v5579
    %5796 = vmatpush1.msra.mxu0 %v5578
    %5797 = vmatprep.subr.mxu0 %v5583
    %5798 = vmatpush1.msra.mxu0 %v5582
    %5799 = vmatprep.subr.mxu0 %v5587
    %5800 = vmatpush1.msra.mxu0 %v5586
    %5801 = vmatprep.subr.mxu0 %v5591
    %5802 = vmatpush1.msra.mxu0 %v5590
    %5803 = vmatprep.subr.mxu0 %v5595
    %5804 = vmatpush1.msra.mxu0 %v5594
    %5805 = vmatprep.subr.mxu0 %v5599
    %5806 = vmatpush1.msra.mxu0 %v5598
    %5807 = vmatprep.subr.mxu0 %v5603
    %5808 = vmatpush1.msra.mxu0 %v5602
    %5809 = vmatprep.subr.mxu0 %v5607
    %5810 = vmatpush1.msra.mxu0 %v5606
    %5811 = vmatprep.subr.mxu0 %v5611
    %5812 = vmatpush1.msra.mxu0 %v5610
    %5813 = vmatprep.subr.mxu0 %v5615
    %5814 = vmatpush1.msra.mxu0 %v5614
    %5815 = vmatprep.subr.mxu0 %v5619
    %5816 = vmatpush1.msra.mxu0 %v5618
    %5817 = vmatprep.subr.mxu0 %v5623
    %5818 = vmatpush1.msra.mxu0 %v5622
    %5819 = vmatprep.subr.mxu0 %v5627
    %5820 = vmatpush1.msra.mxu0 %v5626
    %5821 = vmatprep.subr.mxu0 %v5631
    %5822 = vmatpush1.msra.mxu0 %v5630
    %5823 = vmatprep.subr.mxu0 %v5635
    %5824 = vmatpush1.msra.mxu0 %v5634
    %5825 = vmatprep.subr.mxu0 %v5639
    %5826 = vmatpush1.msra.mxu0 %v5638
    %5827 = vmatprep.subr.mxu0 %v5643
    %5828 = vmatpush1.msra.mxu0 %v5642
    %5829 = vmatprep.subr.mxu0 %v5647
    %5830 = vmatpush1.msra.mxu0 %v5646
    %5831 = vmatprep.subr.mxu0 %v5651
    %5832 = vmatpush1.msra.mxu0 %v5650
    %5833 = vmatprep.subr.mxu0 %v5655
    %5834 = vmatpush1.msra.mxu0 %v5654
    %5835 = vmatprep.subr.mxu0 %v5659
    %5836 = vmatpush1.msra.mxu0 %v5658
    %5837 = vmatprep.subr.mxu0 %v5663
    %5838 = vmatpush1.msra.mxu0 %v5662
    %5839 = vmatprep.subr.mxu0 %v5667
    %5840 = vmatpush1.msra.mxu0 %v5666
    %5841 = vmatprep.subr.mxu0 %v5671
    %5842 = vmatpush1.msra.mxu0 %v5670
    %5843 = vmatprep.subr.mxu0 %v5675
    %5844 = vmatpush1.msra.mxu0 %v5674
    %5845 = vmatprep.subr.mxu0 %v5679
    %5846 = vmatpush1.msra.mxu0 %v5678
    %5847 = vmatprep.subr.mxu0 %v5683
    %5848 = vmatpush1.msra.mxu0 %v5682
    %5849 = vmatprep.subr.mxu0 %v5687
    %5850 = vmatpush1.msra.mxu0 %v5686
    %5851 = vmatprep.mubr.f32.mxu0 %v5557
    %5852 = vmatmul.mubr.f32.gmra.mrb[0].mxu0 %v5556
    %v5853 = vpop.f32.mrb[0].mxu0
    %v5854 = vadd.f32 %v5701, %v5853
    %v5855 = vpop.f32.mrb[0].mxu0
    %v5856 = vadd.f32 %v5705, %v5855
    %5857 = vmatprep.mubr.f32.mxu0 %v5559
    %5858 = vmatmul.mubr.f32.gmra.mrb[0].mxu0 %v5558
    %v5859 = vpop.f32.mrb[0].mxu0
    %v5860 = vadd.f32 %v5701, %v5859
    %v5861 = vpop.f32.mrb[0].mxu0
    %v5862 = vadd.f32 %v5705, %v5861
    %5863 = vdwg.mxu0
    %v5864 = vld [vmem:[#allocation12] sm:$0xff]
    %v5865 = vld [vmem:[#allocation12 + $0x8] sm:$0xff]
    %v5866 = vld [vmem:[#allocation12 + $0x10] sm:$0xff]
    %v5867 = vld [vmem:[#allocation12 + $0x18] sm:$0xff]
    %v5868 = vld [vmem:[#allocation12 + $0x20] sm:$0xff]
    %v5869 = vld [vmem:[#allocation12 + $0x28] sm:$0xff]
    %v5870 = vld [vmem:[#allocation12 + $0x30] sm:$0xff]
    %v5871 = vld [vmem:[#allocation12 + $0x38] sm:$0xff]
    %v5872 = vld [vmem:[#allocation12 + $0x40] sm:$0xff]
    %v5873 = vld [vmem:[#allocation12 + $0x48] sm:$0xff]
    %v5874 = vld [vmem:[#allocation12 + $0x50] sm:$0xff]
    %v5875 = vld [vmem:[#allocation12 + $0x58] sm:$0xff]
    %v5876 = vld [vmem:[#allocation12 + $0x60] sm:$0xff]
    %v5877 = vld [vmem:[#allocation12 + $0x68] sm:$0xff]
    %v5878 = vld [vmem:[#allocation12 + $0x70] sm:$0xff]
    %v5879 = vld [vmem:[#allocation12 + $0x78] sm:$0xff]
    %v5880 = vld [vmem:[#allocation12 + $0x80] sm:$0xff]
    %v5881 = vld [vmem:[#allocation12 + $0x88] sm:$0xff]
    %v5882 = vld [vmem:[#allocation12 + $0x90] sm:$0xff]
    %v5883 = vld [vmem:[#allocation12 + $0x98] sm:$0xff]
    %v5884 = vld [vmem:[#allocation12 + $0xa0] sm:$0xff]
    %v5885 = vld [vmem:[#allocation12 + $0xa8] sm:$0xff]
    %v5886 = vld [vmem:[#allocation12 + $0xb0] sm:$0xff]
    %v5887 = vld [vmem:[#allocation12 + $0xb8] sm:$0xff]
    %v5888 = vld [vmem:[#allocation12 + $0xc0] sm:$0xff]
    %v5889 = vld [vmem:[#allocation12 + $0xc8] sm:$0xff]
    %v5890 = vld [vmem:[#allocation12 + $0xd0] sm:$0xff]
    %v5891 = vld [vmem:[#allocation12 + $0xd8] sm:$0xff]
    %v5892 = vld [vmem:[#allocation12 + $0xe0] sm:$0xff]
    %v5893 = vld [vmem:[#allocation12 + $0xe8] sm:$0xff]
    %v5894 = vld [vmem:[#allocation12 + $0xf0] sm:$0xff]
    %v5895 = vld [vmem:[#allocation12 + $0xf8] sm:$0xff]
    %v5896 = vld [vmem:[#allocation12 + $0x100] sm:$0xff]
    %v5897 = vld [vmem:[#allocation12 + $0x108] sm:$0xff]
    %v5898 = vld [vmem:[#allocation12 + $0x110] sm:$0xff]
    %v5899 = vld [vmem:[#allocation12 + $0x118] sm:$0xff]
    %v5900 = vld [vmem:[#allocation12 + $0x120] sm:$0xff]
    %v5901 = vld [vmem:[#allocation12 + $0x128] sm:$0xff]
    %v5902 = vld [vmem:[#allocation12 + $0x130] sm:$0xff]
    %v5903 = vld [vmem:[#allocation12 + $0x138] sm:$0xff]
    %v5904 = vld [vmem:[#allocation12 + $0x140] sm:$0xff]
    %v5905 = vld [vmem:[#allocation12 + $0x148] sm:$0xff]
    %v5906 = vld [vmem:[#allocation12 + $0x150] sm:$0xff]
    %v5907 = vld [vmem:[#allocation12 + $0x158] sm:$0xff]
    %v5908 = vld [vmem:[#allocation12 + $0x160] sm:$0xff]
    %v5909 = vld [vmem:[#allocation12 + $0x168] sm:$0xff]
    %v5910 = vld [vmem:[#allocation12 + $0x170] sm:$0xff]
    %v5911 = vld [vmem:[#allocation12 + $0x178] sm:$0xff]
    %v5912 = vld [vmem:[#allocation12 + $0x180] sm:$0xff]
    %v5913 = vld [vmem:[#allocation12 + $0x188] sm:$0xff]
    %v5914 = vld [vmem:[#allocation12 + $0x190] sm:$0xff]
    %v5915 = vld [vmem:[#allocation12 + $0x198] sm:$0xff]
    %v5916 = vld [vmem:[#allocation12 + $0x1a0] sm:$0xff]
    %v5917 = vld [vmem:[#allocation12 + $0x1a8] sm:$0xff]
    %v5918 = vld [vmem:[#allocation12 + $0x1b0] sm:$0xff]
    %v5919 = vld [vmem:[#allocation12 + $0x1b8] sm:$0xff]
    %v5920 = vld [vmem:[#allocation12 + $0x1c0] sm:$0xff]
    %v5921 = vld [vmem:[#allocation12 + $0x1c8] sm:$0xff]
    %v5922 = vld [vmem:[#allocation12 + $0x1d0] sm:$0xff]
    %v5923 = vld [vmem:[#allocation12 + $0x1d8] sm:$0xff]
    %v5924 = vld [vmem:[#allocation12 + $0x1e0] sm:$0xff]
    %v5925 = vld [vmem:[#allocation12 + $0x1e8] sm:$0xff]
    %v5926 = vld [vmem:[#allocation12 + $0x1f0] sm:$0xff]
    %v5927 = vld [vmem:[#allocation12 + $0x1f8] sm:$0xff]
    %5928 = vmatprep.subr.mxu0 %v5865
    %5929 = vmatpush1.msra.mxu0 %v5864
    %5930 = vmatprep.subr.mxu0 %v5869
    %5931 = vmatpush1.msra.mxu0 %v5868
    %5932 = vmatprep.subr.mxu0 %v5873
    %5933 = vmatpush1.msra.mxu0 %v5872
    %5934 = vmatprep.subr.mxu0 %v5877
    %5935 = vmatpush1.msra.mxu0 %v5876
    %5936 = vmatprep.subr.mxu0 %v5881
    %5937 = vmatpush1.msra.mxu0 %v5880
    %5938 = vmatprep.subr.mxu0 %v5885
    %5939 = vmatpush1.msra.mxu0 %v5884
    %5940 = vmatprep.subr.mxu0 %v5889
    %5941 = vmatpush1.msra.mxu0 %v5888
    %5942 = vmatprep.subr.mxu0 %v5893
    %5943 = vmatpush1.msra.mxu0 %v5892
    %5944 = vmatprep.subr.mxu0 %v5897
    %5945 = vmatpush1.msra.mxu0 %v5896
    %5946 = vmatprep.subr.mxu0 %v5901
    %5947 = vmatpush1.msra.mxu0 %v5900
    %5948 = vmatprep.subr.mxu0 %v5905
    %5949 = vmatpush1.msra.mxu0 %v5904
    %5950 = vmatprep.subr.mxu0 %v5909
    %5951 = vmatpush1.msra.mxu0 %v5908
    %5952 = vmatprep.subr.mxu0 %v5913
    %5953 = vmatpush1.msra.mxu0 %v5912
    %5954 = vmatprep.subr.mxu0 %v5917
    %5955 = vmatpush1.msra.mxu0 %v5916
    %5956 = vmatprep.subr.mxu0 %v5921
    %5957 = vmatpush1.msra.mxu0 %v5920
    %5958 = vmatprep.subr.mxu0 %v5925
    %5959 = vmatpush1.msra.mxu0 %v5924
    %5960 = vmatprep.subr.mxu0 0.0
    %5961 = vmatpush1.msra.mxu0 0.0
    %5962 = vmatprep.subr.mxu0 0.0
    %5963 = vmatpush1.msra.mxu0 0.0
    %5964 = vmatprep.subr.mxu0 0.0
    %5965 = vmatpush1.msra.mxu0 0.0
    %5966 = vmatprep.subr.mxu0 0.0
    %5967 = vmatpush1.msra.mxu0 0.0
    %5968 = vmatprep.subr.mxu0 0.0
    %5969 = vmatpush1.msra.mxu0 0.0
    %5970 = vmatprep.subr.mxu0 0.0
    %5971 = vmatpush1.msra.mxu0 0.0
    %5972 = vmatprep.subr.mxu0 0.0
    %5973 = vmatpush1.msra.mxu0 0.0
    %5974 = vmatprep.subr.mxu0 0.0
    %5975 = vmatpush1.msra.mxu0 0.0
    %5976 = vmatprep.subr.mxu0 0.0
    %5977 = vmatpush1.msra.mxu0 0.0
    %5978 = vmatprep.subr.mxu0 0.0
    %5979 = vmatpush1.msra.mxu0 0.0
    %5980 = vmatprep.subr.mxu0 0.0
    %5981 = vmatpush1.msra.mxu0 0.0
    %5982 = vmatprep.subr.mxu0 0.0
    %5983 = vmatpush1.msra.mxu0 0.0
    %5984 = vmatprep.subr.mxu0 0.0
    %5985 = vmatpush1.msra.mxu0 0.0
    %5986 = vmatprep.subr.mxu0 0.0
    %5987 = vmatpush1.msra.mxu0 0.0
    %5988 = vmatprep.subr.mxu0 0.0
    %5989 = vmatpush1.msra.mxu0 0.0
    %5990 = vmatprep.subr.mxu0 0.0
    %5991 = vmatpush1.msra.mxu0 0.0
    %5992 = vmatprep.mubr.f32.mxu0 0.0
    %5993 = vmatmul.mubr.f32.gmra.mrb[0].mxu0 0.0
    %v5994 = vpop.f32.mrb[0].mxu0
    %v5995 = vadd.f32 0.0, %v5994
    %v5996 = vpop.f32.mrb[0].mxu0
    %v5997 = vadd.f32 0.0, %v5996
    %5998 = vdwg.mxu0
    %5999 = vmatprep.subr.mxu0 %v5867
    %6000 = vmatpush1.msra.mxu0 %v5866
    %6001 = vmatprep.subr.mxu0 %v5871
    %6002 = vmatpush1.msra.mxu0 %v5870
    %6003 = vmatprep.subr.mxu0 %v5875
    %6004 = vmatpush1.msra.mxu0 %v5874
    %6005 = vmatprep.subr.mxu0 %v5879
    %6006 = vmatpush1.msra.mxu0 %v5878
    %6007 = vmatprep.subr.mxu0 %v5883
    %6008 = vmatpush1.msra.mxu0 %v5882
    %6009 = vmatprep.subr.mxu0 %v5887
    %6010 = vmatpush1.msra.mxu0 %v5886
    %6011 = vmatprep.subr.mxu0 %v5891
    %6012 = vmatpush1.msra.mxu0 %v5890
    %6013 = vmatprep.subr.mxu0 %v5895
    %6014 = vmatpush1.msra.mxu0 %v5894
    %6015 = vmatprep.subr.mxu0 %v5899
    %6016 = vmatpush1.msra.mxu0 %v5898
    %6017 = vmatprep.subr.mxu0 %v5903
    %6018 = vmatpush1.msra.mxu0 %v5902
    %6019 = vmatprep.subr.mxu0 %v5907
    %6020 = vmatpush1.msra.mxu0 %v5906
    %6021 = vmatprep.subr.mxu0 %v5911
    %6022 = vmatpush1.msra.mxu0 %v5910
    %6023 = vmatprep.subr.mxu0 %v5915
    %6024 = vmatpush1.msra.mxu0 %v5914
    %6025 = vmatprep.subr.mxu0 %v5919
    %6026 = vmatpush1.msra.mxu0 %v5918
    %6027 = vmatprep.subr.mxu0 %v5923
    %6028 = vmatpush1.msra.mxu0 %v5922
    %6029 = vmatprep.subr.mxu0 %v5927
    %6030 = vmatpush1.msra.mxu0 %v5926
    %6031 = vmatprep.subr.mxu0 0.0
    %6032 = vmatpush1.msra.mxu0 0.0
    %6033 = vmatprep.subr.mxu0 0.0
    %6034 = vmatpush1.msra.mxu0 0.0
    %6035 = vmatprep.subr.mxu0 0.0
    %6036 = vmatpush1.msra.mxu0 0.0
    %6037 = vmatprep.subr.mxu0 0.0
    %6038 = vmatpush1.msra.mxu0 0.0
    %6039 = vmatprep.subr.mxu0 0.0
    %6040 = vmatpush1.msra.mxu0 0.0
    %6041 = vmatprep.subr.mxu0 0.0
    %6042 = vmatpush1.msra.mxu0 0.0
    %6043 = vmatprep.subr.mxu0 0.0
    %6044 = vmatpush1.msra.mxu0 0.0
    %6045 = vmatprep.subr.mxu0 0.0
    %6046 = vmatpush1.msra.mxu0 0.0
    %6047 = vmatprep.subr.mxu0 0.0
    %6048 = vmatpush1.msra.mxu0 0.0
    %6049 = vmatprep.subr.mxu0 0.0
    %6050 = vmatpush1.msra.mxu0 0.0
    %6051 = vmatprep.subr.mxu0 0.0
    %6052 = vmatpush1.msra.mxu0 0.0
    %6053 = vmatprep.subr.mxu0 0.0
    %6054 = vmatpush1.msra.mxu0 0.0
    %6055 = vmatprep.subr.mxu0 0.0
    %6056 = vmatpush1.msra.mxu0 0.0
    %6057 = vmatprep.subr.mxu0 0.0
    %6058 = vmatpush1.msra.mxu0 0.0
    %6059 = vmatprep.subr.mxu0 0.0
    %6060 = vmatpush1.msra.mxu0 0.0
    %6061 = vmatprep.subr.mxu0 0.0
    %6062 = vmatpush1.msra.mxu0 0.0
    %6063 = vmatprep.mubr.f32.mxu0 0.0
    %6064 = vmatmul.mubr.f32.gmra.mrb[0].mxu0 0.0
    %v6065 = vpop.f32.mrb[0].mxu0
    %v6066 = vadd.f32 0.0, %v6065
    %v6067 = vpop.f32.mrb[0].mxu0
    %v6068 = vadd.f32 0.0, %v6067
    %6069 = vdwg.mxu0
    %v6070 = vadd.f32 %v5777, %v5995
    %v6071 = vadd.f32 %v5779, %v5997
    %v6072 = vadd.f32 %v5854, %v6066
    %v6073 = vadd.f32 %v5856, %v6068
    %v6074 = vxor.u32 %v6070, 2147483648
    %v6075 = vmul.f32 %v6074, 1.442695
    %v6076 = vpow.pop %v6075
    %v6077 = vadd.f32 %v6076, 1.0
    %v6078 = vrcp.pop %v6077
    %v6079 = vmul.f32 1.0, %v6078
    %v6080 = vxor.u32 %v6071, 2147483648
    %v6081 = vmul.f32 %v6080, 1.442695
    %v6082 = vpow.pop %v6081
    %v6083 = vadd.f32 %v6082, 1.0
    %v6084 = vrcp.pop %v6083
    %v6085 = vmul.f32 1.0, %v6084
    %v6086 = vtanh.pop %v6072
    %v6087 = vxor.u32 %v6073, 2147483648
    %v6088 = vmul.f32 %v6087, 1.442695
    %v6089 = vpow.pop %v6088
    %v6090 = vadd.f32 %v6089, 1.0
    %v6091 = vrcp.pop %v6090
    %v6092 = vmul.f32 1.0, %v6091
    %v6093 = vmul.f32 %v6085, 0.0
    %v6094 = vmul.f32 %v6079, %v6086
    %v6095 = vadd.f32 %v6093, %v6094
    %v6096 = vtanh.pop %v6095
    %v6097 = vmul.f32 %v6092, %v6096
    %6098 = vmatprep.subr.mxu0 %v5865
    %6099 = vmatpush1.msra.mxu0 %v5864
    %6100 = vmatprep.subr.mxu0 %v5869
    %6101 = vmatpush1.msra.mxu0 %v5868
    %6102 = vmatprep.subr.mxu0 %v5873
    %6103 = vmatpush1.msra.mxu0 %v5872
    %6104 = vmatprep.subr.mxu0 %v5877
    %6105 = vmatpush1.msra.mxu0 %v5876
    %6106 = vmatprep.subr.mxu0 %v5881
    %6107 = vmatpush1.msra.mxu0 %v5880
    %6108 = vmatprep.subr.mxu0 %v5885
    %6109 = vmatpush1.msra.mxu0 %v5884
    %6110 = vmatprep.subr.mxu0 %v5889
    %6111 = vmatpush1.msra.mxu0 %v5888
    %6112 = vmatprep.subr.mxu0 %v5893
    %6113 = vmatpush1.msra.mxu0 %v5892
    %6114 = vmatprep.subr.mxu0 %v5897
    %6115 = vmatpush1.msra.mxu0 %v5896
    %6116 = vmatprep.subr.mxu0 %v5901
    %6117 = vmatpush1.msra.mxu0 %v5900
    %6118 = vmatprep.subr.mxu0 %v5905
    %6119 = vmatpush1.msra.mxu0 %v5904
    %6120 = vmatprep.subr.mxu0 %v5909
    %6121 = vmatpush1.msra.mxu0 %v5908
    %6122 = vmatprep.subr.mxu0 %v5913
    %6123 = vmatpush1.msra.mxu0 %v5912
    %6124 = vmatprep.subr.mxu0 %v5917
    %6125 = vmatpush1.msra.mxu0 %v5916
    %6126 = vmatprep.subr.mxu0 %v5921
    %6127 = vmatpush1.msra.mxu0 %v5920
    %6128 = vmatprep.subr.mxu0 %v5925
    %6129 = vmatpush1.msra.mxu0 %v5924
    %6130 = vmatprep.subr.mxu0 0.0
    %6131 = vmatpush1.msra.mxu0 0.0
    %6132 = vmatprep.subr.mxu0 0.0
    %6133 = vmatpush1.msra.mxu0 0.0
    %6134 = vmatprep.subr.mxu0 0.0
    %6135 = vmatpush1.msra.mxu0 0.0
    %6136 = vmatprep.subr.mxu0 0.0
    %6137 = vmatpush1.msra.mxu0 0.0
    %6138 = vmatprep.subr.mxu0 0.0
    %6139 = vmatpush1.msra.mxu0 0.0
    %6140 = vmatprep.subr.mxu0 0.0
    %6141 = vmatpush1.msra.mxu0 0.0
    %6142 = vmatprep.subr.mxu0 0.0
    %6143 = vmatpush1.msra.mxu0 0.0
    %6144 = vmatprep.subr.mxu0 0.0
    %6145 = vmatpush1.msra.mxu0 0.0
    %6146 = vmatprep.subr.mxu0 0.0
    %6147 = vmatpush1.msra.mxu0 0.0
    %6148 = vmatprep.subr.mxu0 0.0
    %6149 = vmatpush1.msra.mxu0 0.0
    %6150 = vmatprep.subr.mxu0 0.0
    %6151 = vmatpush1.msra.mxu0 0.0
    %6152 = vmatprep.subr.mxu0 0.0
    %6153 = vmatpush1.msra.mxu0 0.0
    %6154 = vmatprep.subr.mxu0 0.0
    %6155 = vmatpush1.msra.mxu0 0.0
    %6156 = vmatprep.subr.mxu0 0.0
    %6157 = vmatpush1.msra.mxu0 0.0
    %6158 = vmatprep.subr.mxu0 0.0
    %6159 = vmatpush1.msra.mxu0 0.0
    %6160 = vmatprep.subr.mxu0 0.0
    %6161 = vmatpush1.msra.mxu0 0.0
    %6162 = vmatprep.mubr.f32.mxu0 0.0
    %6163 = vmatmul.mubr.f32.gmra.mrb[0].mxu0 %v6097
    %v6164 = vpop.f32.mrb[0].mxu0
    %v6165 = vadd.f32 0.0, %v6164
    %v6166 = vpop.f32.mrb[0].mxu0
    %v6167 = vadd.f32 0.0, %v6166
    %6168 = vdwg.mxu0
    %6169 = vmatprep.subr.mxu0 %v5867
    %6170 = vmatpush1.msra.mxu0 %v5866
    %6171 = vmatprep.subr.mxu0 %v5871
    %6172 = vmatpush1.msra.mxu0 %v5870
    %6173 = vmatprep.subr.mxu0 %v5875
    %6174 = vmatpush1.msra.mxu0 %v5874
    %6175 = vmatprep.subr.mxu0 %v5879
    %6176 = vmatpush1.msra.mxu0 %v5878
    %6177 = vmatprep.subr.mxu0 %v5883
    %6178 = vmatpush1.msra.mxu0 %v5882
    %6179 = vmatprep.subr.mxu0 %v5887
    %6180 = vmatpush1.msra.mxu0 %v5886
    %6181 = vmatprep.subr.mxu0 %v5891
    %6182 = vmatpush1.msra.mxu0 %v5890
    %6183 = vmatprep.subr.mxu0 %v5895
    %6184 = vmatpush1.msra.mxu0 %v5894
    %6185 = vmatprep.subr.mxu0 %v5899
    %6186 = vmatpush1.msra.mxu0 %v5898
    %6187 = vmatprep.subr.mxu0 %v5903
    %6188 = vmatpush1.msra.mxu0 %v5902
    %6189 = vmatprep.subr.mxu0 %v5907
    %6190 = vmatpush1.msra.mxu0 %v5906
    %6191 = vmatprep.subr.mxu0 %v5911
    %6192 = vmatpush1.msra.mxu0 %v5910
    %6193 = vmatprep.subr.mxu0 %v5915
    %6194 = vmatpush1.msra.mxu0 %v5914
    %6195 = vmatprep.subr.mxu0 %v5919
    %6196 = vmatpush1.msra.mxu0 %v5918
    %6197 = vmatprep.subr.mxu0 %v5923
    %6198 = vmatpush1.msra.mxu0 %v5922
    %6199 = vmatprep.subr.mxu0 %v5927
    %6200 = vmatpush1.msra.mxu0 %v5926
    %6201 = vmatprep.subr.mxu0 0.0
    %6202 = vmatpush1.msra.mxu0 0.0
    %6203 = vmatprep.subr.mxu0 0.0
    %6204 = vmatpush1.msra.mxu0 0.0
    %6205 = vmatprep.subr.mxu0 0.0
    %6206 = vmatpush1.msra.mxu0 0.0
    %6207 = vmatprep.subr.mxu0 0.0
    %6208 = vmatpush1.msra.mxu0 0.0
    %6209 = vmatprep.subr.mxu0 0.0
    %6210 = vmatpush1.msra.mxu0 0.0
    %6211 = vmatprep.subr.mxu0 0.0
    %6212 = vmatpush1.msra.mxu0 0.0
    %6213 = vmatprep.subr.mxu0 0.0
    %6214 = vmatpush1.msra.mxu0 0.0
    %6215 = vmatprep.subr.mxu0 0.0
    %6216 = vmatpush1.msra.mxu0 0.0
    %6217 = vmatprep.subr.mxu0 0.0
    %6218 = vmatpush1.msra.mxu0 0.0
    %6219 = vmatprep.subr.mxu0 0.0
    %6220 = vmatpush1.msra.mxu0 0.0
    %6221 = vmatprep.subr.mxu0 0.0
    %6222 = vmatpush1.msra.mxu0 0.0
    %6223 = vmatprep.subr.mxu0 0.0
    %6224 = vmatpush1.msra.mxu0 0.0
    %6225 = vmatprep.subr.mxu0 0.0
    %6226 = vmatpush1.msra.mxu0 0.0
    %6227 = vmatprep.subr.mxu0 0.0
    %6228 = vmatpush1.msra.mxu0 0.0
    %6229 = vmatprep.subr.mxu0 0.0
    %6230 = vmatpush1.msra.mxu0 0.0
    %6231 = vmatprep.subr.mxu0 0.0
    %6232 = vmatpush1.msra.mxu0 0.0
    %6233 = vmatprep.mubr.f32.mxu0 0.0
    %6234 = vmatmul.mubr.f32.gmra.mrb[0].mxu0 %v6097
    %v6235 = vpop.f32.mrb[0].mxu0
    %v6236 = vadd.f32 0.0, %v6235
    %v6237 = vpop.f32.mrb[0].mxu0
    %v6238 = vadd.f32 0.0, %v6237
    %6239 = vdwg.mxu0
    %v6244 = vrot.slane %v6165, 6
    %v6245 = vrot.slane %v6167, 6
    %v6246 = vrot.slane %v6236, 6
    %v6247 = vrot.slane %v6238, 6
    %v6252 = vadd.f32 %v5777, %v6244
    %v6253 = vadd.f32 %v5779, %v6245
    %v6254 = vadd.f32 %v5854, %v6246
    %v6255 = vadd.f32 %v5856, %v6247
    %v6256 = vxor.u32 %v6252, 2147483648
    %v6257 = vmul.f32 %v6256, 1.442695
    %v6258 = vpow.pop %v6257
    %v6259 = vadd.f32 %v6258, 1.0
    %v6260 = vrcp.pop %v6259
    %v6261 = vmul.f32 1.0, %v6260
    %v6262 = vxor.u32 %v6253, 2147483648
    %v6263 = vmul.f32 %v6262, 1.442695
    %v6264 = vpow.pop %v6263
    %v6265 = vadd.f32 %v6264, 1.0
    %v6266 = vrcp.pop %v6265
    %v6267 = vmul.f32 1.0, %v6266
    %v6268 = vtanh.pop %v6254
    %v6269 = vxor.u32 %v6255, 2147483648
    %v6270 = vmul.f32 %v6269, 1.442695
    %v6271 = vpow.pop %v6270
    %v6272 = vadd.f32 %v6271, 1.0
    %v6273 = vrcp.pop %v6272
    %v6274 = vmul.f32 1.0, %v6273
    %v6276 = vrot.slane %v6095, 6
    %v6278 = vmul.f32 %v6267, %v6276
    %v6279 = vmul.f32 %v6261, %v6268
    %v6280 = vadd.f32 %v6278, %v6279
    %v6281 = vtanh.pop %v6280
    %v6282 = vmul.f32 %v6274, %v6281
    %v6284 = vrot.slane %v6282, 2
    %6286 = vmatprep.subr.mxu0 %v5865
    %6287 = vmatpush1.msra.mxu0 %v5864
    %6288 = vmatprep.subr.mxu0 %v5869
    %6289 = vmatpush1.msra.mxu0 %v5868
    %6290 = vmatprep.subr.mxu0 %v5873
    %6291 = vmatpush1.msra.mxu0 %v5872
    %6292 = vmatprep.subr.mxu0 %v5877
    %6293 = vmatpush1.msra.mxu0 %v5876
    %6294 = vmatprep.subr.mxu0 %v5881
    %6295 = vmatpush1.msra.mxu0 %v5880
    %6296 = vmatprep.subr.mxu0 %v5885
    %6297 = vmatpush1.msra.mxu0 %v5884
    %6298 = vmatprep.subr.mxu0 %v5889
    %6299 = vmatpush1.msra.mxu0 %v5888
    %6300 = vmatprep.subr.mxu0 %v5893
    %6301 = vmatpush1.msra.mxu0 %v5892
    %6302 = vmatprep.subr.mxu0 %v5897
    %6303 = vmatpush1.msra.mxu0 %v5896
    %6304 = vmatprep.subr.mxu0 %v5901
    %6305 = vmatpush1.msra.mxu0 %v5900
    %6306 = vmatprep.subr.mxu0 %v5905
    %6307 = vmatpush1.msra.mxu0 %v5904
    %6308 = vmatprep.subr.mxu0 %v5909
    %6309 = vmatpush1.msra.mxu0 %v5908
    %6310 = vmatprep.subr.mxu0 %v5913
    %6311 = vmatpush1.msra.mxu0 %v5912
    %6312 = vmatprep.subr.mxu0 %v5917
    %6313 = vmatpush1.msra.mxu0 %v5916
    %6314 = vmatprep.subr.mxu0 %v5921
    %6315 = vmatpush1.msra.mxu0 %v5920
    %6316 = vmatprep.subr.mxu0 %v5925
    %6317 = vmatpush1.msra.mxu0 %v5924
    %6318 = vmatprep.subr.mxu0 0.0
    %6319 = vmatpush1.msra.mxu0 0.0
    %6320 = vmatprep.subr.mxu0 0.0
    %6321 = vmatpush1.msra.mxu0 0.0
    %6322 = vmatprep.subr.mxu0 0.0
    %6323 = vmatpush1.msra.mxu0 0.0
    %6324 = vmatprep.subr.mxu0 0.0
    %6325 = vmatpush1.msra.mxu0 0.0
    %6326 = vmatprep.subr.mxu0 0.0
    %6327 = vmatpush1.msra.mxu0 0.0
    %6328 = vmatprep.subr.mxu0 0.0
    %6329 = vmatpush1.msra.mxu0 0.0
    %6330 = vmatprep.subr.mxu0 0.0
    %6331 = vmatpush1.msra.mxu0 0.0
    %6332 = vmatprep.subr.mxu0 0.0
    %6333 = vmatpush1.msra.mxu0 0.0
    %6334 = vmatprep.subr.mxu0 0.0
    %6335 = vmatpush1.msra.mxu0 0.0
    %6336 = vmatprep.subr.mxu0 0.0
    %6337 = vmatpush1.msra.mxu0 0.0
    %6338 = vmatprep.subr.mxu0 0.0
    %6339 = vmatpush1.msra.mxu0 0.0
    %6340 = vmatprep.subr.mxu0 0.0
    %6341 = vmatpush1.msra.mxu0 0.0
    %6342 = vmatprep.subr.mxu0 0.0
    %6343 = vmatpush1.msra.mxu0 0.0
    %6344 = vmatprep.subr.mxu0 0.0
    %6345 = vmatpush1.msra.mxu0 0.0
    %6346 = vmatprep.subr.mxu0 0.0
    %6347 = vmatpush1.msra.mxu0 0.0
    %6348 = vmatprep.subr.mxu0 0.0
    %6349 = vmatpush1.msra.mxu0 0.0
    %6350 = vmatprep.mubr.f32.mxu0 0.0
    %6351 = vmatmul.mubr.f32.gmra.mrb[0].mxu0 %v6284
    %v6352 = vpop.f32.mrb[0].mxu0
    %v6353 = vadd.f32 0.0, %v6352
    %v6354 = vpop.f32.mrb[0].mxu0
    %v6355 = vadd.f32 0.0, %v6354
    %6356 = vdwg.mxu0
    %6357 = vmatprep.subr.mxu0 %v5867
    %6358 = vmatpush1.msra.mxu0 %v5866
    %6359 = vmatprep.subr.mxu0 %v5871
    %6360 = vmatpush1.msra.mxu0 %v5870
    %6361 = vmatprep.subr.mxu0 %v5875
    %6362 = vmatpush1.msra.mxu0 %v5874
    %6363 = vmatprep.subr.mxu0 %v5879
    %6364 = vmatpush1.msra.mxu0 %v5878
    %6365 = vmatprep.subr.mxu0 %v5883
    %6366 = vmatpush1.msra.mxu0 %v5882
    %6367 = vmatprep.subr.mxu0 %v5887
    %6368 = vmatpush1.msra.mxu0 %v5886
    %6369 = vmatprep.subr.mxu0 %v5891
    %6370 = vmatpush1.msra.mxu0 %v5890
    %6371 = vmatprep.subr.mxu0 %v5895
    %6372 = vmatpush1.msra.mxu0 %v5894
    %6373 = vmatprep.subr.mxu0 %v5899
    %6374 = vmatpush1.msra.mxu0 %v5898
    %6375 = vmatprep.subr.mxu0 %v5903
    %6376 = vmatpush1.msra.mxu0 %v5902
    %6377 = vmatprep.subr.mxu0 %v5907
    %6378 = vmatpush1.msra.mxu0 %v5906
    %6379 = vmatprep.subr.mxu0 %v5911
    %6380 = vmatpush1.msra.mxu0 %v5910
    %6381 = vmatprep.subr.mxu0 %v5915
    %6382 = vmatpush1.msra.mxu0 %v5914
    %6383 = vmatprep.subr.mxu0 %v5919
    %6384 = vmatpush1.msra.mxu0 %v5918
    %6385 = vmatprep.subr.mxu0 %v5923
    %6386 = vmatpush1.msra.mxu0 %v5922
    %6387 = vmatprep.subr.mxu0 %v5927
    %6388 = vmatpush1.msra.mxu0 %v5926
    %6389 = vmatprep.subr.mxu0 0.0
    %6390 = vmatpush1.msra.mxu0 0.0
    %6391 = vmatprep.subr.mxu0 0.0
    %6392 = vmatpush1.msra.mxu0 0.0
    %6393 = vmatprep.subr.mxu0 0.0
    %6394 = vmatpush1.msra.mxu0 0.0
    %6395 = vmatprep.subr.mxu0 0.0
    %6396 = vmatpush1.msra.mxu0 0.0
    %6397 = vmatprep.subr.mxu0 0.0
    %6398 = vmatpush1.msra.mxu0 0.0
    %6399 = vmatprep.subr.mxu0 0.0
    %6400 = vmatpush1.msra.mxu0 0.0
    %6401 = vmatprep.subr.mxu0 0.0
    %6402 = vmatpush1.msra.mxu0 0.0
    %6403 = vmatprep.subr.mxu0 0.0
    %6404 = vmatpush1.msra.mxu0 0.0
    %6405 = vmatprep.subr.mxu0 0.0
    %6406 = vmatpush1.msra.mxu0 0.0
    %6407 = vmatprep.subr.mxu0 0.0
    %6408 = vmatpush1.msra.mxu0 0.0
    %6409 = vmatprep.subr.mxu0 0.0
    %6410 = vmatpush1.msra.mxu0 0.0
    %6411 = vmatprep.subr.mxu0 0.0
    %6412 = vmatpush1.msra.mxu0 0.0
    %6413 = vmatprep.subr.mxu0 0.0
    %6414 = vmatpush1.msra.mxu0 0.0
    %6415 = vmatprep.subr.mxu0 0.0
    %6416 = vmatpush1.msra.mxu0 0.0
    %6417 = vmatprep.subr.mxu0 0.0
    %6418 = vmatpush1.msra.mxu0 0.0
    %6419 = vmatprep.subr.mxu0 0.0
    %6420 = vmatpush1.msra.mxu0 0.0
    %6421 = vmatprep.mubr.f32.mxu0 0.0
    %6422 = vmatmul.mubr.f32.gmra.mrb[0].mxu0 %v6284
    %v6423 = vpop.f32.mrb[0].mxu0
    %v6424 = vadd.f32 0.0, %v6423
    %v6425 = vpop.f32.mrb[0].mxu0
    %v6426 = vadd.f32 0.0, %v6425
    %6427 = vdwg.mxu0
    %v6432 = vrot.slane %v6353, 4
    %v6433 = vrot.slane %v6355, 4
    %v6434 = vrot.slane %v6424, 4
    %v6435 = vrot.slane %v6426, 4
    %v6440 = vadd.f32 %v5777, %v6432
    %v6441 = vadd.f32 %v5779, %v6433
    %v6442 = vadd.f32 %v5854, %v6434
    %v6443 = vadd.f32 %v5856, %v6435
    %v6444 = vxor.u32 %v6440, 2147483648
    %v6445 = vmul.f32 %v6444, 1.442695
    %v6446 = vpow.pop %v6445
    %v6447 = vadd.f32 %v6446, 1.0
    %v6448 = vrcp.pop %v6447
    %v6449 = vmul.f32 1.0, %v6448
    %v6450 = vxor.u32 %v6441, 2147483648
    %v6451 = vmul.f32 %v6450, 1.442695
    %v6452 = vpow.pop %v6451
    %v6453 = vadd.f32 %v6452, 1.0
    %v6454 = vrcp.pop %v6453
    %v6455 = vmul.f32 1.0, %v6454
    %v6456 = vtanh.pop %v6442
    %v6457 = vxor.u32 %v6443, 2147483648
    %v6458 = vmul.f32 %v6457, 1.442695
    %v6459 = vpow.pop %v6458
    %v6460 = vadd.f32 %v6459, 1.0
    %v6461 = vrcp.pop %v6460
    %v6462 = vmul.f32 1.0, %v6461
    %v6464 = vrot.slane %v6280, 6
    %v6466 = vmul.f32 %v6455, %v6464
    %v6467 = vmul.f32 %v6449, %v6456
    %v6468 = vadd.f32 %v6466, %v6467
    %v6469 = vtanh.pop %v6468
    %v6470 = vmul.f32 %v6462, %v6469
    %v6472 = vrot.slane %v6470, 4
    %6474 = vmatprep.subr.mxu0 %v5865
    %6475 = vmatpush1.msra.mxu0 %v5864
    %6476 = vmatprep.subr.mxu0 %v5869
    %6477 = vmatpush1.msra.mxu0 %v5868
    %6478 = vmatprep.subr.mxu0 %v5873
    %6479 = vmatpush1.msra.mxu0 %v5872
    %6480 = vmatprep.subr.mxu0 %v5877
    %6481 = vmatpush1.msra.mxu0 %v5876
    %6482 = vmatprep.subr.mxu0 %v5881
    %6483 = vmatpush1.msra.mxu0 %v5880
    %6484 = vmatprep.subr.mxu0 %v5885
    %6485 = vmatpush1.msra.mxu0 %v5884
    %6486 = vmatprep.subr.mxu0 %v5889
    %6487 = vmatpush1.msra.mxu0 %v5888
    %6488 = vmatprep.subr.mxu0 %v5893
    %6489 = vmatpush1.msra.mxu0 %v5892
    %6490 = vmatprep.subr.mxu0 %v5897
    %6491 = vmatpush1.msra.mxu0 %v5896
    %6492 = vmatprep.subr.mxu0 %v5901
    %6493 = vmatpush1.msra.mxu0 %v5900
    %6494 = vmatprep.subr.mxu0 %v5905
    %6495 = vmatpush1.msra.mxu0 %v5904
    %6496 = vmatprep.subr.mxu0 %v5909
    %6497 = vmatpush1.msra.mxu0 %v5908
    %6498 = vmatprep.subr.mxu0 %v5913
    %6499 = vmatpush1.msra.mxu0 %v5912
    %6500 = vmatprep.subr.mxu0 %v5917
    %6501 = vmatpush1.msra.mxu0 %v5916
    %6502 = vmatprep.subr.mxu0 %v5921
    %6503 = vmatpush1.msra.mxu0 %v5920
    %6504 = vmatprep.subr.mxu0 %v5925
    %6505 = vmatpush1.msra.mxu0 %v5924
    %6506 = vmatprep.subr.mxu0 0.0
    %6507 = vmatpush1.msra.mxu0 0.0
    %6508 = vmatprep.subr.mxu0 0.0
    %6509 = vmatpush1.msra.mxu0 0.0
    %6510 = vmatprep.subr.mxu0 0.0
    %6511 = vmatpush1.msra.mxu0 0.0
    %6512 = vmatprep.subr.mxu0 0.0
    %6513 = vmatpush1.msra.mxu0 0.0
    %6514 = vmatprep.subr.mxu0 0.0
    %6515 = vmatpush1.msra.mxu0 0.0
    %6516 = vmatprep.subr.mxu0 0.0
    %6517 = vmatpush1.msra.mxu0 0.0
    %6518 = vmatprep.subr.mxu0 0.0
    %6519 = vmatpush1.msra.mxu0 0.0
    %6520 = vmatprep.subr.mxu0 0.0
    %6521 = vmatpush1.msra.mxu0 0.0
    %6522 = vmatprep.subr.mxu0 0.0
    %6523 = vmatpush1.msra.mxu0 0.0
    %6524 = vmatprep.subr.mxu0 0.0
    %6525 = vmatpush1.msra.mxu0 0.0
    %6526 = vmatprep.subr.mxu0 0.0
    %6527 = vmatpush1.msra.mxu0 0.0
    %6528 = vmatprep.subr.mxu0 0.0
    %6529 = vmatpush1.msra.mxu0 0.0
    %6530 = vmatprep.subr.mxu0 0.0
    %6531 = vmatpush1.msra.mxu0 0.0
    %6532 = vmatprep.subr.mxu0 0.0
    %6533 = vmatpush1.msra.mxu0 0.0
    %6534 = vmatprep.subr.mxu0 0.0
    %6535 = vmatpush1.msra.mxu0 0.0
    %6536 = vmatprep.subr.mxu0 0.0
    %6537 = vmatpush1.msra.mxu0 0.0
    %6538 = vmatprep.mubr.f32.mxu0 0.0
    %6539 = vmatmul.mubr.f32.gmra.mrb[0].mxu0 %v6472
    %v6540 = vpop.f32.mrb[0].mxu0
    %v6541 = vadd.f32 0.0, %v6540
    %v6542 = vpop.f32.mrb[0].mxu0
    %v6543 = vadd.f32 0.0, %v6542
    %6544 = vdwg.mxu0
    %6545 = vmatprep.subr.mxu0 %v5867
    %6546 = vmatpush1.msra.mxu0 %v5866
    %6547 = vmatprep.subr.mxu0 %v5871
    %6548 = vmatpush1.msra.mxu0 %v5870
    %6549 = vmatprep.subr.mxu0 %v5875
    %6550 = vmatpush1.msra.mxu0 %v5874
    %6551 = vmatprep.subr.mxu0 %v5879
    %6552 = vmatpush1.msra.mxu0 %v5878
    %6553 = vmatprep.subr.mxu0 %v5883
    %6554 = vmatpush1.msra.mxu0 %v5882
    %6555 = vmatprep.subr.mxu0 %v5887
    %6556 = vmatpush1.msra.mxu0 %v5886
    %6557 = vmatprep.subr.mxu0 %v5891
    %6558 = vmatpush1.msra.mxu0 %v5890
    %6559 = vmatprep.subr.mxu0 %v5895
    %6560 = vmatpush1.msra.mxu0 %v5894
    %6561 = vmatprep.subr.mxu0 %v5899
    %6562 = vmatpush1.msra.mxu0 %v5898
    %6563 = vmatprep.subr.mxu0 %v5903
    %6564 = vmatpush1.msra.mxu0 %v5902
    %6565 = vmatprep.subr.mxu0 %v5907
    %6566 = vmatpush1.msra.mxu0 %v5906
    %6567 = vmatprep.subr.mxu0 %v5911
    %6568 = vmatpush1.msra.mxu0 %v5910
    %6569 = vmatprep.subr.mxu0 %v5915
    %6570 = vmatpush1.msra.mxu0 %v5914
    %6571 = vmatprep.subr.mxu0 %v5919
    %6572 = vmatpush1.msra.mxu0 %v5918
    %6573 = vmatprep.subr.mxu0 %v5923
    %6574 = vmatpush1.msra.mxu0 %v5922
    %6575 = vmatprep.subr.mxu0 %v5927
    %6576 = vmatpush1.msra.mxu0 %v5926
    %6577 = vmatprep.subr.mxu0 0.0
    %6578 = vmatpush1.msra.mxu0 0.0
    %6579 = vmatprep.subr.mxu0 0.0
    %6580 = vmatpush1.msra.mxu0 0.0
    %6581 = vmatprep.subr.mxu0 0.0
    %6582 = vmatpush1.msra.mxu0 0.0
    %6583 = vmatprep.subr.mxu0 0.0
    %6584 = vmatpush1.msra.mxu0 0.0
    %6585 = vmatprep.subr.mxu0 0.0
    %6586 = vmatpush1.msra.mxu0 0.0
    %6587 = vmatprep.subr.mxu0 0.0
    %6588 = vmatpush1.msra.mxu0 0.0
    %6589 = vmatprep.subr.mxu0 0.0
    %6590 = vmatpush1.msra.mxu0 0.0
    %6591 = vmatprep.subr.mxu0 0.0
    %6592 = vmatpush1.msra.mxu0 0.0
    %6593 = vmatprep.subr.mxu0 0.0
    %6594 = vmatpush1.msra.mxu0 0.0
    %6595 = vmatprep.subr.mxu0 0.0
    %6596 = vmatpush1.msra.mxu0 0.0
    %6597 = vmatprep.subr.mxu0 0.0
    %6598 = vmatpush1.msra.mxu0 0.0
    %6599 = vmatprep.subr.mxu0 0.0
    %6600 = vmatpush1.msra.mxu0 0.0
    %6601 = vmatprep.subr.mxu0 0.0
    %6602 = vmatpush1.msra.mxu0 0.0
    %6603 = vmatprep.subr.mxu0 0.0
    %6604 = vmatpush1.msra.mxu0 0.0
    %6605 = vmatprep.subr.mxu0 0.0
    %6606 = vmatpush1.msra.mxu0 0.0
    %6607 = vmatprep.subr.mxu0 0.0
    %6608 = vmatpush1.msra.mxu0 0.0
    %6609 = vmatprep.mubr.f32.mxu0 0.0
    %6610 = vmatmul.mubr.f32.gmra.mrb[0].mxu0 %v6472
    %v6611 = vpop.f32.mrb[0].mxu0
    %v6612 = vadd.f32 0.0, %v6611
    %v6613 = vpop.f32.mrb[0].mxu0
    %v6614 = vadd.f32 0.0, %v6613
    %6615 = vdwg.mxu0
    %v6620 = vrot.slane %v6541, 2
    %v6621 = vrot.slane %v6543, 2
    %v6622 = vrot.slane %v6612, 2
    %v6623 = vrot.slane %v6614, 2
    %v6628 = vadd.f32 %v5777, %v6620
    %v6629 = vadd.f32 %v5779, %v6621
    %v6630 = vadd.f32 %v5854, %v6622
    %v6631 = vadd.f32 %v5856, %v6623
    %v6632 = vxor.u32 %v6628, 2147483648
    %v6633 = vmul.f32 %v6632, 1.442695
    %v6634 = vpow.pop %v6633
    %v6635 = vadd.f32 %v6634, 1.0
    %v6636 = vrcp.pop %v6635
    %v6637 = vmul.f32 1.0, %v6636
    %v6638 = vxor.u32 %v6629, 2147483648
    %v6639 = vmul.f32 %v6638, 1.442695
    %v6640 = vpow.pop %v6639
    %v6641 = vadd.f32 %v6640, 1.0
    %v6642 = vrcp.pop %v6641
    %v6643 = vmul.f32 1.0, %v6642
    %v6644 = vtanh.pop %v6630
    %v6645 = vxor.u32 %v6631, 2147483648
    %v6646 = vmul.f32 %v6645, 1.442695
    %v6647 = vpow.pop %v6646
    %v6648 = vadd.f32 %v6647, 1.0
    %v6649 = vrcp.pop %v6648
    %v6650 = vmul.f32 1.0, %v6649
    %v6652 = vrot.slane %v6468, 6
    %v6654 = vmul.f32 %v6643, %v6652
    %v6655 = vmul.f32 %v6637, %v6644
    %v6656 = vadd.f32 %v6654, %v6655
    %v6657 = vtanh.pop %v6656
    %v6658 = vmul.f32 %v6650, %v6657
    %v6660 = vrot.slane %v6658, 6
    %6662 = vmatprep.subr.mxu0 %v5865
    %6663 = vmatpush1.msra.mxu0 %v5864
    %6664 = vmatprep.subr.mxu0 %v5869
    %6665 = vmatpush1.msra.mxu0 %v5868
    %6666 = vmatprep.subr.mxu0 %v5873
    %6667 = vmatpush1.msra.mxu0 %v5872
    %6668 = vmatprep.subr.mxu0 %v5877
    %6669 = vmatpush1.msra.mxu0 %v5876
    %6670 = vmatprep.subr.mxu0 %v5881
    %6671 = vmatpush1.msra.mxu0 %v5880
    %6672 = vmatprep.subr.mxu0 %v5885
    %6673 = vmatpush1.msra.mxu0 %v5884
    %6674 = vmatprep.subr.mxu0 %v5889
    %6675 = vmatpush1.msra.mxu0 %v5888
    %6676 = vmatprep.subr.mxu0 %v5893
    %6677 = vmatpush1.msra.mxu0 %v5892
    %6678 = vmatprep.subr.mxu0 %v5897
    %6679 = vmatpush1.msra.mxu0 %v5896
    %6680 = vmatprep.subr.mxu0 %v5901
    %6681 = vmatpush1.msra.mxu0 %v5900
    %6682 = vmatprep.subr.mxu0 %v5905
    %6683 = vmatpush1.msra.mxu0 %v5904
    %6684 = vmatprep.subr.mxu0 %v5909
    %6685 = vmatpush1.msra.mxu0 %v5908
    %6686 = vmatprep.subr.mxu0 %v5913
    %6687 = vmatpush1.msra.mxu0 %v5912
    %6688 = vmatprep.subr.mxu0 %v5917
    %6689 = vmatpush1.msra.mxu0 %v5916
    %6690 = vmatprep.subr.mxu0 %v5921
    %6691 = vmatpush1.msra.mxu0 %v5920
    %6692 = vmatprep.subr.mxu0 %v5925
    %6693 = vmatpush1.msra.mxu0 %v5924
    %6694 = vmatprep.subr.mxu0 0.0
    %6695 = vmatpush1.msra.mxu0 0.0
    %6696 = vmatprep.subr.mxu0 0.0
    %6697 = vmatpush1.msra.mxu0 0.0
    %6698 = vmatprep.subr.mxu0 0.0
    %6699 = vmatpush1.msra.mxu0 0.0
    %6700 = vmatprep.subr.mxu0 0.0
    %6701 = vmatpush1.msra.mxu0 0.0
    %6702 = vmatprep.subr.mxu0 0.0
    %6703 = vmatpush1.msra.mxu0 0.0
    %6704 = vmatprep.subr.mxu0 0.0
    %6705 = vmatpush1.msra.mxu0 0.0
    %6706 = vmatprep.subr.mxu0 0.0
    %6707 = vmatpush1.msra.mxu0 0.0
    %6708 = vmatprep.subr.mxu0 0.0
    %6709 = vmatpush1.msra.mxu0 0.0
    %6710 = vmatprep.subr.mxu0 0.0
    %6711 = vmatpush1.msra.mxu0 0.0
    %6712 = vmatprep.subr.mxu0 0.0
    %6713 = vmatpush1.msra.mxu0 0.0
    %6714 = vmatprep.subr.mxu0 0.0
    %6715 = vmatpush1.msra.mxu0 0.0
    %6716 = vmatprep.subr.mxu0 0.0
    %6717 = vmatpush1.msra.mxu0 0.0
    %6718 = vmatprep.subr.mxu0 0.0
    %6719 = vmatpush1.msra.mxu0 0.0
    %6720 = vmatprep.subr.mxu0 0.0
    %6721 = vmatpush1.msra.mxu0 0.0
    %6722 = vmatprep.subr.mxu0 0.0
    %6723 = vmatpush1.msra.mxu0 0.0
    %6724 = vmatprep.subr.mxu0 0.0
    %6725 = vmatpush1.msra.mxu0 0.0
    %6726 = vmatprep.mubr.f32.mxu0 0.0
    %6727 = vmatmul.mubr.f32.gmra.mrb[0].mxu0 %v6660
    %v6728 = vpop.f32.mrb[0].mxu0
    %v6729 = vadd.f32 0.0, %v6728
    %v6730 = vpop.f32.mrb[0].mxu0
    %v6731 = vadd.f32 0.0, %v6730
    %6732 = vdwg.mxu0
    %6733 = vmatprep.subr.mxu0 %v5867
    %6734 = vmatpush1.msra.mxu0 %v5866
    %6735 = vmatprep.subr.mxu0 %v5871
    %6736 = vmatpush1.msra.mxu0 %v5870
    %6737 = vmatprep.subr.mxu0 %v5875
    %6738 = vmatpush1.msra.mxu0 %v5874
    %6739 = vmatprep.subr.mxu0 %v5879
    %6740 = vmatpush1.msra.mxu0 %v5878
    %6741 = vmatprep.subr.mxu0 %v5883
    %6742 = vmatpush1.msra.mxu0 %v5882
    %6743 = vmatprep.subr.mxu0 %v5887
    %6744 = vmatpush1.msra.mxu0 %v5886
    %6745 = vmatprep.subr.mxu0 %v5891
    %6746 = vmatpush1.msra.mxu0 %v5890
    %6747 = vmatprep.subr.mxu0 %v5895
    %6748 = vmatpush1.msra.mxu0 %v5894
    %6749 = vmatprep.subr.mxu0 %v5899
    %6750 = vmatpush1.msra.mxu0 %v5898
    %6751 = vmatprep.subr.mxu0 %v5903
    %6752 = vmatpush1.msra.mxu0 %v5902
    %6753 = vmatprep.subr.mxu0 %v5907
    %6754 = vmatpush1.msra.mxu0 %v5906
    %6755 = vmatprep.subr.mxu0 %v5911
    %6756 = vmatpush1.msra.mxu0 %v5910
    %6757 = vmatprep.subr.mxu0 %v5915
    %6758 = vmatpush1.msra.mxu0 %v5914
    %6759 = vmatprep.subr.mxu0 %v5919
    %6760 = vmatpush1.msra.mxu0 %v5918
    %6761 = vmatprep.subr.mxu0 %v5923
    %6762 = vmatpush1.msra.mxu0 %v5922
    %6763 = vmatprep.subr.mxu0 %v5927
    %6764 = vmatpush1.msra.mxu0 %v5926
    %6765 = vmatprep.subr.mxu0 0.0
    %6766 = vmatpush1.msra.mxu0 0.0
    %6767 = vmatprep.subr.mxu0 0.0
    %6768 = vmatpush1.msra.mxu0 0.0
    %6769 = vmatprep.subr.mxu0 0.0
    %6770 = vmatpush1.msra.mxu0 0.0
    %6771 = vmatprep.subr.mxu0 0.0
    %6772 = vmatpush1.msra.mxu0 0.0
    %6773 = vmatprep.subr.mxu0 0.0
    %6774 = vmatpush1.msra.mxu0 0.0
    %6775 = vmatprep.subr.mxu0 0.0
    %6776 = vmatpush1.msra.mxu0 0.0
    %6777 = vmatprep.subr.mxu0 0.0
    %6778 = vmatpush1.msra.mxu0 0.0
    %6779 = vmatprep.subr.mxu0 0.0
    %6780 = vmatpush1.msra.mxu0 0.0
    %6781 = vmatprep.subr.mxu0 0.0
    %6782 = vmatpush1.msra.mxu0 0.0
    %6783 = vmatprep.subr.mxu0 0.0
    %6784 = vmatpush1.msra.mxu0 0.0
    %6785 = vmatprep.subr.mxu0 0.0
    %6786 = vmatpush1.msra.mxu0 0.0
    %6787 = vmatprep.subr.mxu0 0.0
    %6788 = vmatpush1.msra.mxu0 0.0
    %6789 = vmatprep.subr.mxu0 0.0
    %6790 = vmatpush1.msra.mxu0 0.0
    %6791 = vmatprep.subr.mxu0 0.0
    %6792 = vmatpush1.msra.mxu0 0.0
    %6793 = vmatprep.subr.mxu0 0.0
    %6794 = vmatpush1.msra.mxu0 0.0
    %6795 = vmatprep.subr.mxu0 0.0
    %6796 = vmatpush1.msra.mxu0 0.0
    %6797 = vmatprep.mubr.f32.mxu0 0.0
    %6798 = vmatmul.mubr.f32.gmra.mrb[0].mxu0 %v6660
    %v6799 = vpop.f32.mrb[0].mxu0
    %v6800 = vadd.f32 0.0, %v6799
    %v6801 = vpop.f32.mrb[0].mxu0
    %v6802 = vadd.f32 0.0, %v6801
    %6803 = vdwg.mxu0
    %v6804 = vadd.f32 %v5783, %v6729
    %v6805 = vadd.f32 %v5785, %v6731
    %v6806 = vadd.f32 %v5860, %v6800
    %v6807 = vadd.f32 %v5862, %v6802
    %v6808 = vxor.u32 %v6804, 2147483648
    %v6809 = vmul.f32 %v6808, 1.442695
    %v6810 = vpow.pop %v6809
    %v6811 = vadd.f32 %v6810, 1.0
    %v6812 = vrcp.pop %v6811
    %v6813 = vmul.f32 1.0, %v6812
    %v6814 = vxor.u32 %v6805, 2147483648
    %v6815 = vmul.f32 %v6814, 1.442695
    %v6816 = vpow.pop %v6815
    %v6817 = vadd.f32 %v6816, 1.0
    %v6818 = vrcp.pop %v6817
    %v6819 = vmul.f32 1.0, %v6818
    %v6820 = vtanh.pop %v6806
    %v6821 = vxor.u32 %v6807, 2147483648
    %v6822 = vmul.f32 %v6821, 1.442695
    %v6823 = vpow.pop %v6822
    %v6824 = vadd.f32 %v6823, 1.0
    %v6825 = vrcp.pop %v6824
    %v6826 = vmul.f32 1.0, %v6825
    %v6828 = vrot.slane %v6656, 6
    %v6830 = vmul.f32 %v6819, %v6828
    %v6831 = vmul.f32 %v6813, %v6820
    %v6832 = vadd.f32 %v6830, %v6831
    %v6833 = vtanh.pop %v6832
    %v6834 = vmul.f32 %v6826, %v6833
    %6835 = vmatprep.subr.mxu0 %v5865
    %6836 = vmatpush1.msra.mxu0 %v5864
    %6837 = vmatprep.subr.mxu0 %v5869
    %6838 = vmatpush1.msra.mxu0 %v5868
    %6839 = vmatprep.subr.mxu0 %v5873
    %6840 = vmatpush1.msra.mxu0 %v5872
    %6841 = vmatprep.subr.mxu0 %v5877
    %6842 = vmatpush1.msra.mxu0 %v5876
    %6843 = vmatprep.subr.mxu0 %v5881
    %6844 = vmatpush1.msra.mxu0 %v5880
    %6845 = vmatprep.subr.mxu0 %v5885
    %6846 = vmatpush1.msra.mxu0 %v5884
    %6847 = vmatprep.subr.mxu0 %v5889
    %6848 = vmatpush1.msra.mxu0 %v5888
    %6849 = vmatprep.subr.mxu0 %v5893
    %6850 = vmatpush1.msra.mxu0 %v5892
    %6851 = vmatprep.subr.mxu0 %v5897
    %6852 = vmatpush1.msra.mxu0 %v5896
    %6853 = vmatprep.subr.mxu0 %v5901
    %6854 = vmatpush1.msra.mxu0 %v5900
    %6855 = vmatprep.subr.mxu0 %v5905
    %6856 = vmatpush1.msra.mxu0 %v5904
    %6857 = vmatprep.subr.mxu0 %v5909
    %6858 = vmatpush1.msra.mxu0 %v5908
    %6859 = vmatprep.subr.mxu0 %v5913
    %6860 = vmatpush1.msra.mxu0 %v5912
    %6861 = vmatprep.subr.mxu0 %v5917
    %6862 = vmatpush1.msra.mxu0 %v5916
    %6863 = vmatprep.subr.mxu0 %v5921
    %6864 = vmatpush1.msra.mxu0 %v5920
    %6865 = vmatprep.subr.mxu0 %v5925
    %6866 = vmatpush1.msra.mxu0 %v5924
    %6867 = vmatprep.subr.mxu0 0.0
    %6868 = vmatpush1.msra.mxu0 0.0
    %6869 = vmatprep.subr.mxu0 0.0
    %6870 = vmatpush1.msra.mxu0 0.0
    %6871 = vmatprep.subr.mxu0 0.0
    %6872 = vmatpush1.msra.mxu0 0.0
    %6873 = vmatprep.subr.mxu0 0.0
    %6874 = vmatpush1.msra.mxu0 0.0
    %6875 = vmatprep.subr.mxu0 0.0
    %6876 = vmatpush1.msra.mxu0 0.0
    %6877 = vmatprep.subr.mxu0 0.0
    %6878 = vmatpush1.msra.mxu0 0.0
    %6879 = vmatprep.subr.mxu0 0.0
    %6880 = vmatpush1.msra.mxu0 0.0
    %6881 = vmatprep.subr.mxu0 0.0
    %6882 = vmatpush1.msra.mxu0 0.0
    %6883 = vmatprep.subr.mxu0 0.0
    %6884 = vmatpush1.msra.mxu0 0.0
    %6885 = vmatprep.subr.mxu0 0.0
    %6886 = vmatpush1.msra.mxu0 0.0
    %6887 = vmatprep.subr.mxu0 0.0
    %6888 = vmatpush1.msra.mxu0 0.0
    %6889 = vmatprep.subr.mxu0 0.0
    %6890 = vmatpush1.msra.mxu0 0.0
    %6891 = vmatprep.subr.mxu0 0.0
    %6892 = vmatpush1.msra.mxu0 0.0
    %6893 = vmatprep.subr.mxu0 0.0
    %6894 = vmatpush1.msra.mxu0 0.0
    %6895 = vmatprep.subr.mxu0 0.0
    %6896 = vmatpush1.msra.mxu0 0.0
    %6897 = vmatprep.subr.mxu0 0.0
    %6898 = vmatpush1.msra.mxu0 0.0
    %6899 = vmatprep.mubr.f32.mxu0 0.0
    %6900 = vmatmul.mubr.f32.gmra.mrb[0].mxu0 %v6834
    %v6901 = vpop.f32.mrb[0].mxu0
    %v6902 = vadd.f32 0.0, %v6901
    %v6903 = vpop.f32.mrb[0].mxu0
    %v6904 = vadd.f32 0.0, %v6903
    %6905 = vdwg.mxu0
    %6906 = vmatprep.subr.mxu0 %v5867
    %6907 = vmatpush1.msra.mxu0 %v5866
    %6908 = vmatprep.subr.mxu0 %v5871
    %6909 = vmatpush1.msra.mxu0 %v5870
    %6910 = vmatprep.subr.mxu0 %v5875
    %6911 = vmatpush1.msra.mxu0 %v5874
    %6912 = vmatprep.subr.mxu0 %v5879
    %6913 = vmatpush1.msra.mxu0 %v5878
    %6914 = vmatprep.subr.mxu0 %v5883
    %6915 = vmatpush1.msra.mxu0 %v5882
    %6916 = vmatprep.subr.mxu0 %v5887
    %6917 = vmatpush1.msra.mxu0 %v5886
    %6918 = vmatprep.subr.mxu0 %v5891
    %6919 = vmatpush1.msra.mxu0 %v5890
    %6920 = vmatprep.subr.mxu0 %v5895
    %6921 = vmatpush1.msra.mxu0 %v5894
    %6922 = vmatprep.subr.mxu0 %v5899
    %6923 = vmatpush1.msra.mxu0 %v5898
    %6924 = vmatprep.subr.mxu0 %v5903
    %6925 = vmatpush1.msra.mxu0 %v5902
    %6926 = vmatprep.subr.mxu0 %v5907
    %6927 = vmatpush1.msra.mxu0 %v5906
    %6928 = vmatprep.subr.mxu0 %v5911
    %6929 = vmatpush1.msra.mxu0 %v5910
    %6930 = vmatprep.subr.mxu0 %v5915
    %6931 = vmatpush1.msra.mxu0 %v5914
    %6932 = vmatprep.subr.mxu0 %v5919
    %6933 = vmatpush1.msra.mxu0 %v5918
    %6934 = vmatprep.subr.mxu0 %v5923
    %6935 = vmatpush1.msra.mxu0 %v5922
    %6936 = vmatprep.subr.mxu0 %v5927
    %6937 = vmatpush1.msra.mxu0 %v5926
    %6938 = vmatprep.subr.mxu0 0.0
    %6939 = vmatpush1.msra.mxu0 0.0
    %6940 = vmatprep.subr.mxu0 0.0
    %6941 = vmatpush1.msra.mxu0 0.0
    %6942 = vmatprep.subr.mxu0 0.0
    %6943 = vmatpush1.msra.mxu0 0.0
    %6944 = vmatprep.subr.mxu0 0.0
    %6945 = vmatpush1.msra.mxu0 0.0
    %6946 = vmatprep.subr.mxu0 0.0
    %6947 = vmatpush1.msra.mxu0 0.0
    %6948 = vmatprep.subr.mxu0 0.0
    %6949 = vmatpush1.msra.mxu0 0.0
    %6950 = vmatprep.subr.mxu0 0.0
    %6951 = vmatpush1.msra.mxu0 0.0
    %6952 = vmatprep.subr.mxu0 0.0
    %6953 = vmatpush1.msra.mxu0 0.0
    %6954 = vmatprep.subr.mxu0 0.0
    %6955 = vmatpush1.msra.mxu0 0.0
    %6956 = vmatprep.subr.mxu0 0.0
    %6957 = vmatpush1.msra.mxu0 0.0
    %6958 = vmatprep.subr.mxu0 0.0
    %6959 = vmatpush1.msra.mxu0 0.0
    %6960 = vmatprep.subr.mxu0 0.0
    %6961 = vmatpush1.msra.mxu0 0.0
    %6962 = vmatprep.subr.mxu0 0.0
    %6963 = vmatpush1.msra.mxu0 0.0
    %6964 = vmatprep.subr.mxu0 0.0
    %6965 = vmatpush1.msra.mxu0 0.0
    %6966 = vmatprep.subr.mxu0 0.0
    %6967 = vmatpush1.msra.mxu0 0.0
    %6968 = vmatprep.subr.mxu0 0.0
    %6969 = vmatpush1.msra.mxu0 0.0
    %6970 = vmatprep.mubr.f32.mxu0 0.0
    %6971 = vmatmul.mubr.f32.gmra.mrb[0].mxu0 %v6834
    %v6972 = vpop.f32.mrb[0].mxu0
    %v6973 = vadd.f32 0.0, %v6972
    %v6974 = vpop.f32.mrb[0].mxu0
    %v6975 = vadd.f32 0.0, %v6974
    %6976 = vdwg.mxu0
    %v6981 = vrot.slane %v6902, 6
    %v6982 = vrot.slane %v6904, 6
    %v6983 = vrot.slane %v6973, 6
    %v6984 = vrot.slane %v6975, 6
    %v6989 = vadd.f32 %v5783, %v6981
    %v6990 = vadd.f32 %v5785, %v6982
    %v6991 = vadd.f32 %v5860, %v6983
    %v6992 = vadd.f32 %v5862, %v6984
    %v6993 = vxor.u32 %v6989, 2147483648
    %v6994 = vmul.f32 %v6993, 1.442695
    %v6995 = vpow.pop %v6994
    %v6996 = vadd.f32 %v6995, 1.0
    %v6997 = vrcp.pop %v6996
    %v6998 = vmul.f32 1.0, %v6997
    %v6999 = vxor.u32 %v6990, 2147483648
    %v7000 = vmul.f32 %v6999, 1.442695
    %v7001 = vpow.pop %v7000
    %v7002 = vadd.f32 %v7001, 1.0
    %v7003 = vrcp.pop %v7002
    %v7004 = vmul.f32 1.0, %v7003
    %v7005 = vtanh.pop %v6991
    %v7006 = vxor.u32 %v6992, 2147483648
    %v7007 = vmul.f32 %v7006, 1.442695
    %v7008 = vpow.pop %v7007
    %v7009 = vadd.f32 %v7008, 1.0
    %v7010 = vrcp.pop %v7009
    %v7011 = vmul.f32 1.0, %v7010
    %v7013 = vrot.slane %v6832, 6
    %v7015 = vmul.f32 %v7004, %v7013
    %v7016 = vmul.f32 %v6998, %v7005
    %v7017 = vadd.f32 %v7015, %v7016
    %v7018 = vtanh.pop %v7017
    %v7019 = vmul.f32 %v7011, %v7018
    %v7021 = vrot.slane %v7019, 2
    %7023 = vmatprep.subr.mxu0 %v5865
    %7024 = vmatpush1.msra.mxu0 %v5864
    %7025 = vmatprep.subr.mxu0 %v5869
    %7026 = vmatpush1.msra.mxu0 %v5868
    %7027 = vmatprep.subr.mxu0 %v5873
    %7028 = vmatpush1.msra.mxu0 %v5872
    %7029 = vmatprep.subr.mxu0 %v5877
    %7030 = vmatpush1.msra.mxu0 %v5876
    %7031 = vmatprep.subr.mxu0 %v5881
    %7032 = vmatpush1.msra.mxu0 %v5880
    %7033 = vmatprep.subr.mxu0 %v5885
    %7034 = vmatpush1.msra.mxu0 %v5884
    %7035 = vmatprep.subr.mxu0 %v5889
    %7036 = vmatpush1.msra.mxu0 %v5888
    %7037 = vmatprep.subr.mxu0 %v5893
    %7038 = vmatpush1.msra.mxu0 %v5892
    %7039 = vmatprep.subr.mxu0 %v5897
    %7040 = vmatpush1.msra.mxu0 %v5896
    %7041 = vmatprep.subr.mxu0 %v5901
    %7042 = vmatpush1.msra.mxu0 %v5900
    %7043 = vmatprep.subr.mxu0 %v5905
    %7044 = vmatpush1.msra.mxu0 %v5904
    %7045 = vmatprep.subr.mxu0 %v5909
    %7046 = vmatpush1.msra.mxu0 %v5908
    %7047 = vmatprep.subr.mxu0 %v5913
    %7048 = vmatpush1.msra.mxu0 %v5912
    %7049 = vmatprep.subr.mxu0 %v5917
    %7050 = vmatpush1.msra.mxu0 %v5916
    %7051 = vmatprep.subr.mxu0 %v5921
    %7052 = vmatpush1.msra.mxu0 %v5920
    %7053 = vmatprep.subr.mxu0 %v5925
    %7054 = vmatpush1.msra.mxu0 %v5924
    %7055 = vmatprep.subr.mxu0 0.0
    %7056 = vmatpush1.msra.mxu0 0.0
    %7057 = vmatprep.subr.mxu0 0.0
    %7058 = vmatpush1.msra.mxu0 0.0
    %7059 = vmatprep.subr.mxu0 0.0
    %7060 = vmatpush1.msra.mxu0 0.0
    %7061 = vmatprep.subr.mxu0 0.0
    %7062 = vmatpush1.msra.mxu0 0.0
    %7063 = vmatprep.subr.mxu0 0.0
    %7064 = vmatpush1.msra.mxu0 0.0
    %7065 = vmatprep.subr.mxu0 0.0
    %7066 = vmatpush1.msra.mxu0 0.0
    %7067 = vmatprep.subr.mxu0 0.0
    %7068 = vmatpush1.msra.mxu0 0.0
    %7069 = vmatprep.subr.mxu0 0.0
    %7070 = vmatpush1.msra.mxu0 0.0
    %7071 = vmatprep.subr.mxu0 0.0
    %7072 = vmatpush1.msra.mxu0 0.0
    %7073 = vmatprep.subr.mxu0 0.0
    %7074 = vmatpush1.msra.mxu0 0.0
    %7075 = vmatprep.subr.mxu0 0.0
    %7076 = vmatpush1.msra.mxu0 0.0
    %7077 = vmatprep.subr.mxu0 0.0
    %7078 = vmatpush1.msra.mxu0 0.0
    %7079 = vmatprep.subr.mxu0 0.0
    %7080 = vmatpush1.msra.mxu0 0.0
    %7081 = vmatprep.subr.mxu0 0.0
    %7082 = vmatpush1.msra.mxu0 0.0
    %7083 = vmatprep.subr.mxu0 0.0
    %7084 = vmatpush1.msra.mxu0 0.0
    %7085 = vmatprep.subr.mxu0 0.0
    %7086 = vmatpush1.msra.mxu0 0.0
    %7087 = vmatprep.mubr.f32.mxu0 0.0
    %7088 = vmatmul.mubr.f32.gmra.mrb[0].mxu0 %v7021
    %v7089 = vpop.f32.mrb[0].mxu0
    %v7090 = vadd.f32 0.0, %v7089
    %v7091 = vpop.f32.mrb[0].mxu0
    %v7092 = vadd.f32 0.0, %v7091
    %7093 = vdwg.mxu0
    %7094 = vmatprep.subr.mxu0 %v5867
    %7095 = vmatpush1.msra.mxu0 %v5866
    %7096 = vmatprep.subr.mxu0 %v5871
    %7097 = vmatpush1.msra.mxu0 %v5870
    %7098 = vmatprep.subr.mxu0 %v5875
    %7099 = vmatpush1.msra.mxu0 %v5874
    %7100 = vmatprep.subr.mxu0 %v5879
    %7101 = vmatpush1.msra.mxu0 %v5878
    %7102 = vmatprep.subr.mxu0 %v5883
    %7103 = vmatpush1.msra.mxu0 %v5882
    %7104 = vmatprep.subr.mxu0 %v5887
    %7105 = vmatpush1.msra.mxu0 %v5886
    %7106 = vmatprep.subr.mxu0 %v5891
    %7107 = vmatpush1.msra.mxu0 %v5890
    %7108 = vmatprep.subr.mxu0 %v5895
    %7109 = vmatpush1.msra.mxu0 %v5894
    %7110 = vmatprep.subr.mxu0 %v5899
    %7111 = vmatpush1.msra.mxu0 %v5898
    %7112 = vmatprep.subr.mxu0 %v5903
    %7113 = vmatpush1.msra.mxu0 %v5902
    %7114 = vmatprep.subr.mxu0 %v5907
    %7115 = vmatpush1.msra.mxu0 %v5906
    %7116 = vmatprep.subr.mxu0 %v5911
    %7117 = vmatpush1.msra.mxu0 %v5910
    %7118 = vmatprep.subr.mxu0 %v5915
    %7119 = vmatpush1.msra.mxu0 %v5914
    %7120 = vmatprep.subr.mxu0 %v5919
    %7121 = vmatpush1.msra.mxu0 %v5918
    %7122 = vmatprep.subr.mxu0 %v5923
    %7123 = vmatpush1.msra.mxu0 %v5922
    %7124 = vmatprep.subr.mxu0 %v5927
    %7125 = vmatpush1.msra.mxu0 %v5926
    %7126 = vmatprep.subr.mxu0 0.0
    %7127 = vmatpush1.msra.mxu0 0.0
    %7128 = vmatprep.subr.mxu0 0.0
    %7129 = vmatpush1.msra.mxu0 0.0
    %7130 = vmatprep.subr.mxu0 0.0
    %7131 = vmatpush1.msra.mxu0 0.0
    %7132 = vmatprep.subr.mxu0 0.0
    %7133 = vmatpush1.msra.mxu0 0.0
    %7134 = vmatprep.subr.mxu0 0.0
    %7135 = vmatpush1.msra.mxu0 0.0
    %7136 = vmatprep.subr.mxu0 0.0
    %7137 = vmatpush1.msra.mxu0 0.0
    %7138 = vmatprep.subr.mxu0 0.0
    %7139 = vmatpush1.msra.mxu0 0.0
    %7140 = vmatprep.subr.mxu0 0.0
    %7141 = vmatpush1.msra.mxu0 0.0
    %7142 = vmatprep.subr.mxu0 0.0
    %7143 = vmatpush1.msra.mxu0 0.0
    %7144 = vmatprep.subr.mxu0 0.0
    %7145 = vmatpush1.msra.mxu0 0.0
    %7146 = vmatprep.subr.mxu0 0.0
    %7147 = vmatpush1.msra.mxu0 0.0
    %7148 = vmatprep.subr.mxu0 0.0
    %7149 = vmatpush1.msra.mxu0 0.0
    %7150 = vmatprep.subr.mxu0 0.0
    %7151 = vmatpush1.msra.mxu0 0.0
    %7152 = vmatprep.subr.mxu0 0.0
    %7153 = vmatpush1.msra.mxu0 0.0
    %7154 = vmatprep.subr.mxu0 0.0
    %7155 = vmatpush1.msra.mxu0 0.0
    %7156 = vmatprep.subr.mxu0 0.0
    %7157 = vmatpush1.msra.mxu0 0.0
    %7158 = vmatprep.mubr.f32.mxu0 0.0
    %7159 = vmatmul.mubr.f32.gmra.mrb[0].mxu0 %v7021
    %v7160 = vpop.f32.mrb[0].mxu0
    %v7161 = vadd.f32 0.0, %v7160
    %v7162 = vpop.f32.mrb[0].mxu0
    %v7163 = vadd.f32 0.0, %v7162
    %7164 = vdwg.mxu0
    %v7169 = vrot.slane %v7090, 4
    %v7170 = vrot.slane %v7092, 4
    %v7171 = vrot.slane %v7161, 4
    %v7172 = vrot.slane %v7163, 4
    %v7177 = vadd.f32 %v5783, %v7169
    %v7178 = vadd.f32 %v5785, %v7170
    %v7179 = vadd.f32 %v5860, %v7171
    %v7180 = vadd.f32 %v5862, %v7172
    %v7181 = vxor.u32 %v7177, 2147483648
    %v7182 = vmul.f32 %v7181, 1.442695
    %v7183 = vpow.pop %v7182
    %v7184 = vadd.f32 %v7183, 1.0
    %v7185 = vrcp.pop %v7184
    %v7186 = vmul.f32 1.0, %v7185
    %v7187 = vxor.u32 %v7178, 2147483648
    %v7188 = vmul.f32 %v7187, 1.442695
    %v7189 = vpow.pop %v7188
    %v7190 = vadd.f32 %v7189, 1.0
    %v7191 = vrcp.pop %v7190
    %v7192 = vmul.f32 1.0, %v7191
    %v7193 = vtanh.pop %v7179
    %v7194 = vxor.u32 %v7180, 2147483648
    %v7195 = vmul.f32 %v7194, 1.442695
    %v7196 = vpow.pop %v7195
    %v7197 = vadd.f32 %v7196, 1.0
    %v7198 = vrcp.pop %v7197
    %v7199 = vmul.f32 1.0, %v7198
    %v7201 = vrot.slane %v7017, 6
    %v7203 = vmul.f32 %v7192, %v7201
    %v7204 = vmul.f32 %v7186, %v7193
    %v7205 = vadd.f32 %v7203, %v7204
    %v7206 = vtanh.pop %v7205
    %v7207 = vmul.f32 %v7199, %v7206
    %v7209 = vrot.slane %v7207, 4
    %7211 = vmatprep.subr.mxu0 %v5865
    %7212 = vmatpush1.msra.mxu0 %v5864
    %7213 = vmatprep.subr.mxu0 %v5869
    %7214 = vmatpush1.msra.mxu0 %v5868
    %7215 = vmatprep.subr.mxu0 %v5873
    %7216 = vmatpush1.msra.mxu0 %v5872
    %7217 = vmatprep.subr.mxu0 %v5877
    %7218 = vmatpush1.msra.mxu0 %v5876
    %7219 = vmatprep.subr.mxu0 %v5881
    %7220 = vmatpush1.msra.mxu0 %v5880
    %7221 = vmatprep.subr.mxu0 %v5885
    %7222 = vmatpush1.msra.mxu0 %v5884
    %7223 = vmatprep.subr.mxu0 %v5889
    %7224 = vmatpush1.msra.mxu0 %v5888
    %7225 = vmatprep.subr.mxu0 %v5893
    %7226 = vmatpush1.msra.mxu0 %v5892
    %7227 = vmatprep.subr.mxu0 %v5897
    %7228 = vmatpush1.msra.mxu0 %v5896
    %7229 = vmatprep.subr.mxu0 %v5901
    %7230 = vmatpush1.msra.mxu0 %v5900
    %7231 = vmatprep.subr.mxu0 %v5905
    %7232 = vmatpush1.msra.mxu0 %v5904
    %7233 = vmatprep.subr.mxu0 %v5909
    %7234 = vmatpush1.msra.mxu0 %v5908
    %7235 = vmatprep.subr.mxu0 %v5913
    %7236 = vmatpush1.msra.mxu0 %v5912
    %7237 = vmatprep.subr.mxu0 %v5917
    %7238 = vmatpush1.msra.mxu0 %v5916
    %7239 = vmatprep.subr.mxu0 %v5921
    %7240 = vmatpush1.msra.mxu0 %v5920
    %7241 = vmatprep.subr.mxu0 %v5925
    %7242 = vmatpush1.msra.mxu0 %v5924
    %7243 = vmatprep.subr.mxu0 0.0
    %7244 = vmatpush1.msra.mxu0 0.0
    %7245 = vmatprep.subr.mxu0 0.0
    %7246 = vmatpush1.msra.mxu0 0.0
    %7247 = vmatprep.subr.mxu0 0.0
    %7248 = vmatpush1.msra.mxu0 0.0
    %7249 = vmatprep.subr.mxu0 0.0
    %7250 = vmatpush1.msra.mxu0 0.0
    %7251 = vmatprep.subr.mxu0 0.0
    %7252 = vmatpush1.msra.mxu0 0.0
    %7253 = vmatprep.subr.mxu0 0.0
    %7254 = vmatpush1.msra.mxu0 0.0
    %7255 = vmatprep.subr.mxu0 0.0
    %7256 = vmatpush1.msra.mxu0 0.0
    %7257 = vmatprep.subr.mxu0 0.0
    %7258 = vmatpush1.msra.mxu0 0.0
    %7259 = vmatprep.subr.mxu0 0.0
    %7260 = vmatpush1.msra.mxu0 0.0
    %7261 = vmatprep.subr.mxu0 0.0
    %7262 = vmatpush1.msra.mxu0 0.0
    %7263 = vmatprep.subr.mxu0 0.0
    %7264 = vmatpush1.msra.mxu0 0.0
    %7265 = vmatprep.subr.mxu0 0.0
    %7266 = vmatpush1.msra.mxu0 0.0
    %7267 = vmatprep.subr.mxu0 0.0
    %7268 = vmatpush1.msra.mxu0 0.0
    %7269 = vmatprep.subr.mxu0 0.0
    %7270 = vmatpush1.msra.mxu0 0.0
    %7271 = vmatprep.subr.mxu0 0.0
    %7272 = vmatpush1.msra.mxu0 0.0
    %7273 = vmatprep.subr.mxu0 0.0
    %7274 = vmatpush1.msra.mxu0 0.0
    %7275 = vmatprep.mubr.f32.mxu0 0.0
    %7276 = vmatmul.mubr.f32.gmra.mrb[0].mxu0 %v7209
    %v7277 = vpop.f32.mrb[0].mxu0
    %v7278 = vadd.f32 0.0, %v7277
    %v7279 = vpop.f32.mrb[0].mxu0
    %v7280 = vadd.f32 0.0, %v7279
    %7281 = vdwg.mxu0
    %7282 = vmatprep.subr.mxu0 %v5867
    %7283 = vmatpush1.msra.mxu0 %v5866
    %7284 = vmatprep.subr.mxu0 %v5871
    %7285 = vmatpush1.msra.mxu0 %v5870
    %7286 = vmatprep.subr.mxu0 %v5875
    %7287 = vmatpush1.msra.mxu0 %v5874
    %7288 = vmatprep.subr.mxu0 %v5879
    %7289 = vmatpush1.msra.mxu0 %v5878
    %7290 = vmatprep.subr.mxu0 %v5883
    %7291 = vmatpush1.msra.mxu0 %v5882
    %7292 = vmatprep.subr.mxu0 %v5887
    %7293 = vmatpush1.msra.mxu0 %v5886
    %7294 = vmatprep.subr.mxu0 %v5891
    %7295 = vmatpush1.msra.mxu0 %v5890
    %7296 = vmatprep.subr.mxu0 %v5895
    %7297 = vmatpush1.msra.mxu0 %v5894
    %7298 = vmatprep.subr.mxu0 %v5899
    %7299 = vmatpush1.msra.mxu0 %v5898
    %7300 = vmatprep.subr.mxu0 %v5903
    %7301 = vmatpush1.msra.mxu0 %v5902
    %7302 = vmatprep.subr.mxu0 %v5907
    %7303 = vmatpush1.msra.mxu0 %v5906
    %7304 = vmatprep.subr.mxu0 %v5911
    %7305 = vmatpush1.msra.mxu0 %v5910
    %7306 = vmatprep.subr.mxu0 %v5915
    %7307 = vmatpush1.msra.mxu0 %v5914
    %7308 = vmatprep.subr.mxu0 %v5919
    %7309 = vmatpush1.msra.mxu0 %v5918
    %7310 = vmatprep.subr.mxu0 %v5923
    %7311 = vmatpush1.msra.mxu0 %v5922
    %7312 = vmatprep.subr.mxu0 %v5927
    %7313 = vmatpush1.msra.mxu0 %v5926
    %7314 = vmatprep.subr.mxu0 0.0
    %7315 = vmatpush1.msra.mxu0 0.0
    %7316 = vmatprep.subr.mxu0 0.0
    %7317 = vmatpush1.msra.mxu0 0.0
    %7318 = vmatprep.subr.mxu0 0.0
    %7319 = vmatpush1.msra.mxu0 0.0
    %7320 = vmatprep.subr.mxu0 0.0
    %7321 = vmatpush1.msra.mxu0 0.0
    %7322 = vmatprep.subr.mxu0 0.0
    %7323 = vmatpush1.msra.mxu0 0.0
    %7324 = vmatprep.subr.mxu0 0.0
    %7325 = vmatpush1.msra.mxu0 0.0
    %7326 = vmatprep.subr.mxu0 0.0
    %7327 = vmatpush1.msra.mxu0 0.0
    %7328 = vmatprep.subr.mxu0 0.0
    %7329 = vmatpush1.msra.mxu0 0.0
    %7330 = vmatprep.subr.mxu0 0.0
    %7331 = vmatpush1.msra.mxu0 0.0
    %7332 = vmatprep.subr.mxu0 0.0
    %7333 = vmatpush1.msra.mxu0 0.0
    %7334 = vmatprep.subr.mxu0 0.0
    %7335 = vmatpush1.msra.mxu0 0.0
    %7336 = vmatprep.subr.mxu0 0.0
    %7337 = vmatpush1.msra.mxu0 0.0
    %7338 = vmatprep.subr.mxu0 0.0
    %7339 = vmatpush1.msra.mxu0 0.0
    %7340 = vmatprep.subr.mxu0 0.0
    %7341 = vmatpush1.msra.mxu0 0.0
    %7342 = vmatprep.subr.mxu0 0.0
    %7343 = vmatpush1.msra.mxu0 0.0
    %7344 = vmatprep.subr.mxu0 0.0
    %7345 = vmatpush1.msra.mxu0 0.0
    %7346 = vmatprep.mubr.f32.mxu0 0.0
    %7347 = vmatmul.mubr.f32.gmra.mrb[0].mxu0 %v7209
    %v7348 = vpop.f32.mrb[0].mxu0
    %v7349 = vadd.f32 0.0, %v7348
    %v7350 = vpop.f32.mrb[0].mxu0
    %v7351 = vadd.f32 0.0, %v7350
    %7352 = vdwg.mxu0
    %v7357 = vrot.slane %v7278, 2
    %v7358 = vrot.slane %v7280, 2
    %v7359 = vrot.slane %v7349, 2
    %v7360 = vrot.slane %v7351, 2
    %v7365 = vadd.f32 %v5783, %v7357
    %v7366 = vadd.f32 %v5785, %v7358
    %v7367 = vadd.f32 %v5860, %v7359
    %v7368 = vadd.f32 %v5862, %v7360
    %v7369 = vxor.u32 %v7365, 2147483648
    %v7370 = vmul.f32 %v7369, 1.442695
    %v7371 = vpow.pop %v7370
    %v7372 = vadd.f32 %v7371, 1.0
    %v7373 = vrcp.pop %v7372
    %v7374 = vmul.f32 1.0, %v7373
    %v7375 = vxor.u32 %v7366, 2147483648
    %v7376 = vmul.f32 %v7375, 1.442695
    %v7377 = vpow.pop %v7376
    %v7378 = vadd.f32 %v7377, 1.0
    %v7379 = vrcp.pop %v7378
    %v7380 = vmul.f32 1.0, %v7379
    %v7381 = vtanh.pop %v7367
    %v7382 = vxor.u32 %v7368, 2147483648
    %v7383 = vmul.f32 %v7382, 1.442695
    %v7384 = vpow.pop %v7383
    %v7385 = vadd.f32 %v7384, 1.0
    %v7386 = vrcp.pop %v7385
    %v7387 = vmul.f32 1.0, %v7386
    %v7389 = vrot.slane %v7205, 6
    %v7391 = vmul.f32 %v7380, %v7389
    %v7392 = vmul.f32 %v7374, %v7381
    %v7393 = vadd.f32 %v7391, %v7392
    %v7394 = vtanh.pop %v7393
    %v7395 = vmul.f32 %v7387, %v7394
    %v7396 = vld [vmem:[%s10] sm:$0xff]
    %v7397 = vld [vmem:[%s10 + $0x8] sm:$0xff]
    %v7398 = vld [vmem:[%s10 + $0x10] sm:$0xff]
    %v7399 = vld [vmem:[%s10 + $0x18] sm:$0xff]
    %v7400 = vld [vmem:[%s10 + $0x20] sm:$0xff]
    %v7401 = vld [vmem:[%s10 + $0x28] sm:$0xff]
    %v7402 = vld [vmem:[%s10 + $0x30] sm:$0xff]
    %v7403 = vld [vmem:[%s10 + $0x38] sm:$0xff]
    %v7404 = vld [vmem:[%s10 + $0x40] sm:$0xff]
    %v7405 = vld [vmem:[%s10 + $0x48] sm:$0xff]
    %v7406 = vld [vmem:[%s10 + $0x50] sm:$0xff]
    %v7407 = vld [vmem:[%s10 + $0x58] sm:$0xff]
    %v7408 = vld [vmem:[%s10 + $0x60] sm:$0xff]
    %v7409 = vld [vmem:[%s10 + $0x68] sm:$0xff]
    %v7410 = vld [vmem:[%s10 + $0x70] sm:$0xff]
    %v7411 = vld [vmem:[%s10 + $0x78] sm:$0xff]
    %v7412 = vld [vmem:[%s11] sm:$0x1]
    %v7414 = vlaneseq
    %v7415 = vshrl.u32 %v7414, 7
    %v7416 = vsub.s32 0, %v7415
    %v7417 = vrot.slane %v7412, %v7416
    %v7420 = vrot.slane %v7395, 6
    %7422 = vmatprep.subr.mxu0 0.0
    %7423 = vmatpush1.msra.mxu0 %v7396
    %7424 = vmatprep.subr.mxu0 0.0
    %7425 = vmatpush1.msra.mxu0 %v7397
    %7426 = vmatprep.subr.mxu0 0.0
    %7427 = vmatpush1.msra.mxu0 %v7398
    %7428 = vmatprep.subr.mxu0 0.0
    %7429 = vmatpush1.msra.mxu0 %v7399
    %7430 = vmatprep.subr.mxu0 0.0
    %7431 = vmatpush1.msra.mxu0 %v7400
    %7432 = vmatprep.subr.mxu0 0.0
    %7433 = vmatpush1.msra.mxu0 %v7401
    %7434 = vmatprep.subr.mxu0 0.0
    %7435 = vmatpush1.msra.mxu0 %v7402
    %7436 = vmatprep.subr.mxu0 0.0
    %7437 = vmatpush1.msra.mxu0 %v7403
    %7438 = vmatprep.subr.mxu0 0.0
    %7439 = vmatpush1.msra.mxu0 %v7404
    %7440 = vmatprep.subr.mxu0 0.0
    %7441 = vmatpush1.msra.mxu0 %v7405
    %7442 = vmatprep.subr.mxu0 0.0
    %7443 = vmatpush1.msra.mxu0 %v7406
    %7444 = vmatprep.subr.mxu0 0.0
    %7445 = vmatpush1.msra.mxu0 %v7407
    %7446 = vmatprep.subr.mxu0 0.0
    %7447 = vmatpush1.msra.mxu0 %v7408
    %7448 = vmatprep.subr.mxu0 0.0
    %7449 = vmatpush1.msra.mxu0 %v7409
    %7450 = vmatprep.subr.mxu0 0.0
    %7451 = vmatpush1.msra.mxu0 %v7410
    %7452 = vmatprep.subr.mxu0 0.0
    %7453 = vmatpush1.msra.mxu0 %v7411
    %7454 = vmatprep.subr.mxu0 0.0
    %7455 = vmatpush1.msra.mxu0 0.0
    %7456 = vmatprep.subr.mxu0 0.0
    %7457 = vmatpush1.msra.mxu0 0.0
    %7458 = vmatprep.subr.mxu0 0.0
    %7459 = vmatpush1.msra.mxu0 0.0
    %7460 = vmatprep.subr.mxu0 0.0
    %7461 = vmatpush1.msra.mxu0 0.0
    %7462 = vmatprep.subr.mxu0 0.0
    %7463 = vmatpush1.msra.mxu0 0.0
    %7464 = vmatprep.subr.mxu0 0.0
    %7465 = vmatpush1.msra.mxu0 0.0
    %7466 = vmatprep.subr.mxu0 0.0
    %7467 = vmatpush1.msra.mxu0 0.0
    %7468 = vmatprep.subr.mxu0 0.0
    %7469 = vmatpush1.msra.mxu0 0.0
    %7470 = vmatprep.subr.mxu0 0.0
    %7471 = vmatpush1.msra.mxu0 0.0
    %7472 = vmatprep.subr.mxu0 0.0
    %7473 = vmatpush1.msra.mxu0 0.0
    %7474 = vmatprep.subr.mxu0 0.0
    %7475 = vmatpush1.msra.mxu0 0.0
    %7476 = vmatprep.subr.mxu0 0.0
    %7477 = vmatpush1.msra.mxu0 0.0
    %7478 = vmatprep.subr.mxu0 0.0
    %7479 = vmatpush1.msra.mxu0 0.0
    %7480 = vmatprep.subr.mxu0 0.0
    %7481 = vmatpush1.msra.mxu0 0.0
    %7482 = vmatprep.subr.mxu0 0.0
    %7483 = vmatpush1.msra.mxu0 0.0
    %7484 = vmatprep.subr.mxu0 0.0
    %7485 = vmatpush1.msra.mxu0 0.0
    %7486 = vmatprep.mubr.f32.mxu0 0.0
    %7487 = vmatmul.mubr.f32.gmra.mrb[0].mxu0 %v7420
    %v7488 = vpop.f32.mrb[0].mxu0
    %v7489 = vadd.f32 %v7417, %v7488
    %v7490 = vpop.f32.mrb[0].mxu0
    %7491 = vdwg.mxu0
    %vm7492 = vcmask 9216
    %7493 = vst.msk [vmem:[#allocation13] sm:$0x3] %vm7492, %v7489
    // Predicated region
    $region70: #{skel_lstm_forward.1} parent=1 // pred_check
      _
    $region71: #{skel_lstm_forward.1} parent=1 // pred_check_branch
      %7495 = sbr.rel (0) target = $region73
    $region72: #{skel_lstm_forward.1} parent=1 // pred_region
      %s7497 = ssub.s32 32, 32
      %7498 = vsyncadd [#allocation6], %s7497
      %s7500 = sshll.u32 [#allocation13], 4
      %s7501 = int_to_ptr.vmem [resolvable:$true] %s7500
      %7503 = dma.vmem_to_hbm [thread:$0]  %s7501, 32, %s12, [#allocation6]
    $region73: #{skel_lstm_forward.1} parent=1 // pred_fallthru
      _
    // Predicated region
    $region74: #{skel_lstm_forward.1} parent=1 // pred_check
      _
    $region75: #{skel_lstm_forward.1} parent=1 // pred_check_branch
      %7505 = sbr.rel (0) target = $region77
    $region76: #{skel_lstm_forward.1} parent=1 // pred_region
      %7506 = dma.done [#allocation6], 32
    $region77: #{skel_lstm_forward.1} parent=1 // pred_fallthru
      _
    %7507 = vsyncpa [#allocation5], 1
    %7508 = vsyncpa [#allocation8], 1
    %7509 = vsyncpa [#allocation11], 1
    %7510 = vsyncpa [#allocation6], 1

</llo_original>
